<compile_context>
chip_gen: v6e
topology: v6e:2x2x1
jax: 0.10.0
libtpu: 0.0.40
codegen_flags: <defaults>
</compile_context>

<pallas_src>
import jax
import jax.numpy as jnp
from jax.experimental import pallas as pl
from jax.experimental.pallas import tpu as pltpu

LN_EPS = 1e-5  # PyTorch nn.LayerNorm default


def _layernorm(x, gamma, beta):
    mu = jnp.mean(x, axis=-1, keepdims=True)
    var = jnp.mean(jnp.square(x - mu), axis=-1, keepdims=True)
    return (x - mu) * jax.lax.rsqrt(var + LN_EPS) * gamma + beta


def _gelu_tanh(x):
    # TODO(synk): PyTorch nn.GELU default is the exact erf form; tanh approximation
    # is used here (EUP-friendly) and mirrored in the reference.
    c = 0.7978845608028654  # sqrt(2/pi)
    return 0.5 * x * (1.0 + jnp.tanh(c * (x + 0.044715 * x * x * x)))


def block_kernel(x_ref, par_ref, fc1b_ref,
                 wq_ref, wk_ref, wv_ref, wp_ref, w1_ref, w2_ref,
                 o_ref):
    f32 = jnp.float32
    bf16 = jnp.bfloat16

    x = x_ref[0]                                   # (N, C) f32, current batch

    # Packed per-channel params, one row each.
    n1_g = par_ref[0:1, :]; n1_b = par_ref[1:2, :]
    n2_g = par_ref[2:3, :]; n2_b = par_ref[3:4, :]
    ls1  = par_ref[4:5, :]; ls2  = par_ref[5:6, :]
    pr_b = par_ref[6:7, :]; f2_b = par_ref[7:8, :]

    H = wq_ref.shape[0]
    N, C = x.shape

    # --- attention branch: ls1 * proj(softmax(q k^T) v) --------------------
    xn1 = _layernorm(x, n1_g, n1_b)                          # f32 elementwise
    xh = jnp.broadcast_to(xn1.astype(bf16)[None], (H, N, C))  # head-major view

    # head-major projections; scale already folded into Wq on the host
    q = jnp.einsum('hnc,hcd->hnd', xh, wq_ref[...], preferred_element_type=f32)
    k = jnp.einsum('hnc,hcd->hnd', xh, wk_ref[...], preferred_element_type=f32)
    v = jnp.einsum('hnc,hcd->hnd', xh, wv_ref[...], preferred_element_type=f32)

    logits = jnp.einsum('hqd,hkd->hqk', q.astype(bf16), k.astype(bf16),
                        preferred_element_type=f32)          # (H, N, N)
    m = jnp.max(logits, axis=-1, keepdims=True)
    p = jnp.exp(logits - m)
    attn = p * pl.reciprocal(jnp.sum(p, axis=-1, keepdims=True), approx=True)

    ctx = jnp.einsum('hqk,hkd->hqd', attn.astype(bf16), v.astype(bf16),
                     preferred_element_type=f32)             # (H, N, d)

    # head merge folded into the output projection: sum_h ctx[h] @ Wp[h]
    proj_h = jnp.einsum('hqd,hdo->hqo', ctx.astype(bf16), wp_ref[...],
                        preferred_element_type=f32)          # (H, N, C)
    attn_out = jnp.sum(proj_h, axis=0) + pr_b                # (N, C)

    x1 = x + ls1 * attn_out

    # --- MLP branch: ls2 * fc2(gelu(fc1(LN2(x)))) ---------------------------
    xn2 = _layernorm(x1, n2_g, n2_b)
    h = jnp.dot(xn2.astype(bf16), w1_ref[...],
                preferred_element_type=f32) + fc1b_ref[...]
    h = _gelu_tanh(h)                                        # f32 elementwise
    y = jnp.dot(h.astype(bf16), w2_ref[...],
                preferred_element_type=f32) + f2_b

    o_ref[0] = (x1 + ls2 * y).astype(o_ref.dtype)


def block_forward(x, params, *, num_heads):
    """params hold PyTorch-convention weights; this wrapper re-lays them out."""
    B, N, C = x.shape
    head_dim = C // num_heads
    scale = head_dim ** -0.5
    hidden = params["fc1_w"].shape[0]
    bf16 = jnp.bfloat16

    # qkv weight (3C, C): rows [0,C) = Q, [C,2C) = K, [2C,3C) = V; output
    # channel o = h*head_dim + j.  Re-layout to head-major (H, C_in, d), bf16,
    # with the attention scale folded into Wq.
    def head_major(w_rows, s=1.0):
        return (w_rows.reshape(num_heads, head_dim, C).transpose(0, 2, 1) * s
                ).astype(bf16)

    wq = head_major(params["qkv_w"][0 * C:1 * C], scale)      # (H, C, d)
    wk = head_major(params["qkv_w"][1 * C:2 * C])
    wv = head_major(params["qkv_w"][2 * C:3 * C])
    wp = params["proj_w"].T.reshape(num_heads, head_dim, C).astype(bf16)  # (H, d, C)
    w1 = params["fc1_w"].T.astype(bf16)                       # (C, hidden)
    w2 = params["fc2_w"].T.astype(bf16)                       # (hidden, C)

    packed = jnp.stack([
        params["n1_g"], params["n1_b"], params["n2_g"], params["n2_b"],
        params["ls1"], params["ls2"], params["proj_b"], params["fc2_b"],
    ], axis=0).astype(jnp.float32)                            # (8, C)
    fc1_b = params["fc1_b"].reshape(1, hidden).astype(jnp.float32)

    def full(shape):
        return pl.BlockSpec(shape, lambda b, _s=len(shape): (0,) * _s)

    return pl.pallas_call(
        block_kernel,
        out_shape=jax.ShapeDtypeStruct((B, N, C), x.dtype),
        grid_spec=pltpu.PrefetchScalarGridSpec(
            num_scalar_prefetch=0,
            grid=(B,),
            in_specs=[
                pl.BlockSpec((1, N, C), lambda b: (b, 0, 0)),  # x
                full((8, C)),                                  # packed LN/ls/bias params
                full((1, hidden)),                             # fc1 bias
                full((num_heads, C, head_dim)),                # Wq (pre-scaled)
                full((num_heads, C, head_dim)),                # Wk
                full((num_heads, C, head_dim)),                # Wv
                full((num_heads, head_dim, C)),                # Wproj (head-split)
                full((C, hidden)),                             # fc1
                full((hidden, C)),                             # fc2
            ],
            out_specs=pl.BlockSpec((1, N, C), lambda b: (b, 0, 0)),
        ),
        compiler_params=pltpu.CompilerParams(
            dimension_semantics=("parallel",),
            vmem_limit_bytes=32 * 1024 * 1024,
        ),
    )(x, packed, fc1_b, wq, wk, wv, wp, w1, w2)


def reference_block(x, params, *, num_heads):
    """Pure-JAX f32 reference mirroring the PyTorch Block forward."""
    B, N, C = x.shape
    d = C // num_heads
    scale = d ** -0.5

    def ln(t, g, b):
        mu = t.mean(-1, keepdims=True)
        var = ((t - mu) ** 2).mean(-1, keepdims=True)
        return (t - mu) / jnp.sqrt(var + LN_EPS) * g + b

    xn1 = ln(x, params["n1_g"], params["n1_b"])
    qkv = xn1 @ params["qkv_w"].T                              # (B, N, 3C)
    qkv = qkv.reshape(B, N, 3, num_heads, d).transpose(2, 0, 3, 1, 4)
    q, k, v = qkv[0], qkv[1], qkv[2]                           # (B, H, N, d)
    attn = jax.nn.softmax((q * scale) @ jnp.swapaxes(k, -2, -1), axis=-1)
    ctx = (attn @ v).transpose(0, 2, 1, 3).reshape(B, N, C)
    attn_out = ctx @ params["proj_w"].T + params["proj_b"]
    x1 = x + params["ls1"] * attn_out

    xn2 = ln(x1, params["n2_g"], params["n2_b"])
    h = _gelu_tanh(xn2 @ params["fc1_w"].T + params["fc1_b"])
    y = h @ params["fc2_w"].T + params["fc2_b"]
    return x1 + params["ls2"] * y


if __name__ == "__main__":
    # Small but lane-dense shapes: B=2, seq N=128, dim C=128, heads=8 (d=16),
    # MLP hidden = 4*C = 512.
    B, N, C, H = 2, 128, 128, 8
    hidden = 4 * C

    key = jax.random.PRNGKey(0)
    ks = iter(jax.random.split(key, 16))
    s = 0.05

    x = jax.random.normal(next(ks), (B, N, C), jnp.float32)
    params = {
        "n1_g": 1.0 + s * jax.random.normal(next(ks), (C,), jnp.float32),
        "n1_b": s * jax.random.normal(next(ks), (C,), jnp.float32),
        "n2_g": 1.0 + s * jax.random.normal(next(ks), (C,), jnp.float32),
        "n2_b": s * jax.random.normal(next(ks), (C,), jnp.float32),
        # LayerScale parameters (ls1/ls2 in the module).
        "ls1": 0.5 + s * jax.random.normal(next(ks), (C,), jnp.float32),
        "ls2": 0.5 + s * jax.random.normal(next(ks), (C,), jnp.float32),
        # PyTorch (out, in) convention; qkv has no bias (qkv_bias=False default).
        "qkv_w": jax.random.normal(next(ks), (3 * C, C), jnp.float32) * (C ** -0.5),
        "proj_w": jax.random.normal(next(ks), (C, C), jnp.float32) * (C ** -0.5),
        "proj_b": jax.random.normal(next(ks), (C,), jnp.float32) * 0.02,
        "fc1_w": jax.random.normal(next(ks), (hidden, C), jnp.float32) * (C ** -0.5),
        "fc1_b": jax.random.normal(next(ks), (hidden,), jnp.float32) * 0.02,
        "fc2_w": jax.random.normal(next(ks), (C, hidden), jnp.float32) * (hidden ** -0.5),
        "fc2_b": jax.random.normal(next(ks), (C,), jnp.float32) * 0.02,
    }

    out = jax.block_until_ready(block_forward(x, params, num_heads=H))
    ref = reference_block(x, params, num_heads=H)

    assert out.shape == (B, N, C)
    err = jnp.max(jnp.abs(out - ref))
    # bf16 MXU operands (f32 accumulation) -> relaxed tolerance vs f32 reference.
    assert jnp.allclose(out, ref, atol=3e-2, rtol=3e-2), f"max abs err {err}"

    print("KERNEL_OK")
</pallas_src>

<mosaic_0001>
module attributes {stable_mosaic.version = 11 : i64} {
  func.func @block_kernel(%arg0: i32, %arg1: memref<1x128x128xf32, #tpu.memory_space<vmem>>, %arg2: memref<8x128xf32, #tpu.memory_space<vmem>>, %arg3: memref<1x512xf32, #tpu.memory_space<vmem>>, %arg4: memref<8x128x16xbf16, #tpu.memory_space<vmem>>, %arg5: memref<8x128x16xbf16, #tpu.memory_space<vmem>>, %arg6: memref<8x128x16xbf16, #tpu.memory_space<vmem>>, %arg7: memref<8x16x128xbf16, #tpu.memory_space<vmem>>, %arg8: memref<128x512xbf16, #tpu.memory_space<vmem>>, %arg9: memref<512x128xbf16, #tpu.memory_space<vmem>>, %arg10: memref<1x128x128xf32, #tpu.memory_space<vmem>>) attributes {dimension_semantics = [#tpu.dimension_semantics<parallel>], iteration_bounds = array<i64: 2>, scalar_prefetch = 0 : i64, scratch_operands = 0 : i64, tpu.core_type = #tpu.core_type<tc>, window_params = [{transform_indices = @transform_0, window_bounds = array<i64: 1, 128, 128>}, {pipeline_mode = #tpu.pipeline_mode<synchronous>, transform_indices = @transform_1, window_bounds = array<i64: 8, 128>}, {pipeline_mode = #tpu.pipeline_mode<synchronous>, transform_indices = @transform_2, window_bounds = array<i64: 1, 512>}, {pipeline_mode = #tpu.pipeline_mode<synchronous>, transform_indices = @transform_3, window_bounds = array<i64: 8, 128, 16>}, {pipeline_mode = #tpu.pipeline_mode<synchronous>, transform_indices = @transform_4, window_bounds = array<i64: 8, 128, 16>}, {pipeline_mode = #tpu.pipeline_mode<synchronous>, transform_indices = @transform_5, window_bounds = array<i64: 8, 128, 16>}, {pipeline_mode = #tpu.pipeline_mode<synchronous>, transform_indices = @transform_6, window_bounds = array<i64: 8, 16, 128>}, {pipeline_mode = #tpu.pipeline_mode<synchronous>, transform_indices = @transform_7, window_bounds = array<i64: 128, 512>}, {pipeline_mode = #tpu.pipeline_mode<synchronous>, transform_indices = @transform_8, window_bounds = array<i64: 512, 128>}, {transform_indices = @transform_9, window_bounds = array<i64: 1, 128, 128>}]} {
    %c0 = arith.constant 0 : index
    %c0_0 = arith.constant 0 : index
    %c0_1 = arith.constant 0 : index
    %0 = vector.load %arg1[%c0, %c0_0, %c0_1] : memref<1x128x128xf32, #tpu.memory_space<vmem>>, vector<1x128x128xf32>
    %1 = vector.shape_cast %0 : vector<1x128x128xf32> to vector<128x128xf32>
    %c0_2 = arith.constant 0 : index
    %c0_3 = arith.constant 0 : index
    %2 = vector.load %arg2[%c0_2, %c0_3] : memref<8x128xf32, #tpu.memory_space<vmem>>, vector<1x128xf32>
    %c1 = arith.constant 1 : index
    %c0_4 = arith.constant 0 : index
    %3 = vector.load %arg2[%c1, %c0_4] : memref<8x128xf32, #tpu.memory_space<vmem>>, vector<1x128xf32>
    %c2 = arith.constant 2 : index
    %c0_5 = arith.constant 0 : index
    %4 = vector.load %arg2[%c2, %c0_5] : memref<8x128xf32, #tpu.memory_space<vmem>>, vector<1x128xf32>
    %c3 = arith.constant 3 : index
    %c0_6 = arith.constant 0 : index
    %5 = vector.load %arg2[%c3, %c0_6] : memref<8x128xf32, #tpu.memory_space<vmem>>, vector<1x128xf32>
    %c4 = arith.constant 4 : index
    %c0_7 = arith.constant 0 : index
    %6 = vector.load %arg2[%c4, %c0_7] : memref<8x128xf32, #tpu.memory_space<vmem>>, vector<1x128xf32>
    %c5 = arith.constant 5 : index
    %c0_8 = arith.constant 0 : index
    %7 = vector.load %arg2[%c5, %c0_8] : memref<8x128xf32, #tpu.memory_space<vmem>>, vector<1x128xf32>
    %c6 = arith.constant 6 : index
    %c0_9 = arith.constant 0 : index
    %8 = vector.load %arg2[%c6, %c0_9] : memref<8x128xf32, #tpu.memory_space<vmem>>, vector<1x128xf32>
    %c7 = arith.constant 7 : index
    %c0_10 = arith.constant 0 : index
    %9 = vector.load %arg2[%c7, %c0_10] : memref<8x128xf32, #tpu.memory_space<vmem>>, vector<1x128xf32>
    %cst = arith.constant dense<0.000000e+00> : vector<128xf32>
    %10 = vector.multi_reduction <add>, %1, %cst [1] : vector<128x128xf32> to vector<128xf32>
    %11 = vector.shape_cast %10 : vector<128xf32> to vector<128x1xf32>
    %cst_11 = arith.constant 1.280000e+02 : f32
    %12 = vector.broadcast %cst_11 : f32 to vector<128x1xf32>
    %13 = arith.divf %11, %12 : vector<128x1xf32>
    %14 = vector.broadcast %13 : vector<128x1xf32> to vector<128x128xf32>
    %15 = arith.subf %1, %14 : vector<128x128xf32>
    %16 = arith.mulf %15, %15 : vector<128x128xf32>
    %cst_12 = arith.constant dense<0.000000e+00> : vector<128xf32>
    %17 = vector.multi_reduction <add>, %16, %cst_12 [1] : vector<128x128xf32> to vector<128xf32>
    %18 = vector.shape_cast %17 : vector<128xf32> to vector<128x1xf32>
    %cst_13 = arith.constant 1.280000e+02 : f32
    %19 = vector.broadcast %cst_13 : f32 to vector<128x1xf32>
    %20 = arith.divf %18, %19 : vector<128x1xf32>
    %21 = vector.broadcast %13 : vector<128x1xf32> to vector<128x128xf32>
    %22 = arith.subf %1, %21 : vector<128x128xf32>
    %cst_14 = arith.constant 9.99999974E-6 : f32
    %23 = vector.broadcast %cst_14 : f32 to vector<128x1xf32>
    %24 = arith.addf %20, %23 : vector<128x1xf32>
    %25 = math.rsqrt %24 : vector<128x1xf32>
    %26 = vector.broadcast %25 : vector<128x1xf32> to vector<128x128xf32>
    %27 = arith.mulf %22, %26 : vector<128x128xf32>
    %28 = vector.broadcast %2 : vector<1x128xf32> to vector<128x128xf32>
    %29 = arith.mulf %27, %28 : vector<128x128xf32>
    %30 = vector.broadcast %3 : vector<1x128xf32> to vector<128x128xf32>
    %31 = arith.addf %29, %30 : vector<128x128xf32>
    %32 = arith.truncf %31 : vector<128x128xf32> to vector<128x128xbf16>
    %33 = vector.shape_cast %32 : vector<128x128xbf16> to vector<1x128x128xbf16>
    %34 = vector.shape_cast %33 : vector<1x128x128xbf16> to vector<1x128x128xbf16>
    %35 = vector.broadcast %34 : vector<1x128x128xbf16> to vector<8x128x128xbf16>
    %c0_15 = arith.constant 0 : index
    %c0_16 = arith.constant 0 : index
    %c0_17 = arith.constant 0 : index
    %36 = vector.load %arg4[%c0_15, %c0_16, %c0_17] : memref<8x128x16xbf16, #tpu.memory_space<vmem>>, vector<8x128x16xbf16>
    "tpu.trace_start"() <{level = 10 : i32, message = "hnc,hcd->hnd"}> : () -> ()
    %cst_18 = arith.constant dense<0.000000e+00> : vector<8x128x16xf32>
    %37 = tpu.matmul %35, %36, %cst_18 {dimension_numbers = #tpu.dot_dimension_numbers<[2], [1], [1], [2], [0, 0, 0, 1, 1, 2], [0], [0]>} : vector<8x128x128xbf16>, vector<8x128x16xbf16>, vector<8x128x16xf32> -> vector<8x128x16xf32>
    "tpu.trace_stop"() : () -> ()
    %c0_19 = arith.constant 0 : index
    %c0_20 = arith.constant 0 : index
    %c0_21 = arith.constant 0 : index
    %38 = vector.load %arg5[%c0_19, %c0_20, %c0_21] : memref<8x128x16xbf16, #tpu.memory_space<vmem>>, vector<8x128x16xbf16>
    "tpu.trace_start"() <{level = 10 : i32, message = "hnc,hcd->hnd"}> : () -> ()
    %cst_22 = arith.constant dense<0.000000e+00> : vector<8x128x16xf32>
    %39 = tpu.matmul %35, %38, %cst_22 {dimension_numbers = #tpu.dot_dimension_numbers<[2], [1], [1], [2], [0, 0, 0, 1, 1, 2], [0], [0]>} : vector<8x128x128xbf16>, vector<8x128x16xbf16>, vector<8x128x16xf32> -> vector<8x128x16xf32>
    "tpu.trace_stop"() : () -> ()
    %c0_23 = arith.constant 0 : index
    %c0_24 = arith.constant 0 : index
    %c0_25 = arith.constant 0 : index
    %40 = vector.load %arg6[%c0_23, %c0_24, %c0_25] : memref<8x128x16xbf16, #tpu.memory_space<vmem>>, vector<8x128x16xbf16>
    "tpu.trace_start"() <{level = 10 : i32, message = "hnc,hcd->hnd"}> : () -> ()
    %cst_26 = arith.constant dense<0.000000e+00> : vector<8x128x16xf32>
    %41 = tpu.matmul %35, %40, %cst_26 {dimension_numbers = #tpu.dot_dimension_numbers<[2], [1], [1], [2], [0, 0, 0, 1, 1, 2], [0], [0]>} : vector<8x128x128xbf16>, vector<8x128x16xbf16>, vector<8x128x16xf32> -> vector<8x128x16xf32>
    "tpu.trace_stop"() : () -> ()
    %42 = arith.truncf %37 : vector<8x128x16xf32> to vector<8x128x16xbf16>
    %43 = arith.truncf %39 : vector<8x128x16xf32> to vector<8x128x16xbf16>
    "tpu.trace_start"() <{level = 10 : i32, message = "hqd,hkd->hqk"}> : () -> ()
    %cst_27 = arith.constant dense<0.000000e+00> : vector<8x128x128xf32>
    %44 = tpu.matmul %42, %43, %cst_27 {dimension_numbers = #tpu.dot_dimension_numbers<[2], [2], [1], [1], [0, 0, 0, 1, 1, 1], [0], [0]>} : vector<8x128x16xbf16>, vector<8x128x16xbf16>, vector<8x128x128xf32> -> vector<8x128x128xf32>
    "tpu.trace_stop"() : () -> ()
    %cst_28 = arith.constant dense<0xFF800000> : vector<8x128xf32>
    %45 = vector.multi_reduction <maximumf>, %44, %cst_28 [2] : vector<8x128x128xf32> to vector<8x128xf32>
    %46 = vector.shape_cast %45 : vector<8x128xf32> to vector<8x128x1xf32>
    %47 = vector.broadcast %46 : vector<8x128x1xf32> to vector<8x128x128xf32>
    %48 = arith.subf %44, %47 : vector<8x128x128xf32>
    %49 = math.exp %48 : vector<8x128x128xf32>
    %cst_29 = arith.constant dense<0.000000e+00> : vector<8x128xf32>
    %50 = vector.multi_reduction <add>, %49, %cst_29 [2] : vector<8x128x128xf32> to vector<8x128xf32>
    %51 = vector.shape_cast %50 : vector<8x128xf32> to vector<8x128x1xf32>
    %52 = tpu.reciprocal %51 {approx = true} : vector<8x128x1xf32> -> vector<8x128x1xf32>
    %53 = vector.broadcast %52 : vector<8x128x1xf32> to vector<8x128x128xf32>
    %54 = arith.mulf %49, %53 : vector<8x128x128xf32>
    %55 = arith.truncf %54 : vector<8x128x128xf32> to vector<8x128x128xbf16>
    %56 = arith.truncf %41 : vector<8x128x16xf32> to vector<8x128x16xbf16>
    "tpu.trace_start"() <{level = 10 : i32, message = "hqk,hkd->hqd"}> : () -> ()
    %cst_30 = arith.constant dense<0.000000e+00> : vector<8x128x16xf32>
    %57 = tpu.matmul %55, %56, %cst_30 {dimension_numbers = #tpu.dot_dimension_numbers<[2], [1], [1], [2], [0, 0, 0, 1, 1, 2], [0], [0]>} : vector<8x128x128xbf16>, vector<8x128x16xbf16>, vector<8x128x16xf32> -> vector<8x128x16xf32>
    "tpu.trace_stop"() : () -> ()
    %58 = arith.truncf %57 : vector<8x128x16xf32> to vector<8x128x16xbf16>
    %c0_31 = arith.constant 0 : index
    %c0_32 = arith.constant 0 : index
    %c0_33 = arith.constant 0 : index
    %59 = vector.load %arg7[%c0_31, %c0_32, %c0_33] : memref<8x16x128xbf16, #tpu.memory_space<vmem>>, vector<8x16x128xbf16>
    "tpu.trace_start"() <{level = 10 : i32, message = "hqd,hdo->hqo"}> : () -> ()
    %cst_34 = arith.constant dense<0.000000e+00> : vector<8x128x128xf32>
    %60 = tpu.matmul %58, %59, %cst_34 {dimension_numbers = #tpu.dot_dimension_numbers<[2], [1], [1], [2], [0, 0, 0, 1, 1, 2], [0], [0]>} : vector<8x128x16xbf16>, vector<8x16x128xbf16>, vector<8x128x128xf32> -> vector<8x128x128xf32>
    "tpu.trace_stop"() : () -> ()
    %cst_35 = arith.constant dense<0.000000e+00> : vector<128x128xf32>
    %61 = vector.multi_reduction <add>, %60, %cst_35 [0] : vector<8x128x128xf32> to vector<128x128xf32>
    %62 = vector.broadcast %8 : vector<1x128xf32> to vector<128x128xf32>
    %63 = arith.addf %61, %62 : vector<128x128xf32>
    %64 = vector.broadcast %6 : vector<1x128xf32> to vector<128x128xf32>
    %65 = arith.mulf %64, %63 : vector<128x128xf32>
    %66 = arith.addf %1, %65 : vector<128x128xf32>
    %cst_36 = arith.constant dense<0.000000e+00> : vector<128xf32>
    %67 = vector.multi_reduction <add>, %66, %cst_36 [1] : vector<128x128xf32> to vector<128xf32>
    %68 = vector.shape_cast %67 : vector<128xf32> to vector<128x1xf32>
    %cst_37 = arith.constant 1.280000e+02 : f32
    %69 = vector.broadcast %cst_37 : f32 to vector<128x1xf32>
    %70 = arith.divf %68, %69 : vector<128x1xf32>
    %71 = vector.broadcast %70 : vector<128x1xf32> to vector<128x128xf32>
    %72 = arith.subf %66, %71 : vector<128x128xf32>
    %73 = arith.mulf %72, %72 : vector<128x128xf32>
    %cst_38 = arith.constant dense<0.000000e+00> : vector<128xf32>
    %74 = vector.multi_reduction <add>, %73, %cst_38 [1] : vector<128x128xf32> to vector<128xf32>
    %75 = vector.shape_cast %74 : vector<128xf32> to vector<128x1xf32>
    %cst_39 = arith.constant 1.280000e+02 : f32
    %76 = vector.broadcast %cst_39 : f32 to vector<128x1xf32>
    %77 = arith.divf %75, %76 : vector<128x1xf32>
    %78 = vector.broadcast %70 : vector<128x1xf32> to vector<128x128xf32>
    %79 = arith.subf %66, %78 : vector<128x128xf32>
    %cst_40 = arith.constant 9.99999974E-6 : f32
    %80 = vector.broadcast %cst_40 : f32 to vector<128x1xf32>
    %81 = arith.addf %77, %80 : vector<128x1xf32>
    %82 = math.rsqrt %81 : vector<128x1xf32>
    %83 = vector.broadcast %82 : vector<128x1xf32> to vector<128x128xf32>
    %84 = arith.mulf %79, %83 : vector<128x128xf32>
    %85 = vector.broadcast %4 : vector<1x128xf32> to vector<128x128xf32>
    %86 = arith.mulf %84, %85 : vector<128x128xf32>
    %87 = vector.broadcast %5 : vector<1x128xf32> to vector<128x128xf32>
    %88 = arith.addf %86, %87 : vector<128x128xf32>
    %89 = arith.truncf %88 : vector<128x128xf32> to vector<128x128xbf16>
    %c0_41 = arith.constant 0 : index
    %c0_42 = arith.constant 0 : index
    %90 = vector.load %arg8[%c0_41, %c0_42] : memref<128x512xbf16, #tpu.memory_space<vmem>>, vector<128x512xbf16>
    %cst_43 = arith.constant dense<0.000000e+00> : vector<128x512xf32>
    %91 = tpu.matmul %89, %90, %cst_43 {dimension_numbers = #tpu.dot_dimension_numbers<[1], [0], [0], [1], [0, 0, 1, 1], [], []>} : vector<128x128xbf16>, vector<128x512xbf16>, vector<128x512xf32> -> vector<128x512xf32>
    %c0_44 = arith.constant 0 : index
    %c0_45 = arith.constant 0 : index
    %92 = vector.load %arg3[%c0_44, %c0_45] : memref<1x512xf32, #tpu.memory_space<vmem>>, vector<1x512xf32>
    %93 = vector.broadcast %92 : vector<1x512xf32> to vector<128x512xf32>
    %94 = arith.addf %91, %93 : vector<128x512xf32>
    %cst_46 = arith.constant 5.000000e-01 : f32
    %95 = vector.broadcast %cst_46 : f32 to vector<128x512xf32>
    %96 = arith.mulf %95, %94 : vector<128x512xf32>
    %cst_47 = arith.constant 4.471500e-02 : f32
    %97 = vector.broadcast %cst_47 : f32 to vector<128x512xf32>
    %98 = arith.mulf %97, %94 : vector<128x512xf32>
    %99 = arith.mulf %98, %94 : vector<128x512xf32>
    %100 = arith.mulf %99, %94 : vector<128x512xf32>
    %101 = arith.addf %94, %100 : vector<128x512xf32>
    %cst_48 = arith.constant 0.797884583 : f32
    %102 = vector.broadcast %cst_48 : f32 to vector<128x512xf32>
    %103 = arith.mulf %102, %101 : vector<128x512xf32>
    %104 = math.tanh %103 : vector<128x512xf32>
    %cst_49 = arith.constant 1.000000e+00 : f32
    %105 = vector.broadcast %cst_49 : f32 to vector<128x512xf32>
    %106 = arith.addf %105, %104 : vector<128x512xf32>
    %107 = arith.mulf %96, %106 : vector<128x512xf32>
    %108 = arith.truncf %107 : vector<128x512xf32> to vector<128x512xbf16>
    %c0_50 = arith.constant 0 : index
    %c0_51 = arith.constant 0 : index
    %109 = vector.load %arg9[%c0_50, %c0_51] : memref<512x128xbf16, #tpu.memory_space<vmem>>, vector<512x128xbf16>
    %cst_52 = arith.constant dense<0.000000e+00> : vector<128x128xf32>
    %110 = tpu.matmul %108, %109, %cst_52 {dimension_numbers = #tpu.dot_dimension_numbers<[1], [0], [0], [1], [0, 0, 1, 1], [], []>} : vector<128x512xbf16>, vector<512x128xbf16>, vector<128x128xf32> -> vector<128x128xf32>
    %111 = vector.broadcast %9 : vector<1x128xf32> to vector<128x128xf32>
    %112 = arith.addf %110, %111 : vector<128x128xf32>
    %113 = vector.broadcast %7 : vector<1x128xf32> to vector<128x128xf32>
    %114 = arith.mulf %113, %112 : vector<128x128xf32>
    %115 = arith.addf %66, %114 : vector<128x128xf32>
    %c0_53 = arith.constant 0 : index
    %c0_54 = arith.constant 0 : index
    %c0_55 = arith.constant 0 : index
    %116 = vector.load %arg10[%c0_53, %c0_54, %c0_55] : memref<1x128x128xf32, #tpu.memory_space<vmem>>, vector<1x128x128xf32>
    %117 = vector.shape_cast %116 : vector<1x128x128xf32> to vector<128x128xf32>
    %118 = vector.shape_cast %115 : vector<128x128xf32> to vector<1x128x128xf32>
    tpu.vector_store %arg10[%c0_53, %c0_54, %c0_55], %118 {strides = array<i32>} : memref<1x128x128xf32, #tpu.memory_space<vmem>>, vector<1x128x128xf32>,
    return
  }
  func.func @transform_0(%arg0: i32) -> (i32, i32, i32) {
    %c0_i32 = arith.constant 0 : i32
    %c0_i32_0 = arith.constant 0 : i32
    %c0_i32_1 = arith.constant 0 : i32
    return %arg0, %c0_i32, %c0_i32_0 : i32, i32, i32
  }
  func.func @transform_1(%arg0: i32) -> (i32, i32) {
    %c0_i32 = arith.constant 0 : i32
    %c0_i32_0 = arith.constant 0 : i32
    %c0_i32_1 = arith.constant 0 : i32
    return %c0_i32, %c0_i32_0 : i32, i32
  }
  func.func @transform_2(%arg0: i32) -> (i32, i32) {
    %c0_i32 = arith.constant 0 : i32
    %c0_i32_0 = arith.constant 0 : i32
    %c0_i32_1 = arith.constant 0 : i32
    return %c0_i32, %c0_i32_0 : i32, i32
  }
  func.func @transform_3(%arg0: i32) -> (i32, i32, i32) {
    %c0_i32 = arith.constant 0 : i32
    %c0_i32_0 = arith.constant 0 : i32
    %c0_i32_1 = arith.constant 0 : i32
    %c0_i32_2 = arith.constant 0 : i32
    return %c0_i32, %c0_i32_0, %c0_i32_1 : i32, i32, i32
  }
  func.func @transform_4(%arg0: i32) -> (i32, i32, i32) {
    %c0_i32 = arith.constant 0 : i32
    %c0_i32_0 = arith.constant 0 : i32
    %c0_i32_1 = arith.constant 0 : i32
    %c0_i32_2 = arith.constant 0 : i32
    return %c0_i32, %c0_i32_0, %c0_i32_1 : i32, i32, i32
  }
  func.func @transform_5(%arg0: i32) -> (i32, i32, i32) {
    %c0_i32 = arith.constant 0 : i32
    %c0_i32_0 = arith.constant 0 : i32
    %c0_i32_1 = arith.constant 0 : i32
    %c0_i32_2 = arith.constant 0 : i32
    return %c0_i32, %c0_i32_0, %c0_i32_1 : i32, i32, i32
  }
  func.func @transform_6(%arg0: i32) -> (i32, i32, i32) {
    %c0_i32 = arith.constant 0 : i32
    %c0_i32_0 = arith.constant 0 : i32
    %c0_i32_1 = arith.constant 0 : i32
    %c0_i32_2 = arith.constant 0 : i32
    return %c0_i32, %c0_i32_0, %c0_i32_1 : i32, i32, i32
  }
  func.func @transform_7(%arg0: i32) -> (i32, i32) {
    %c0_i32 = arith.constant 0 : i32
    %c0_i32_0 = arith.constant 0 : i32
    %c0_i32_1 = arith.constant 0 : i32
    return %c0_i32, %c0_i32_0 : i32, i32
  }
  func.func @transform_8(%arg0: i32) -> (i32, i32) {
    %c0_i32 = arith.constant 0 : i32
    %c0_i32_0 = arith.constant 0 : i32
    %c0_i32_1 = arith.constant 0 : i32
    return %c0_i32, %c0_i32_0 : i32, i32
  }
  func.func @transform_9(%arg0: i32) -> (i32, i32, i32) {
    %c0_i32 = arith.constant 0 : i32
    %c0_i32_0 = arith.constant 0 : i32
    %c0_i32_1 = arith.constant 0 : i32
    return %arg0, %c0_i32, %c0_i32_0 : i32, i32, i32
  }
}

</mosaic_0001>

<llo_original>
// kernel: tpu_custom_call.1
$region0: #{tpu_custom_call.1}
  #allocation0 [shape = 'u32[]', space=smem, size = 0x4, offset = 0x4, fixed_abs, tag = 'smem constant byte address 0x4 - core index']
  #allocation1 [shape = 'u32[144,128]{1,0:T(1,128)}', space=vmem, size = 0x12000, scoped, tag = 'internal scratch']
  %s0 = inlined_call_operand.vmem [shape: f32[2,128,128], index: 0, kind: input, shape index: {}]
  %s1 = inlined_call_operand.vmem [shape: f32[8,128], index: 1, kind: input, shape index: {}]
  %s2 = inlined_call_operand.vmem [shape: f32[1,512], index: 2, kind: input, shape index: {}]
  %s3 = inlined_call_operand.vmem [shape: bf16[8,128,16], index: 3, kind: input, shape index: {}]
  %s4 = inlined_call_operand.vmem [shape: bf16[8,128,16], index: 4, kind: input, shape index: {}]
  %s5 = inlined_call_operand.vmem [shape: bf16[8,128,16], index: 5, kind: input, shape index: {}]
  %s6 = inlined_call_operand.vmem [shape: bf16[8,16,128], index: 6, kind: input, shape index: {}]
  %s7 = inlined_call_operand.vmem [shape: bf16[128,512], index: 7, kind: input, shape index: {}]
  %s8 = inlined_call_operand.vmem [shape: bf16[512,128], index: 8, kind: input, shape index: {}]
  %s9 = inlined_call_operand.hbm [shape: f32[2,128,128], index: 9, kind: output, shape index: {}]
  %s10 = sld [smem:[#allocation0]]
  $region69: #{tpu_custom_call.1} parent=0
    _
  %s12 = ssub.s32 1, %s10
  %s13 = scalar_select 0, %s12, %s10
  $region1: #{tpu_custom_call.1} parent=0
    #allocation2 [shape = 'u8[131072]{0}', space=vmem, size = 0x20000, scoped, tag = 'output window, operand 0']
    #allocation3 [shape = 's32[2]{0}', space=sflag, size = 0x8, scoped, tag = 'scoped memory for tpu_custom_call.1']
    %14 = vsyncpa [#allocation3], 0
    %s15 = scalar_lea.sflag [#allocation3], 1
    %16 = vsyncpa %s15, 0
    loop: start=0, step=1, limit=4
    $region2: #{tpu_custom_call.1} parent=1 // loop_pre_header
      _
    $region3: #{tpu_custom_call.1} parent=1 // loop_header
      %s18 = sphi 0, %s22
      %p19 = scmp.ge.s32.totalorder %s18, 4
      %s28 = sphi 0, %s30
      %s31 = sphi 0, %s28
      %s32 = sphi 0, %s31
      %s48 = sphi 0, %s32
      %s52 = sphi 0, %s52
      %s54 = sphi 0, %s52
      %s55 = sphi 0, %s54
      %s69 = sphi 0, %s55
      %s73 = sphi 0, %s73
      %s75 = sphi 0, %s73
      %s76 = sphi 0, %s75
      %s90 = sphi 0, %s76
      %s94 = sphi 0, %s94
      %s96 = sphi 0, %s94
      %s97 = sphi 0, %s96
      %s111 = sphi 0, %s97
      %s115 = sphi 0, %s115
      %s117 = sphi 0, %s115
      %s118 = sphi 0, %s117
      %s132 = sphi 0, %s118
      %s136 = sphi 0, %s136
      %s138 = sphi 0, %s136
      %s139 = sphi 0, %s138
      %s153 = sphi 0, %s139
      %s157 = sphi 0, %s157
      %s159 = sphi 0, %s157
      %s160 = sphi 0, %s159
      %s174 = sphi 0, %s160
      %s178 = sphi 0, %s178
      %s180 = sphi 0, %s178
      %s181 = sphi 0, %s180
      %s195 = sphi 0, %s181
      %s199 = sphi 0, %s199
      %s201 = sphi 0, %s199
      %s202 = sphi 0, %s201
      %s216 = sphi 0, %s202
      %s222 = sphi 0, %s224
      %s225 = sphi 0, %s222
      %s226 = sphi 0, %s225
      %s242 = sphi 0, %s226
    $region4: #{tpu_custom_call.1} parent=1 // loop_header_branch
      %21 = sbr.rel (%p19) target = $region8
    $region5: #{tpu_custom_call.1} parent=1 // loop_body
      %s23 = ssub.s32 %s18, 1
      %s24 = ssub.s32 %s18, 2
      %s25 = sadd.s32 %s18, 1
      %s26 = ssub.s32 %s18, %s25
      %p27 = scmp.eq.s32.totalorder %s26, 0
      %s29 = sadd.s32 %s28, 1
      %s30 = scalar_select %p27, %s28, %s29
      %p33 = pneg %p27
      %p34 = scmp.eq.s32.totalorder %s18, 1
      %p35 = por %p33, %p34
      %p36 = scmp.ne.s32.totalorder %s28, %s31
      %p37 = scmp.eq.s32.totalorder %s18, 0
      %p38 = por %p36, %p37
      %p39 = scmp.ne.s32.totalorder %s28, %s31
      %p40 = scmp.eq.s32.totalorder %s23, 1
      %p41 = por %p39, %p40
      %p42 = scmp.ne.s32.totalorder %s31, %s32
      %p43 = scmp.eq.s32.totalorder %s23, 0
      %p44 = por %p42, %p43
      %p45 = scmp.ne.s32.totalorder %s31, %s32
      %p46 = scmp.eq.s32.totalorder %s24, 1
      %p47 = por %p45, %p46
      %p49 = scmp.ne.s32.totalorder %s32, %s48
      %p50 = scmp.eq.s32.totalorder %s24, 0
      %p51 = por %p49, %p50
      %s53 = sadd.s32 %s52, 1
      %p56 = scmp.eq.s32.totalorder %s18, 1
      %p57 = scmp.ne.s32.totalorder %s52, %s54
      %p58 = scmp.eq.s32.totalorder %s18, 0
      %p59 = por %p57, %p58
      %p60 = scmp.ne.s32.totalorder %s52, %s54
      %p61 = scmp.eq.s32.totalorder %s23, 1
      %p62 = por %p60, %p61
      %p63 = scmp.ne.s32.totalorder %s54, %s55
      %p64 = scmp.eq.s32.totalorder %s23, 0
      %p65 = por %p63, %p64
      %p66 = scmp.ne.s32.totalorder %s54, %s55
      %p67 = scmp.eq.s32.totalorder %s24, 1
      %p68 = por %p66, %p67
      %p70 = scmp.ne.s32.totalorder %s55, %s69
      %p71 = scmp.eq.s32.totalorder %s24, 0
      %p72 = por %p70, %p71
      %s74 = sadd.s32 %s73, 1
      %p77 = scmp.eq.s32.totalorder %s18, 1
      %p78 = scmp.ne.s32.totalorder %s73, %s75
      %p79 = scmp.eq.s32.totalorder %s18, 0
      %p80 = por %p78, %p79
      %p81 = scmp.ne.s32.totalorder %s73, %s75
      %p82 = scmp.eq.s32.totalorder %s23, 1
      %p83 = por %p81, %p82
      %p84 = scmp.ne.s32.totalorder %s75, %s76
      %p85 = scmp.eq.s32.totalorder %s23, 0
      %p86 = por %p84, %p85
      %p87 = scmp.ne.s32.totalorder %s75, %s76
      %p88 = scmp.eq.s32.totalorder %s24, 1
      %p89 = por %p87, %p88
      %p91 = scmp.ne.s32.totalorder %s76, %s90
      %p92 = scmp.eq.s32.totalorder %s24, 0
      %p93 = por %p91, %p92
      %s95 = sadd.s32 %s94, 1
      %p98 = scmp.eq.s32.totalorder %s18, 1
      %p99 = scmp.ne.s32.totalorder %s94, %s96
      %p100 = scmp.eq.s32.totalorder %s18, 0
      %p101 = por %p99, %p100
      %p102 = scmp.ne.s32.totalorder %s94, %s96
      %p103 = scmp.eq.s32.totalorder %s23, 1
      %p104 = por %p102, %p103
      %p105 = scmp.ne.s32.totalorder %s96, %s97
      %p106 = scmp.eq.s32.totalorder %s23, 0
      %p107 = por %p105, %p106
      %p108 = scmp.ne.s32.totalorder %s96, %s97
      %p109 = scmp.eq.s32.totalorder %s24, 1
      %p110 = por %p108, %p109
      %p112 = scmp.ne.s32.totalorder %s97, %s111
      %p113 = scmp.eq.s32.totalorder %s24, 0
      %p114 = por %p112, %p113
      %s116 = sadd.s32 %s115, 1
      %p119 = scmp.eq.s32.totalorder %s18, 1
      %p120 = scmp.ne.s32.totalorder %s115, %s117
      %p121 = scmp.eq.s32.totalorder %s18, 0
      %p122 = por %p120, %p121
      %p123 = scmp.ne.s32.totalorder %s115, %s117
      %p124 = scmp.eq.s32.totalorder %s23, 1
      %p125 = por %p123, %p124
      %p126 = scmp.ne.s32.totalorder %s117, %s118
      %p127 = scmp.eq.s32.totalorder %s23, 0
      %p128 = por %p126, %p127
      %p129 = scmp.ne.s32.totalorder %s117, %s118
      %p130 = scmp.eq.s32.totalorder %s24, 1
      %p131 = por %p129, %p130
      %p133 = scmp.ne.s32.totalorder %s118, %s132
      %p134 = scmp.eq.s32.totalorder %s24, 0
      %p135 = por %p133, %p134
      %s137 = sadd.s32 %s136, 1
      %p140 = scmp.eq.s32.totalorder %s18, 1
      %p141 = scmp.ne.s32.totalorder %s136, %s138
      %p142 = scmp.eq.s32.totalorder %s18, 0
      %p143 = por %p141, %p142
      %p144 = scmp.ne.s32.totalorder %s136, %s138
      %p145 = scmp.eq.s32.totalorder %s23, 1
      %p146 = por %p144, %p145
      %p147 = scmp.ne.s32.totalorder %s138, %s139
      %p148 = scmp.eq.s32.totalorder %s23, 0
      %p149 = por %p147, %p148
      %p150 = scmp.ne.s32.totalorder %s138, %s139
      %p151 = scmp.eq.s32.totalorder %s24, 1
      %p152 = por %p150, %p151
      %p154 = scmp.ne.s32.totalorder %s139, %s153
      %p155 = scmp.eq.s32.totalorder %s24, 0
      %p156 = por %p154, %p155
      %s158 = sadd.s32 %s157, 1
      %p161 = scmp.eq.s32.totalorder %s18, 1
      %p162 = scmp.ne.s32.totalorder %s157, %s159
      %p163 = scmp.eq.s32.totalorder %s18, 0
      %p164 = por %p162, %p163
      %p165 = scmp.ne.s32.totalorder %s157, %s159
      %p166 = scmp.eq.s32.totalorder %s23, 1
      %p167 = por %p165, %p166
      %p168 = scmp.ne.s32.totalorder %s159, %s160
      %p169 = scmp.eq.s32.totalorder %s23, 0
      %p170 = por %p168, %p169
      %p171 = scmp.ne.s32.totalorder %s159, %s160
      %p172 = scmp.eq.s32.totalorder %s24, 1
      %p173 = por %p171, %p172
      %p175 = scmp.ne.s32.totalorder %s160, %s174
      %p176 = scmp.eq.s32.totalorder %s24, 0
      %p177 = por %p175, %p176
      %s179 = sadd.s32 %s178, 1
      %p182 = scmp.eq.s32.totalorder %s18, 1
      %p183 = scmp.ne.s32.totalorder %s178, %s180
      %p184 = scmp.eq.s32.totalorder %s18, 0
      %p185 = por %p183, %p184
      %p186 = scmp.ne.s32.totalorder %s178, %s180
      %p187 = scmp.eq.s32.totalorder %s23, 1
      %p188 = por %p186, %p187
      %p189 = scmp.ne.s32.totalorder %s180, %s181
      %p190 = scmp.eq.s32.totalorder %s23, 0
      %p191 = por %p189, %p190
      %p192 = scmp.ne.s32.totalorder %s180, %s181
      %p193 = scmp.eq.s32.totalorder %s24, 1
      %p194 = por %p192, %p193
      %p196 = scmp.ne.s32.totalorder %s181, %s195
      %p197 = scmp.eq.s32.totalorder %s24, 0
      %p198 = por %p196, %p197
      %s200 = sadd.s32 %s199, 1
      %p203 = scmp.eq.s32.totalorder %s18, 1
      %p204 = scmp.ne.s32.totalorder %s199, %s201
      %p205 = scmp.eq.s32.totalorder %s18, 0
      %p206 = por %p204, %p205
      %p207 = scmp.ne.s32.totalorder %s199, %s201
      %p208 = scmp.eq.s32.totalorder %s23, 1
      %p209 = por %p207, %p208
      %p210 = scmp.ne.s32.totalorder %s201, %s202
      %p211 = scmp.eq.s32.totalorder %s23, 0
      %p212 = por %p210, %p211
      %p213 = scmp.ne.s32.totalorder %s201, %s202
      %p214 = scmp.eq.s32.totalorder %s24, 1
      %p215 = por %p213, %p214
      %p217 = scmp.ne.s32.totalorder %s202, %s216
      %p218 = scmp.eq.s32.totalorder %s24, 0
      %p219 = por %p217, %p218
      %s220 = ssub.s32 %s18, %s25
      %p221 = scmp.eq.s32.totalorder %s220, 0
      %s223 = sadd.s32 %s222, 1
      %s224 = scalar_select %p221, %s222, %s223
      %p227 = pneg %p221
      %p228 = scmp.eq.s32.totalorder %s18, 1
      %p229 = por %p227, %p228
      %p230 = scmp.ne.s32.totalorder %s222, %s225
      %p231 = scmp.eq.s32.totalorder %s18, 0
      %p232 = por %p230, %p231
      %p233 = scmp.ne.s32.totalorder %s222, %s225
      %p234 = scmp.eq.s32.totalorder %s23, 1
      %p235 = por %p233, %p234
      %p236 = scmp.ne.s32.totalorder %s225, %s226
      %p237 = scmp.eq.s32.totalorder %s23, 0
      %p238 = por %p236, %p237
      %p239 = scmp.ne.s32.totalorder %s225, %s226
      %p240 = scmp.eq.s32.totalorder %s24, 1
      %p241 = por %p239, %p240
      %p243 = scmp.ne.s32.totalorder %s226, %s242
      %p244 = scmp.eq.s32.totalorder %s24, 0
      %p245 = por %p243, %p244
      %p246 = scmp.le.s32.totalorder 1, %s18
      %p247 = scmp.lt.s32.totalorder %s18, 3
      %p248 = pnand %p246, %p247
      %p249 = pneg %p248
      // Predicated region
      $region9: #{tpu_custom_call.1} parent=5 // pred_check
        _
      $region10: #{tpu_custom_call.1} parent=5 // pred_check_branch
        %251 = sbr.rel (%p248) target = $region12
      $region11: #{tpu_custom_call.1} parent=5 // pred_region
        %s252 = ssub.s32 %s18, 1
        // Predicated region
        $region13: #{tpu_custom_call.1} parent=11 // pred_check
          %p253 = pneg %p65
        $region14: #{tpu_custom_call.1} parent=11 // pred_check_branch
          %255 = sbr.rel (%p253) target = $region16
        $region15: #{tpu_custom_call.1} parent=11 // pred_region
          _
        $region16: #{tpu_custom_call.1} parent=11 // pred_fallthru
          _
        // Predicated region
        $region17: #{tpu_custom_call.1} parent=11 // pred_check
          %p256 = pneg %p86
        $region18: #{tpu_custom_call.1} parent=11 // pred_check_branch
          %258 = sbr.rel (%p256) target = $region20
        $region19: #{tpu_custom_call.1} parent=11 // pred_region
          _
        $region20: #{tpu_custom_call.1} parent=11 // pred_fallthru
          _
        // Predicated region
        $region21: #{tpu_custom_call.1} parent=11 // pred_check
          %p259 = pneg %p107
        $region22: #{tpu_custom_call.1} parent=11 // pred_check_branch
          %261 = sbr.rel (%p259) target = $region24
        $region23: #{tpu_custom_call.1} parent=11 // pred_region
          _
        $region24: #{tpu_custom_call.1} parent=11 // pred_fallthru
          _
        // Predicated region
        $region25: #{tpu_custom_call.1} parent=11 // pred_check
          %p262 = pneg %p128
        $region26: #{tpu_custom_call.1} parent=11 // pred_check_branch
          %264 = sbr.rel (%p262) target = $region28
        $region27: #{tpu_custom_call.1} parent=11 // pred_region
          _
        $region28: #{tpu_custom_call.1} parent=11 // pred_fallthru
          _
        // Predicated region
        $region29: #{tpu_custom_call.1} parent=11 // pred_check
          %p265 = pneg %p149
        $region30: #{tpu_custom_call.1} parent=11 // pred_check_branch
          %267 = sbr.rel (%p265) target = $region32
        $region31: #{tpu_custom_call.1} parent=11 // pred_region
          _
        $region32: #{tpu_custom_call.1} parent=11 // pred_fallthru
          _
        // Predicated region
        $region33: #{tpu_custom_call.1} parent=11 // pred_check
          %p268 = pneg %p170
        $region34: #{tpu_custom_call.1} parent=11 // pred_check_branch
          %270 = sbr.rel (%p268) target = $region36
        $region35: #{tpu_custom_call.1} parent=11 // pred_region
          _
        $region36: #{tpu_custom_call.1} parent=11 // pred_fallthru
          _
        // Predicated region
        $region37: #{tpu_custom_call.1} parent=11 // pred_check
          %p271 = pneg %p191
        $region38: #{tpu_custom_call.1} parent=11 // pred_check_branch
          %273 = sbr.rel (%p271) target = $region40
        $region39: #{tpu_custom_call.1} parent=11 // pred_region
          _
        $region40: #{tpu_custom_call.1} parent=11 // pred_fallthru
          _
        // Predicated region
        $region41: #{tpu_custom_call.1} parent=11 // pred_check
          %p274 = pneg %p212
        $region42: #{tpu_custom_call.1} parent=11 // pred_check_branch
          %276 = sbr.rel (%p274) target = $region44
        $region43: #{tpu_custom_call.1} parent=11 // pred_region
          _
        $region44: #{tpu_custom_call.1} parent=11 // pred_fallthru
          _
      $region12: #{tpu_custom_call.1} parent=5 // pred_fallthru
        _
      %p277 = scmp.lt.s32.totalorder %s18, 2
      // Predicated region
      $region45: #{tpu_custom_call.1} parent=5 // pred_check
        %p278 = pneg %p277
      $region46: #{tpu_custom_call.1} parent=5 // pred_check_branch
        %280 = sbr.rel (%p278) target = $region48
      $region47: #{tpu_custom_call.1} parent=5 // pred_region
        // Predicated region
        $region49: #{tpu_custom_call.1} parent=47 // pred_check
          %p281 = pneg %p38
        $region50: #{tpu_custom_call.1} parent=47 // pred_check_branch
          %283 = sbr.rel (%p281) target = $region52
        $region51: #{tpu_custom_call.1} parent=47 // pred_region
          %p284 = scmp.lt.s32.totalorder %s18, 1
          %s285 = scalar_select %p284, %s18, 1
          %s286 = smul.addr %s285, 16
          %s287 = smul.addr %s286, 8
          %s288 = scalar_lea.vmem %s0, %s287
        $region52: #{tpu_custom_call.1} parent=47 // pred_fallthru
          _
      $region48: #{tpu_custom_call.1} parent=5 // pred_fallthru
        _
      %p289 = scmp.le.s32.totalorder 1, %s18
      %p290 = scmp.lt.s32.totalorder %s18, 3
      %p291 = pnand %p289, %p290
      %p292 = pneg %p291
      // Predicated region
      $region53: #{tpu_custom_call.1} parent=5 // pred_check
        _
      $region54: #{tpu_custom_call.1} parent=5 // pred_check_branch
        %294 = sbr.rel (%p291) target = $region56
      $region55: #{tpu_custom_call.1} parent=5 // pred_region
        %s295 = ssub.s32 %s18, 1
        %p296 = scmp.lt.s32.totalorder %s23, 1
        %s297 = scalar_select %p296, %s23, 1
        %s298 = smul.addr %s297, 16
        %s299 = smul.addr %s298, 8
        %s300 = scalar_lea.vmem %s0, %s299
        %p301 = pneg %p44
        %p302 = pneg %p41
        %p303 = pneg %p65
        %p304 = pneg %p62
        %p305 = pneg %p86
        %p306 = pneg %p83
        %p307 = pneg %p107
        %p308 = pneg %p104
        %p309 = pneg %p128
        %p310 = pneg %p125
        %p311 = pneg %p149
        %p312 = pneg %p146
        %p313 = pneg %p170
        %p314 = pneg %p167
        %p315 = pneg %p191
        %p316 = pneg %p188
        %p317 = pneg %p212
        %p318 = pneg %p209
        %p319 = pneg %p238
        %p320 = pneg %p235
        %s321 = sand.u32 %s225, 1
        %s322 = scalar_lea.sflag [#allocation3], %s321
        %s323 = sand.u32 %s225, 1
        %s324 = smul.addr %s323, 128
        %s325 = scalar_lea.vmem [#allocation2], %s324
        %p326 = scmp.lt.s32.totalorder %s23, 1
        %s327 = scalar_select %p326, %s23, 1
        %s328 = smul.addr %s327, 16
        %s329 = smul.addr %s328, 8
        %s330 = scalar_lea.vmem %s0, %s329
        %v332 = vld [vmem:[%s330] sm:$0xff]
        %v333 = vld [vmem:[%s330 + $0x8] sm:$0xff]
        %v334 = vld [vmem:[%s330 + $0x10] sm:$0xff]
        %v335 = vld [vmem:[%s330 + $0x18] sm:$0xff]
        %v336 = vld [vmem:[%s330 + $0x20] sm:$0xff]
        %v337 = vld [vmem:[%s330 + $0x28] sm:$0xff]
        %v338 = vld [vmem:[%s330 + $0x30] sm:$0xff]
        %v339 = vld [vmem:[%s330 + $0x38] sm:$0xff]
        %v340 = vld [vmem:[%s330 + $0x40] sm:$0xff]
        %v341 = vld [vmem:[%s330 + $0x48] sm:$0xff]
        %v342 = vld [vmem:[%s330 + $0x50] sm:$0xff]
        %v343 = vld [vmem:[%s330 + $0x58] sm:$0xff]
        %v344 = vld [vmem:[%s330 + $0x60] sm:$0xff]
        %v345 = vld [vmem:[%s330 + $0x68] sm:$0xff]
        %v346 = vld [vmem:[%s330 + $0x70] sm:$0xff]
        %v347 = vld [vmem:[%s330 + $0x78] sm:$0xff]
        %v348 = vld [vmem:[%s1] sm:$0x1]
        %v349 = vld [vmem:[%s1 + $0x1] sm:$0x1]
        %v350 = vld [vmem:[%s1 + $0x2] sm:$0x1]
        %v351 = vld [vmem:[%s1 + $0x3] sm:$0x1]
        %v352 = vld [vmem:[%s1 + $0x4] sm:$0x1]
        %v353 = vld [vmem:[%s1 + $0x5] sm:$0x1]
        %v354 = vld [vmem:[%s1 + $0x6] sm:$0x1]
        %v355 = vld [vmem:[%s1 + $0x7] sm:$0x1]
        %356 = vadd.xlane.f32.xlu0 %v332
        %v357 = vpop.xlane.xlu0 %356
        %358 = vadd.xlane.f32.xlu0 %v333
        %v359 = vpop.xlane.xlu0 %358
        %360 = vadd.xlane.f32.xlu0 %v334
        %v361 = vpop.xlane.xlu0 %360
        %362 = vadd.xlane.f32.xlu0 %v335
        %v363 = vpop.xlane.xlu0 %362
        %364 = vadd.xlane.f32.xlu0 %v336
        %v365 = vpop.xlane.xlu0 %364
        %366 = vadd.xlane.f32.xlu0 %v337
        %v367 = vpop.xlane.xlu0 %366
        %368 = vadd.xlane.f32.xlu0 %v338
        %v369 = vpop.xlane.xlu0 %368
        %370 = vadd.xlane.f32.xlu0 %v339
        %v371 = vpop.xlane.xlu0 %370
        %372 = vadd.xlane.f32.xlu0 %v340
        %v373 = vpop.xlane.xlu0 %372
        %374 = vadd.xlane.f32.xlu0 %v341
        %v375 = vpop.xlane.xlu0 %374
        %376 = vadd.xlane.f32.xlu0 %v342
        %v377 = vpop.xlane.xlu0 %376
        %378 = vadd.xlane.f32.xlu0 %v343
        %v379 = vpop.xlane.xlu0 %378
        %380 = vadd.xlane.f32.xlu0 %v344
        %v381 = vpop.xlane.xlu0 %380
        %382 = vadd.xlane.f32.xlu0 %v345
        %v383 = vpop.xlane.xlu0 %382
        %384 = vadd.xlane.f32.xlu0 %v346
        %v385 = vpop.xlane.xlu0 %384
        %386 = vadd.xlane.f32.xlu0 %v347
        %v387 = vpop.xlane.xlu0 %386
        %v388 = vrcp.pop 128.0
        %v389 = vmul.f32 %v357, %v388
        %v390 = vmul.f32 %v359, %v388
        %v391 = vmul.f32 %v361, %v388
        %v392 = vmul.f32 %v363, %v388
        %v393 = vmul.f32 %v365, %v388
        %v394 = vmul.f32 %v367, %v388
        %v395 = vmul.f32 %v369, %v388
        %v396 = vmul.f32 %v371, %v388
        %v397 = vmul.f32 %v373, %v388
        %v398 = vmul.f32 %v375, %v388
        %v399 = vmul.f32 %v377, %v388
        %v400 = vmul.f32 %v379, %v388
        %v401 = vmul.f32 %v381, %v388
        %v402 = vmul.f32 %v383, %v388
        %v403 = vmul.f32 %v385, %v388
        %v404 = vmul.f32 %v387, %v388
        %v405 = vsub.f32 %v332, %v389
        %v406 = vsub.f32 %v333, %v390
        %v407 = vsub.f32 %v334, %v391
        %v408 = vsub.f32 %v335, %v392
        %v409 = vsub.f32 %v336, %v393
        %v410 = vsub.f32 %v337, %v394
        %v411 = vsub.f32 %v338, %v395
        %v412 = vsub.f32 %v339, %v396
        %v413 = vsub.f32 %v340, %v397
        %v414 = vsub.f32 %v341, %v398
        %v415 = vsub.f32 %v342, %v399
        %v416 = vsub.f32 %v343, %v400
        %v417 = vsub.f32 %v344, %v401
        %v418 = vsub.f32 %v345, %v402
        %v419 = vsub.f32 %v346, %v403
        %v420 = vsub.f32 %v347, %v404
        %v421 = vmul.f32 %v405, %v405
        %v422 = vmul.f32 %v406, %v406
        %v423 = vmul.f32 %v407, %v407
        %v424 = vmul.f32 %v408, %v408
        %v425 = vmul.f32 %v409, %v409
        %v426 = vmul.f32 %v410, %v410
        %v427 = vmul.f32 %v411, %v411
        %v428 = vmul.f32 %v412, %v412
        %v429 = vmul.f32 %v413, %v413
        %v430 = vmul.f32 %v414, %v414
        %v431 = vmul.f32 %v415, %v415
        %v432 = vmul.f32 %v416, %v416
        %v433 = vmul.f32 %v417, %v417
        %v434 = vmul.f32 %v418, %v418
        %v435 = vmul.f32 %v419, %v419
        %v436 = vmul.f32 %v420, %v420
        %437 = vadd.xlane.f32.xlu0 %v421
        %v438 = vpop.xlane.xlu0 %437
        %439 = vadd.xlane.f32.xlu0 %v422
        %v440 = vpop.xlane.xlu0 %439
        %441 = vadd.xlane.f32.xlu0 %v423
        %v442 = vpop.xlane.xlu0 %441
        %443 = vadd.xlane.f32.xlu0 %v424
        %v444 = vpop.xlane.xlu0 %443
        %445 = vadd.xlane.f32.xlu0 %v425
        %v446 = vpop.xlane.xlu0 %445
        %447 = vadd.xlane.f32.xlu0 %v426
        %v448 = vpop.xlane.xlu0 %447
        %449 = vadd.xlane.f32.xlu0 %v427
        %v450 = vpop.xlane.xlu0 %449
        %451 = vadd.xlane.f32.xlu0 %v428
        %v452 = vpop.xlane.xlu0 %451
        %453 = vadd.xlane.f32.xlu0 %v429
        %v454 = vpop.xlane.xlu0 %453
        %455 = vadd.xlane.f32.xlu0 %v430
        %v456 = vpop.xlane.xlu0 %455
        %457 = vadd.xlane.f32.xlu0 %v431
        %v458 = vpop.xlane.xlu0 %457
        %459 = vadd.xlane.f32.xlu0 %v432
        %v460 = vpop.xlane.xlu0 %459
        %461 = vadd.xlane.f32.xlu0 %v433
        %v462 = vpop.xlane.xlu0 %461
        %463 = vadd.xlane.f32.xlu0 %v434
        %v464 = vpop.xlane.xlu0 %463
        %465 = vadd.xlane.f32.xlu0 %v435
        %v466 = vpop.xlane.xlu0 %465
        %467 = vadd.xlane.f32.xlu0 %v436
        %v468 = vpop.xlane.xlu0 %467
        %v469 = vmul.f32 %v438, %v388
        %v470 = vmul.f32 %v440, %v388
        %v471 = vmul.f32 %v442, %v388
        %v472 = vmul.f32 %v444, %v388
        %v473 = vmul.f32 %v446, %v388
        %v474 = vmul.f32 %v448, %v388
        %v475 = vmul.f32 %v450, %v388
        %v476 = vmul.f32 %v452, %v388
        %v477 = vmul.f32 %v454, %v388
        %v478 = vmul.f32 %v456, %v388
        %v479 = vmul.f32 %v458, %v388
        %v480 = vmul.f32 %v460, %v388
        %v481 = vmul.f32 %v462, %v388
        %v482 = vmul.f32 %v464, %v388
        %v483 = vmul.f32 %v466, %v388
        %v484 = vmul.f32 %v468, %v388
        %v485 = vadd.f32 %v469, 1e-05
        %v486 = vadd.f32 %v470, 1e-05
        %v487 = vadd.f32 %v471, 1e-05
        %v488 = vadd.f32 %v472, 1e-05
        %v489 = vadd.f32 %v473, 1e-05
        %v490 = vadd.f32 %v474, 1e-05
        %v491 = vadd.f32 %v475, 1e-05
        %v492 = vadd.f32 %v476, 1e-05
        %v493 = vadd.f32 %v477, 1e-05
        %v494 = vadd.f32 %v478, 1e-05
        %v495 = vadd.f32 %v479, 1e-05
        %v496 = vadd.f32 %v480, 1e-05
        %v497 = vadd.f32 %v481, 1e-05
        %v498 = vadd.f32 %v482, 1e-05
        %v499 = vadd.f32 %v483, 1e-05
        %v500 = vadd.f32 %v484, 1e-05
        %v501 = vrsqrt.pop %v485
        %v502 = vrsqrt.pop %v486
        %v503 = vrsqrt.pop %v487
        %v504 = vrsqrt.pop %v488
        %v505 = vrsqrt.pop %v489
        %v506 = vrsqrt.pop %v490
        %v507 = vrsqrt.pop %v491
        %v508 = vrsqrt.pop %v492
        %v509 = vrsqrt.pop %v493
        %v510 = vrsqrt.pop %v494
        %v511 = vrsqrt.pop %v495
        %v512 = vrsqrt.pop %v496
        %v513 = vrsqrt.pop %v497
        %v514 = vrsqrt.pop %v498
        %v515 = vrsqrt.pop %v499
        %v516 = vrsqrt.pop %v500
        %v517 = vmul.f32 %v405, %v501
        %v518 = vmul.f32 %v406, %v502
        %v519 = vmul.f32 %v407, %v503
        %v520 = vmul.f32 %v408, %v504
        %v521 = vmul.f32 %v409, %v505
        %v522 = vmul.f32 %v410, %v506
        %v523 = vmul.f32 %v411, %v507
        %v524 = vmul.f32 %v412, %v508
        %v525 = vmul.f32 %v413, %v509
        %v526 = vmul.f32 %v414, %v510
        %v527 = vmul.f32 %v415, %v511
        %v528 = vmul.f32 %v416, %v512
        %v529 = vmul.f32 %v417, %v513
        %v530 = vmul.f32 %v418, %v514
        %v531 = vmul.f32 %v419, %v515
        %v532 = vmul.f32 %v420, %v516
        %v533 = vlaneseq
        %v534 = vshrl.u32 %v533, 7
        %v535 = vsub.s32 0, %v534
        %v536 = vrot.slane %v348, %v535
        %v537 = vmul.f32 %v517, %v536
        %v538 = vmul.f32 %v518, %v536
        %v539 = vmul.f32 %v519, %v536
        %v540 = vmul.f32 %v520, %v536
        %v541 = vmul.f32 %v521, %v536
        %v542 = vmul.f32 %v522, %v536
        %v543 = vmul.f32 %v523, %v536
        %v544 = vmul.f32 %v524, %v536
        %v545 = vmul.f32 %v525, %v536
        %v546 = vmul.f32 %v526, %v536
        %v547 = vmul.f32 %v527, %v536
        %v548 = vmul.f32 %v528, %v536
        %v549 = vmul.f32 %v529, %v536
        %v550 = vmul.f32 %v530, %v536
        %v551 = vmul.f32 %v531, %v536
        %v552 = vmul.f32 %v532, %v536
        %v553 = vlaneseq
        %v554 = vshrl.u32 %v553, 7
        %v555 = vsub.s32 0, %v554
        %v556 = vrot.slane %v349, %v555
        %v557 = vadd.f32 %v537, %v556
        %v558 = vadd.f32 %v538, %v556
        %v559 = vadd.f32 %v539, %v556
        %v560 = vadd.f32 %v540, %v556
        %v561 = vadd.f32 %v541, %v556
        %v562 = vadd.f32 %v542, %v556
        %v563 = vadd.f32 %v543, %v556
        %v564 = vadd.f32 %v544, %v556
        %v565 = vadd.f32 %v545, %v556
        %v566 = vadd.f32 %v546, %v556
        %v567 = vadd.f32 %v547, %v556
        %v568 = vadd.f32 %v548, %v556
        %v569 = vadd.f32 %v549, %v556
        %v570 = vadd.f32 %v550, %v556
        %v571 = vadd.f32 %v551, %v556
        %v572 = vadd.f32 %v552, %v556
        %v573 = vpack.c.bf16 %v558, %v557
        %v574 = vpack.c.bf16 %v560, %v559
        %v575 = vpack.c.bf16 %v562, %v561
        %v576 = vpack.c.bf16 %v564, %v563
        %v577 = vpack.c.bf16 %v566, %v565
        %v578 = vpack.c.bf16 %v568, %v567
        %v579 = vpack.c.bf16 %v570, %v569
        %v580 = vpack.c.bf16 %v572, %v571
        %v581 = vld [vmem:[%s3] sm:$0xf]
        %v582 = vld [vmem:[%s3 + $0x4] sm:$0xf]
        %v583 = vld [vmem:[%s3 + $0x8] sm:$0xf]
        %v584 = vld [vmem:[%s3 + $0xc] sm:$0xf]
        %v585 = vld [vmem:[%s3 + $0x10] sm:$0xf]
        %v586 = vld [vmem:[%s3 + $0x14] sm:$0xf]
        %v587 = vld [vmem:[%s3 + $0x18] sm:$0xf]
        %v588 = vld [vmem:[%s3 + $0x1c] sm:$0xf]
        %v589 = vld [vmem:[%s3 + $0x20] sm:$0xf]
        %v590 = vld [vmem:[%s3 + $0x24] sm:$0xf]
        %v591 = vld [vmem:[%s3 + $0x28] sm:$0xf]
        %v592 = vld [vmem:[%s3 + $0x2c] sm:$0xf]
        %v593 = vld [vmem:[%s3 + $0x30] sm:$0xf]
        %v594 = vld [vmem:[%s3 + $0x34] sm:$0xf]
        %v595 = vld [vmem:[%s3 + $0x38] sm:$0xf]
        %v596 = vld [vmem:[%s3 + $0x3c] sm:$0xf]
        %v597 = vld [vmem:[%s3 + $0x40] sm:$0xf]
        %v598 = vld [vmem:[%s3 + $0x44] sm:$0xf]
        %v599 = vld [vmem:[%s3 + $0x48] sm:$0xf]
        %v600 = vld [vmem:[%s3 + $0x4c] sm:$0xf]
        %v601 = vld [vmem:[%s3 + $0x50] sm:$0xf]
        %v602 = vld [vmem:[%s3 + $0x54] sm:$0xf]
        %v603 = vld [vmem:[%s3 + $0x58] sm:$0xf]
        %v604 = vld [vmem:[%s3 + $0x5c] sm:$0xf]
        %v605 = vld [vmem:[%s3 + $0x60] sm:$0xf]
        %v606 = vld [vmem:[%s3 + $0x64] sm:$0xf]
        %v607 = vld [vmem:[%s3 + $0x68] sm:$0xf]
        %v608 = vld [vmem:[%s3 + $0x6c] sm:$0xf]
        %v609 = vld [vmem:[%s3 + $0x70] sm:$0xf]
        %v610 = vld [vmem:[%s3 + $0x74] sm:$0xf]
        %v611 = vld [vmem:[%s3 + $0x78] sm:$0xf]
        %v612 = vld [vmem:[%s3 + $0x7c] sm:$0xf]
        %v613 = vld [vmem:[%s3 + $0x80] sm:$0xf]
        %v614 = vld [vmem:[%s3 + $0x84] sm:$0xf]
        %v615 = vld [vmem:[%s3 + $0x88] sm:$0xf]
        %v616 = vld [vmem:[%s3 + $0x8c] sm:$0xf]
        %v617 = vld [vmem:[%s3 + $0x90] sm:$0xf]
        %v618 = vld [vmem:[%s3 + $0x94] sm:$0xf]
        %v619 = vld [vmem:[%s3 + $0x98] sm:$0xf]
        %v620 = vld [vmem:[%s3 + $0x9c] sm:$0xf]
        %v621 = vld [vmem:[%s3 + $0xa0] sm:$0xf]
        %v622 = vld [vmem:[%s3 + $0xa4] sm:$0xf]
        %v623 = vld [vmem:[%s3 + $0xa8] sm:$0xf]
        %v624 = vld [vmem:[%s3 + $0xac] sm:$0xf]
        %v625 = vld [vmem:[%s3 + $0xb0] sm:$0xf]
        %v626 = vld [vmem:[%s3 + $0xb4] sm:$0xf]
        %v627 = vld [vmem:[%s3 + $0xb8] sm:$0xf]
        %v628 = vld [vmem:[%s3 + $0xbc] sm:$0xf]
        %v629 = vld [vmem:[%s3 + $0xc0] sm:$0xf]
        %v630 = vld [vmem:[%s3 + $0xc4] sm:$0xf]
        %v631 = vld [vmem:[%s3 + $0xc8] sm:$0xf]
        %v632 = vld [vmem:[%s3 + $0xcc] sm:$0xf]
        %v633 = vld [vmem:[%s3 + $0xd0] sm:$0xf]
        %v634 = vld [vmem:[%s3 + $0xd4] sm:$0xf]
        %v635 = vld [vmem:[%s3 + $0xd8] sm:$0xf]
        %v636 = vld [vmem:[%s3 + $0xdc] sm:$0xf]
        %v637 = vld [vmem:[%s3 + $0xe0] sm:$0xf]
        %v638 = vld [vmem:[%s3 + $0xe4] sm:$0xf]
        %v639 = vld [vmem:[%s3 + $0xe8] sm:$0xf]
        %v640 = vld [vmem:[%s3 + $0xec] sm:$0xf]
        %v641 = vld [vmem:[%s3 + $0xf0] sm:$0xf]
        %v642 = vld [vmem:[%s3 + $0xf4] sm:$0xf]
        %v643 = vld [vmem:[%s3 + $0xf8] sm:$0xf]
        %v644 = vld [vmem:[%s3 + $0xfc] sm:$0xf]
        %v645 = vld [vmem:[%s3 + $0x100] sm:$0xf]
        %v646 = vld [vmem:[%s3 + $0x104] sm:$0xf]
        %v647 = vld [vmem:[%s3 + $0x108] sm:$0xf]
        %v648 = vld [vmem:[%s3 + $0x10c] sm:$0xf]
        %v649 = vld [vmem:[%s3 + $0x110] sm:$0xf]
        %v650 = vld [vmem:[%s3 + $0x114] sm:$0xf]
        %v651 = vld [vmem:[%s3 + $0x118] sm:$0xf]
        %v652 = vld [vmem:[%s3 + $0x11c] sm:$0xf]
        %v653 = vld [vmem:[%s3 + $0x120] sm:$0xf]
        %v654 = vld [vmem:[%s3 + $0x124] sm:$0xf]
        %v655 = vld [vmem:[%s3 + $0x128] sm:$0xf]
        %v656 = vld [vmem:[%s3 + $0x12c] sm:$0xf]
        %v657 = vld [vmem:[%s3 + $0x130] sm:$0xf]
        %v658 = vld [vmem:[%s3 + $0x134] sm:$0xf]
        %v659 = vld [vmem:[%s3 + $0x138] sm:$0xf]
        %v660 = vld [vmem:[%s3 + $0x13c] sm:$0xf]
        %v661 = vld [vmem:[%s3 + $0x140] sm:$0xf]
        %v662 = vld [vmem:[%s3 + $0x144] sm:$0xf]
        %v663 = vld [vmem:[%s3 + $0x148] sm:$0xf]
        %v664 = vld [vmem:[%s3 + $0x14c] sm:$0xf]
        %v665 = vld [vmem:[%s3 + $0x150] sm:$0xf]
        %v666 = vld [vmem:[%s3 + $0x154] sm:$0xf]
        %v667 = vld [vmem:[%s3 + $0x158] sm:$0xf]
        %v668 = vld [vmem:[%s3 + $0x15c] sm:$0xf]
        %v669 = vld [vmem:[%s3 + $0x160] sm:$0xf]
        %v670 = vld [vmem:[%s3 + $0x164] sm:$0xf]
        %v671 = vld [vmem:[%s3 + $0x168] sm:$0xf]
        %v672 = vld [vmem:[%s3 + $0x16c] sm:$0xf]
        %v673 = vld [vmem:[%s3 + $0x170] sm:$0xf]
        %v674 = vld [vmem:[%s3 + $0x174] sm:$0xf]
        %v675 = vld [vmem:[%s3 + $0x178] sm:$0xf]
        %v676 = vld [vmem:[%s3 + $0x17c] sm:$0xf]
        %v677 = vld [vmem:[%s3 + $0x180] sm:$0xf]
        %v678 = vld [vmem:[%s3 + $0x184] sm:$0xf]
        %v679 = vld [vmem:[%s3 + $0x188] sm:$0xf]
        %v680 = vld [vmem:[%s3 + $0x18c] sm:$0xf]
        %v681 = vld [vmem:[%s3 + $0x190] sm:$0xf]
        %v682 = vld [vmem:[%s3 + $0x194] sm:$0xf]
        %v683 = vld [vmem:[%s3 + $0x198] sm:$0xf]
        %v684 = vld [vmem:[%s3 + $0x19c] sm:$0xf]
        %v685 = vld [vmem:[%s3 + $0x1a0] sm:$0xf]
        %v686 = vld [vmem:[%s3 + $0x1a4] sm:$0xf]
        %v687 = vld [vmem:[%s3 + $0x1a8] sm:$0xf]
        %v688 = vld [vmem:[%s3 + $0x1ac] sm:$0xf]
        %v689 = vld [vmem:[%s3 + $0x1b0] sm:$0xf]
        %v690 = vld [vmem:[%s3 + $0x1b4] sm:$0xf]
        %v691 = vld [vmem:[%s3 + $0x1b8] sm:$0xf]
        %v692 = vld [vmem:[%s3 + $0x1bc] sm:$0xf]
        %v693 = vld [vmem:[%s3 + $0x1c0] sm:$0xf]
        %v694 = vld [vmem:[%s3 + $0x1c4] sm:$0xf]
        %v695 = vld [vmem:[%s3 + $0x1c8] sm:$0xf]
        %v696 = vld [vmem:[%s3 + $0x1cc] sm:$0xf]
        %v697 = vld [vmem:[%s3 + $0x1d0] sm:$0xf]
        %v698 = vld [vmem:[%s3 + $0x1d4] sm:$0xf]
        %v699 = vld [vmem:[%s3 + $0x1d8] sm:$0xf]
        %v700 = vld [vmem:[%s3 + $0x1dc] sm:$0xf]
        %v701 = vld [vmem:[%s3 + $0x1e0] sm:$0xf]
        %v702 = vld [vmem:[%s3 + $0x1e4] sm:$0xf]
        %v703 = vld [vmem:[%s3 + $0x1e8] sm:$0xf]
        %v704 = vld [vmem:[%s3 + $0x1ec] sm:$0xf]
        %v705 = vld [vmem:[%s3 + $0x1f0] sm:$0xf]
        %v706 = vld [vmem:[%s3 + $0x1f4] sm:$0xf]
        %v707 = vld [vmem:[%s3 + $0x1f8] sm:$0xf]
        %v708 = vld [vmem:[%s3 + $0x1fc] sm:$0xf]
        %v725 = vunpack.c.l.b16 %v581
        %v726 = vunpack.c.l.b16 %v582
        %v727 = vunpack.c.l.b16 %v583
        %v728 = vunpack.c.l.b16 %v584
        %v729 = vunpack.c.l.b16 %v585
        %v730 = vunpack.c.l.b16 %v586
        %v731 = vunpack.c.l.b16 %v587
        %v732 = vunpack.c.l.b16 %v588
        %v733 = vunpack.c.l.b16 %v589
        %v734 = vunpack.c.l.b16 %v590
        %v735 = vunpack.c.l.b16 %v591
        %v736 = vunpack.c.l.b16 %v592
        %v737 = vunpack.c.l.b16 %v593
        %v738 = vunpack.c.l.b16 %v594
        %v739 = vunpack.c.l.b16 %v595
        %v740 = vunpack.c.l.b16 %v596
        %v741 = vpack.c.b16 %v726, %v725
        %v742 = vpack.c.b16 %v728, %v727
        %v743 = vpack.c.b16 %v730, %v729
        %v744 = vpack.c.b16 %v732, %v731
        %v745 = vpack.c.b16 %v734, %v733
        %v746 = vpack.c.b16 %v736, %v735
        %v747 = vpack.c.b16 %v738, %v737
        %v748 = vpack.c.b16 %v740, %v739
        %757 = vmatprep.subr.bf16.mxu0 0
        %758 = vmatpush1.bf16.msra.mxu0 %v748
        %759 = vmatprep.subr.bf16.mxu0 0
        %760 = vmatpush1.bf16.msra.mxu0 %v747
        %761 = vmatprep.subr.bf16.mxu0 0
        %762 = vmatpush1.bf16.msra.mxu0 %v746
        %763 = vmatprep.subr.bf16.mxu0 0
        %764 = vmatpush1.bf16.msra.mxu0 %v745
        %765 = vmatprep.subr.bf16.mxu0 0
        %766 = vmatpush1.bf16.msra.mxu0 %v744
        %767 = vmatprep.subr.bf16.mxu0 0
        %768 = vmatpush1.bf16.msra.mxu0 %v743
        %769 = vmatprep.subr.bf16.mxu0 0
        %770 = vmatpush1.bf16.msra.mxu0 %v742
        %771 = vmatprep.subr.bf16.mxu0 0
        %772 = vmatpush1.bf16.msra.mxu0 %v741
        %773 = vmatprep.subr.bf16.mxu0 0
        %774 = vmatpush2.bf16.msra.mxu0 0
        %775 = vmatprep.subr.bf16.mxu0 0
        %776 = vmatpush2.bf16.msra.mxu0 0
        %777 = vmatprep.subr.bf16.mxu0 0
        %778 = vmatpush2.bf16.msra.mxu0 0
        %779 = vmatprep.subr.bf16.mxu0 0
        %780 = vmatpush2.bf16.msra.mxu0 0
        %781 = vmatprep.subr.bf16.mxu0 0
        %782 = vmatpush2.bf16.msra.mxu0 0
        %783 = vmatprep.subr.bf16.mxu0 0
        %784 = vmatpush2.bf16.msra.mxu0 0
        %785 = vmatprep.subr.bf16.mxu0 0
        %786 = vmatpush2.bf16.msra.mxu0 0
        %787 = vmatprep.subr.bf16.mxu0 0
        %788 = vmatpush2.bf16.msra.mxu0 0
        %789 = vmatprep.mubr.bf16.mxu0 0
        %790 = vmatmul.mubr.bf16.gmra.mxu0 %v573
        %v791 = vpop.f32.mrf.mxu0
        %v792 = vadd.f32 0.0, %v791
        %v793 = vpop.f32.mrf.mxu0
        %v794 = vpop.f32.mrf.mxu0
        %v795 = vadd.f32 0.0, %v794
        %v796 = vpop.f32.mrf.mxu0
        %797 = vmatprep.mubr.bf16.mxu0 0
        %798 = vmatmul.mubr.bf16.gmra.mxu0 %v574
        %v799 = vpop.f32.mrf.mxu0
        %v800 = vadd.f32 0.0, %v799
        %v801 = vpop.f32.mrf.mxu0
        %v802 = vpop.f32.mrf.mxu0
        %v803 = vadd.f32 0.0, %v802
        %v804 = vpop.f32.mrf.mxu0
        %805 = vmatprep.mubr.bf16.mxu0 0
        %806 = vmatmul.mubr.bf16.gmra.mxu0 %v575
        %v807 = vpop.f32.mrf.mxu0
        %v808 = vadd.f32 0.0, %v807
        %v809 = vpop.f32.mrf.mxu0
        %v810 = vpop.f32.mrf.mxu0
        %v811 = vadd.f32 0.0, %v810
        %v812 = vpop.f32.mrf.mxu0
        %813 = vmatprep.mubr.bf16.mxu0 0
        %814 = vmatmul.mubr.bf16.gmra.mxu0 %v576
        %v815 = vpop.f32.mrf.mxu0
        %v816 = vadd.f32 0.0, %v815
        %v817 = vpop.f32.mrf.mxu0
        %v818 = vpop.f32.mrf.mxu0
        %v819 = vadd.f32 0.0, %v818
        %v820 = vpop.f32.mrf.mxu0
        %821 = vmatprep.mubr.bf16.mxu0 0
        %822 = vmatmul.mubr.bf16.gmra.mxu0 %v577
        %v823 = vpop.f32.mrf.mxu0
        %v824 = vadd.f32 0.0, %v823
        %v825 = vpop.f32.mrf.mxu0
        %v826 = vpop.f32.mrf.mxu0
        %v827 = vadd.f32 0.0, %v826
        %v828 = vpop.f32.mrf.mxu0
        %829 = vmatprep.mubr.bf16.mxu0 0
        %830 = vmatmul.mubr.bf16.gmra.mxu0 %v578
        %v831 = vpop.f32.mrf.mxu0
        %v832 = vadd.f32 0.0, %v831
        %v833 = vpop.f32.mrf.mxu0
        %v834 = vpop.f32.mrf.mxu0
        %v835 = vadd.f32 0.0, %v834
        %v836 = vpop.f32.mrf.mxu0
        %837 = vmatprep.mubr.bf16.mxu0 0
        %838 = vmatmul.mubr.bf16.gmra.mxu0 %v579
        %v839 = vpop.f32.mrf.mxu0
        %v840 = vadd.f32 0.0, %v839
        %v841 = vpop.f32.mrf.mxu0
        %v842 = vpop.f32.mrf.mxu0
        %v843 = vadd.f32 0.0, %v842
        %v844 = vpop.f32.mrf.mxu0
        %845 = vmatprep.mubr.bf16.mxu0 0
        %846 = vmatmul.mubr.bf16.gmra.mxu0 %v580
        %v847 = vpop.f32.mrf.mxu0
        %v848 = vadd.f32 0.0, %v847
        %v849 = vpop.f32.mrf.mxu0
        %v850 = vpop.f32.mrf.mxu0
        %v851 = vadd.f32 0.0, %v850
        %v852 = vpop.f32.mrf.mxu0
        %853 = vdwg.mxu0
        %v870 = vunpack.c.l.b16 %v597
        %v871 = vunpack.c.l.b16 %v598
        %v872 = vunpack.c.l.b16 %v599
        %v873 = vunpack.c.l.b16 %v600
        %v874 = vunpack.c.l.b16 %v601
        %v875 = vunpack.c.l.b16 %v602
        %v876 = vunpack.c.l.b16 %v603
        %v877 = vunpack.c.l.b16 %v604
        %v878 = vunpack.c.l.b16 %v605
        %v879 = vunpack.c.l.b16 %v606
        %v880 = vunpack.c.l.b16 %v607
        %v881 = vunpack.c.l.b16 %v608
        %v882 = vunpack.c.l.b16 %v609
        %v883 = vunpack.c.l.b16 %v610
        %v884 = vunpack.c.l.b16 %v611
        %v885 = vunpack.c.l.b16 %v612
        %v886 = vpack.c.b16 %v871, %v870
        %v887 = vpack.c.b16 %v873, %v872
        %v888 = vpack.c.b16 %v875, %v874
        %v889 = vpack.c.b16 %v877, %v876
        %v890 = vpack.c.b16 %v879, %v878
        %v891 = vpack.c.b16 %v881, %v880
        %v892 = vpack.c.b16 %v883, %v882
        %v893 = vpack.c.b16 %v885, %v884
        %902 = vmatprep.subr.bf16.mxu0 0
        %903 = vmatpush1.bf16.msra.mxu0 %v893
        %904 = vmatprep.subr.bf16.mxu0 0
        %905 = vmatpush1.bf16.msra.mxu0 %v892
        %906 = vmatprep.subr.bf16.mxu0 0
        %907 = vmatpush1.bf16.msra.mxu0 %v891
        %908 = vmatprep.subr.bf16.mxu0 0
        %909 = vmatpush1.bf16.msra.mxu0 %v890
        %910 = vmatprep.subr.bf16.mxu0 0
        %911 = vmatpush1.bf16.msra.mxu0 %v889
        %912 = vmatprep.subr.bf16.mxu0 0
        %913 = vmatpush1.bf16.msra.mxu0 %v888
        %914 = vmatprep.subr.bf16.mxu0 0
        %915 = vmatpush1.bf16.msra.mxu0 %v887
        %916 = vmatprep.subr.bf16.mxu0 0
        %917 = vmatpush1.bf16.msra.mxu0 %v886
        %918 = vmatprep.subr.bf16.mxu0 0
        %919 = vmatpush2.bf16.msra.mxu0 0
        %920 = vmatprep.subr.bf16.mxu0 0
        %921 = vmatpush2.bf16.msra.mxu0 0
        %922 = vmatprep.subr.bf16.mxu0 0
        %923 = vmatpush2.bf16.msra.mxu0 0
        %924 = vmatprep.subr.bf16.mxu0 0
        %925 = vmatpush2.bf16.msra.mxu0 0
        %926 = vmatprep.subr.bf16.mxu0 0
        %927 = vmatpush2.bf16.msra.mxu0 0
        %928 = vmatprep.subr.bf16.mxu0 0
        %929 = vmatpush2.bf16.msra.mxu0 0
        %930 = vmatprep.subr.bf16.mxu0 0
        %931 = vmatpush2.bf16.msra.mxu0 0
        %932 = vmatprep.subr.bf16.mxu0 0
        %933 = vmatpush2.bf16.msra.mxu0 0
        %934 = vmatprep.mubr.bf16.mxu0 0
        %935 = vmatmul.mubr.bf16.gmra.mxu0 %v573
        %v936 = vpop.f32.mrf.mxu0
        %v937 = vadd.f32 0.0, %v936
        %v938 = vpop.f32.mrf.mxu0
        %v939 = vpop.f32.mrf.mxu0
        %v940 = vadd.f32 0.0, %v939
        %v941 = vpop.f32.mrf.mxu0
        %942 = vmatprep.mubr.bf16.mxu0 0
        %943 = vmatmul.mubr.bf16.gmra.mxu0 %v574
        %v944 = vpop.f32.mrf.mxu0
        %v945 = vadd.f32 0.0, %v944
        %v946 = vpop.f32.mrf.mxu0
        %v947 = vpop.f32.mrf.mxu0
        %v948 = vadd.f32 0.0, %v947
        %v949 = vpop.f32.mrf.mxu0
        %950 = vmatprep.mubr.bf16.mxu0 0
        %951 = vmatmul.mubr.bf16.gmra.mxu0 %v575
        %v952 = vpop.f32.mrf.mxu0
        %v953 = vadd.f32 0.0, %v952
        %v954 = vpop.f32.mrf.mxu0
        %v955 = vpop.f32.mrf.mxu0
        %v956 = vadd.f32 0.0, %v955
        %v957 = vpop.f32.mrf.mxu0
        %958 = vmatprep.mubr.bf16.mxu0 0
        %959 = vmatmul.mubr.bf16.gmra.mxu0 %v576
        %v960 = vpop.f32.mrf.mxu0
        %v961 = vadd.f32 0.0, %v960
        %v962 = vpop.f32.mrf.mxu0
        %v963 = vpop.f32.mrf.mxu0
        %v964 = vadd.f32 0.0, %v963
        %v965 = vpop.f32.mrf.mxu0
        %966 = vmatprep.mubr.bf16.mxu0 0
        %967 = vmatmul.mubr.bf16.gmra.mxu0 %v577
        %v968 = vpop.f32.mrf.mxu0
        %v969 = vadd.f32 0.0, %v968
        %v970 = vpop.f32.mrf.mxu0
        %v971 = vpop.f32.mrf.mxu0
        %v972 = vadd.f32 0.0, %v971
        %v973 = vpop.f32.mrf.mxu0
        %974 = vmatprep.mubr.bf16.mxu0 0
        %975 = vmatmul.mubr.bf16.gmra.mxu0 %v578
        %v976 = vpop.f32.mrf.mxu0
        %v977 = vadd.f32 0.0, %v976
        %v978 = vpop.f32.mrf.mxu0
        %v979 = vpop.f32.mrf.mxu0
        %v980 = vadd.f32 0.0, %v979
        %v981 = vpop.f32.mrf.mxu0
        %982 = vmatprep.mubr.bf16.mxu0 0
        %983 = vmatmul.mubr.bf16.gmra.mxu0 %v579
        %v984 = vpop.f32.mrf.mxu0
        %v985 = vadd.f32 0.0, %v984
        %v986 = vpop.f32.mrf.mxu0
        %v987 = vpop.f32.mrf.mxu0
        %v988 = vadd.f32 0.0, %v987
        %v989 = vpop.f32.mrf.mxu0
        %990 = vmatprep.mubr.bf16.mxu0 0
        %991 = vmatmul.mubr.bf16.gmra.mxu0 %v580
        %v992 = vpop.f32.mrf.mxu0
        %v993 = vadd.f32 0.0, %v992
        %v994 = vpop.f32.mrf.mxu0
        %v995 = vpop.f32.mrf.mxu0
        %v996 = vadd.f32 0.0, %v995
        %v997 = vpop.f32.mrf.mxu0
        %998 = vdwg.mxu0
        %v1015 = vunpack.c.l.b16 %v613
        %v1016 = vunpack.c.l.b16 %v614
        %v1017 = vunpack.c.l.b16 %v615
        %v1018 = vunpack.c.l.b16 %v616
        %v1019 = vunpack.c.l.b16 %v617
        %v1020 = vunpack.c.l.b16 %v618
        %v1021 = vunpack.c.l.b16 %v619
        %v1022 = vunpack.c.l.b16 %v620
        %v1023 = vunpack.c.l.b16 %v621
        %v1024 = vunpack.c.l.b16 %v622
        %v1025 = vunpack.c.l.b16 %v623
        %v1026 = vunpack.c.l.b16 %v624
        %v1027 = vunpack.c.l.b16 %v625
        %v1028 = vunpack.c.l.b16 %v626
        %v1029 = vunpack.c.l.b16 %v627
        %v1030 = vunpack.c.l.b16 %v628
        %v1031 = vpack.c.b16 %v1016, %v1015
        %v1032 = vpack.c.b16 %v1018, %v1017
        %v1033 = vpack.c.b16 %v1020, %v1019
        %v1034 = vpack.c.b16 %v1022, %v1021
        %v1035 = vpack.c.b16 %v1024, %v1023
        %v1036 = vpack.c.b16 %v1026, %v1025
        %v1037 = vpack.c.b16 %v1028, %v1027
        %v1038 = vpack.c.b16 %v1030, %v1029
        %1047 = vmatprep.subr.bf16.mxu0 0
        %1048 = vmatpush1.bf16.msra.mxu0 %v1038
        %1049 = vmatprep.subr.bf16.mxu0 0
        %1050 = vmatpush1.bf16.msra.mxu0 %v1037
        %1051 = vmatprep.subr.bf16.mxu0 0
        %1052 = vmatpush1.bf16.msra.mxu0 %v1036
        %1053 = vmatprep.subr.bf16.mxu0 0
        %1054 = vmatpush1.bf16.msra.mxu0 %v1035
        %1055 = vmatprep.subr.bf16.mxu0 0
        %1056 = vmatpush1.bf16.msra.mxu0 %v1034
        %1057 = vmatprep.subr.bf16.mxu0 0
        %1058 = vmatpush1.bf16.msra.mxu0 %v1033
        %1059 = vmatprep.subr.bf16.mxu0 0
        %1060 = vmatpush1.bf16.msra.mxu0 %v1032
        %1061 = vmatprep.subr.bf16.mxu0 0
        %1062 = vmatpush1.bf16.msra.mxu0 %v1031
        %1063 = vmatprep.subr.bf16.mxu0 0
        %1064 = vmatpush2.bf16.msra.mxu0 0
        %1065 = vmatprep.subr.bf16.mxu0 0
        %1066 = vmatpush2.bf16.msra.mxu0 0
        %1067 = vmatprep.subr.bf16.mxu0 0
        %1068 = vmatpush2.bf16.msra.mxu0 0
        %1069 = vmatprep.subr.bf16.mxu0 0
        %1070 = vmatpush2.bf16.msra.mxu0 0
        %1071 = vmatprep.subr.bf16.mxu0 0
        %1072 = vmatpush2.bf16.msra.mxu0 0
        %1073 = vmatprep.subr.bf16.mxu0 0
        %1074 = vmatpush2.bf16.msra.mxu0 0
        %1075 = vmatprep.subr.bf16.mxu0 0
        %1076 = vmatpush2.bf16.msra.mxu0 0
        %1077 = vmatprep.subr.bf16.mxu0 0
        %1078 = vmatpush2.bf16.msra.mxu0 0
        %1079 = vmatprep.mubr.bf16.mxu0 0
        %1080 = vmatmul.mubr.bf16.gmra.mxu0 %v573
        %v1081 = vpop.f32.mrf.mxu0
        %v1082 = vadd.f32 0.0, %v1081
        %v1083 = vpop.f32.mrf.mxu0
        %v1084 = vpop.f32.mrf.mxu0
        %v1085 = vadd.f32 0.0, %v1084
        %v1086 = vpop.f32.mrf.mxu0
        %1087 = vmatprep.mubr.bf16.mxu0 0
        %1088 = vmatmul.mubr.bf16.gmra.mxu0 %v574
        %v1089 = vpop.f32.mrf.mxu0
        %v1090 = vadd.f32 0.0, %v1089
        %v1091 = vpop.f32.mrf.mxu0
        %v1092 = vpop.f32.mrf.mxu0
        %v1093 = vadd.f32 0.0, %v1092
        %v1094 = vpop.f32.mrf.mxu0
        %1095 = vmatprep.mubr.bf16.mxu0 0
        %1096 = vmatmul.mubr.bf16.gmra.mxu0 %v575
        %v1097 = vpop.f32.mrf.mxu0
        %v1098 = vadd.f32 0.0, %v1097
        %v1099 = vpop.f32.mrf.mxu0
        %v1100 = vpop.f32.mrf.mxu0
        %v1101 = vadd.f32 0.0, %v1100
        %v1102 = vpop.f32.mrf.mxu0
        %1103 = vmatprep.mubr.bf16.mxu0 0
        %1104 = vmatmul.mubr.bf16.gmra.mxu0 %v576
        %v1105 = vpop.f32.mrf.mxu0
        %v1106 = vadd.f32 0.0, %v1105
        %v1107 = vpop.f32.mrf.mxu0
        %v1108 = vpop.f32.mrf.mxu0
        %v1109 = vadd.f32 0.0, %v1108
        %v1110 = vpop.f32.mrf.mxu0
        %1111 = vmatprep.mubr.bf16.mxu0 0
        %1112 = vmatmul.mubr.bf16.gmra.mxu0 %v577
        %v1113 = vpop.f32.mrf.mxu0
        %v1114 = vadd.f32 0.0, %v1113
        %v1115 = vpop.f32.mrf.mxu0
        %v1116 = vpop.f32.mrf.mxu0
        %v1117 = vadd.f32 0.0, %v1116
        %v1118 = vpop.f32.mrf.mxu0
        %1119 = vmatprep.mubr.bf16.mxu0 0
        %1120 = vmatmul.mubr.bf16.gmra.mxu0 %v578
        %v1121 = vpop.f32.mrf.mxu0
        %v1122 = vadd.f32 0.0, %v1121
        %v1123 = vpop.f32.mrf.mxu0
        %v1124 = vpop.f32.mrf.mxu0
        %v1125 = vadd.f32 0.0, %v1124
        %v1126 = vpop.f32.mrf.mxu0
        %1127 = vmatprep.mubr.bf16.mxu0 0
        %1128 = vmatmul.mubr.bf16.gmra.mxu0 %v579
        %v1129 = vpop.f32.mrf.mxu0
        %v1130 = vadd.f32 0.0, %v1129
        %v1131 = vpop.f32.mrf.mxu0
        %v1132 = vpop.f32.mrf.mxu0
        %v1133 = vadd.f32 0.0, %v1132
        %v1134 = vpop.f32.mrf.mxu0
        %1135 = vmatprep.mubr.bf16.mxu0 0
        %1136 = vmatmul.mubr.bf16.gmra.mxu0 %v580
        %v1137 = vpop.f32.mrf.mxu0
        %v1138 = vadd.f32 0.0, %v1137
        %v1139 = vpop.f32.mrf.mxu0
        %v1140 = vpop.f32.mrf.mxu0
        %v1141 = vadd.f32 0.0, %v1140
        %v1142 = vpop.f32.mrf.mxu0
        %1143 = vdwg.mxu0
        %v1160 = vunpack.c.l.b16 %v629
        %v1161 = vunpack.c.l.b16 %v630
        %v1162 = vunpack.c.l.b16 %v631
        %v1163 = vunpack.c.l.b16 %v632
        %v1164 = vunpack.c.l.b16 %v633
        %v1165 = vunpack.c.l.b16 %v634
        %v1166 = vunpack.c.l.b16 %v635
        %v1167 = vunpack.c.l.b16 %v636
        %v1168 = vunpack.c.l.b16 %v637
        %v1169 = vunpack.c.l.b16 %v638
        %v1170 = vunpack.c.l.b16 %v639
        %v1171 = vunpack.c.l.b16 %v640
        %v1172 = vunpack.c.l.b16 %v641
        %v1173 = vunpack.c.l.b16 %v642
        %v1174 = vunpack.c.l.b16 %v643
        %v1175 = vunpack.c.l.b16 %v644
        %v1176 = vpack.c.b16 %v1161, %v1160
        %v1177 = vpack.c.b16 %v1163, %v1162
        %v1178 = vpack.c.b16 %v1165, %v1164
        %v1179 = vpack.c.b16 %v1167, %v1166
        %v1180 = vpack.c.b16 %v1169, %v1168
        %v1181 = vpack.c.b16 %v1171, %v1170
        %v1182 = vpack.c.b16 %v1173, %v1172
        %v1183 = vpack.c.b16 %v1175, %v1174
        %1192 = vmatprep.subr.bf16.mxu0 0
        %1193 = vmatpush1.bf16.msra.mxu0 %v1183
        %1194 = vmatprep.subr.bf16.mxu0 0
        %1195 = vmatpush1.bf16.msra.mxu0 %v1182
        %1196 = vmatprep.subr.bf16.mxu0 0
        %1197 = vmatpush1.bf16.msra.mxu0 %v1181
        %1198 = vmatprep.subr.bf16.mxu0 0
        %1199 = vmatpush1.bf16.msra.mxu0 %v1180
        %1200 = vmatprep.subr.bf16.mxu0 0
        %1201 = vmatpush1.bf16.msra.mxu0 %v1179
        %1202 = vmatprep.subr.bf16.mxu0 0
        %1203 = vmatpush1.bf16.msra.mxu0 %v1178
        %1204 = vmatprep.subr.bf16.mxu0 0
        %1205 = vmatpush1.bf16.msra.mxu0 %v1177
        %1206 = vmatprep.subr.bf16.mxu0 0
        %1207 = vmatpush1.bf16.msra.mxu0 %v1176
        %1208 = vmatprep.subr.bf16.mxu0 0
        %1209 = vmatpush2.bf16.msra.mxu0 0
        %1210 = vmatprep.subr.bf16.mxu0 0
        %1211 = vmatpush2.bf16.msra.mxu0 0
        %1212 = vmatprep.subr.bf16.mxu0 0
        %1213 = vmatpush2.bf16.msra.mxu0 0
        %1214 = vmatprep.subr.bf16.mxu0 0
        %1215 = vmatpush2.bf16.msra.mxu0 0
        %1216 = vmatprep.subr.bf16.mxu0 0
        %1217 = vmatpush2.bf16.msra.mxu0 0
        %1218 = vmatprep.subr.bf16.mxu0 0
        %1219 = vmatpush2.bf16.msra.mxu0 0
        %1220 = vmatprep.subr.bf16.mxu0 0
        %1221 = vmatpush2.bf16.msra.mxu0 0
        %1222 = vmatprep.subr.bf16.mxu0 0
        %1223 = vmatpush2.bf16.msra.mxu0 0
        %1224 = vmatprep.mubr.bf16.mxu0 0
        %1225 = vmatmul.mubr.bf16.gmra.mxu0 %v573
        %v1226 = vpop.f32.mrf.mxu0
        %v1227 = vadd.f32 0.0, %v1226
        %v1228 = vpop.f32.mrf.mxu0
        %v1229 = vpop.f32.mrf.mxu0
        %v1230 = vadd.f32 0.0, %v1229
        %v1231 = vpop.f32.mrf.mxu0
        %1232 = vmatprep.mubr.bf16.mxu0 0
        %1233 = vmatmul.mubr.bf16.gmra.mxu0 %v574
        %v1234 = vpop.f32.mrf.mxu0
        %v1235 = vadd.f32 0.0, %v1234
        %v1236 = vpop.f32.mrf.mxu0
        %v1237 = vpop.f32.mrf.mxu0
        %v1238 = vadd.f32 0.0, %v1237
        %v1239 = vpop.f32.mrf.mxu0
        %1240 = vmatprep.mubr.bf16.mxu0 0
        %1241 = vmatmul.mubr.bf16.gmra.mxu0 %v575
        %v1242 = vpop.f32.mrf.mxu0
        %v1243 = vadd.f32 0.0, %v1242
        %v1244 = vpop.f32.mrf.mxu0
        %v1245 = vpop.f32.mrf.mxu0
        %v1246 = vadd.f32 0.0, %v1245
        %v1247 = vpop.f32.mrf.mxu0
        %1248 = vmatprep.mubr.bf16.mxu0 0
        %1249 = vmatmul.mubr.bf16.gmra.mxu0 %v576
        %v1250 = vpop.f32.mrf.mxu0
        %v1251 = vadd.f32 0.0, %v1250
        %v1252 = vpop.f32.mrf.mxu0
        %v1253 = vpop.f32.mrf.mxu0
        %v1254 = vadd.f32 0.0, %v1253
        %v1255 = vpop.f32.mrf.mxu0
        %1256 = vmatprep.mubr.bf16.mxu0 0
        %1257 = vmatmul.mubr.bf16.gmra.mxu0 %v577
        %v1258 = vpop.f32.mrf.mxu0
        %v1259 = vadd.f32 0.0, %v1258
        %v1260 = vpop.f32.mrf.mxu0
        %v1261 = vpop.f32.mrf.mxu0
        %v1262 = vadd.f32 0.0, %v1261
        %v1263 = vpop.f32.mrf.mxu0
        %1264 = vmatprep.mubr.bf16.mxu0 0
        %1265 = vmatmul.mubr.bf16.gmra.mxu0 %v578
        %v1266 = vpop.f32.mrf.mxu0
        %v1267 = vadd.f32 0.0, %v1266
        %v1268 = vpop.f32.mrf.mxu0
        %v1269 = vpop.f32.mrf.mxu0
        %v1270 = vadd.f32 0.0, %v1269
        %v1271 = vpop.f32.mrf.mxu0
        %1272 = vmatprep.mubr.bf16.mxu0 0
        %1273 = vmatmul.mubr.bf16.gmra.mxu0 %v579
        %v1274 = vpop.f32.mrf.mxu0
        %v1275 = vadd.f32 0.0, %v1274
        %v1276 = vpop.f32.mrf.mxu0
        %v1277 = vpop.f32.mrf.mxu0
        %v1278 = vadd.f32 0.0, %v1277
        %v1279 = vpop.f32.mrf.mxu0
        %1280 = vmatprep.mubr.bf16.mxu0 0
        %1281 = vmatmul.mubr.bf16.gmra.mxu0 %v580
        %v1282 = vpop.f32.mrf.mxu0
        %v1283 = vadd.f32 0.0, %v1282
        %v1284 = vpop.f32.mrf.mxu0
        %v1285 = vpop.f32.mrf.mxu0
        %v1286 = vadd.f32 0.0, %v1285
        %v1287 = vpop.f32.mrf.mxu0
        %1288 = vdwg.mxu0
        %v1305 = vunpack.c.l.b16 %v645
        %v1306 = vunpack.c.l.b16 %v646
        %v1307 = vunpack.c.l.b16 %v647
        %v1308 = vunpack.c.l.b16 %v648
        %v1309 = vunpack.c.l.b16 %v649
        %v1310 = vunpack.c.l.b16 %v650
        %v1311 = vunpack.c.l.b16 %v651
        %v1312 = vunpack.c.l.b16 %v652
        %v1313 = vunpack.c.l.b16 %v653
        %v1314 = vunpack.c.l.b16 %v654
        %v1315 = vunpack.c.l.b16 %v655
        %v1316 = vunpack.c.l.b16 %v656
        %v1317 = vunpack.c.l.b16 %v657
        %v1318 = vunpack.c.l.b16 %v658
        %v1319 = vunpack.c.l.b16 %v659
        %v1320 = vunpack.c.l.b16 %v660
        %v1321 = vpack.c.b16 %v1306, %v1305
        %v1322 = vpack.c.b16 %v1308, %v1307
        %v1323 = vpack.c.b16 %v1310, %v1309
        %v1324 = vpack.c.b16 %v1312, %v1311
        %v1325 = vpack.c.b16 %v1314, %v1313
        %v1326 = vpack.c.b16 %v1316, %v1315
        %v1327 = vpack.c.b16 %v1318, %v1317
        %v1328 = vpack.c.b16 %v1320, %v1319
        %1337 = vmatprep.subr.bf16.mxu0 0
        %1338 = vmatpush1.bf16.msra.mxu0 %v1328
        %1339 = vmatprep.subr.bf16.mxu0 0
        %1340 = vmatpush1.bf16.msra.mxu0 %v1327
        %1341 = vmatprep.subr.bf16.mxu0 0
        %1342 = vmatpush1.bf16.msra.mxu0 %v1326
        %1343 = vmatprep.subr.bf16.mxu0 0
        %1344 = vmatpush1.bf16.msra.mxu0 %v1325
        %1345 = vmatprep.subr.bf16.mxu0 0
        %1346 = vmatpush1.bf16.msra.mxu0 %v1324
        %1347 = vmatprep.subr.bf16.mxu0 0
        %1348 = vmatpush1.bf16.msra.mxu0 %v1323
        %1349 = vmatprep.subr.bf16.mxu0 0
        %1350 = vmatpush1.bf16.msra.mxu0 %v1322
        %1351 = vmatprep.subr.bf16.mxu0 0
        %1352 = vmatpush1.bf16.msra.mxu0 %v1321
        %1353 = vmatprep.subr.bf16.mxu0 0
        %1354 = vmatpush2.bf16.msra.mxu0 0
        %1355 = vmatprep.subr.bf16.mxu0 0
        %1356 = vmatpush2.bf16.msra.mxu0 0
        %1357 = vmatprep.subr.bf16.mxu0 0
        %1358 = vmatpush2.bf16.msra.mxu0 0
        %1359 = vmatprep.subr.bf16.mxu0 0
        %1360 = vmatpush2.bf16.msra.mxu0 0
        %1361 = vmatprep.subr.bf16.mxu0 0
        %1362 = vmatpush2.bf16.msra.mxu0 0
        %1363 = vmatprep.subr.bf16.mxu0 0
        %1364 = vmatpush2.bf16.msra.mxu0 0
        %1365 = vmatprep.subr.bf16.mxu0 0
        %1366 = vmatpush2.bf16.msra.mxu0 0
        %1367 = vmatprep.subr.bf16.mxu0 0
        %1368 = vmatpush2.bf16.msra.mxu0 0
        %1369 = vmatprep.mubr.bf16.mxu0 0
        %1370 = vmatmul.mubr.bf16.gmra.mxu0 %v573
        %v1371 = vpop.f32.mrf.mxu0
        %v1372 = vadd.f32 0.0, %v1371
        %v1373 = vpop.f32.mrf.mxu0
        %v1374 = vpop.f32.mrf.mxu0
        %v1375 = vadd.f32 0.0, %v1374
        %v1376 = vpop.f32.mrf.mxu0
        %1377 = vmatprep.mubr.bf16.mxu0 0
        %1378 = vmatmul.mubr.bf16.gmra.mxu0 %v574
        %v1379 = vpop.f32.mrf.mxu0
        %v1380 = vadd.f32 0.0, %v1379
        %v1381 = vpop.f32.mrf.mxu0
        %v1382 = vpop.f32.mrf.mxu0
        %v1383 = vadd.f32 0.0, %v1382
        %v1384 = vpop.f32.mrf.mxu0
        %1385 = vmatprep.mubr.bf16.mxu0 0
        %1386 = vmatmul.mubr.bf16.gmra.mxu0 %v575
        %v1387 = vpop.f32.mrf.mxu0
        %v1388 = vadd.f32 0.0, %v1387
        %v1389 = vpop.f32.mrf.mxu0
        %v1390 = vpop.f32.mrf.mxu0
        %v1391 = vadd.f32 0.0, %v1390
        %v1392 = vpop.f32.mrf.mxu0
        %1393 = vmatprep.mubr.bf16.mxu0 0
        %1394 = vmatmul.mubr.bf16.gmra.mxu0 %v576
        %v1395 = vpop.f32.mrf.mxu0
        %v1396 = vadd.f32 0.0, %v1395
        %v1397 = vpop.f32.mrf.mxu0
        %v1398 = vpop.f32.mrf.mxu0
        %v1399 = vadd.f32 0.0, %v1398
        %v1400 = vpop.f32.mrf.mxu0
        %1401 = vmatprep.mubr.bf16.mxu0 0
        %1402 = vmatmul.mubr.bf16.gmra.mxu0 %v577
        %v1403 = vpop.f32.mrf.mxu0
        %v1404 = vadd.f32 0.0, %v1403
        %v1405 = vpop.f32.mrf.mxu0
        %v1406 = vpop.f32.mrf.mxu0
        %v1407 = vadd.f32 0.0, %v1406
        %v1408 = vpop.f32.mrf.mxu0
        %1409 = vmatprep.mubr.bf16.mxu0 0
        %1410 = vmatmul.mubr.bf16.gmra.mxu0 %v578
        %v1411 = vpop.f32.mrf.mxu0
        %v1412 = vadd.f32 0.0, %v1411
        %v1413 = vpop.f32.mrf.mxu0
        %v1414 = vpop.f32.mrf.mxu0
        %v1415 = vadd.f32 0.0, %v1414
        %v1416 = vpop.f32.mrf.mxu0
        %1417 = vmatprep.mubr.bf16.mxu0 0
        %1418 = vmatmul.mubr.bf16.gmra.mxu0 %v579
        %v1419 = vpop.f32.mrf.mxu0
        %v1420 = vadd.f32 0.0, %v1419
        %v1421 = vpop.f32.mrf.mxu0
        %v1422 = vpop.f32.mrf.mxu0
        %v1423 = vadd.f32 0.0, %v1422
        %v1424 = vpop.f32.mrf.mxu0
        %1425 = vmatprep.mubr.bf16.mxu0 0
        %1426 = vmatmul.mubr.bf16.gmra.mxu0 %v580
        %v1427 = vpop.f32.mrf.mxu0
        %v1428 = vadd.f32 0.0, %v1427
        %v1429 = vpop.f32.mrf.mxu0
        %v1430 = vpop.f32.mrf.mxu0
        %v1431 = vadd.f32 0.0, %v1430
        %v1432 = vpop.f32.mrf.mxu0
        %1433 = vdwg.mxu0
        %v1450 = vunpack.c.l.b16 %v661
        %v1451 = vunpack.c.l.b16 %v662
        %v1452 = vunpack.c.l.b16 %v663
        %v1453 = vunpack.c.l.b16 %v664
        %v1454 = vunpack.c.l.b16 %v665
        %v1455 = vunpack.c.l.b16 %v666
        %v1456 = vunpack.c.l.b16 %v667
        %v1457 = vunpack.c.l.b16 %v668
        %v1458 = vunpack.c.l.b16 %v669
        %v1459 = vunpack.c.l.b16 %v670
        %v1460 = vunpack.c.l.b16 %v671
        %v1461 = vunpack.c.l.b16 %v672
        %v1462 = vunpack.c.l.b16 %v673
        %v1463 = vunpack.c.l.b16 %v674
        %v1464 = vunpack.c.l.b16 %v675
        %v1465 = vunpack.c.l.b16 %v676
        %v1466 = vpack.c.b16 %v1451, %v1450
        %v1467 = vpack.c.b16 %v1453, %v1452
        %v1468 = vpack.c.b16 %v1455, %v1454
        %v1469 = vpack.c.b16 %v1457, %v1456
        %v1470 = vpack.c.b16 %v1459, %v1458
        %v1471 = vpack.c.b16 %v1461, %v1460
        %v1472 = vpack.c.b16 %v1463, %v1462
        %v1473 = vpack.c.b16 %v1465, %v1464
        %1482 = vmatprep.subr.bf16.mxu0 0
        %1483 = vmatpush1.bf16.msra.mxu0 %v1473
        %1484 = vmatprep.subr.bf16.mxu0 0
        %1485 = vmatpush1.bf16.msra.mxu0 %v1472
        %1486 = vmatprep.subr.bf16.mxu0 0
        %1487 = vmatpush1.bf16.msra.mxu0 %v1471
        %1488 = vmatprep.subr.bf16.mxu0 0
        %1489 = vmatpush1.bf16.msra.mxu0 %v1470
        %1490 = vmatprep.subr.bf16.mxu0 0
        %1491 = vmatpush1.bf16.msra.mxu0 %v1469
        %1492 = vmatprep.subr.bf16.mxu0 0
        %1493 = vmatpush1.bf16.msra.mxu0 %v1468
        %1494 = vmatprep.subr.bf16.mxu0 0
        %1495 = vmatpush1.bf16.msra.mxu0 %v1467
        %1496 = vmatprep.subr.bf16.mxu0 0
        %1497 = vmatpush1.bf16.msra.mxu0 %v1466
        %1498 = vmatprep.subr.bf16.mxu0 0
        %1499 = vmatpush2.bf16.msra.mxu0 0
        %1500 = vmatprep.subr.bf16.mxu0 0
        %1501 = vmatpush2.bf16.msra.mxu0 0
        %1502 = vmatprep.subr.bf16.mxu0 0
        %1503 = vmatpush2.bf16.msra.mxu0 0
        %1504 = vmatprep.subr.bf16.mxu0 0
        %1505 = vmatpush2.bf16.msra.mxu0 0
        %1506 = vmatprep.subr.bf16.mxu0 0
        %1507 = vmatpush2.bf16.msra.mxu0 0
        %1508 = vmatprep.subr.bf16.mxu0 0
        %1509 = vmatpush2.bf16.msra.mxu0 0
        %1510 = vmatprep.subr.bf16.mxu0 0
        %1511 = vmatpush2.bf16.msra.mxu0 0
        %1512 = vmatprep.subr.bf16.mxu0 0
        %1513 = vmatpush2.bf16.msra.mxu0 0
        %1514 = vmatprep.mubr.bf16.mxu0 0
        %1515 = vmatmul.mubr.bf16.gmra.mxu0 %v573
        %v1516 = vpop.f32.mrf.mxu0
        %v1517 = vadd.f32 0.0, %v1516
        %v1518 = vpop.f32.mrf.mxu0
        %v1519 = vpop.f32.mrf.mxu0
        %v1520 = vadd.f32 0.0, %v1519
        %v1521 = vpop.f32.mrf.mxu0
        %1522 = vmatprep.mubr.bf16.mxu0 0
        %1523 = vmatmul.mubr.bf16.gmra.mxu0 %v574
        %v1524 = vpop.f32.mrf.mxu0
        %v1525 = vadd.f32 0.0, %v1524
        %v1526 = vpop.f32.mrf.mxu0
        %v1527 = vpop.f32.mrf.mxu0
        %v1528 = vadd.f32 0.0, %v1527
        %v1529 = vpop.f32.mrf.mxu0
        %1530 = vmatprep.mubr.bf16.mxu0 0
        %1531 = vmatmul.mubr.bf16.gmra.mxu0 %v575
        %v1532 = vpop.f32.mrf.mxu0
        %v1533 = vadd.f32 0.0, %v1532
        %v1534 = vpop.f32.mrf.mxu0
        %v1535 = vpop.f32.mrf.mxu0
        %v1536 = vadd.f32 0.0, %v1535
        %v1537 = vpop.f32.mrf.mxu0
        %1538 = vmatprep.mubr.bf16.mxu0 0
        %1539 = vmatmul.mubr.bf16.gmra.mxu0 %v576
        %v1540 = vpop.f32.mrf.mxu0
        %v1541 = vadd.f32 0.0, %v1540
        %v1542 = vpop.f32.mrf.mxu0
        %v1543 = vpop.f32.mrf.mxu0
        %v1544 = vadd.f32 0.0, %v1543
        %v1545 = vpop.f32.mrf.mxu0
        %1546 = vmatprep.mubr.bf16.mxu0 0
        %1547 = vmatmul.mubr.bf16.gmra.mxu0 %v577
        %v1548 = vpop.f32.mrf.mxu0
        %v1549 = vadd.f32 0.0, %v1548
        %v1550 = vpop.f32.mrf.mxu0
        %v1551 = vpop.f32.mrf.mxu0
        %v1552 = vadd.f32 0.0, %v1551
        %v1553 = vpop.f32.mrf.mxu0
        %1554 = vmatprep.mubr.bf16.mxu0 0
        %1555 = vmatmul.mubr.bf16.gmra.mxu0 %v578
        %v1556 = vpop.f32.mrf.mxu0
        %v1557 = vadd.f32 0.0, %v1556
        %v1558 = vpop.f32.mrf.mxu0
        %v1559 = vpop.f32.mrf.mxu0
        %v1560 = vadd.f32 0.0, %v1559
        %v1561 = vpop.f32.mrf.mxu0
        %1562 = vmatprep.mubr.bf16.mxu0 0
        %1563 = vmatmul.mubr.bf16.gmra.mxu0 %v579
        %v1564 = vpop.f32.mrf.mxu0
        %v1565 = vadd.f32 0.0, %v1564
        %v1566 = vpop.f32.mrf.mxu0
        %v1567 = vpop.f32.mrf.mxu0
        %v1568 = vadd.f32 0.0, %v1567
        %v1569 = vpop.f32.mrf.mxu0
        %1570 = vmatprep.mubr.bf16.mxu0 0
        %1571 = vmatmul.mubr.bf16.gmra.mxu0 %v580
        %v1572 = vpop.f32.mrf.mxu0
        %v1573 = vadd.f32 0.0, %v1572
        %v1574 = vpop.f32.mrf.mxu0
        %v1575 = vpop.f32.mrf.mxu0
        %v1576 = vadd.f32 0.0, %v1575
        %v1577 = vpop.f32.mrf.mxu0
        %1578 = vdwg.mxu0
        %v1595 = vunpack.c.l.b16 %v677
        %v1596 = vunpack.c.l.b16 %v678
        %v1597 = vunpack.c.l.b16 %v679
        %v1598 = vunpack.c.l.b16 %v680
        %v1599 = vunpack.c.l.b16 %v681
        %v1600 = vunpack.c.l.b16 %v682
        %v1601 = vunpack.c.l.b16 %v683
        %v1602 = vunpack.c.l.b16 %v684
        %v1603 = vunpack.c.l.b16 %v685
        %v1604 = vunpack.c.l.b16 %v686
        %v1605 = vunpack.c.l.b16 %v687
        %v1606 = vunpack.c.l.b16 %v688
        %v1607 = vunpack.c.l.b16 %v689
        %v1608 = vunpack.c.l.b16 %v690
        %v1609 = vunpack.c.l.b16 %v691
        %v1610 = vunpack.c.l.b16 %v692
        %v1611 = vpack.c.b16 %v1596, %v1595
        %v1612 = vpack.c.b16 %v1598, %v1597
        %v1613 = vpack.c.b16 %v1600, %v1599
        %v1614 = vpack.c.b16 %v1602, %v1601
        %v1615 = vpack.c.b16 %v1604, %v1603
        %v1616 = vpack.c.b16 %v1606, %v1605
        %v1617 = vpack.c.b16 %v1608, %v1607
        %v1618 = vpack.c.b16 %v1610, %v1609
        %1627 = vmatprep.subr.bf16.mxu0 0
        %1628 = vmatpush1.bf16.msra.mxu0 %v1618
        %1629 = vmatprep.subr.bf16.mxu0 0
        %1630 = vmatpush1.bf16.msra.mxu0 %v1617
        %1631 = vmatprep.subr.bf16.mxu0 0
        %1632 = vmatpush1.bf16.msra.mxu0 %v1616
        %1633 = vmatprep.subr.bf16.mxu0 0
        %1634 = vmatpush1.bf16.msra.mxu0 %v1615
        %1635 = vmatprep.subr.bf16.mxu0 0
        %1636 = vmatpush1.bf16.msra.mxu0 %v1614
        %1637 = vmatprep.subr.bf16.mxu0 0
        %1638 = vmatpush1.bf16.msra.mxu0 %v1613
        %1639 = vmatprep.subr.bf16.mxu0 0
        %1640 = vmatpush1.bf16.msra.mxu0 %v1612
        %1641 = vmatprep.subr.bf16.mxu0 0
        %1642 = vmatpush1.bf16.msra.mxu0 %v1611
        %1643 = vmatprep.subr.bf16.mxu0 0
        %1644 = vmatpush2.bf16.msra.mxu0 0
        %1645 = vmatprep.subr.bf16.mxu0 0
        %1646 = vmatpush2.bf16.msra.mxu0 0
        %1647 = vmatprep.subr.bf16.mxu0 0
        %1648 = vmatpush2.bf16.msra.mxu0 0
        %1649 = vmatprep.subr.bf16.mxu0 0
        %1650 = vmatpush2.bf16.msra.mxu0 0
        %1651 = vmatprep.subr.bf16.mxu0 0
        %1652 = vmatpush2.bf16.msra.mxu0 0
        %1653 = vmatprep.subr.bf16.mxu0 0
        %1654 = vmatpush2.bf16.msra.mxu0 0
        %1655 = vmatprep.subr.bf16.mxu0 0
        %1656 = vmatpush2.bf16.msra.mxu0 0
        %1657 = vmatprep.subr.bf16.mxu0 0
        %1658 = vmatpush2.bf16.msra.mxu0 0
        %1659 = vmatprep.mubr.bf16.mxu0 0
        %1660 = vmatmul.mubr.bf16.gmra.mxu0 %v573
        %v1661 = vpop.f32.mrf.mxu0
        %v1662 = vadd.f32 0.0, %v1661
        %v1663 = vpop.f32.mrf.mxu0
        %v1664 = vpop.f32.mrf.mxu0
        %v1665 = vadd.f32 0.0, %v1664
        %v1666 = vpop.f32.mrf.mxu0
        %1667 = vmatprep.mubr.bf16.mxu0 0
        %1668 = vmatmul.mubr.bf16.gmra.mxu0 %v574
        %v1669 = vpop.f32.mrf.mxu0
        %v1670 = vadd.f32 0.0, %v1669
        %v1671 = vpop.f32.mrf.mxu0
        %v1672 = vpop.f32.mrf.mxu0
        %v1673 = vadd.f32 0.0, %v1672
        %v1674 = vpop.f32.mrf.mxu0
        %1675 = vmatprep.mubr.bf16.mxu0 0
        %1676 = vmatmul.mubr.bf16.gmra.mxu0 %v575
        %v1677 = vpop.f32.mrf.mxu0
        %v1678 = vadd.f32 0.0, %v1677
        %v1679 = vpop.f32.mrf.mxu0
        %v1680 = vpop.f32.mrf.mxu0
        %v1681 = vadd.f32 0.0, %v1680
        %v1682 = vpop.f32.mrf.mxu0
        %1683 = vmatprep.mubr.bf16.mxu0 0
        %1684 = vmatmul.mubr.bf16.gmra.mxu0 %v576
        %v1685 = vpop.f32.mrf.mxu0
        %v1686 = vadd.f32 0.0, %v1685
        %v1687 = vpop.f32.mrf.mxu0
        %v1688 = vpop.f32.mrf.mxu0
        %v1689 = vadd.f32 0.0, %v1688
        %v1690 = vpop.f32.mrf.mxu0
        %1691 = vmatprep.mubr.bf16.mxu0 0
        %1692 = vmatmul.mubr.bf16.gmra.mxu0 %v577
        %v1693 = vpop.f32.mrf.mxu0
        %v1694 = vadd.f32 0.0, %v1693
        %v1695 = vpop.f32.mrf.mxu0
        %v1696 = vpop.f32.mrf.mxu0
        %v1697 = vadd.f32 0.0, %v1696
        %v1698 = vpop.f32.mrf.mxu0
        %1699 = vmatprep.mubr.bf16.mxu0 0
        %1700 = vmatmul.mubr.bf16.gmra.mxu0 %v578
        %v1701 = vpop.f32.mrf.mxu0
        %v1702 = vadd.f32 0.0, %v1701
        %v1703 = vpop.f32.mrf.mxu0
        %v1704 = vpop.f32.mrf.mxu0
        %v1705 = vadd.f32 0.0, %v1704
        %v1706 = vpop.f32.mrf.mxu0
        %1707 = vmatprep.mubr.bf16.mxu0 0
        %1708 = vmatmul.mubr.bf16.gmra.mxu0 %v579
        %v1709 = vpop.f32.mrf.mxu0
        %v1710 = vadd.f32 0.0, %v1709
        %v1711 = vpop.f32.mrf.mxu0
        %v1712 = vpop.f32.mrf.mxu0
        %v1713 = vadd.f32 0.0, %v1712
        %v1714 = vpop.f32.mrf.mxu0
        %1715 = vmatprep.mubr.bf16.mxu0 0
        %1716 = vmatmul.mubr.bf16.gmra.mxu0 %v580
        %v1717 = vpop.f32.mrf.mxu0
        %v1718 = vadd.f32 0.0, %v1717
        %v1719 = vpop.f32.mrf.mxu0
        %v1720 = vpop.f32.mrf.mxu0
        %v1721 = vadd.f32 0.0, %v1720
        %v1722 = vpop.f32.mrf.mxu0
        %1723 = vdwg.mxu0
        %v1740 = vunpack.c.l.b16 %v693
        %v1741 = vunpack.c.l.b16 %v694
        %v1742 = vunpack.c.l.b16 %v695
        %v1743 = vunpack.c.l.b16 %v696
        %v1744 = vunpack.c.l.b16 %v697
        %v1745 = vunpack.c.l.b16 %v698
        %v1746 = vunpack.c.l.b16 %v699
        %v1747 = vunpack.c.l.b16 %v700
        %v1748 = vunpack.c.l.b16 %v701
        %v1749 = vunpack.c.l.b16 %v702
        %v1750 = vunpack.c.l.b16 %v703
        %v1751 = vunpack.c.l.b16 %v704
        %v1752 = vunpack.c.l.b16 %v705
        %v1753 = vunpack.c.l.b16 %v706
        %v1754 = vunpack.c.l.b16 %v707
        %v1755 = vunpack.c.l.b16 %v708
        %v1756 = vpack.c.b16 %v1741, %v1740
        %v1757 = vpack.c.b16 %v1743, %v1742
        %v1758 = vpack.c.b16 %v1745, %v1744
        %v1759 = vpack.c.b16 %v1747, %v1746
        %v1760 = vpack.c.b16 %v1749, %v1748
        %v1761 = vpack.c.b16 %v1751, %v1750
        %v1762 = vpack.c.b16 %v1753, %v1752
        %v1763 = vpack.c.b16 %v1755, %v1754
        %1772 = vmatprep.subr.bf16.mxu0 0
        %1773 = vmatpush1.bf16.msra.mxu0 %v1763
        %1774 = vmatprep.subr.bf16.mxu0 0
        %1775 = vmatpush1.bf16.msra.mxu0 %v1762
        %1776 = vmatprep.subr.bf16.mxu0 0
        %1777 = vmatpush1.bf16.msra.mxu0 %v1761
        %1778 = vmatprep.subr.bf16.mxu0 0
        %1779 = vmatpush1.bf16.msra.mxu0 %v1760
        %1780 = vmatprep.subr.bf16.mxu0 0
        %1781 = vmatpush1.bf16.msra.mxu0 %v1759
        %1782 = vmatprep.subr.bf16.mxu0 0
        %1783 = vmatpush1.bf16.msra.mxu0 %v1758
        %1784 = vmatprep.subr.bf16.mxu0 0
        %1785 = vmatpush1.bf16.msra.mxu0 %v1757
        %1786 = vmatprep.subr.bf16.mxu0 0
        %1787 = vmatpush1.bf16.msra.mxu0 %v1756
        %1788 = vmatprep.subr.bf16.mxu0 0
        %1789 = vmatpush2.bf16.msra.mxu0 0
        %1790 = vmatprep.subr.bf16.mxu0 0
        %1791 = vmatpush2.bf16.msra.mxu0 0
        %1792 = vmatprep.subr.bf16.mxu0 0
        %1793 = vmatpush2.bf16.msra.mxu0 0
        %1794 = vmatprep.subr.bf16.mxu0 0
        %1795 = vmatpush2.bf16.msra.mxu0 0
        %1796 = vmatprep.subr.bf16.mxu0 0
        %1797 = vmatpush2.bf16.msra.mxu0 0
        %1798 = vmatprep.subr.bf16.mxu0 0
        %1799 = vmatpush2.bf16.msra.mxu0 0
        %1800 = vmatprep.subr.bf16.mxu0 0
        %1801 = vmatpush2.bf16.msra.mxu0 0
        %1802 = vmatprep.subr.bf16.mxu0 0
        %1803 = vmatpush2.bf16.msra.mxu0 0
        %1804 = vmatprep.mubr.bf16.mxu0 0
        %1805 = vmatmul.mubr.bf16.gmra.mxu0 %v573
        %v1806 = vpop.f32.mrf.mxu0
        %v1807 = vadd.f32 0.0, %v1806
        %v1808 = vpop.f32.mrf.mxu0
        %v1809 = vpop.f32.mrf.mxu0
        %v1810 = vadd.f32 0.0, %v1809
        %v1811 = vpop.f32.mrf.mxu0
        %1812 = vmatprep.mubr.bf16.mxu0 0
        %1813 = vmatmul.mubr.bf16.gmra.mxu0 %v574
        %v1814 = vpop.f32.mrf.mxu0
        %v1815 = vadd.f32 0.0, %v1814
        %v1816 = vpop.f32.mrf.mxu0
        %v1817 = vpop.f32.mrf.mxu0
        %v1818 = vadd.f32 0.0, %v1817
        %v1819 = vpop.f32.mrf.mxu0
        %1820 = vmatprep.mubr.bf16.mxu0 0
        %1821 = vmatmul.mubr.bf16.gmra.mxu0 %v575
        %v1822 = vpop.f32.mrf.mxu0
        %v1823 = vadd.f32 0.0, %v1822
        %v1824 = vpop.f32.mrf.mxu0
        %v1825 = vpop.f32.mrf.mxu0
        %v1826 = vadd.f32 0.0, %v1825
        %v1827 = vpop.f32.mrf.mxu0
        %1828 = vmatprep.mubr.bf16.mxu0 0
        %1829 = vmatmul.mubr.bf16.gmra.mxu0 %v576
        %v1830 = vpop.f32.mrf.mxu0
        %v1831 = vadd.f32 0.0, %v1830
        %v1832 = vpop.f32.mrf.mxu0
        %v1833 = vpop.f32.mrf.mxu0
        %v1834 = vadd.f32 0.0, %v1833
        %v1835 = vpop.f32.mrf.mxu0
        %1836 = vmatprep.mubr.bf16.mxu0 0
        %1837 = vmatmul.mubr.bf16.gmra.mxu0 %v577
        %v1838 = vpop.f32.mrf.mxu0
        %v1839 = vadd.f32 0.0, %v1838
        %v1840 = vpop.f32.mrf.mxu0
        %v1841 = vpop.f32.mrf.mxu0
        %v1842 = vadd.f32 0.0, %v1841
        %v1843 = vpop.f32.mrf.mxu0
        %1844 = vmatprep.mubr.bf16.mxu0 0
        %1845 = vmatmul.mubr.bf16.gmra.mxu0 %v578
        %v1846 = vpop.f32.mrf.mxu0
        %v1847 = vadd.f32 0.0, %v1846
        %v1848 = vpop.f32.mrf.mxu0
        %v1849 = vpop.f32.mrf.mxu0
        %v1850 = vadd.f32 0.0, %v1849
        %v1851 = vpop.f32.mrf.mxu0
        %1852 = vmatprep.mubr.bf16.mxu0 0
        %1853 = vmatmul.mubr.bf16.gmra.mxu0 %v579
        %v1854 = vpop.f32.mrf.mxu0
        %v1855 = vadd.f32 0.0, %v1854
        %v1856 = vpop.f32.mrf.mxu0
        %v1857 = vpop.f32.mrf.mxu0
        %v1858 = vadd.f32 0.0, %v1857
        %v1859 = vpop.f32.mrf.mxu0
        %1860 = vmatprep.mubr.bf16.mxu0 0
        %1861 = vmatmul.mubr.bf16.gmra.mxu0 %v580
        %v1862 = vpop.f32.mrf.mxu0
        %v1863 = vadd.f32 0.0, %v1862
        %v1864 = vpop.f32.mrf.mxu0
        %v1865 = vpop.f32.mrf.mxu0
        %v1866 = vadd.f32 0.0, %v1865
        %v1867 = vpop.f32.mrf.mxu0
        %1868 = vdwg.mxu0
        %v1869 = vld [vmem:[%s4] sm:$0xf]
        %v1870 = vld [vmem:[%s4 + $0x4] sm:$0xf]
        %v1871 = vld [vmem:[%s4 + $0x8] sm:$0xf]
        %v1872 = vld [vmem:[%s4 + $0xc] sm:$0xf]
        %v1873 = vld [vmem:[%s4 + $0x10] sm:$0xf]
        %v1874 = vld [vmem:[%s4 + $0x14] sm:$0xf]
        %v1875 = vld [vmem:[%s4 + $0x18] sm:$0xf]
        %v1876 = vld [vmem:[%s4 + $0x1c] sm:$0xf]
        %v1877 = vld [vmem:[%s4 + $0x20] sm:$0xf]
        %v1878 = vld [vmem:[%s4 + $0x24] sm:$0xf]
        %v1879 = vld [vmem:[%s4 + $0x28] sm:$0xf]
        %v1880 = vld [vmem:[%s4 + $0x2c] sm:$0xf]
        %v1881 = vld [vmem:[%s4 + $0x30] sm:$0xf]
        %v1882 = vld [vmem:[%s4 + $0x34] sm:$0xf]
        %v1883 = vld [vmem:[%s4 + $0x38] sm:$0xf]
        %v1884 = vld [vmem:[%s4 + $0x3c] sm:$0xf]
        %v1885 = vld [vmem:[%s4 + $0x40] sm:$0xf]
        %v1886 = vld [vmem:[%s4 + $0x44] sm:$0xf]
        %v1887 = vld [vmem:[%s4 + $0x48] sm:$0xf]
        %v1888 = vld [vmem:[%s4 + $0x4c] sm:$0xf]
        %v1889 = vld [vmem:[%s4 + $0x50] sm:$0xf]
        %v1890 = vld [vmem:[%s4 + $0x54] sm:$0xf]
        %v1891 = vld [vmem:[%s4 + $0x58] sm:$0xf]
        %v1892 = vld [vmem:[%s4 + $0x5c] sm:$0xf]
        %v1893 = vld [vmem:[%s4 + $0x60] sm:$0xf]
        %v1894 = vld [vmem:[%s4 + $0x64] sm:$0xf]
        %v1895 = vld [vmem:[%s4 + $0x68] sm:$0xf]
        %v1896 = vld [vmem:[%s4 + $0x6c] sm:$0xf]
        %v1897 = vld [vmem:[%s4 + $0x70] sm:$0xf]
        %v1898 = vld [vmem:[%s4 + $0x74] sm:$0xf]
        %v1899 = vld [vmem:[%s4 + $0x78] sm:$0xf]
        %v1900 = vld [vmem:[%s4 + $0x7c] sm:$0xf]
        %v1901 = vld [vmem:[%s4 + $0x80] sm:$0xf]
        %v1902 = vld [vmem:[%s4 + $0x84] sm:$0xf]
        %v1903 = vld [vmem:[%s4 + $0x88] sm:$0xf]
        %v1904 = vld [vmem:[%s4 + $0x8c] sm:$0xf]
        %v1905 = vld [vmem:[%s4 + $0x90] sm:$0xf]
        %v1906 = vld [vmem:[%s4 + $0x94] sm:$0xf]
        %v1907 = vld [vmem:[%s4 + $0x98] sm:$0xf]
        %v1908 = vld [vmem:[%s4 + $0x9c] sm:$0xf]
        %v1909 = vld [vmem:[%s4 + $0xa0] sm:$0xf]
        %v1910 = vld [vmem:[%s4 + $0xa4] sm:$0xf]
        %v1911 = vld [vmem:[%s4 + $0xa8] sm:$0xf]
        %v1912 = vld [vmem:[%s4 + $0xac] sm:$0xf]
        %v1913 = vld [vmem:[%s4 + $0xb0] sm:$0xf]
        %v1914 = vld [vmem:[%s4 + $0xb4] sm:$0xf]
        %v1915 = vld [vmem:[%s4 + $0xb8] sm:$0xf]
        %v1916 = vld [vmem:[%s4 + $0xbc] sm:$0xf]
        %v1917 = vld [vmem:[%s4 + $0xc0] sm:$0xf]
        %v1918 = vld [vmem:[%s4 + $0xc4] sm:$0xf]
        %v1919 = vld [vmem:[%s4 + $0xc8] sm:$0xf]
        %v1920 = vld [vmem:[%s4 + $0xcc] sm:$0xf]
        %v1921 = vld [vmem:[%s4 + $0xd0] sm:$0xf]
        %v1922 = vld [vmem:[%s4 + $0xd4] sm:$0xf]
        %v1923 = vld [vmem:[%s4 + $0xd8] sm:$0xf]
        %v1924 = vld [vmem:[%s4 + $0xdc] sm:$0xf]
        %v1925 = vld [vmem:[%s4 + $0xe0] sm:$0xf]
        %v1926 = vld [vmem:[%s4 + $0xe4] sm:$0xf]
        %v1927 = vld [vmem:[%s4 + $0xe8] sm:$0xf]
        %v1928 = vld [vmem:[%s4 + $0xec] sm:$0xf]
        %v1929 = vld [vmem:[%s4 + $0xf0] sm:$0xf]
        %v1930 = vld [vmem:[%s4 + $0xf4] sm:$0xf]
        %v1931 = vld [vmem:[%s4 + $0xf8] sm:$0xf]
        %v1932 = vld [vmem:[%s4 + $0xfc] sm:$0xf]
        %v1933 = vld [vmem:[%s4 + $0x100] sm:$0xf]
        %v1934 = vld [vmem:[%s4 + $0x104] sm:$0xf]
        %v1935 = vld [vmem:[%s4 + $0x108] sm:$0xf]
        %v1936 = vld [vmem:[%s4 + $0x10c] sm:$0xf]
        %v1937 = vld [vmem:[%s4 + $0x110] sm:$0xf]
        %v1938 = vld [vmem:[%s4 + $0x114] sm:$0xf]
        %v1939 = vld [vmem:[%s4 + $0x118] sm:$0xf]
        %v1940 = vld [vmem:[%s4 + $0x11c] sm:$0xf]
        %v1941 = vld [vmem:[%s4 + $0x120] sm:$0xf]
        %v1942 = vld [vmem:[%s4 + $0x124] sm:$0xf]
        %v1943 = vld [vmem:[%s4 + $0x128] sm:$0xf]
        %v1944 = vld [vmem:[%s4 + $0x12c] sm:$0xf]
        %v1945 = vld [vmem:[%s4 + $0x130] sm:$0xf]
        %v1946 = vld [vmem:[%s4 + $0x134] sm:$0xf]
        %v1947 = vld [vmem:[%s4 + $0x138] sm:$0xf]
        %v1948 = vld [vmem:[%s4 + $0x13c] sm:$0xf]
        %v1949 = vld [vmem:[%s4 + $0x140] sm:$0xf]
        %v1950 = vld [vmem:[%s4 + $0x144] sm:$0xf]
        %v1951 = vld [vmem:[%s4 + $0x148] sm:$0xf]
        %v1952 = vld [vmem:[%s4 + $0x14c] sm:$0xf]
        %v1953 = vld [vmem:[%s4 + $0x150] sm:$0xf]
        %v1954 = vld [vmem:[%s4 + $0x154] sm:$0xf]
        %v1955 = vld [vmem:[%s4 + $0x158] sm:$0xf]
        %v1956 = vld [vmem:[%s4 + $0x15c] sm:$0xf]
        %v1957 = vld [vmem:[%s4 + $0x160] sm:$0xf]
        %v1958 = vld [vmem:[%s4 + $0x164] sm:$0xf]
        %v1959 = vld [vmem:[%s4 + $0x168] sm:$0xf]
        %v1960 = vld [vmem:[%s4 + $0x16c] sm:$0xf]
        %v1961 = vld [vmem:[%s4 + $0x170] sm:$0xf]
        %v1962 = vld [vmem:[%s4 + $0x174] sm:$0xf]
        %v1963 = vld [vmem:[%s4 + $0x178] sm:$0xf]
        %v1964 = vld [vmem:[%s4 + $0x17c] sm:$0xf]
        %v1965 = vld [vmem:[%s4 + $0x180] sm:$0xf]
        %v1966 = vld [vmem:[%s4 + $0x184] sm:$0xf]
        %v1967 = vld [vmem:[%s4 + $0x188] sm:$0xf]
        %v1968 = vld [vmem:[%s4 + $0x18c] sm:$0xf]
        %v1969 = vld [vmem:[%s4 + $0x190] sm:$0xf]
        %v1970 = vld [vmem:[%s4 + $0x194] sm:$0xf]
        %v1971 = vld [vmem:[%s4 + $0x198] sm:$0xf]
        %v1972 = vld [vmem:[%s4 + $0x19c] sm:$0xf]
        %v1973 = vld [vmem:[%s4 + $0x1a0] sm:$0xf]
        %v1974 = vld [vmem:[%s4 + $0x1a4] sm:$0xf]
        %v1975 = vld [vmem:[%s4 + $0x1a8] sm:$0xf]
        %v1976 = vld [vmem:[%s4 + $0x1ac] sm:$0xf]
        %v1977 = vld [vmem:[%s4 + $0x1b0] sm:$0xf]
        %v1978 = vld [vmem:[%s4 + $0x1b4] sm:$0xf]
        %v1979 = vld [vmem:[%s4 + $0x1b8] sm:$0xf]
        %v1980 = vld [vmem:[%s4 + $0x1bc] sm:$0xf]
        %v1981 = vld [vmem:[%s4 + $0x1c0] sm:$0xf]
        %v1982 = vld [vmem:[%s4 + $0x1c4] sm:$0xf]
        %v1983 = vld [vmem:[%s4 + $0x1c8] sm:$0xf]
        %v1984 = vld [vmem:[%s4 + $0x1cc] sm:$0xf]
        %v1985 = vld [vmem:[%s4 + $0x1d0] sm:$0xf]
        %v1986 = vld [vmem:[%s4 + $0x1d4] sm:$0xf]
        %v1987 = vld [vmem:[%s4 + $0x1d8] sm:$0xf]
        %v1988 = vld [vmem:[%s4 + $0x1dc] sm:$0xf]
        %v1989 = vld [vmem:[%s4 + $0x1e0] sm:$0xf]
        %v1990 = vld [vmem:[%s4 + $0x1e4] sm:$0xf]
        %v1991 = vld [vmem:[%s4 + $0x1e8] sm:$0xf]
        %v1992 = vld [vmem:[%s4 + $0x1ec] sm:$0xf]
        %v1993 = vld [vmem:[%s4 + $0x1f0] sm:$0xf]
        %v1994 = vld [vmem:[%s4 + $0x1f4] sm:$0xf]
        %v1995 = vld [vmem:[%s4 + $0x1f8] sm:$0xf]
        %v1996 = vld [vmem:[%s4 + $0x1fc] sm:$0xf]
        %v2013 = vunpack.c.l.b16 %v1869
        %v2014 = vunpack.c.l.b16 %v1870
        %v2015 = vunpack.c.l.b16 %v1871
        %v2016 = vunpack.c.l.b16 %v1872
        %v2017 = vunpack.c.l.b16 %v1873
        %v2018 = vunpack.c.l.b16 %v1874
        %v2019 = vunpack.c.l.b16 %v1875
        %v2020 = vunpack.c.l.b16 %v1876
        %v2021 = vunpack.c.l.b16 %v1877
        %v2022 = vunpack.c.l.b16 %v1878
        %v2023 = vunpack.c.l.b16 %v1879
        %v2024 = vunpack.c.l.b16 %v1880
        %v2025 = vunpack.c.l.b16 %v1881
        %v2026 = vunpack.c.l.b16 %v1882
        %v2027 = vunpack.c.l.b16 %v1883
        %v2028 = vunpack.c.l.b16 %v1884
        %v2029 = vpack.c.b16 %v2014, %v2013
        %v2030 = vpack.c.b16 %v2016, %v2015
        %v2031 = vpack.c.b16 %v2018, %v2017
        %v2032 = vpack.c.b16 %v2020, %v2019
        %v2033 = vpack.c.b16 %v2022, %v2021
        %v2034 = vpack.c.b16 %v2024, %v2023
        %v2035 = vpack.c.b16 %v2026, %v2025
        %v2036 = vpack.c.b16 %v2028, %v2027
        %2045 = vmatprep.subr.bf16.mxu0 0
        %2046 = vmatpush1.bf16.msra.mxu0 %v2036
        %2047 = vmatprep.subr.bf16.mxu0 0
        %2048 = vmatpush1.bf16.msra.mxu0 %v2035
        %2049 = vmatprep.subr.bf16.mxu0 0
        %2050 = vmatpush1.bf16.msra.mxu0 %v2034
        %2051 = vmatprep.subr.bf16.mxu0 0
        %2052 = vmatpush1.bf16.msra.mxu0 %v2033
        %2053 = vmatprep.subr.bf16.mxu0 0
        %2054 = vmatpush1.bf16.msra.mxu0 %v2032
        %2055 = vmatprep.subr.bf16.mxu0 0
        %2056 = vmatpush1.bf16.msra.mxu0 %v2031
        %2057 = vmatprep.subr.bf16.mxu0 0
        %2058 = vmatpush1.bf16.msra.mxu0 %v2030
        %2059 = vmatprep.subr.bf16.mxu0 0
        %2060 = vmatpush1.bf16.msra.mxu0 %v2029
        %2061 = vmatprep.subr.bf16.mxu0 0
        %2062 = vmatpush2.bf16.msra.mxu0 0
        %2063 = vmatprep.subr.bf16.mxu0 0
        %2064 = vmatpush2.bf16.msra.mxu0 0
        %2065 = vmatprep.subr.bf16.mxu0 0
        %2066 = vmatpush2.bf16.msra.mxu0 0
        %2067 = vmatprep.subr.bf16.mxu0 0
        %2068 = vmatpush2.bf16.msra.mxu0 0
        %2069 = vmatprep.subr.bf16.mxu0 0
        %2070 = vmatpush2.bf16.msra.mxu0 0
        %2071 = vmatprep.subr.bf16.mxu0 0
        %2072 = vmatpush2.bf16.msra.mxu0 0
        %2073 = vmatprep.subr.bf16.mxu0 0
        %2074 = vmatpush2.bf16.msra.mxu0 0
        %2075 = vmatprep.subr.bf16.mxu0 0
        %2076 = vmatpush2.bf16.msra.mxu0 0
        %2077 = vmatprep.mubr.bf16.mxu0 0
        %2078 = vmatmul.mubr.bf16.gmra.mxu0 %v573
        %v2079 = vpop.f32.mrf.mxu0
        %v2080 = vadd.f32 0.0, %v2079
        %v2081 = vpop.f32.mrf.mxu0
        %v2082 = vpop.f32.mrf.mxu0
        %v2083 = vadd.f32 0.0, %v2082
        %v2084 = vpop.f32.mrf.mxu0
        %2085 = vmatprep.mubr.bf16.mxu0 0
        %2086 = vmatmul.mubr.bf16.gmra.mxu0 %v574
        %v2087 = vpop.f32.mrf.mxu0
        %v2088 = vadd.f32 0.0, %v2087
        %v2089 = vpop.f32.mrf.mxu0
        %v2090 = vpop.f32.mrf.mxu0
        %v2091 = vadd.f32 0.0, %v2090
        %v2092 = vpop.f32.mrf.mxu0
        %2093 = vmatprep.mubr.bf16.mxu0 0
        %2094 = vmatmul.mubr.bf16.gmra.mxu0 %v575
        %v2095 = vpop.f32.mrf.mxu0
        %v2096 = vadd.f32 0.0, %v2095
        %v2097 = vpop.f32.mrf.mxu0
        %v2098 = vpop.f32.mrf.mxu0
        %v2099 = vadd.f32 0.0, %v2098
        %v2100 = vpop.f32.mrf.mxu0
        %2101 = vmatprep.mubr.bf16.mxu0 0
        %2102 = vmatmul.mubr.bf16.gmra.mxu0 %v576
        %v2103 = vpop.f32.mrf.mxu0
        %v2104 = vadd.f32 0.0, %v2103
        %v2105 = vpop.f32.mrf.mxu0
        %v2106 = vpop.f32.mrf.mxu0
        %v2107 = vadd.f32 0.0, %v2106
        %v2108 = vpop.f32.mrf.mxu0
        %2109 = vmatprep.mubr.bf16.mxu0 0
        %2110 = vmatmul.mubr.bf16.gmra.mxu0 %v577
        %v2111 = vpop.f32.mrf.mxu0
        %v2112 = vadd.f32 0.0, %v2111
        %v2113 = vpop.f32.mrf.mxu0
        %v2114 = vpop.f32.mrf.mxu0
        %v2115 = vadd.f32 0.0, %v2114
        %v2116 = vpop.f32.mrf.mxu0
        %2117 = vmatprep.mubr.bf16.mxu0 0
        %2118 = vmatmul.mubr.bf16.gmra.mxu0 %v578
        %v2119 = vpop.f32.mrf.mxu0
        %v2120 = vadd.f32 0.0, %v2119
        %v2121 = vpop.f32.mrf.mxu0
        %v2122 = vpop.f32.mrf.mxu0
        %v2123 = vadd.f32 0.0, %v2122
        %v2124 = vpop.f32.mrf.mxu0
        %2125 = vmatprep.mubr.bf16.mxu0 0
        %2126 = vmatmul.mubr.bf16.gmra.mxu0 %v579
        %v2127 = vpop.f32.mrf.mxu0
        %v2128 = vadd.f32 0.0, %v2127
        %v2129 = vpop.f32.mrf.mxu0
        %v2130 = vpop.f32.mrf.mxu0
        %v2131 = vadd.f32 0.0, %v2130
        %v2132 = vpop.f32.mrf.mxu0
        %2133 = vmatprep.mubr.bf16.mxu0 0
        %2134 = vmatmul.mubr.bf16.gmra.mxu0 %v580
        %v2135 = vpop.f32.mrf.mxu0
        %v2136 = vadd.f32 0.0, %v2135
        %v2137 = vpop.f32.mrf.mxu0
        %v2138 = vpop.f32.mrf.mxu0
        %v2139 = vadd.f32 0.0, %v2138
        %v2140 = vpop.f32.mrf.mxu0
        %2141 = vdwg.mxu0
        %v2158 = vunpack.c.l.b16 %v1885
        %v2159 = vunpack.c.l.b16 %v1886
        %v2160 = vunpack.c.l.b16 %v1887
        %v2161 = vunpack.c.l.b16 %v1888
        %v2162 = vunpack.c.l.b16 %v1889
        %v2163 = vunpack.c.l.b16 %v1890
        %v2164 = vunpack.c.l.b16 %v1891
        %v2165 = vunpack.c.l.b16 %v1892
        %v2166 = vunpack.c.l.b16 %v1893
        %v2167 = vunpack.c.l.b16 %v1894
        %v2168 = vunpack.c.l.b16 %v1895
        %v2169 = vunpack.c.l.b16 %v1896
        %v2170 = vunpack.c.l.b16 %v1897
        %v2171 = vunpack.c.l.b16 %v1898
        %v2172 = vunpack.c.l.b16 %v1899
        %v2173 = vunpack.c.l.b16 %v1900
        %v2174 = vpack.c.b16 %v2159, %v2158
        %v2175 = vpack.c.b16 %v2161, %v2160
        %v2176 = vpack.c.b16 %v2163, %v2162
        %v2177 = vpack.c.b16 %v2165, %v2164
        %v2178 = vpack.c.b16 %v2167, %v2166
        %v2179 = vpack.c.b16 %v2169, %v2168
        %v2180 = vpack.c.b16 %v2171, %v2170
        %v2181 = vpack.c.b16 %v2173, %v2172
        %2190 = vmatprep.subr.bf16.mxu0 0
        %2191 = vmatpush1.bf16.msra.mxu0 %v2181
        %2192 = vmatprep.subr.bf16.mxu0 0
        %2193 = vmatpush1.bf16.msra.mxu0 %v2180
        %2194 = vmatprep.subr.bf16.mxu0 0
        %2195 = vmatpush1.bf16.msra.mxu0 %v2179
        %2196 = vmatprep.subr.bf16.mxu0 0
        %2197 = vmatpush1.bf16.msra.mxu0 %v2178
        %2198 = vmatprep.subr.bf16.mxu0 0
        %2199 = vmatpush1.bf16.msra.mxu0 %v2177
        %2200 = vmatprep.subr.bf16.mxu0 0
        %2201 = vmatpush1.bf16.msra.mxu0 %v2176
        %2202 = vmatprep.subr.bf16.mxu0 0
        %2203 = vmatpush1.bf16.msra.mxu0 %v2175
        %2204 = vmatprep.subr.bf16.mxu0 0
        %2205 = vmatpush1.bf16.msra.mxu0 %v2174
        %2206 = vmatprep.subr.bf16.mxu0 0
        %2207 = vmatpush2.bf16.msra.mxu0 0
        %2208 = vmatprep.subr.bf16.mxu0 0
        %2209 = vmatpush2.bf16.msra.mxu0 0
        %2210 = vmatprep.subr.bf16.mxu0 0
        %2211 = vmatpush2.bf16.msra.mxu0 0
        %2212 = vmatprep.subr.bf16.mxu0 0
        %2213 = vmatpush2.bf16.msra.mxu0 0
        %2214 = vmatprep.subr.bf16.mxu0 0
        %2215 = vmatpush2.bf16.msra.mxu0 0
        %2216 = vmatprep.subr.bf16.mxu0 0
        %2217 = vmatpush2.bf16.msra.mxu0 0
        %2218 = vmatprep.subr.bf16.mxu0 0
        %2219 = vmatpush2.bf16.msra.mxu0 0
        %2220 = vmatprep.subr.bf16.mxu0 0
        %2221 = vmatpush2.bf16.msra.mxu0 0
        %2222 = vmatprep.mubr.bf16.mxu0 0
        %2223 = vmatmul.mubr.bf16.gmra.mxu0 %v573
        %v2224 = vpop.f32.mrf.mxu0
        %v2225 = vadd.f32 0.0, %v2224
        %v2226 = vpop.f32.mrf.mxu0
        %v2227 = vpop.f32.mrf.mxu0
        %v2228 = vadd.f32 0.0, %v2227
        %v2229 = vpop.f32.mrf.mxu0
        %2230 = vmatprep.mubr.bf16.mxu0 0
        %2231 = vmatmul.mubr.bf16.gmra.mxu0 %v574
        %v2232 = vpop.f32.mrf.mxu0
        %v2233 = vadd.f32 0.0, %v2232
        %v2234 = vpop.f32.mrf.mxu0
        %v2235 = vpop.f32.mrf.mxu0
        %v2236 = vadd.f32 0.0, %v2235
        %v2237 = vpop.f32.mrf.mxu0
        %2238 = vmatprep.mubr.bf16.mxu0 0
        %2239 = vmatmul.mubr.bf16.gmra.mxu0 %v575
        %v2240 = vpop.f32.mrf.mxu0
        %v2241 = vadd.f32 0.0, %v2240
        %v2242 = vpop.f32.mrf.mxu0
        %v2243 = vpop.f32.mrf.mxu0
        %v2244 = vadd.f32 0.0, %v2243
        %v2245 = vpop.f32.mrf.mxu0
        %2246 = vmatprep.mubr.bf16.mxu0 0
        %2247 = vmatmul.mubr.bf16.gmra.mxu0 %v576
        %v2248 = vpop.f32.mrf.mxu0
        %v2249 = vadd.f32 0.0, %v2248
        %v2250 = vpop.f32.mrf.mxu0
        %v2251 = vpop.f32.mrf.mxu0
        %v2252 = vadd.f32 0.0, %v2251
        %v2253 = vpop.f32.mrf.mxu0
        %2254 = vmatprep.mubr.bf16.mxu0 0
        %2255 = vmatmul.mubr.bf16.gmra.mxu0 %v577
        %v2256 = vpop.f32.mrf.mxu0
        %v2257 = vadd.f32 0.0, %v2256
        %v2258 = vpop.f32.mrf.mxu0
        %v2259 = vpop.f32.mrf.mxu0
        %v2260 = vadd.f32 0.0, %v2259
        %v2261 = vpop.f32.mrf.mxu0
        %2262 = vmatprep.mubr.bf16.mxu0 0
        %2263 = vmatmul.mubr.bf16.gmra.mxu0 %v578
        %v2264 = vpop.f32.mrf.mxu0
        %v2265 = vadd.f32 0.0, %v2264
        %v2266 = vpop.f32.mrf.mxu0
        %v2267 = vpop.f32.mrf.mxu0
        %v2268 = vadd.f32 0.0, %v2267
        %v2269 = vpop.f32.mrf.mxu0
        %2270 = vmatprep.mubr.bf16.mxu0 0
        %2271 = vmatmul.mubr.bf16.gmra.mxu0 %v579
        %v2272 = vpop.f32.mrf.mxu0
        %v2273 = vadd.f32 0.0, %v2272
        %v2274 = vpop.f32.mrf.mxu0
        %v2275 = vpop.f32.mrf.mxu0
        %v2276 = vadd.f32 0.0, %v2275
        %v2277 = vpop.f32.mrf.mxu0
        %2278 = vmatprep.mubr.bf16.mxu0 0
        %2279 = vmatmul.mubr.bf16.gmra.mxu0 %v580
        %v2280 = vpop.f32.mrf.mxu0
        %v2281 = vadd.f32 0.0, %v2280
        %v2282 = vpop.f32.mrf.mxu0
        %v2283 = vpop.f32.mrf.mxu0
        %v2284 = vadd.f32 0.0, %v2283
        %v2285 = vpop.f32.mrf.mxu0
        %2286 = vdwg.mxu0
        %v2303 = vunpack.c.l.b16 %v1901
        %v2304 = vunpack.c.l.b16 %v1902
        %v2305 = vunpack.c.l.b16 %v1903
        %v2306 = vunpack.c.l.b16 %v1904
        %v2307 = vunpack.c.l.b16 %v1905
        %v2308 = vunpack.c.l.b16 %v1906
        %v2309 = vunpack.c.l.b16 %v1907
        %v2310 = vunpack.c.l.b16 %v1908
        %v2311 = vunpack.c.l.b16 %v1909
        %v2312 = vunpack.c.l.b16 %v1910
        %v2313 = vunpack.c.l.b16 %v1911
        %v2314 = vunpack.c.l.b16 %v1912
        %v2315 = vunpack.c.l.b16 %v1913
        %v2316 = vunpack.c.l.b16 %v1914
        %v2317 = vunpack.c.l.b16 %v1915
        %v2318 = vunpack.c.l.b16 %v1916
        %v2319 = vpack.c.b16 %v2304, %v2303
        %v2320 = vpack.c.b16 %v2306, %v2305
        %v2321 = vpack.c.b16 %v2308, %v2307
        %v2322 = vpack.c.b16 %v2310, %v2309
        %v2323 = vpack.c.b16 %v2312, %v2311
        %v2324 = vpack.c.b16 %v2314, %v2313
        %v2325 = vpack.c.b16 %v2316, %v2315
        %v2326 = vpack.c.b16 %v2318, %v2317
        %2335 = vmatprep.subr.bf16.mxu0 0
        %2336 = vmatpush1.bf16.msra.mxu0 %v2326
        %2337 = vmatprep.subr.bf16.mxu0 0
        %2338 = vmatpush1.bf16.msra.mxu0 %v2325
        %2339 = vmatprep.subr.bf16.mxu0 0
        %2340 = vmatpush1.bf16.msra.mxu0 %v2324
        %2341 = vmatprep.subr.bf16.mxu0 0
        %2342 = vmatpush1.bf16.msra.mxu0 %v2323
        %2343 = vmatprep.subr.bf16.mxu0 0
        %2344 = vmatpush1.bf16.msra.mxu0 %v2322
        %2345 = vmatprep.subr.bf16.mxu0 0
        %2346 = vmatpush1.bf16.msra.mxu0 %v2321
        %2347 = vmatprep.subr.bf16.mxu0 0
        %2348 = vmatpush1.bf16.msra.mxu0 %v2320
        %2349 = vmatprep.subr.bf16.mxu0 0
        %2350 = vmatpush1.bf16.msra.mxu0 %v2319
        %2351 = vmatprep.subr.bf16.mxu0 0
        %2352 = vmatpush2.bf16.msra.mxu0 0
        %2353 = vmatprep.subr.bf16.mxu0 0
        %2354 = vmatpush2.bf16.msra.mxu0 0
        %2355 = vmatprep.subr.bf16.mxu0 0
        %2356 = vmatpush2.bf16.msra.mxu0 0
        %2357 = vmatprep.subr.bf16.mxu0 0
        %2358 = vmatpush2.bf16.msra.mxu0 0
        %2359 = vmatprep.subr.bf16.mxu0 0
        %2360 = vmatpush2.bf16.msra.mxu0 0
        %2361 = vmatprep.subr.bf16.mxu0 0
        %2362 = vmatpush2.bf16.msra.mxu0 0
        %2363 = vmatprep.subr.bf16.mxu0 0
        %2364 = vmatpush2.bf16.msra.mxu0 0
        %2365 = vmatprep.subr.bf16.mxu0 0
        %2366 = vmatpush2.bf16.msra.mxu0 0
        %2367 = vmatprep.mubr.bf16.mxu0 0
        %2368 = vmatmul.mubr.bf16.gmra.mxu0 %v573
        %v2369 = vpop.f32.mrf.mxu0
        %v2370 = vadd.f32 0.0, %v2369
        %v2371 = vpop.f32.mrf.mxu0
        %v2372 = vpop.f32.mrf.mxu0
        %v2373 = vadd.f32 0.0, %v2372
        %v2374 = vpop.f32.mrf.mxu0
        %2375 = vmatprep.mubr.bf16.mxu0 0
        %2376 = vmatmul.mubr.bf16.gmra.mxu0 %v574
        %v2377 = vpop.f32.mrf.mxu0
        %v2378 = vadd.f32 0.0, %v2377
        %v2379 = vpop.f32.mrf.mxu0
        %v2380 = vpop.f32.mrf.mxu0
        %v2381 = vadd.f32 0.0, %v2380
        %v2382 = vpop.f32.mrf.mxu0
        %2383 = vmatprep.mubr.bf16.mxu0 0
        %2384 = vmatmul.mubr.bf16.gmra.mxu0 %v575
        %v2385 = vpop.f32.mrf.mxu0
        %v2386 = vadd.f32 0.0, %v2385
        %v2387 = vpop.f32.mrf.mxu0
        %v2388 = vpop.f32.mrf.mxu0
        %v2389 = vadd.f32 0.0, %v2388
        %v2390 = vpop.f32.mrf.mxu0
        %2391 = vmatprep.mubr.bf16.mxu0 0
        %2392 = vmatmul.mubr.bf16.gmra.mxu0 %v576
        %v2393 = vpop.f32.mrf.mxu0
        %v2394 = vadd.f32 0.0, %v2393
        %v2395 = vpop.f32.mrf.mxu0
        %v2396 = vpop.f32.mrf.mxu0
        %v2397 = vadd.f32 0.0, %v2396
        %v2398 = vpop.f32.mrf.mxu0
        %2399 = vmatprep.mubr.bf16.mxu0 0
        %2400 = vmatmul.mubr.bf16.gmra.mxu0 %v577
        %v2401 = vpop.f32.mrf.mxu0
        %v2402 = vadd.f32 0.0, %v2401
        %v2403 = vpop.f32.mrf.mxu0
        %v2404 = vpop.f32.mrf.mxu0
        %v2405 = vadd.f32 0.0, %v2404
        %v2406 = vpop.f32.mrf.mxu0
        %2407 = vmatprep.mubr.bf16.mxu0 0
        %2408 = vmatmul.mubr.bf16.gmra.mxu0 %v578
        %v2409 = vpop.f32.mrf.mxu0
        %v2410 = vadd.f32 0.0, %v2409
        %v2411 = vpop.f32.mrf.mxu0
        %v2412 = vpop.f32.mrf.mxu0
        %v2413 = vadd.f32 0.0, %v2412
        %v2414 = vpop.f32.mrf.mxu0
        %2415 = vmatprep.mubr.bf16.mxu0 0
        %2416 = vmatmul.mubr.bf16.gmra.mxu0 %v579
        %v2417 = vpop.f32.mrf.mxu0
        %v2418 = vadd.f32 0.0, %v2417
        %v2419 = vpop.f32.mrf.mxu0
        %v2420 = vpop.f32.mrf.mxu0
        %v2421 = vadd.f32 0.0, %v2420
        %v2422 = vpop.f32.mrf.mxu0
        %2423 = vmatprep.mubr.bf16.mxu0 0
        %2424 = vmatmul.mubr.bf16.gmra.mxu0 %v580
        %v2425 = vpop.f32.mrf.mxu0
        %v2426 = vadd.f32 0.0, %v2425
        %v2427 = vpop.f32.mrf.mxu0
        %v2428 = vpop.f32.mrf.mxu0
        %v2429 = vadd.f32 0.0, %v2428
        %v2430 = vpop.f32.mrf.mxu0
        %2431 = vdwg.mxu0
        %v2448 = vunpack.c.l.b16 %v1917
        %v2449 = vunpack.c.l.b16 %v1918
        %v2450 = vunpack.c.l.b16 %v1919
        %v2451 = vunpack.c.l.b16 %v1920
        %v2452 = vunpack.c.l.b16 %v1921
        %v2453 = vunpack.c.l.b16 %v1922
        %v2454 = vunpack.c.l.b16 %v1923
        %v2455 = vunpack.c.l.b16 %v1924
        %v2456 = vunpack.c.l.b16 %v1925
        %v2457 = vunpack.c.l.b16 %v1926
        %v2458 = vunpack.c.l.b16 %v1927
        %v2459 = vunpack.c.l.b16 %v1928
        %v2460 = vunpack.c.l.b16 %v1929
        %v2461 = vunpack.c.l.b16 %v1930
        %v2462 = vunpack.c.l.b16 %v1931
        %v2463 = vunpack.c.l.b16 %v1932
        %v2464 = vpack.c.b16 %v2449, %v2448
        %v2465 = vpack.c.b16 %v2451, %v2450
        %v2466 = vpack.c.b16 %v2453, %v2452
        %v2467 = vpack.c.b16 %v2455, %v2454
        %v2468 = vpack.c.b16 %v2457, %v2456
        %v2469 = vpack.c.b16 %v2459, %v2458
        %v2470 = vpack.c.b16 %v2461, %v2460
        %v2471 = vpack.c.b16 %v2463, %v2462
        %2480 = vmatprep.subr.bf16.mxu0 0
        %2481 = vmatpush1.bf16.msra.mxu0 %v2471
        %2482 = vmatprep.subr.bf16.mxu0 0
        %2483 = vmatpush1.bf16.msra.mxu0 %v2470
        %2484 = vmatprep.subr.bf16.mxu0 0
        %2485 = vmatpush1.bf16.msra.mxu0 %v2469
        %2486 = vmatprep.subr.bf16.mxu0 0
        %2487 = vmatpush1.bf16.msra.mxu0 %v2468
        %2488 = vmatprep.subr.bf16.mxu0 0
        %2489 = vmatpush1.bf16.msra.mxu0 %v2467
        %2490 = vmatprep.subr.bf16.mxu0 0
        %2491 = vmatpush1.bf16.msra.mxu0 %v2466
        %2492 = vmatprep.subr.bf16.mxu0 0
        %2493 = vmatpush1.bf16.msra.mxu0 %v2465
        %2494 = vmatprep.subr.bf16.mxu0 0
        %2495 = vmatpush1.bf16.msra.mxu0 %v2464
        %2496 = vmatprep.subr.bf16.mxu0 0
        %2497 = vmatpush2.bf16.msra.mxu0 0
        %2498 = vmatprep.subr.bf16.mxu0 0
        %2499 = vmatpush2.bf16.msra.mxu0 0
        %2500 = vmatprep.subr.bf16.mxu0 0
        %2501 = vmatpush2.bf16.msra.mxu0 0
        %2502 = vmatprep.subr.bf16.mxu0 0
        %2503 = vmatpush2.bf16.msra.mxu0 0
        %2504 = vmatprep.subr.bf16.mxu0 0
        %2505 = vmatpush2.bf16.msra.mxu0 0
        %2506 = vmatprep.subr.bf16.mxu0 0
        %2507 = vmatpush2.bf16.msra.mxu0 0
        %2508 = vmatprep.subr.bf16.mxu0 0
        %2509 = vmatpush2.bf16.msra.mxu0 0
        %2510 = vmatprep.subr.bf16.mxu0 0
        %2511 = vmatpush2.bf16.msra.mxu0 0
        %2512 = vmatprep.mubr.bf16.mxu0 0
        %2513 = vmatmul.mubr.bf16.gmra.mxu0 %v573
        %v2514 = vpop.f32.mrf.mxu0
        %v2515 = vadd.f32 0.0, %v2514
        %v2516 = vpop.f32.mrf.mxu0
        %v2517 = vpop.f32.mrf.mxu0
        %v2518 = vadd.f32 0.0, %v2517
        %v2519 = vpop.f32.mrf.mxu0
        %2520 = vmatprep.mubr.bf16.mxu0 0
        %2521 = vmatmul.mubr.bf16.gmra.mxu0 %v574
        %v2522 = vpop.f32.mrf.mxu0
        %v2523 = vadd.f32 0.0, %v2522
        %v2524 = vpop.f32.mrf.mxu0
        %v2525 = vpop.f32.mrf.mxu0
        %v2526 = vadd.f32 0.0, %v2525
        %v2527 = vpop.f32.mrf.mxu0
        %2528 = vmatprep.mubr.bf16.mxu0 0
        %2529 = vmatmul.mubr.bf16.gmra.mxu0 %v575
        %v2530 = vpop.f32.mrf.mxu0
        %v2531 = vadd.f32 0.0, %v2530
        %v2532 = vpop.f32.mrf.mxu0
        %v2533 = vpop.f32.mrf.mxu0
        %v2534 = vadd.f32 0.0, %v2533
        %v2535 = vpop.f32.mrf.mxu0
        %2536 = vmatprep.mubr.bf16.mxu0 0
        %2537 = vmatmul.mubr.bf16.gmra.mxu0 %v576
        %v2538 = vpop.f32.mrf.mxu0
        %v2539 = vadd.f32 0.0, %v2538
        %v2540 = vpop.f32.mrf.mxu0
        %v2541 = vpop.f32.mrf.mxu0
        %v2542 = vadd.f32 0.0, %v2541
        %v2543 = vpop.f32.mrf.mxu0
        %2544 = vmatprep.mubr.bf16.mxu0 0
        %2545 = vmatmul.mubr.bf16.gmra.mxu0 %v577
        %v2546 = vpop.f32.mrf.mxu0
        %v2547 = vadd.f32 0.0, %v2546
        %v2548 = vpop.f32.mrf.mxu0
        %v2549 = vpop.f32.mrf.mxu0
        %v2550 = vadd.f32 0.0, %v2549
        %v2551 = vpop.f32.mrf.mxu0
        %2552 = vmatprep.mubr.bf16.mxu0 0
        %2553 = vmatmul.mubr.bf16.gmra.mxu0 %v578
        %v2554 = vpop.f32.mrf.mxu0
        %v2555 = vadd.f32 0.0, %v2554
        %v2556 = vpop.f32.mrf.mxu0
        %v2557 = vpop.f32.mrf.mxu0
        %v2558 = vadd.f32 0.0, %v2557
        %v2559 = vpop.f32.mrf.mxu0
        %2560 = vmatprep.mubr.bf16.mxu0 0
        %2561 = vmatmul.mubr.bf16.gmra.mxu0 %v579
        %v2562 = vpop.f32.mrf.mxu0
        %v2563 = vadd.f32 0.0, %v2562
        %v2564 = vpop.f32.mrf.mxu0
        %v2565 = vpop.f32.mrf.mxu0
        %v2566 = vadd.f32 0.0, %v2565
        %v2567 = vpop.f32.mrf.mxu0
        %2568 = vmatprep.mubr.bf16.mxu0 0
        %2569 = vmatmul.mubr.bf16.gmra.mxu0 %v580
        %v2570 = vpop.f32.mrf.mxu0
        %v2571 = vadd.f32 0.0, %v2570
        %v2572 = vpop.f32.mrf.mxu0
        %v2573 = vpop.f32.mrf.mxu0
        %v2574 = vadd.f32 0.0, %v2573
        %v2575 = vpop.f32.mrf.mxu0
        %2576 = vdwg.mxu0
        %v2593 = vunpack.c.l.b16 %v1933
        %v2594 = vunpack.c.l.b16 %v1934
        %v2595 = vunpack.c.l.b16 %v1935
        %v2596 = vunpack.c.l.b16 %v1936
        %v2597 = vunpack.c.l.b16 %v1937
        %v2598 = vunpack.c.l.b16 %v1938
        %v2599 = vunpack.c.l.b16 %v1939
        %v2600 = vunpack.c.l.b16 %v1940
        %v2601 = vunpack.c.l.b16 %v1941
        %v2602 = vunpack.c.l.b16 %v1942
        %v2603 = vunpack.c.l.b16 %v1943
        %v2604 = vunpack.c.l.b16 %v1944
        %v2605 = vunpack.c.l.b16 %v1945
        %v2606 = vunpack.c.l.b16 %v1946
        %v2607 = vunpack.c.l.b16 %v1947
        %v2608 = vunpack.c.l.b16 %v1948
        %v2609 = vpack.c.b16 %v2594, %v2593
        %v2610 = vpack.c.b16 %v2596, %v2595
        %v2611 = vpack.c.b16 %v2598, %v2597
        %v2612 = vpack.c.b16 %v2600, %v2599
        %v2613 = vpack.c.b16 %v2602, %v2601
        %v2614 = vpack.c.b16 %v2604, %v2603
        %v2615 = vpack.c.b16 %v2606, %v2605
        %v2616 = vpack.c.b16 %v2608, %v2607
        %2625 = vmatprep.subr.bf16.mxu0 0
        %2626 = vmatpush1.bf16.msra.mxu0 %v2616
        %2627 = vmatprep.subr.bf16.mxu0 0
        %2628 = vmatpush1.bf16.msra.mxu0 %v2615
        %2629 = vmatprep.subr.bf16.mxu0 0
        %2630 = vmatpush1.bf16.msra.mxu0 %v2614
        %2631 = vmatprep.subr.bf16.mxu0 0
        %2632 = vmatpush1.bf16.msra.mxu0 %v2613
        %2633 = vmatprep.subr.bf16.mxu0 0
        %2634 = vmatpush1.bf16.msra.mxu0 %v2612
        %2635 = vmatprep.subr.bf16.mxu0 0
        %2636 = vmatpush1.bf16.msra.mxu0 %v2611
        %2637 = vmatprep.subr.bf16.mxu0 0
        %2638 = vmatpush1.bf16.msra.mxu0 %v2610
        %2639 = vmatprep.subr.bf16.mxu0 0
        %2640 = vmatpush1.bf16.msra.mxu0 %v2609
        %2641 = vmatprep.subr.bf16.mxu0 0
        %2642 = vmatpush2.bf16.msra.mxu0 0
        %2643 = vmatprep.subr.bf16.mxu0 0
        %2644 = vmatpush2.bf16.msra.mxu0 0
        %2645 = vmatprep.subr.bf16.mxu0 0
        %2646 = vmatpush2.bf16.msra.mxu0 0
        %2647 = vmatprep.subr.bf16.mxu0 0
        %2648 = vmatpush2.bf16.msra.mxu0 0
        %2649 = vmatprep.subr.bf16.mxu0 0
        %2650 = vmatpush2.bf16.msra.mxu0 0
        %2651 = vmatprep.subr.bf16.mxu0 0
        %2652 = vmatpush2.bf16.msra.mxu0 0
        %2653 = vmatprep.subr.bf16.mxu0 0
        %2654 = vmatpush2.bf16.msra.mxu0 0
        %2655 = vmatprep.subr.bf16.mxu0 0
        %2656 = vmatpush2.bf16.msra.mxu0 0
        %2657 = vmatprep.mubr.bf16.mxu0 0
        %2658 = vmatmul.mubr.bf16.gmra.mxu0 %v573
        %v2659 = vpop.f32.mrf.mxu0
        %v2660 = vadd.f32 0.0, %v2659
        %v2661 = vpop.f32.mrf.mxu0
        %v2662 = vpop.f32.mrf.mxu0
        %v2663 = vadd.f32 0.0, %v2662
        %v2664 = vpop.f32.mrf.mxu0
        %2665 = vmatprep.mubr.bf16.mxu0 0
        %2666 = vmatmul.mubr.bf16.gmra.mxu0 %v574
        %v2667 = vpop.f32.mrf.mxu0
        %v2668 = vadd.f32 0.0, %v2667
        %v2669 = vpop.f32.mrf.mxu0
        %v2670 = vpop.f32.mrf.mxu0
        %v2671 = vadd.f32 0.0, %v2670
        %v2672 = vpop.f32.mrf.mxu0
        %2673 = vmatprep.mubr.bf16.mxu0 0
        %2674 = vmatmul.mubr.bf16.gmra.mxu0 %v575
        %v2675 = vpop.f32.mrf.mxu0
        %v2676 = vadd.f32 0.0, %v2675
        %v2677 = vpop.f32.mrf.mxu0
        %v2678 = vpop.f32.mrf.mxu0
        %v2679 = vadd.f32 0.0, %v2678
        %v2680 = vpop.f32.mrf.mxu0
        %2681 = vmatprep.mubr.bf16.mxu0 0
        %2682 = vmatmul.mubr.bf16.gmra.mxu0 %v576
        %v2683 = vpop.f32.mrf.mxu0
        %v2684 = vadd.f32 0.0, %v2683
        %v2685 = vpop.f32.mrf.mxu0
        %v2686 = vpop.f32.mrf.mxu0
        %v2687 = vadd.f32 0.0, %v2686
        %v2688 = vpop.f32.mrf.mxu0
        %2689 = vmatprep.mubr.bf16.mxu0 0
        %2690 = vmatmul.mubr.bf16.gmra.mxu0 %v577
        %v2691 = vpop.f32.mrf.mxu0
        %v2692 = vadd.f32 0.0, %v2691
        %v2693 = vpop.f32.mrf.mxu0
        %v2694 = vpop.f32.mrf.mxu0
        %v2695 = vadd.f32 0.0, %v2694
        %v2696 = vpop.f32.mrf.mxu0
        %2697 = vmatprep.mubr.bf16.mxu0 0
        %2698 = vmatmul.mubr.bf16.gmra.mxu0 %v578
        %v2699 = vpop.f32.mrf.mxu0
        %v2700 = vadd.f32 0.0, %v2699
        %v2701 = vpop.f32.mrf.mxu0
        %v2702 = vpop.f32.mrf.mxu0
        %v2703 = vadd.f32 0.0, %v2702
        %v2704 = vpop.f32.mrf.mxu0
        %2705 = vmatprep.mubr.bf16.mxu0 0
        %2706 = vmatmul.mubr.bf16.gmra.mxu0 %v579
        %v2707 = vpop.f32.mrf.mxu0
        %v2708 = vadd.f32 0.0, %v2707
        %v2709 = vpop.f32.mrf.mxu0
        %v2710 = vpop.f32.mrf.mxu0
        %v2711 = vadd.f32 0.0, %v2710
        %v2712 = vpop.f32.mrf.mxu0
        %2713 = vmatprep.mubr.bf16.mxu0 0
        %2714 = vmatmul.mubr.bf16.gmra.mxu0 %v580
        %v2715 = vpop.f32.mrf.mxu0
        %v2716 = vadd.f32 0.0, %v2715
        %v2717 = vpop.f32.mrf.mxu0
        %v2718 = vpop.f32.mrf.mxu0
        %v2719 = vadd.f32 0.0, %v2718
        %v2720 = vpop.f32.mrf.mxu0
        %2721 = vdwg.mxu0
        %v2738 = vunpack.c.l.b16 %v1949
        %v2739 = vunpack.c.l.b16 %v1950
        %v2740 = vunpack.c.l.b16 %v1951
        %v2741 = vunpack.c.l.b16 %v1952
        %v2742 = vunpack.c.l.b16 %v1953
        %v2743 = vunpack.c.l.b16 %v1954
        %v2744 = vunpack.c.l.b16 %v1955
        %v2745 = vunpack.c.l.b16 %v1956
        %v2746 = vunpack.c.l.b16 %v1957
        %v2747 = vunpack.c.l.b16 %v1958
        %v2748 = vunpack.c.l.b16 %v1959
        %v2749 = vunpack.c.l.b16 %v1960
        %v2750 = vunpack.c.l.b16 %v1961
        %v2751 = vunpack.c.l.b16 %v1962
        %v2752 = vunpack.c.l.b16 %v1963
        %v2753 = vunpack.c.l.b16 %v1964
        %v2754 = vpack.c.b16 %v2739, %v2738
        %v2755 = vpack.c.b16 %v2741, %v2740
        %v2756 = vpack.c.b16 %v2743, %v2742
        %v2757 = vpack.c.b16 %v2745, %v2744
        %v2758 = vpack.c.b16 %v2747, %v2746
        %v2759 = vpack.c.b16 %v2749, %v2748
        %v2760 = vpack.c.b16 %v2751, %v2750
        %v2761 = vpack.c.b16 %v2753, %v2752
        %2770 = vmatprep.subr.bf16.mxu0 0
        %2771 = vmatpush1.bf16.msra.mxu0 %v2761
        %2772 = vmatprep.subr.bf16.mxu0 0
        %2773 = vmatpush1.bf16.msra.mxu0 %v2760
        %2774 = vmatprep.subr.bf16.mxu0 0
        %2775 = vmatpush1.bf16.msra.mxu0 %v2759
        %2776 = vmatprep.subr.bf16.mxu0 0
        %2777 = vmatpush1.bf16.msra.mxu0 %v2758
        %2778 = vmatprep.subr.bf16.mxu0 0
        %2779 = vmatpush1.bf16.msra.mxu0 %v2757
        %2780 = vmatprep.subr.bf16.mxu0 0
        %2781 = vmatpush1.bf16.msra.mxu0 %v2756
        %2782 = vmatprep.subr.bf16.mxu0 0
        %2783 = vmatpush1.bf16.msra.mxu0 %v2755
        %2784 = vmatprep.subr.bf16.mxu0 0
        %2785 = vmatpush1.bf16.msra.mxu0 %v2754
        %2786 = vmatprep.subr.bf16.mxu0 0
        %2787 = vmatpush2.bf16.msra.mxu0 0
        %2788 = vmatprep.subr.bf16.mxu0 0
        %2789 = vmatpush2.bf16.msra.mxu0 0
        %2790 = vmatprep.subr.bf16.mxu0 0
        %2791 = vmatpush2.bf16.msra.mxu0 0
        %2792 = vmatprep.subr.bf16.mxu0 0
        %2793 = vmatpush2.bf16.msra.mxu0 0
        %2794 = vmatprep.subr.bf16.mxu0 0
        %2795 = vmatpush2.bf16.msra.mxu0 0
        %2796 = vmatprep.subr.bf16.mxu0 0
        %2797 = vmatpush2.bf16.msra.mxu0 0
        %2798 = vmatprep.subr.bf16.mxu0 0
        %2799 = vmatpush2.bf16.msra.mxu0 0
        %2800 = vmatprep.subr.bf16.mxu0 0
        %2801 = vmatpush2.bf16.msra.mxu0 0
        %2802 = vmatprep.mubr.bf16.mxu0 0
        %2803 = vmatmul.mubr.bf16.gmra.mxu0 %v573
        %v2804 = vpop.f32.mrf.mxu0
        %v2805 = vadd.f32 0.0, %v2804
        %v2806 = vpop.f32.mrf.mxu0
        %v2807 = vpop.f32.mrf.mxu0
        %v2808 = vadd.f32 0.0, %v2807
        %v2809 = vpop.f32.mrf.mxu0
        %2810 = vmatprep.mubr.bf16.mxu0 0
        %2811 = vmatmul.mubr.bf16.gmra.mxu0 %v574
        %v2812 = vpop.f32.mrf.mxu0
        %v2813 = vadd.f32 0.0, %v2812
        %v2814 = vpop.f32.mrf.mxu0
        %v2815 = vpop.f32.mrf.mxu0
        %v2816 = vadd.f32 0.0, %v2815
        %v2817 = vpop.f32.mrf.mxu0
        %2818 = vmatprep.mubr.bf16.mxu0 0
        %2819 = vmatmul.mubr.bf16.gmra.mxu0 %v575
        %v2820 = vpop.f32.mrf.mxu0
        %v2821 = vadd.f32 0.0, %v2820
        %v2822 = vpop.f32.mrf.mxu0
        %v2823 = vpop.f32.mrf.mxu0
        %v2824 = vadd.f32 0.0, %v2823
        %v2825 = vpop.f32.mrf.mxu0
        %2826 = vmatprep.mubr.bf16.mxu0 0
        %2827 = vmatmul.mubr.bf16.gmra.mxu0 %v576
        %v2828 = vpop.f32.mrf.mxu0
        %v2829 = vadd.f32 0.0, %v2828
        %v2830 = vpop.f32.mrf.mxu0
        %v2831 = vpop.f32.mrf.mxu0
        %v2832 = vadd.f32 0.0, %v2831
        %v2833 = vpop.f32.mrf.mxu0
        %2834 = vmatprep.mubr.bf16.mxu0 0
        %2835 = vmatmul.mubr.bf16.gmra.mxu0 %v577
        %v2836 = vpop.f32.mrf.mxu0
        %v2837 = vadd.f32 0.0, %v2836
        %v2838 = vpop.f32.mrf.mxu0
        %v2839 = vpop.f32.mrf.mxu0
        %v2840 = vadd.f32 0.0, %v2839
        %v2841 = vpop.f32.mrf.mxu0
        %2842 = vmatprep.mubr.bf16.mxu0 0
        %2843 = vmatmul.mubr.bf16.gmra.mxu0 %v578
        %v2844 = vpop.f32.mrf.mxu0
        %v2845 = vadd.f32 0.0, %v2844
        %v2846 = vpop.f32.mrf.mxu0
        %v2847 = vpop.f32.mrf.mxu0
        %v2848 = vadd.f32 0.0, %v2847
        %v2849 = vpop.f32.mrf.mxu0
        %2850 = vmatprep.mubr.bf16.mxu0 0
        %2851 = vmatmul.mubr.bf16.gmra.mxu0 %v579
        %v2852 = vpop.f32.mrf.mxu0
        %v2853 = vadd.f32 0.0, %v2852
        %v2854 = vpop.f32.mrf.mxu0
        %v2855 = vpop.f32.mrf.mxu0
        %v2856 = vadd.f32 0.0, %v2855
        %v2857 = vpop.f32.mrf.mxu0
        %2858 = vmatprep.mubr.bf16.mxu0 0
        %2859 = vmatmul.mubr.bf16.gmra.mxu0 %v580
        %v2860 = vpop.f32.mrf.mxu0
        %v2861 = vadd.f32 0.0, %v2860
        %v2862 = vpop.f32.mrf.mxu0
        %v2863 = vpop.f32.mrf.mxu0
        %v2864 = vadd.f32 0.0, %v2863
        %v2865 = vpop.f32.mrf.mxu0
        %2866 = vdwg.mxu0
        %v2883 = vunpack.c.l.b16 %v1965
        %v2884 = vunpack.c.l.b16 %v1966
        %v2885 = vunpack.c.l.b16 %v1967
        %v2886 = vunpack.c.l.b16 %v1968
        %v2887 = vunpack.c.l.b16 %v1969
        %v2888 = vunpack.c.l.b16 %v1970
        %v2889 = vunpack.c.l.b16 %v1971
        %v2890 = vunpack.c.l.b16 %v1972
        %v2891 = vunpack.c.l.b16 %v1973
        %v2892 = vunpack.c.l.b16 %v1974
        %v2893 = vunpack.c.l.b16 %v1975
        %v2894 = vunpack.c.l.b16 %v1976
        %v2895 = vunpack.c.l.b16 %v1977
        %v2896 = vunpack.c.l.b16 %v1978
        %v2897 = vunpack.c.l.b16 %v1979
        %v2898 = vunpack.c.l.b16 %v1980
        %v2899 = vpack.c.b16 %v2884, %v2883
        %v2900 = vpack.c.b16 %v2886, %v2885
        %v2901 = vpack.c.b16 %v2888, %v2887
        %v2902 = vpack.c.b16 %v2890, %v2889
        %v2903 = vpack.c.b16 %v2892, %v2891
        %v2904 = vpack.c.b16 %v2894, %v2893
        %v2905 = vpack.c.b16 %v2896, %v2895
        %v2906 = vpack.c.b16 %v2898, %v2897
        %2915 = vmatprep.subr.bf16.mxu0 0
        %2916 = vmatpush1.bf16.msra.mxu0 %v2906
        %2917 = vmatprep.subr.bf16.mxu0 0
        %2918 = vmatpush1.bf16.msra.mxu0 %v2905
        %2919 = vmatprep.subr.bf16.mxu0 0
        %2920 = vmatpush1.bf16.msra.mxu0 %v2904
        %2921 = vmatprep.subr.bf16.mxu0 0
        %2922 = vmatpush1.bf16.msra.mxu0 %v2903
        %2923 = vmatprep.subr.bf16.mxu0 0
        %2924 = vmatpush1.bf16.msra.mxu0 %v2902
        %2925 = vmatprep.subr.bf16.mxu0 0
        %2926 = vmatpush1.bf16.msra.mxu0 %v2901
        %2927 = vmatprep.subr.bf16.mxu0 0
        %2928 = vmatpush1.bf16.msra.mxu0 %v2900
        %2929 = vmatprep.subr.bf16.mxu0 0
        %2930 = vmatpush1.bf16.msra.mxu0 %v2899
        %2931 = vmatprep.subr.bf16.mxu0 0
        %2932 = vmatpush2.bf16.msra.mxu0 0
        %2933 = vmatprep.subr.bf16.mxu0 0
        %2934 = vmatpush2.bf16.msra.mxu0 0
        %2935 = vmatprep.subr.bf16.mxu0 0
        %2936 = vmatpush2.bf16.msra.mxu0 0
        %2937 = vmatprep.subr.bf16.mxu0 0
        %2938 = vmatpush2.bf16.msra.mxu0 0
        %2939 = vmatprep.subr.bf16.mxu0 0
        %2940 = vmatpush2.bf16.msra.mxu0 0
        %2941 = vmatprep.subr.bf16.mxu0 0
        %2942 = vmatpush2.bf16.msra.mxu0 0
        %2943 = vmatprep.subr.bf16.mxu0 0
        %2944 = vmatpush2.bf16.msra.mxu0 0
        %2945 = vmatprep.subr.bf16.mxu0 0
        %2946 = vmatpush2.bf16.msra.mxu0 0
        %2947 = vmatprep.mubr.bf16.mxu0 0
        %2948 = vmatmul.mubr.bf16.gmra.mxu0 %v573
        %v2949 = vpop.f32.mrf.mxu0
        %v2950 = vadd.f32 0.0, %v2949
        %v2951 = vpop.f32.mrf.mxu0
        %v2952 = vpop.f32.mrf.mxu0
        %v2953 = vadd.f32 0.0, %v2952
        %v2954 = vpop.f32.mrf.mxu0
        %2955 = vmatprep.mubr.bf16.mxu0 0
        %2956 = vmatmul.mubr.bf16.gmra.mxu0 %v574
        %v2957 = vpop.f32.mrf.mxu0
        %v2958 = vadd.f32 0.0, %v2957
        %v2959 = vpop.f32.mrf.mxu0
        %v2960 = vpop.f32.mrf.mxu0
        %v2961 = vadd.f32 0.0, %v2960
        %v2962 = vpop.f32.mrf.mxu0
        %2963 = vmatprep.mubr.bf16.mxu0 0
        %2964 = vmatmul.mubr.bf16.gmra.mxu0 %v575
        %v2965 = vpop.f32.mrf.mxu0
        %v2966 = vadd.f32 0.0, %v2965
        %v2967 = vpop.f32.mrf.mxu0
        %v2968 = vpop.f32.mrf.mxu0
        %v2969 = vadd.f32 0.0, %v2968
        %v2970 = vpop.f32.mrf.mxu0
        %2971 = vmatprep.mubr.bf16.mxu0 0
        %2972 = vmatmul.mubr.bf16.gmra.mxu0 %v576
        %v2973 = vpop.f32.mrf.mxu0
        %v2974 = vadd.f32 0.0, %v2973
        %v2975 = vpop.f32.mrf.mxu0
        %v2976 = vpop.f32.mrf.mxu0
        %v2977 = vadd.f32 0.0, %v2976
        %v2978 = vpop.f32.mrf.mxu0
        %2979 = vmatprep.mubr.bf16.mxu0 0
        %2980 = vmatmul.mubr.bf16.gmra.mxu0 %v577
        %v2981 = vpop.f32.mrf.mxu0
        %v2982 = vadd.f32 0.0, %v2981
        %v2983 = vpop.f32.mrf.mxu0
        %v2984 = vpop.f32.mrf.mxu0
        %v2985 = vadd.f32 0.0, %v2984
        %v2986 = vpop.f32.mrf.mxu0
        %2987 = vmatprep.mubr.bf16.mxu0 0
        %2988 = vmatmul.mubr.bf16.gmra.mxu0 %v578
        %v2989 = vpop.f32.mrf.mxu0
        %v2990 = vadd.f32 0.0, %v2989
        %v2991 = vpop.f32.mrf.mxu0
        %v2992 = vpop.f32.mrf.mxu0
        %v2993 = vadd.f32 0.0, %v2992
        %v2994 = vpop.f32.mrf.mxu0
        %2995 = vmatprep.mubr.bf16.mxu0 0
        %2996 = vmatmul.mubr.bf16.gmra.mxu0 %v579
        %v2997 = vpop.f32.mrf.mxu0
        %v2998 = vadd.f32 0.0, %v2997
        %v2999 = vpop.f32.mrf.mxu0
        %v3000 = vpop.f32.mrf.mxu0
        %v3001 = vadd.f32 0.0, %v3000
        %v3002 = vpop.f32.mrf.mxu0
        %3003 = vmatprep.mubr.bf16.mxu0 0
        %3004 = vmatmul.mubr.bf16.gmra.mxu0 %v580
        %v3005 = vpop.f32.mrf.mxu0
        %v3006 = vadd.f32 0.0, %v3005
        %v3007 = vpop.f32.mrf.mxu0
        %v3008 = vpop.f32.mrf.mxu0
        %v3009 = vadd.f32 0.0, %v3008
        %v3010 = vpop.f32.mrf.mxu0
        %3011 = vdwg.mxu0
        %v3028 = vunpack.c.l.b16 %v1981
        %v3029 = vunpack.c.l.b16 %v1982
        %v3030 = vunpack.c.l.b16 %v1983
        %v3031 = vunpack.c.l.b16 %v1984
        %v3032 = vunpack.c.l.b16 %v1985
        %v3033 = vunpack.c.l.b16 %v1986
        %v3034 = vunpack.c.l.b16 %v1987
        %v3035 = vunpack.c.l.b16 %v1988
        %v3036 = vunpack.c.l.b16 %v1989
        %v3037 = vunpack.c.l.b16 %v1990
        %v3038 = vunpack.c.l.b16 %v1991
        %v3039 = vunpack.c.l.b16 %v1992
        %v3040 = vunpack.c.l.b16 %v1993
        %v3041 = vunpack.c.l.b16 %v1994
        %v3042 = vunpack.c.l.b16 %v1995
        %v3043 = vunpack.c.l.b16 %v1996
        %v3044 = vpack.c.b16 %v3029, %v3028
        %v3045 = vpack.c.b16 %v3031, %v3030
        %v3046 = vpack.c.b16 %v3033, %v3032
        %v3047 = vpack.c.b16 %v3035, %v3034
        %v3048 = vpack.c.b16 %v3037, %v3036
        %v3049 = vpack.c.b16 %v3039, %v3038
        %v3050 = vpack.c.b16 %v3041, %v3040
        %v3051 = vpack.c.b16 %v3043, %v3042
        %3060 = vmatprep.subr.bf16.mxu0 0
        %3061 = vmatpush1.bf16.msra.mxu0 %v3051
        %3062 = vmatprep.subr.bf16.mxu0 0
        %3063 = vmatpush1.bf16.msra.mxu0 %v3050
        %3064 = vmatprep.subr.bf16.mxu0 0
        %3065 = vmatpush1.bf16.msra.mxu0 %v3049
        %3066 = vmatprep.subr.bf16.mxu0 0
        %3067 = vmatpush1.bf16.msra.mxu0 %v3048
        %3068 = vmatprep.subr.bf16.mxu0 0
        %3069 = vmatpush1.bf16.msra.mxu0 %v3047
        %3070 = vmatprep.subr.bf16.mxu0 0
        %3071 = vmatpush1.bf16.msra.mxu0 %v3046
        %3072 = vmatprep.subr.bf16.mxu0 0
        %3073 = vmatpush1.bf16.msra.mxu0 %v3045
        %3074 = vmatprep.subr.bf16.mxu0 0
        %3075 = vmatpush1.bf16.msra.mxu0 %v3044
        %3076 = vmatprep.subr.bf16.mxu0 0
        %3077 = vmatpush2.bf16.msra.mxu0 0
        %3078 = vmatprep.subr.bf16.mxu0 0
        %3079 = vmatpush2.bf16.msra.mxu0 0
        %3080 = vmatprep.subr.bf16.mxu0 0
        %3081 = vmatpush2.bf16.msra.mxu0 0
        %3082 = vmatprep.subr.bf16.mxu0 0
        %3083 = vmatpush2.bf16.msra.mxu0 0
        %3084 = vmatprep.subr.bf16.mxu0 0
        %3085 = vmatpush2.bf16.msra.mxu0 0
        %3086 = vmatprep.subr.bf16.mxu0 0
        %3087 = vmatpush2.bf16.msra.mxu0 0
        %3088 = vmatprep.subr.bf16.mxu0 0
        %3089 = vmatpush2.bf16.msra.mxu0 0
        %3090 = vmatprep.subr.bf16.mxu0 0
        %3091 = vmatpush2.bf16.msra.mxu0 0
        %3092 = vmatprep.mubr.bf16.mxu0 0
        %3093 = vmatmul.mubr.bf16.gmra.mxu0 %v573
        %v3094 = vpop.f32.mrf.mxu0
        %v3095 = vadd.f32 0.0, %v3094
        %v3096 = vpop.f32.mrf.mxu0
        %v3097 = vpop.f32.mrf.mxu0
        %v3098 = vadd.f32 0.0, %v3097
        %v3099 = vpop.f32.mrf.mxu0
        %3100 = vmatprep.mubr.bf16.mxu0 0
        %3101 = vmatmul.mubr.bf16.gmra.mxu0 %v574
        %v3102 = vpop.f32.mrf.mxu0
        %v3103 = vadd.f32 0.0, %v3102
        %v3104 = vpop.f32.mrf.mxu0
        %v3105 = vpop.f32.mrf.mxu0
        %v3106 = vadd.f32 0.0, %v3105
        %v3107 = vpop.f32.mrf.mxu0
        %3108 = vmatprep.mubr.bf16.mxu0 0
        %3109 = vmatmul.mubr.bf16.gmra.mxu0 %v575
        %v3110 = vpop.f32.mrf.mxu0
        %v3111 = vadd.f32 0.0, %v3110
        %v3112 = vpop.f32.mrf.mxu0
        %v3113 = vpop.f32.mrf.mxu0
        %v3114 = vadd.f32 0.0, %v3113
        %v3115 = vpop.f32.mrf.mxu0
        %3116 = vmatprep.mubr.bf16.mxu0 0
        %3117 = vmatmul.mubr.bf16.gmra.mxu0 %v576
        %v3118 = vpop.f32.mrf.mxu0
        %v3119 = vadd.f32 0.0, %v3118
        %v3120 = vpop.f32.mrf.mxu0
        %v3121 = vpop.f32.mrf.mxu0
        %v3122 = vadd.f32 0.0, %v3121
        %v3123 = vpop.f32.mrf.mxu0
        %3124 = vmatprep.mubr.bf16.mxu0 0
        %3125 = vmatmul.mubr.bf16.gmra.mxu0 %v577
        %v3126 = vpop.f32.mrf.mxu0
        %v3127 = vadd.f32 0.0, %v3126
        %v3128 = vpop.f32.mrf.mxu0
        %v3129 = vpop.f32.mrf.mxu0
        %v3130 = vadd.f32 0.0, %v3129
        %v3131 = vpop.f32.mrf.mxu0
        %3132 = vmatprep.mubr.bf16.mxu0 0
        %3133 = vmatmul.mubr.bf16.gmra.mxu0 %v578
        %v3134 = vpop.f32.mrf.mxu0
        %v3135 = vadd.f32 0.0, %v3134
        %v3136 = vpop.f32.mrf.mxu0
        %v3137 = vpop.f32.mrf.mxu0
        %v3138 = vadd.f32 0.0, %v3137
        %v3139 = vpop.f32.mrf.mxu0
        %3140 = vmatprep.mubr.bf16.mxu0 0
        %3141 = vmatmul.mubr.bf16.gmra.mxu0 %v579
        %v3142 = vpop.f32.mrf.mxu0
        %v3143 = vadd.f32 0.0, %v3142
        %v3144 = vpop.f32.mrf.mxu0
        %v3145 = vpop.f32.mrf.mxu0
        %v3146 = vadd.f32 0.0, %v3145
        %v3147 = vpop.f32.mrf.mxu0
        %3148 = vmatprep.mubr.bf16.mxu0 0
        %3149 = vmatmul.mubr.bf16.gmra.mxu0 %v580
        %v3150 = vpop.f32.mrf.mxu0
        %v3151 = vadd.f32 0.0, %v3150
        %v3152 = vpop.f32.mrf.mxu0
        %v3153 = vpop.f32.mrf.mxu0
        %v3154 = vadd.f32 0.0, %v3153
        %v3155 = vpop.f32.mrf.mxu0
        %3156 = vdwg.mxu0
        %v3157 = vld [vmem:[%s5] sm:$0xf]
        %v3158 = vld [vmem:[%s5 + $0x4] sm:$0xf]
        %v3159 = vld [vmem:[%s5 + $0x8] sm:$0xf]
        %v3160 = vld [vmem:[%s5 + $0xc] sm:$0xf]
        %v3161 = vld [vmem:[%s5 + $0x10] sm:$0xf]
        %v3162 = vld [vmem:[%s5 + $0x14] sm:$0xf]
        %v3163 = vld [vmem:[%s5 + $0x18] sm:$0xf]
        %v3164 = vld [vmem:[%s5 + $0x1c] sm:$0xf]
        %v3165 = vld [vmem:[%s5 + $0x20] sm:$0xf]
        %v3166 = vld [vmem:[%s5 + $0x24] sm:$0xf]
        %v3167 = vld [vmem:[%s5 + $0x28] sm:$0xf]
        %v3168 = vld [vmem:[%s5 + $0x2c] sm:$0xf]
        %v3169 = vld [vmem:[%s5 + $0x30] sm:$0xf]
        %v3170 = vld [vmem:[%s5 + $0x34] sm:$0xf]
        %v3171 = vld [vmem:[%s5 + $0x38] sm:$0xf]
        %v3172 = vld [vmem:[%s5 + $0x3c] sm:$0xf]
        %v3173 = vld [vmem:[%s5 + $0x40] sm:$0xf]
        %v3174 = vld [vmem:[%s5 + $0x44] sm:$0xf]
        %v3175 = vld [vmem:[%s5 + $0x48] sm:$0xf]
        %v3176 = vld [vmem:[%s5 + $0x4c] sm:$0xf]
        %v3177 = vld [vmem:[%s5 + $0x50] sm:$0xf]
        %v3178 = vld [vmem:[%s5 + $0x54] sm:$0xf]
        %v3179 = vld [vmem:[%s5 + $0x58] sm:$0xf]
        %v3180 = vld [vmem:[%s5 + $0x5c] sm:$0xf]
        %v3181 = vld [vmem:[%s5 + $0x60] sm:$0xf]
        %v3182 = vld [vmem:[%s5 + $0x64] sm:$0xf]
        %v3183 = vld [vmem:[%s5 + $0x68] sm:$0xf]
        %v3184 = vld [vmem:[%s5 + $0x6c] sm:$0xf]
        %v3185 = vld [vmem:[%s5 + $0x70] sm:$0xf]
        %v3186 = vld [vmem:[%s5 + $0x74] sm:$0xf]
        %v3187 = vld [vmem:[%s5 + $0x78] sm:$0xf]
        %v3188 = vld [vmem:[%s5 + $0x7c] sm:$0xf]
        %v3189 = vld [vmem:[%s5 + $0x80] sm:$0xf]
        %v3190 = vld [vmem:[%s5 + $0x84] sm:$0xf]
        %v3191 = vld [vmem:[%s5 + $0x88] sm:$0xf]
        %v3192 = vld [vmem:[%s5 + $0x8c] sm:$0xf]
        %v3193 = vld [vmem:[%s5 + $0x90] sm:$0xf]
        %v3194 = vld [vmem:[%s5 + $0x94] sm:$0xf]
        %v3195 = vld [vmem:[%s5 + $0x98] sm:$0xf]
        %v3196 = vld [vmem:[%s5 + $0x9c] sm:$0xf]
        %v3197 = vld [vmem:[%s5 + $0xa0] sm:$0xf]
        %v3198 = vld [vmem:[%s5 + $0xa4] sm:$0xf]
        %v3199 = vld [vmem:[%s5 + $0xa8] sm:$0xf]
        %v3200 = vld [vmem:[%s5 + $0xac] sm:$0xf]
        %v3201 = vld [vmem:[%s5 + $0xb0] sm:$0xf]
        %v3202 = vld [vmem:[%s5 + $0xb4] sm:$0xf]
        %v3203 = vld [vmem:[%s5 + $0xb8] sm:$0xf]
        %v3204 = vld [vmem:[%s5 + $0xbc] sm:$0xf]
        %v3205 = vld [vmem:[%s5 + $0xc0] sm:$0xf]
        %v3206 = vld [vmem:[%s5 + $0xc4] sm:$0xf]
        %v3207 = vld [vmem:[%s5 + $0xc8] sm:$0xf]
        %v3208 = vld [vmem:[%s5 + $0xcc] sm:$0xf]
        %v3209 = vld [vmem:[%s5 + $0xd0] sm:$0xf]
        %v3210 = vld [vmem:[%s5 + $0xd4] sm:$0xf]
        %v3211 = vld [vmem:[%s5 + $0xd8] sm:$0xf]
        %v3212 = vld [vmem:[%s5 + $0xdc] sm:$0xf]
        %v3213 = vld [vmem:[%s5 + $0xe0] sm:$0xf]
        %v3214 = vld [vmem:[%s5 + $0xe4] sm:$0xf]
        %v3215 = vld [vmem:[%s5 + $0xe8] sm:$0xf]
        %v3216 = vld [vmem:[%s5 + $0xec] sm:$0xf]
        %v3217 = vld [vmem:[%s5 + $0xf0] sm:$0xf]
        %v3218 = vld [vmem:[%s5 + $0xf4] sm:$0xf]
        %v3219 = vld [vmem:[%s5 + $0xf8] sm:$0xf]
        %v3220 = vld [vmem:[%s5 + $0xfc] sm:$0xf]
        %v3221 = vld [vmem:[%s5 + $0x100] sm:$0xf]
        %v3222 = vld [vmem:[%s5 + $0x104] sm:$0xf]
        %v3223 = vld [vmem:[%s5 + $0x108] sm:$0xf]
        %v3224 = vld [vmem:[%s5 + $0x10c] sm:$0xf]
        %v3225 = vld [vmem:[%s5 + $0x110] sm:$0xf]
        %v3226 = vld [vmem:[%s5 + $0x114] sm:$0xf]
        %v3227 = vld [vmem:[%s5 + $0x118] sm:$0xf]
        %v3228 = vld [vmem:[%s5 + $0x11c] sm:$0xf]
        %v3229 = vld [vmem:[%s5 + $0x120] sm:$0xf]
        %v3230 = vld [vmem:[%s5 + $0x124] sm:$0xf]
        %v3231 = vld [vmem:[%s5 + $0x128] sm:$0xf]
        %v3232 = vld [vmem:[%s5 + $0x12c] sm:$0xf]
        %v3233 = vld [vmem:[%s5 + $0x130] sm:$0xf]
        %v3234 = vld [vmem:[%s5 + $0x134] sm:$0xf]
        %v3235 = vld [vmem:[%s5 + $0x138] sm:$0xf]
        %v3236 = vld [vmem:[%s5 + $0x13c] sm:$0xf]
        %v3237 = vld [vmem:[%s5 + $0x140] sm:$0xf]
        %v3238 = vld [vmem:[%s5 + $0x144] sm:$0xf]
        %v3239 = vld [vmem:[%s5 + $0x148] sm:$0xf]
        %v3240 = vld [vmem:[%s5 + $0x14c] sm:$0xf]
        %v3241 = vld [vmem:[%s5 + $0x150] sm:$0xf]
        %v3242 = vld [vmem:[%s5 + $0x154] sm:$0xf]
        %v3243 = vld [vmem:[%s5 + $0x158] sm:$0xf]
        %v3244 = vld [vmem:[%s5 + $0x15c] sm:$0xf]
        %v3245 = vld [vmem:[%s5 + $0x160] sm:$0xf]
        %v3246 = vld [vmem:[%s5 + $0x164] sm:$0xf]
        %v3247 = vld [vmem:[%s5 + $0x168] sm:$0xf]
        %v3248 = vld [vmem:[%s5 + $0x16c] sm:$0xf]
        %v3249 = vld [vmem:[%s5 + $0x170] sm:$0xf]
        %v3250 = vld [vmem:[%s5 + $0x174] sm:$0xf]
        %v3251 = vld [vmem:[%s5 + $0x178] sm:$0xf]
        %v3252 = vld [vmem:[%s5 + $0x17c] sm:$0xf]
        %v3253 = vld [vmem:[%s5 + $0x180] sm:$0xf]
        %v3254 = vld [vmem:[%s5 + $0x184] sm:$0xf]
        %v3255 = vld [vmem:[%s5 + $0x188] sm:$0xf]
        %v3256 = vld [vmem:[%s5 + $0x18c] sm:$0xf]
        %v3257 = vld [vmem:[%s5 + $0x190] sm:$0xf]
        %v3258 = vld [vmem:[%s5 + $0x194] sm:$0xf]
        %v3259 = vld [vmem:[%s5 + $0x198] sm:$0xf]
        %v3260 = vld [vmem:[%s5 + $0x19c] sm:$0xf]
        %v3261 = vld [vmem:[%s5 + $0x1a0] sm:$0xf]
        %v3262 = vld [vmem:[%s5 + $0x1a4] sm:$0xf]
        %v3263 = vld [vmem:[%s5 + $0x1a8] sm:$0xf]
        %v3264 = vld [vmem:[%s5 + $0x1ac] sm:$0xf]
        %v3265 = vld [vmem:[%s5 + $0x1b0] sm:$0xf]
        %v3266 = vld [vmem:[%s5 + $0x1b4] sm:$0xf]
        %v3267 = vld [vmem:[%s5 + $0x1b8] sm:$0xf]
        %v3268 = vld [vmem:[%s5 + $0x1bc] sm:$0xf]
        %v3269 = vld [vmem:[%s5 + $0x1c0] sm:$0xf]
        %v3270 = vld [vmem:[%s5 + $0x1c4] sm:$0xf]
        %v3271 = vld [vmem:[%s5 + $0x1c8] sm:$0xf]
        %v3272 = vld [vmem:[%s5 + $0x1cc] sm:$0xf]
        %v3273 = vld [vmem:[%s5 + $0x1d0] sm:$0xf]
        %v3274 = vld [vmem:[%s5 + $0x1d4] sm:$0xf]
        %v3275 = vld [vmem:[%s5 + $0x1d8] sm:$0xf]
        %v3276 = vld [vmem:[%s5 + $0x1dc] sm:$0xf]
        %v3277 = vld [vmem:[%s5 + $0x1e0] sm:$0xf]
        %v3278 = vld [vmem:[%s5 + $0x1e4] sm:$0xf]
        %v3279 = vld [vmem:[%s5 + $0x1e8] sm:$0xf]
        %v3280 = vld [vmem:[%s5 + $0x1ec] sm:$0xf]
        %v3281 = vld [vmem:[%s5 + $0x1f0] sm:$0xf]
        %v3282 = vld [vmem:[%s5 + $0x1f4] sm:$0xf]
        %v3283 = vld [vmem:[%s5 + $0x1f8] sm:$0xf]
        %v3284 = vld [vmem:[%s5 + $0x1fc] sm:$0xf]
        %v3301 = vunpack.c.l.b16 %v3157
        %v3302 = vunpack.c.l.b16 %v3158
        %v3303 = vunpack.c.l.b16 %v3159
        %v3304 = vunpack.c.l.b16 %v3160
        %v3305 = vunpack.c.l.b16 %v3161
        %v3306 = vunpack.c.l.b16 %v3162
        %v3307 = vunpack.c.l.b16 %v3163
        %v3308 = vunpack.c.l.b16 %v3164
        %v3309 = vunpack.c.l.b16 %v3165
        %v3310 = vunpack.c.l.b16 %v3166
        %v3311 = vunpack.c.l.b16 %v3167
        %v3312 = vunpack.c.l.b16 %v3168
        %v3313 = vunpack.c.l.b16 %v3169
        %v3314 = vunpack.c.l.b16 %v3170
        %v3315 = vunpack.c.l.b16 %v3171
        %v3316 = vunpack.c.l.b16 %v3172
        %v3317 = vpack.c.b16 %v3302, %v3301
        %v3318 = vpack.c.b16 %v3304, %v3303
        %v3319 = vpack.c.b16 %v3306, %v3305
        %v3320 = vpack.c.b16 %v3308, %v3307
        %v3321 = vpack.c.b16 %v3310, %v3309
        %v3322 = vpack.c.b16 %v3312, %v3311
        %v3323 = vpack.c.b16 %v3314, %v3313
        %v3324 = vpack.c.b16 %v3316, %v3315
        %3333 = vmatprep.subr.bf16.mxu0 0
        %3334 = vmatpush1.bf16.msra.mxu0 %v3324
        %3335 = vmatprep.subr.bf16.mxu0 0
        %3336 = vmatpush1.bf16.msra.mxu0 %v3323
        %3337 = vmatprep.subr.bf16.mxu0 0
        %3338 = vmatpush1.bf16.msra.mxu0 %v3322
        %3339 = vmatprep.subr.bf16.mxu0 0
        %3340 = vmatpush1.bf16.msra.mxu0 %v3321
        %3341 = vmatprep.subr.bf16.mxu0 0
        %3342 = vmatpush1.bf16.msra.mxu0 %v3320
        %3343 = vmatprep.subr.bf16.mxu0 0
        %3344 = vmatpush1.bf16.msra.mxu0 %v3319
        %3345 = vmatprep.subr.bf16.mxu0 0
        %3346 = vmatpush1.bf16.msra.mxu0 %v3318
        %3347 = vmatprep.subr.bf16.mxu0 0
        %3348 = vmatpush1.bf16.msra.mxu0 %v3317
        %3349 = vmatprep.subr.bf16.mxu0 0
        %3350 = vmatpush2.bf16.msra.mxu0 0
        %3351 = vmatprep.subr.bf16.mxu0 0
        %3352 = vmatpush2.bf16.msra.mxu0 0
        %3353 = vmatprep.subr.bf16.mxu0 0
        %3354 = vmatpush2.bf16.msra.mxu0 0
        %3355 = vmatprep.subr.bf16.mxu0 0
        %3356 = vmatpush2.bf16.msra.mxu0 0
        %3357 = vmatprep.subr.bf16.mxu0 0
        %3358 = vmatpush2.bf16.msra.mxu0 0
        %3359 = vmatprep.subr.bf16.mxu0 0
        %3360 = vmatpush2.bf16.msra.mxu0 0
        %3361 = vmatprep.subr.bf16.mxu0 0
        %3362 = vmatpush2.bf16.msra.mxu0 0
        %3363 = vmatprep.subr.bf16.mxu0 0
        %3364 = vmatpush2.bf16.msra.mxu0 0
        %3365 = vmatprep.mubr.bf16.mxu0 0
        %3366 = vmatmul.mubr.bf16.gmra.mxu0 %v573
        %v3367 = vpop.f32.mrf.mxu0
        %v3368 = vadd.f32 0.0, %v3367
        %v3369 = vpop.f32.mrf.mxu0
        %v3370 = vpop.f32.mrf.mxu0
        %v3371 = vadd.f32 0.0, %v3370
        %v3372 = vpop.f32.mrf.mxu0
        %3373 = vmatprep.mubr.bf16.mxu0 0
        %3374 = vmatmul.mubr.bf16.gmra.mxu0 %v574
        %v3375 = vpop.f32.mrf.mxu0
        %v3376 = vadd.f32 0.0, %v3375
        %v3377 = vpop.f32.mrf.mxu0
        %v3378 = vpop.f32.mrf.mxu0
        %v3379 = vadd.f32 0.0, %v3378
        %v3380 = vpop.f32.mrf.mxu0
        %3381 = vmatprep.mubr.bf16.mxu0 0
        %3382 = vmatmul.mubr.bf16.gmra.mxu0 %v575
        %v3383 = vpop.f32.mrf.mxu0
        %v3384 = vadd.f32 0.0, %v3383
        %v3385 = vpop.f32.mrf.mxu0
        %v3386 = vpop.f32.mrf.mxu0
        %v3387 = vadd.f32 0.0, %v3386
        %v3388 = vpop.f32.mrf.mxu0
        %3389 = vmatprep.mubr.bf16.mxu0 0
        %3390 = vmatmul.mubr.bf16.gmra.mxu0 %v576
        %v3391 = vpop.f32.mrf.mxu0
        %v3392 = vadd.f32 0.0, %v3391
        %v3393 = vpop.f32.mrf.mxu0
        %v3394 = vpop.f32.mrf.mxu0
        %v3395 = vadd.f32 0.0, %v3394
        %v3396 = vpop.f32.mrf.mxu0
        %3397 = vmatprep.mubr.bf16.mxu0 0
        %3398 = vmatmul.mubr.bf16.gmra.mxu0 %v577
        %v3399 = vpop.f32.mrf.mxu0
        %v3400 = vadd.f32 0.0, %v3399
        %v3401 = vpop.f32.mrf.mxu0
        %v3402 = vpop.f32.mrf.mxu0
        %v3403 = vadd.f32 0.0, %v3402
        %v3404 = vpop.f32.mrf.mxu0
        %3405 = vmatprep.mubr.bf16.mxu0 0
        %3406 = vmatmul.mubr.bf16.gmra.mxu0 %v578
        %v3407 = vpop.f32.mrf.mxu0
        %v3408 = vadd.f32 0.0, %v3407
        %v3409 = vpop.f32.mrf.mxu0
        %v3410 = vpop.f32.mrf.mxu0
        %v3411 = vadd.f32 0.0, %v3410
        %v3412 = vpop.f32.mrf.mxu0
        %3413 = vmatprep.mubr.bf16.mxu0 0
        %3414 = vmatmul.mubr.bf16.gmra.mxu0 %v579
        %v3415 = vpop.f32.mrf.mxu0
        %v3416 = vadd.f32 0.0, %v3415
        %v3417 = vpop.f32.mrf.mxu0
        %v3418 = vpop.f32.mrf.mxu0
        %v3419 = vadd.f32 0.0, %v3418
        %v3420 = vpop.f32.mrf.mxu0
        %3421 = vmatprep.mubr.bf16.mxu0 0
        %3422 = vmatmul.mubr.bf16.gmra.mxu0 %v580
        %v3423 = vpop.f32.mrf.mxu0
        %v3424 = vadd.f32 0.0, %v3423
        %v3425 = vpop.f32.mrf.mxu0
        %v3426 = vpop.f32.mrf.mxu0
        %v3427 = vadd.f32 0.0, %v3426
        %v3428 = vpop.f32.mrf.mxu0
        %3429 = vdwg.mxu0
        %v3446 = vunpack.c.l.b16 %v3173
        %v3447 = vunpack.c.l.b16 %v3174
        %v3448 = vunpack.c.l.b16 %v3175
        %v3449 = vunpack.c.l.b16 %v3176
        %v3450 = vunpack.c.l.b16 %v3177
        %v3451 = vunpack.c.l.b16 %v3178
        %v3452 = vunpack.c.l.b16 %v3179
        %v3453 = vunpack.c.l.b16 %v3180
        %v3454 = vunpack.c.l.b16 %v3181
        %v3455 = vunpack.c.l.b16 %v3182
        %v3456 = vunpack.c.l.b16 %v3183
        %v3457 = vunpack.c.l.b16 %v3184
        %v3458 = vunpack.c.l.b16 %v3185
        %v3459 = vunpack.c.l.b16 %v3186
        %v3460 = vunpack.c.l.b16 %v3187
        %v3461 = vunpack.c.l.b16 %v3188
        %v3462 = vpack.c.b16 %v3447, %v3446
        %v3463 = vpack.c.b16 %v3449, %v3448
        %v3464 = vpack.c.b16 %v3451, %v3450
        %v3465 = vpack.c.b16 %v3453, %v3452
        %v3466 = vpack.c.b16 %v3455, %v3454
        %v3467 = vpack.c.b16 %v3457, %v3456
        %v3468 = vpack.c.b16 %v3459, %v3458
        %v3469 = vpack.c.b16 %v3461, %v3460
        %3478 = vmatprep.subr.bf16.mxu0 0
        %3479 = vmatpush1.bf16.msra.mxu0 %v3469
        %3480 = vmatprep.subr.bf16.mxu0 0
        %3481 = vmatpush1.bf16.msra.mxu0 %v3468
        %3482 = vmatprep.subr.bf16.mxu0 0
        %3483 = vmatpush1.bf16.msra.mxu0 %v3467
        %3484 = vmatprep.subr.bf16.mxu0 0
        %3485 = vmatpush1.bf16.msra.mxu0 %v3466
        %3486 = vmatprep.subr.bf16.mxu0 0
        %3487 = vmatpush1.bf16.msra.mxu0 %v3465
        %3488 = vmatprep.subr.bf16.mxu0 0
        %3489 = vmatpush1.bf16.msra.mxu0 %v3464
        %3490 = vmatprep.subr.bf16.mxu0 0
        %3491 = vmatpush1.bf16.msra.mxu0 %v3463
        %3492 = vmatprep.subr.bf16.mxu0 0
        %3493 = vmatpush1.bf16.msra.mxu0 %v3462
        %3494 = vmatprep.subr.bf16.mxu0 0
        %3495 = vmatpush2.bf16.msra.mxu0 0
        %3496 = vmatprep.subr.bf16.mxu0 0
        %3497 = vmatpush2.bf16.msra.mxu0 0
        %3498 = vmatprep.subr.bf16.mxu0 0
        %3499 = vmatpush2.bf16.msra.mxu0 0
        %3500 = vmatprep.subr.bf16.mxu0 0
        %3501 = vmatpush2.bf16.msra.mxu0 0
        %3502 = vmatprep.subr.bf16.mxu0 0
        %3503 = vmatpush2.bf16.msra.mxu0 0
        %3504 = vmatprep.subr.bf16.mxu0 0
        %3505 = vmatpush2.bf16.msra.mxu0 0
        %3506 = vmatprep.subr.bf16.mxu0 0
        %3507 = vmatpush2.bf16.msra.mxu0 0
        %3508 = vmatprep.subr.bf16.mxu0 0
        %3509 = vmatpush2.bf16.msra.mxu0 0
        %3510 = vmatprep.mubr.bf16.mxu0 0
        %3511 = vmatmul.mubr.bf16.gmra.mxu0 %v573
        %v3512 = vpop.f32.mrf.mxu0
        %v3513 = vadd.f32 0.0, %v3512
        %v3514 = vpop.f32.mrf.mxu0
        %v3515 = vpop.f32.mrf.mxu0
        %v3516 = vadd.f32 0.0, %v3515
        %v3517 = vpop.f32.mrf.mxu0
        %3518 = vmatprep.mubr.bf16.mxu0 0
        %3519 = vmatmul.mubr.bf16.gmra.mxu0 %v574
        %v3520 = vpop.f32.mrf.mxu0
        %v3521 = vadd.f32 0.0, %v3520
        %v3522 = vpop.f32.mrf.mxu0
        %v3523 = vpop.f32.mrf.mxu0
        %v3524 = vadd.f32 0.0, %v3523
        %v3525 = vpop.f32.mrf.mxu0
        %3526 = vmatprep.mubr.bf16.mxu0 0
        %3527 = vmatmul.mubr.bf16.gmra.mxu0 %v575
        %v3528 = vpop.f32.mrf.mxu0
        %v3529 = vadd.f32 0.0, %v3528
        %v3530 = vpop.f32.mrf.mxu0
        %v3531 = vpop.f32.mrf.mxu0
        %v3532 = vadd.f32 0.0, %v3531
        %v3533 = vpop.f32.mrf.mxu0
        %3534 = vmatprep.mubr.bf16.mxu0 0
        %3535 = vmatmul.mubr.bf16.gmra.mxu0 %v576
        %v3536 = vpop.f32.mrf.mxu0
        %v3537 = vadd.f32 0.0, %v3536
        %v3538 = vpop.f32.mrf.mxu0
        %v3539 = vpop.f32.mrf.mxu0
        %v3540 = vadd.f32 0.0, %v3539
        %v3541 = vpop.f32.mrf.mxu0
        %3542 = vmatprep.mubr.bf16.mxu0 0
        %3543 = vmatmul.mubr.bf16.gmra.mxu0 %v577
        %v3544 = vpop.f32.mrf.mxu0
        %v3545 = vadd.f32 0.0, %v3544
        %v3546 = vpop.f32.mrf.mxu0
        %v3547 = vpop.f32.mrf.mxu0
        %v3548 = vadd.f32 0.0, %v3547
        %v3549 = vpop.f32.mrf.mxu0
        %3550 = vmatprep.mubr.bf16.mxu0 0
        %3551 = vmatmul.mubr.bf16.gmra.mxu0 %v578
        %v3552 = vpop.f32.mrf.mxu0
        %v3553 = vadd.f32 0.0, %v3552
        %v3554 = vpop.f32.mrf.mxu0
        %v3555 = vpop.f32.mrf.mxu0
        %v3556 = vadd.f32 0.0, %v3555
        %v3557 = vpop.f32.mrf.mxu0
        %3558 = vmatprep.mubr.bf16.mxu0 0
        %3559 = vmatmul.mubr.bf16.gmra.mxu0 %v579
        %v3560 = vpop.f32.mrf.mxu0
        %v3561 = vadd.f32 0.0, %v3560
        %v3562 = vpop.f32.mrf.mxu0
        %v3563 = vpop.f32.mrf.mxu0
        %v3564 = vadd.f32 0.0, %v3563
        %v3565 = vpop.f32.mrf.mxu0
        %3566 = vmatprep.mubr.bf16.mxu0 0
        %3567 = vmatmul.mubr.bf16.gmra.mxu0 %v580
        %v3568 = vpop.f32.mrf.mxu0
        %v3569 = vadd.f32 0.0, %v3568
        %v3570 = vpop.f32.mrf.mxu0
        %v3571 = vpop.f32.mrf.mxu0
        %v3572 = vadd.f32 0.0, %v3571
        %v3573 = vpop.f32.mrf.mxu0
        %3574 = vdwg.mxu0
        %v3591 = vunpack.c.l.b16 %v3189
        %v3592 = vunpack.c.l.b16 %v3190
        %v3593 = vunpack.c.l.b16 %v3191
        %v3594 = vunpack.c.l.b16 %v3192
        %v3595 = vunpack.c.l.b16 %v3193
        %v3596 = vunpack.c.l.b16 %v3194
        %v3597 = vunpack.c.l.b16 %v3195
        %v3598 = vunpack.c.l.b16 %v3196
        %v3599 = vunpack.c.l.b16 %v3197
        %v3600 = vunpack.c.l.b16 %v3198
        %v3601 = vunpack.c.l.b16 %v3199
        %v3602 = vunpack.c.l.b16 %v3200
        %v3603 = vunpack.c.l.b16 %v3201
        %v3604 = vunpack.c.l.b16 %v3202
        %v3605 = vunpack.c.l.b16 %v3203
        %v3606 = vunpack.c.l.b16 %v3204
        %v3607 = vpack.c.b16 %v3592, %v3591
        %v3608 = vpack.c.b16 %v3594, %v3593
        %v3609 = vpack.c.b16 %v3596, %v3595
        %v3610 = vpack.c.b16 %v3598, %v3597
        %v3611 = vpack.c.b16 %v3600, %v3599
        %v3612 = vpack.c.b16 %v3602, %v3601
        %v3613 = vpack.c.b16 %v3604, %v3603
        %v3614 = vpack.c.b16 %v3606, %v3605
        %3623 = vmatprep.subr.bf16.mxu0 0
        %3624 = vmatpush1.bf16.msra.mxu0 %v3614
        %3625 = vmatprep.subr.bf16.mxu0 0
        %3626 = vmatpush1.bf16.msra.mxu0 %v3613
        %3627 = vmatprep.subr.bf16.mxu0 0
        %3628 = vmatpush1.bf16.msra.mxu0 %v3612
        %3629 = vmatprep.subr.bf16.mxu0 0
        %3630 = vmatpush1.bf16.msra.mxu0 %v3611
        %3631 = vmatprep.subr.bf16.mxu0 0
        %3632 = vmatpush1.bf16.msra.mxu0 %v3610
        %3633 = vmatprep.subr.bf16.mxu0 0
        %3634 = vmatpush1.bf16.msra.mxu0 %v3609
        %3635 = vmatprep.subr.bf16.mxu0 0
        %3636 = vmatpush1.bf16.msra.mxu0 %v3608
        %3637 = vmatprep.subr.bf16.mxu0 0
        %3638 = vmatpush1.bf16.msra.mxu0 %v3607
        %3639 = vmatprep.subr.bf16.mxu0 0
        %3640 = vmatpush2.bf16.msra.mxu0 0
        %3641 = vmatprep.subr.bf16.mxu0 0
        %3642 = vmatpush2.bf16.msra.mxu0 0
        %3643 = vmatprep.subr.bf16.mxu0 0
        %3644 = vmatpush2.bf16.msra.mxu0 0
        %3645 = vmatprep.subr.bf16.mxu0 0
        %3646 = vmatpush2.bf16.msra.mxu0 0
        %3647 = vmatprep.subr.bf16.mxu0 0
        %3648 = vmatpush2.bf16.msra.mxu0 0
        %3649 = vmatprep.subr.bf16.mxu0 0
        %3650 = vmatpush2.bf16.msra.mxu0 0
        %3651 = vmatprep.subr.bf16.mxu0 0
        %3652 = vmatpush2.bf16.msra.mxu0 0
        %3653 = vmatprep.subr.bf16.mxu0 0
        %3654 = vmatpush2.bf16.msra.mxu0 0
        %3655 = vmatprep.mubr.bf16.mxu0 0
        %3656 = vmatmul.mubr.bf16.gmra.mxu0 %v573
        %v3657 = vpop.f32.mrf.mxu0
        %v3658 = vadd.f32 0.0, %v3657
        %v3659 = vpop.f32.mrf.mxu0
        %v3660 = vpop.f32.mrf.mxu0
        %v3661 = vadd.f32 0.0, %v3660
        %v3662 = vpop.f32.mrf.mxu0
        %3663 = vmatprep.mubr.bf16.mxu0 0
        %3664 = vmatmul.mubr.bf16.gmra.mxu0 %v574
        %v3665 = vpop.f32.mrf.mxu0
        %v3666 = vadd.f32 0.0, %v3665
        %v3667 = vpop.f32.mrf.mxu0
        %v3668 = vpop.f32.mrf.mxu0
        %v3669 = vadd.f32 0.0, %v3668
        %v3670 = vpop.f32.mrf.mxu0
        %3671 = vmatprep.mubr.bf16.mxu0 0
        %3672 = vmatmul.mubr.bf16.gmra.mxu0 %v575
        %v3673 = vpop.f32.mrf.mxu0
        %v3674 = vadd.f32 0.0, %v3673
        %v3675 = vpop.f32.mrf.mxu0
        %v3676 = vpop.f32.mrf.mxu0
        %v3677 = vadd.f32 0.0, %v3676
        %v3678 = vpop.f32.mrf.mxu0
        %3679 = vmatprep.mubr.bf16.mxu0 0
        %3680 = vmatmul.mubr.bf16.gmra.mxu0 %v576
        %v3681 = vpop.f32.mrf.mxu0
        %v3682 = vadd.f32 0.0, %v3681
        %v3683 = vpop.f32.mrf.mxu0
        %v3684 = vpop.f32.mrf.mxu0
        %v3685 = vadd.f32 0.0, %v3684
        %v3686 = vpop.f32.mrf.mxu0
        %3687 = vmatprep.mubr.bf16.mxu0 0
        %3688 = vmatmul.mubr.bf16.gmra.mxu0 %v577
        %v3689 = vpop.f32.mrf.mxu0
        %v3690 = vadd.f32 0.0, %v3689
        %v3691 = vpop.f32.mrf.mxu0
        %v3692 = vpop.f32.mrf.mxu0
        %v3693 = vadd.f32 0.0, %v3692
        %v3694 = vpop.f32.mrf.mxu0
        %3695 = vmatprep.mubr.bf16.mxu0 0
        %3696 = vmatmul.mubr.bf16.gmra.mxu0 %v578
        %v3697 = vpop.f32.mrf.mxu0
        %v3698 = vadd.f32 0.0, %v3697
        %v3699 = vpop.f32.mrf.mxu0
        %v3700 = vpop.f32.mrf.mxu0
        %v3701 = vadd.f32 0.0, %v3700
        %v3702 = vpop.f32.mrf.mxu0
        %3703 = vmatprep.mubr.bf16.mxu0 0
        %3704 = vmatmul.mubr.bf16.gmra.mxu0 %v579
        %v3705 = vpop.f32.mrf.mxu0
        %v3706 = vadd.f32 0.0, %v3705
        %v3707 = vpop.f32.mrf.mxu0
        %v3708 = vpop.f32.mrf.mxu0
        %v3709 = vadd.f32 0.0, %v3708
        %v3710 = vpop.f32.mrf.mxu0
        %3711 = vmatprep.mubr.bf16.mxu0 0
        %3712 = vmatmul.mubr.bf16.gmra.mxu0 %v580
        %v3713 = vpop.f32.mrf.mxu0
        %v3714 = vadd.f32 0.0, %v3713
        %v3715 = vpop.f32.mrf.mxu0
        %v3716 = vpop.f32.mrf.mxu0
        %v3717 = vadd.f32 0.0, %v3716
        %v3718 = vpop.f32.mrf.mxu0
        %3719 = vdwg.mxu0
        %v3736 = vunpack.c.l.b16 %v3205
        %v3737 = vunpack.c.l.b16 %v3206
        %v3738 = vunpack.c.l.b16 %v3207
        %v3739 = vunpack.c.l.b16 %v3208
        %v3740 = vunpack.c.l.b16 %v3209
        %v3741 = vunpack.c.l.b16 %v3210
        %v3742 = vunpack.c.l.b16 %v3211
        %v3743 = vunpack.c.l.b16 %v3212
        %v3744 = vunpack.c.l.b16 %v3213
        %v3745 = vunpack.c.l.b16 %v3214
        %v3746 = vunpack.c.l.b16 %v3215
        %v3747 = vunpack.c.l.b16 %v3216
        %v3748 = vunpack.c.l.b16 %v3217
        %v3749 = vunpack.c.l.b16 %v3218
        %v3750 = vunpack.c.l.b16 %v3219
        %v3751 = vunpack.c.l.b16 %v3220
        %v3752 = vpack.c.b16 %v3737, %v3736
        %v3753 = vpack.c.b16 %v3739, %v3738
        %v3754 = vpack.c.b16 %v3741, %v3740
        %v3755 = vpack.c.b16 %v3743, %v3742
        %v3756 = vpack.c.b16 %v3745, %v3744
        %v3757 = vpack.c.b16 %v3747, %v3746
        %v3758 = vpack.c.b16 %v3749, %v3748
        %v3759 = vpack.c.b16 %v3751, %v3750
        %3768 = vmatprep.subr.bf16.mxu0 0
        %3769 = vmatpush1.bf16.msra.mxu0 %v3759
        %3770 = vmatprep.subr.bf16.mxu0 0
        %3771 = vmatpush1.bf16.msra.mxu0 %v3758
        %3772 = vmatprep.subr.bf16.mxu0 0
        %3773 = vmatpush1.bf16.msra.mxu0 %v3757
        %3774 = vmatprep.subr.bf16.mxu0 0
        %3775 = vmatpush1.bf16.msra.mxu0 %v3756
        %3776 = vmatprep.subr.bf16.mxu0 0
        %3777 = vmatpush1.bf16.msra.mxu0 %v3755
        %3778 = vmatprep.subr.bf16.mxu0 0
        %3779 = vmatpush1.bf16.msra.mxu0 %v3754
        %3780 = vmatprep.subr.bf16.mxu0 0
        %3781 = vmatpush1.bf16.msra.mxu0 %v3753
        %3782 = vmatprep.subr.bf16.mxu0 0
        %3783 = vmatpush1.bf16.msra.mxu0 %v3752
        %3784 = vmatprep.subr.bf16.mxu0 0
        %3785 = vmatpush2.bf16.msra.mxu0 0
        %3786 = vmatprep.subr.bf16.mxu0 0
        %3787 = vmatpush2.bf16.msra.mxu0 0
        %3788 = vmatprep.subr.bf16.mxu0 0
        %3789 = vmatpush2.bf16.msra.mxu0 0
        %3790 = vmatprep.subr.bf16.mxu0 0
        %3791 = vmatpush2.bf16.msra.mxu0 0
        %3792 = vmatprep.subr.bf16.mxu0 0
        %3793 = vmatpush2.bf16.msra.mxu0 0
        %3794 = vmatprep.subr.bf16.mxu0 0
        %3795 = vmatpush2.bf16.msra.mxu0 0
        %3796 = vmatprep.subr.bf16.mxu0 0
        %3797 = vmatpush2.bf16.msra.mxu0 0
        %3798 = vmatprep.subr.bf16.mxu0 0
        %3799 = vmatpush2.bf16.msra.mxu0 0
        %3800 = vmatprep.mubr.bf16.mxu0 0
        %3801 = vmatmul.mubr.bf16.gmra.mxu0 %v573
        %v3802 = vpop.f32.mrf.mxu0
        %v3803 = vadd.f32 0.0, %v3802
        %v3804 = vpop.f32.mrf.mxu0
        %v3805 = vpop.f32.mrf.mxu0
        %v3806 = vadd.f32 0.0, %v3805
        %v3807 = vpop.f32.mrf.mxu0
        %3808 = vmatprep.mubr.bf16.mxu0 0
        %3809 = vmatmul.mubr.bf16.gmra.mxu0 %v574
        %v3810 = vpop.f32.mrf.mxu0
        %v3811 = vadd.f32 0.0, %v3810
        %v3812 = vpop.f32.mrf.mxu0
        %v3813 = vpop.f32.mrf.mxu0
        %v3814 = vadd.f32 0.0, %v3813
        %v3815 = vpop.f32.mrf.mxu0
        %3816 = vmatprep.mubr.bf16.mxu0 0
        %3817 = vmatmul.mubr.bf16.gmra.mxu0 %v575
        %v3818 = vpop.f32.mrf.mxu0
        %v3819 = vadd.f32 0.0, %v3818
        %v3820 = vpop.f32.mrf.mxu0
        %v3821 = vpop.f32.mrf.mxu0
        %v3822 = vadd.f32 0.0, %v3821
        %v3823 = vpop.f32.mrf.mxu0
        %3824 = vmatprep.mubr.bf16.mxu0 0
        %3825 = vmatmul.mubr.bf16.gmra.mxu0 %v576
        %v3826 = vpop.f32.mrf.mxu0
        %v3827 = vadd.f32 0.0, %v3826
        %v3828 = vpop.f32.mrf.mxu0
        %v3829 = vpop.f32.mrf.mxu0
        %v3830 = vadd.f32 0.0, %v3829
        %v3831 = vpop.f32.mrf.mxu0
        %3832 = vmatprep.mubr.bf16.mxu0 0
        %3833 = vmatmul.mubr.bf16.gmra.mxu0 %v577
        %v3834 = vpop.f32.mrf.mxu0
        %v3835 = vadd.f32 0.0, %v3834
        %v3836 = vpop.f32.mrf.mxu0
        %v3837 = vpop.f32.mrf.mxu0
        %v3838 = vadd.f32 0.0, %v3837
        %v3839 = vpop.f32.mrf.mxu0
        %3840 = vmatprep.mubr.bf16.mxu0 0
        %3841 = vmatmul.mubr.bf16.gmra.mxu0 %v578
        %v3842 = vpop.f32.mrf.mxu0
        %v3843 = vadd.f32 0.0, %v3842
        %v3844 = vpop.f32.mrf.mxu0
        %v3845 = vpop.f32.mrf.mxu0
        %v3846 = vadd.f32 0.0, %v3845
        %v3847 = vpop.f32.mrf.mxu0
        %3848 = vmatprep.mubr.bf16.mxu0 0
        %3849 = vmatmul.mubr.bf16.gmra.mxu0 %v579
        %v3850 = vpop.f32.mrf.mxu0
        %v3851 = vadd.f32 0.0, %v3850
        %v3852 = vpop.f32.mrf.mxu0
        %v3853 = vpop.f32.mrf.mxu0
        %v3854 = vadd.f32 0.0, %v3853
        %v3855 = vpop.f32.mrf.mxu0
        %3856 = vmatprep.mubr.bf16.mxu0 0
        %3857 = vmatmul.mubr.bf16.gmra.mxu0 %v580
        %v3858 = vpop.f32.mrf.mxu0
        %v3859 = vadd.f32 0.0, %v3858
        %v3860 = vpop.f32.mrf.mxu0
        %v3861 = vpop.f32.mrf.mxu0
        %v3862 = vadd.f32 0.0, %v3861
        %v3863 = vpop.f32.mrf.mxu0
        %3864 = vdwg.mxu0
        %v3881 = vunpack.c.l.b16 %v3221
        %v3882 = vunpack.c.l.b16 %v3222
        %v3883 = vunpack.c.l.b16 %v3223
        %v3884 = vunpack.c.l.b16 %v3224
        %v3885 = vunpack.c.l.b16 %v3225
        %v3886 = vunpack.c.l.b16 %v3226
        %v3887 = vunpack.c.l.b16 %v3227
        %v3888 = vunpack.c.l.b16 %v3228
        %v3889 = vunpack.c.l.b16 %v3229
        %v3890 = vunpack.c.l.b16 %v3230
        %v3891 = vunpack.c.l.b16 %v3231
        %v3892 = vunpack.c.l.b16 %v3232
        %v3893 = vunpack.c.l.b16 %v3233
        %v3894 = vunpack.c.l.b16 %v3234
        %v3895 = vunpack.c.l.b16 %v3235
        %v3896 = vunpack.c.l.b16 %v3236
        %v3897 = vpack.c.b16 %v3882, %v3881
        %v3898 = vpack.c.b16 %v3884, %v3883
        %v3899 = vpack.c.b16 %v3886, %v3885
        %v3900 = vpack.c.b16 %v3888, %v3887
        %v3901 = vpack.c.b16 %v3890, %v3889
        %v3902 = vpack.c.b16 %v3892, %v3891
        %v3903 = vpack.c.b16 %v3894, %v3893
        %v3904 = vpack.c.b16 %v3896, %v3895
        %3913 = vmatprep.subr.bf16.mxu0 0
        %3914 = vmatpush1.bf16.msra.mxu0 %v3904
        %3915 = vmatprep.subr.bf16.mxu0 0
        %3916 = vmatpush1.bf16.msra.mxu0 %v3903
        %3917 = vmatprep.subr.bf16.mxu0 0
        %3918 = vmatpush1.bf16.msra.mxu0 %v3902
        %3919 = vmatprep.subr.bf16.mxu0 0
        %3920 = vmatpush1.bf16.msra.mxu0 %v3901
        %3921 = vmatprep.subr.bf16.mxu0 0
        %3922 = vmatpush1.bf16.msra.mxu0 %v3900
        %3923 = vmatprep.subr.bf16.mxu0 0
        %3924 = vmatpush1.bf16.msra.mxu0 %v3899
        %3925 = vmatprep.subr.bf16.mxu0 0
        %3926 = vmatpush1.bf16.msra.mxu0 %v3898
        %3927 = vmatprep.subr.bf16.mxu0 0
        %3928 = vmatpush1.bf16.msra.mxu0 %v3897
        %3929 = vmatprep.subr.bf16.mxu0 0
        %3930 = vmatpush2.bf16.msra.mxu0 0
        %3931 = vmatprep.subr.bf16.mxu0 0
        %3932 = vmatpush2.bf16.msra.mxu0 0
        %3933 = vmatprep.subr.bf16.mxu0 0
        %3934 = vmatpush2.bf16.msra.mxu0 0
        %3935 = vmatprep.subr.bf16.mxu0 0
        %3936 = vmatpush2.bf16.msra.mxu0 0
        %3937 = vmatprep.subr.bf16.mxu0 0
        %3938 = vmatpush2.bf16.msra.mxu0 0
        %3939 = vmatprep.subr.bf16.mxu0 0
        %3940 = vmatpush2.bf16.msra.mxu0 0
        %3941 = vmatprep.subr.bf16.mxu0 0
        %3942 = vmatpush2.bf16.msra.mxu0 0
        %3943 = vmatprep.subr.bf16.mxu0 0
        %3944 = vmatpush2.bf16.msra.mxu0 0
        %3945 = vmatprep.mubr.bf16.mxu0 0
        %3946 = vmatmul.mubr.bf16.gmra.mxu0 %v573
        %v3947 = vpop.f32.mrf.mxu0
        %v3948 = vadd.f32 0.0, %v3947
        %v3949 = vpop.f32.mrf.mxu0
        %v3950 = vpop.f32.mrf.mxu0
        %v3951 = vadd.f32 0.0, %v3950
        %v3952 = vpop.f32.mrf.mxu0
        %3953 = vmatprep.mubr.bf16.mxu0 0
        %3954 = vmatmul.mubr.bf16.gmra.mxu0 %v574
        %v3955 = vpop.f32.mrf.mxu0
        %v3956 = vadd.f32 0.0, %v3955
        %v3957 = vpop.f32.mrf.mxu0
        %v3958 = vpop.f32.mrf.mxu0
        %v3959 = vadd.f32 0.0, %v3958
        %v3960 = vpop.f32.mrf.mxu0
        %3961 = vmatprep.mubr.bf16.mxu0 0
        %3962 = vmatmul.mubr.bf16.gmra.mxu0 %v575
        %v3963 = vpop.f32.mrf.mxu0
        %v3964 = vadd.f32 0.0, %v3963
        %v3965 = vpop.f32.mrf.mxu0
        %v3966 = vpop.f32.mrf.mxu0
        %v3967 = vadd.f32 0.0, %v3966
        %v3968 = vpop.f32.mrf.mxu0
        %3969 = vmatprep.mubr.bf16.mxu0 0
        %3970 = vmatmul.mubr.bf16.gmra.mxu0 %v576
        %v3971 = vpop.f32.mrf.mxu0
        %v3972 = vadd.f32 0.0, %v3971
        %v3973 = vpop.f32.mrf.mxu0
        %v3974 = vpop.f32.mrf.mxu0
        %v3975 = vadd.f32 0.0, %v3974
        %v3976 = vpop.f32.mrf.mxu0
        %3977 = vmatprep.mubr.bf16.mxu0 0
        %3978 = vmatmul.mubr.bf16.gmra.mxu0 %v577
        %v3979 = vpop.f32.mrf.mxu0
        %v3980 = vadd.f32 0.0, %v3979
        %v3981 = vpop.f32.mrf.mxu0
        %v3982 = vpop.f32.mrf.mxu0
        %v3983 = vadd.f32 0.0, %v3982
        %v3984 = vpop.f32.mrf.mxu0
        %3985 = vmatprep.mubr.bf16.mxu0 0
        %3986 = vmatmul.mubr.bf16.gmra.mxu0 %v578
        %v3987 = vpop.f32.mrf.mxu0
        %v3988 = vadd.f32 0.0, %v3987
        %v3989 = vpop.f32.mrf.mxu0
        %v3990 = vpop.f32.mrf.mxu0
        %v3991 = vadd.f32 0.0, %v3990
        %v3992 = vpop.f32.mrf.mxu0
        %3993 = vmatprep.mubr.bf16.mxu0 0
        %3994 = vmatmul.mubr.bf16.gmra.mxu0 %v579
        %v3995 = vpop.f32.mrf.mxu0
        %v3996 = vadd.f32 0.0, %v3995
        %v3997 = vpop.f32.mrf.mxu0
        %v3998 = vpop.f32.mrf.mxu0
        %v3999 = vadd.f32 0.0, %v3998
        %v4000 = vpop.f32.mrf.mxu0
        %4001 = vmatprep.mubr.bf16.mxu0 0
        %4002 = vmatmul.mubr.bf16.gmra.mxu0 %v580
        %v4003 = vpop.f32.mrf.mxu0
        %v4004 = vadd.f32 0.0, %v4003
        %v4005 = vpop.f32.mrf.mxu0
        %v4006 = vpop.f32.mrf.mxu0
        %v4007 = vadd.f32 0.0, %v4006
        %v4008 = vpop.f32.mrf.mxu0
        %4009 = vdwg.mxu0
        %v4026 = vunpack.c.l.b16 %v3237
        %v4027 = vunpack.c.l.b16 %v3238
        %v4028 = vunpack.c.l.b16 %v3239
        %v4029 = vunpack.c.l.b16 %v3240
        %v4030 = vunpack.c.l.b16 %v3241
        %v4031 = vunpack.c.l.b16 %v3242
        %v4032 = vunpack.c.l.b16 %v3243
        %v4033 = vunpack.c.l.b16 %v3244
        %v4034 = vunpack.c.l.b16 %v3245
        %v4035 = vunpack.c.l.b16 %v3246
        %v4036 = vunpack.c.l.b16 %v3247
        %v4037 = vunpack.c.l.b16 %v3248
        %v4038 = vunpack.c.l.b16 %v3249
        %v4039 = vunpack.c.l.b16 %v3250
        %v4040 = vunpack.c.l.b16 %v3251
        %v4041 = vunpack.c.l.b16 %v3252
        %v4042 = vpack.c.b16 %v4027, %v4026
        %v4043 = vpack.c.b16 %v4029, %v4028
        %v4044 = vpack.c.b16 %v4031, %v4030
        %v4045 = vpack.c.b16 %v4033, %v4032
        %v4046 = vpack.c.b16 %v4035, %v4034
        %v4047 = vpack.c.b16 %v4037, %v4036
        %v4048 = vpack.c.b16 %v4039, %v4038
        %v4049 = vpack.c.b16 %v4041, %v4040
        %4058 = vmatprep.subr.bf16.mxu0 0
        %4059 = vmatpush1.bf16.msra.mxu0 %v4049
        %4060 = vmatprep.subr.bf16.mxu0 0
        %4061 = vmatpush1.bf16.msra.mxu0 %v4048
        %4062 = vmatprep.subr.bf16.mxu0 0
        %4063 = vmatpush1.bf16.msra.mxu0 %v4047
        %4064 = vmatprep.subr.bf16.mxu0 0
        %4065 = vmatpush1.bf16.msra.mxu0 %v4046
        %4066 = vmatprep.subr.bf16.mxu0 0
        %4067 = vmatpush1.bf16.msra.mxu0 %v4045
        %4068 = vmatprep.subr.bf16.mxu0 0
        %4069 = vmatpush1.bf16.msra.mxu0 %v4044
        %4070 = vmatprep.subr.bf16.mxu0 0
        %4071 = vmatpush1.bf16.msra.mxu0 %v4043
        %4072 = vmatprep.subr.bf16.mxu0 0
        %4073 = vmatpush1.bf16.msra.mxu0 %v4042
        %4074 = vmatprep.subr.bf16.mxu0 0
        %4075 = vmatpush2.bf16.msra.mxu0 0
        %4076 = vmatprep.subr.bf16.mxu0 0
        %4077 = vmatpush2.bf16.msra.mxu0 0
        %4078 = vmatprep.subr.bf16.mxu0 0
        %4079 = vmatpush2.bf16.msra.mxu0 0
        %4080 = vmatprep.subr.bf16.mxu0 0
        %4081 = vmatpush2.bf16.msra.mxu0 0
        %4082 = vmatprep.subr.bf16.mxu0 0
        %4083 = vmatpush2.bf16.msra.mxu0 0
        %4084 = vmatprep.subr.bf16.mxu0 0
        %4085 = vmatpush2.bf16.msra.mxu0 0
        %4086 = vmatprep.subr.bf16.mxu0 0
        %4087 = vmatpush2.bf16.msra.mxu0 0
        %4088 = vmatprep.subr.bf16.mxu0 0
        %4089 = vmatpush2.bf16.msra.mxu0 0
        %4090 = vmatprep.mubr.bf16.mxu0 0
        %4091 = vmatmul.mubr.bf16.gmra.mxu0 %v573
        %v4092 = vpop.f32.mrf.mxu0
        %v4093 = vadd.f32 0.0, %v4092
        %v4094 = vpop.f32.mrf.mxu0
        %v4095 = vpop.f32.mrf.mxu0
        %v4096 = vadd.f32 0.0, %v4095
        %v4097 = vpop.f32.mrf.mxu0
        %4098 = vmatprep.mubr.bf16.mxu0 0
        %4099 = vmatmul.mubr.bf16.gmra.mxu0 %v574
        %v4100 = vpop.f32.mrf.mxu0
        %v4101 = vadd.f32 0.0, %v4100
        %v4102 = vpop.f32.mrf.mxu0
        %v4103 = vpop.f32.mrf.mxu0
        %v4104 = vadd.f32 0.0, %v4103
        %v4105 = vpop.f32.mrf.mxu0
        %4106 = vmatprep.mubr.bf16.mxu0 0
        %4107 = vmatmul.mubr.bf16.gmra.mxu0 %v575
        %v4108 = vpop.f32.mrf.mxu0
        %v4109 = vadd.f32 0.0, %v4108
        %v4110 = vpop.f32.mrf.mxu0
        %v4111 = vpop.f32.mrf.mxu0
        %v4112 = vadd.f32 0.0, %v4111
        %v4113 = vpop.f32.mrf.mxu0
        %4114 = vmatprep.mubr.bf16.mxu0 0
        %4115 = vmatmul.mubr.bf16.gmra.mxu0 %v576
        %v4116 = vpop.f32.mrf.mxu0
        %v4117 = vadd.f32 0.0, %v4116
        %v4118 = vpop.f32.mrf.mxu0
        %v4119 = vpop.f32.mrf.mxu0
        %v4120 = vadd.f32 0.0, %v4119
        %v4121 = vpop.f32.mrf.mxu0
        %4122 = vmatprep.mubr.bf16.mxu0 0
        %4123 = vmatmul.mubr.bf16.gmra.mxu0 %v577
        %v4124 = vpop.f32.mrf.mxu0
        %v4125 = vadd.f32 0.0, %v4124
        %v4126 = vpop.f32.mrf.mxu0
        %v4127 = vpop.f32.mrf.mxu0
        %v4128 = vadd.f32 0.0, %v4127
        %v4129 = vpop.f32.mrf.mxu0
        %4130 = vmatprep.mubr.bf16.mxu0 0
        %4131 = vmatmul.mubr.bf16.gmra.mxu0 %v578
        %v4132 = vpop.f32.mrf.mxu0
        %v4133 = vadd.f32 0.0, %v4132
        %v4134 = vpop.f32.mrf.mxu0
        %v4135 = vpop.f32.mrf.mxu0
        %v4136 = vadd.f32 0.0, %v4135
        %v4137 = vpop.f32.mrf.mxu0
        %4138 = vmatprep.mubr.bf16.mxu0 0
        %4139 = vmatmul.mubr.bf16.gmra.mxu0 %v579
        %v4140 = vpop.f32.mrf.mxu0
        %v4141 = vadd.f32 0.0, %v4140
        %v4142 = vpop.f32.mrf.mxu0
        %v4143 = vpop.f32.mrf.mxu0
        %v4144 = vadd.f32 0.0, %v4143
        %v4145 = vpop.f32.mrf.mxu0
        %4146 = vmatprep.mubr.bf16.mxu0 0
        %4147 = vmatmul.mubr.bf16.gmra.mxu0 %v580
        %v4148 = vpop.f32.mrf.mxu0
        %v4149 = vadd.f32 0.0, %v4148
        %v4150 = vpop.f32.mrf.mxu0
        %v4151 = vpop.f32.mrf.mxu0
        %v4152 = vadd.f32 0.0, %v4151
        %v4153 = vpop.f32.mrf.mxu0
        %4154 = vdwg.mxu0
        %v4171 = vunpack.c.l.b16 %v3253
        %v4172 = vunpack.c.l.b16 %v3254
        %v4173 = vunpack.c.l.b16 %v3255
        %v4174 = vunpack.c.l.b16 %v3256
        %v4175 = vunpack.c.l.b16 %v3257
        %v4176 = vunpack.c.l.b16 %v3258
        %v4177 = vunpack.c.l.b16 %v3259
        %v4178 = vunpack.c.l.b16 %v3260
        %v4179 = vunpack.c.l.b16 %v3261
        %v4180 = vunpack.c.l.b16 %v3262
        %v4181 = vunpack.c.l.b16 %v3263
        %v4182 = vunpack.c.l.b16 %v3264
        %v4183 = vunpack.c.l.b16 %v3265
        %v4184 = vunpack.c.l.b16 %v3266
        %v4185 = vunpack.c.l.b16 %v3267
        %v4186 = vunpack.c.l.b16 %v3268
        %v4187 = vpack.c.b16 %v4172, %v4171
        %v4188 = vpack.c.b16 %v4174, %v4173
        %v4189 = vpack.c.b16 %v4176, %v4175
        %v4190 = vpack.c.b16 %v4178, %v4177
        %v4191 = vpack.c.b16 %v4180, %v4179
        %v4192 = vpack.c.b16 %v4182, %v4181
        %v4193 = vpack.c.b16 %v4184, %v4183
        %v4194 = vpack.c.b16 %v4186, %v4185
        %4203 = vmatprep.subr.bf16.mxu0 0
        %4204 = vmatpush1.bf16.msra.mxu0 %v4194
        %4205 = vmatprep.subr.bf16.mxu0 0
        %4206 = vmatpush1.bf16.msra.mxu0 %v4193
        %4207 = vmatprep.subr.bf16.mxu0 0
        %4208 = vmatpush1.bf16.msra.mxu0 %v4192
        %4209 = vmatprep.subr.bf16.mxu0 0
        %4210 = vmatpush1.bf16.msra.mxu0 %v4191
        %4211 = vmatprep.subr.bf16.mxu0 0
        %4212 = vmatpush1.bf16.msra.mxu0 %v4190
        %4213 = vmatprep.subr.bf16.mxu0 0
        %4214 = vmatpush1.bf16.msra.mxu0 %v4189
        %4215 = vmatprep.subr.bf16.mxu0 0
        %4216 = vmatpush1.bf16.msra.mxu0 %v4188
        %4217 = vmatprep.subr.bf16.mxu0 0
        %4218 = vmatpush1.bf16.msra.mxu0 %v4187
        %4219 = vmatprep.subr.bf16.mxu0 0
        %4220 = vmatpush2.bf16.msra.mxu0 0
        %4221 = vmatprep.subr.bf16.mxu0 0
        %4222 = vmatpush2.bf16.msra.mxu0 0
        %4223 = vmatprep.subr.bf16.mxu0 0
        %4224 = vmatpush2.bf16.msra.mxu0 0
        %4225 = vmatprep.subr.bf16.mxu0 0
        %4226 = vmatpush2.bf16.msra.mxu0 0
        %4227 = vmatprep.subr.bf16.mxu0 0
        %4228 = vmatpush2.bf16.msra.mxu0 0
        %4229 = vmatprep.subr.bf16.mxu0 0
        %4230 = vmatpush2.bf16.msra.mxu0 0
        %4231 = vmatprep.subr.bf16.mxu0 0
        %4232 = vmatpush2.bf16.msra.mxu0 0
        %4233 = vmatprep.subr.bf16.mxu0 0
        %4234 = vmatpush2.bf16.msra.mxu0 0
        %4235 = vmatprep.mubr.bf16.mxu0 0
        %4236 = vmatmul.mubr.bf16.gmra.mxu0 %v573
        %v4237 = vpop.f32.mrf.mxu0
        %v4238 = vadd.f32 0.0, %v4237
        %v4239 = vpop.f32.mrf.mxu0
        %v4240 = vpop.f32.mrf.mxu0
        %v4241 = vadd.f32 0.0, %v4240
        %v4242 = vpop.f32.mrf.mxu0
        %4243 = vmatprep.mubr.bf16.mxu0 0
        %4244 = vmatmul.mubr.bf16.gmra.mxu0 %v574
        %v4245 = vpop.f32.mrf.mxu0
        %v4246 = vadd.f32 0.0, %v4245
        %v4247 = vpop.f32.mrf.mxu0
        %v4248 = vpop.f32.mrf.mxu0
        %v4249 = vadd.f32 0.0, %v4248
        %v4250 = vpop.f32.mrf.mxu0
        %4251 = vmatprep.mubr.bf16.mxu0 0
        %4252 = vmatmul.mubr.bf16.gmra.mxu0 %v575
        %v4253 = vpop.f32.mrf.mxu0
        %v4254 = vadd.f32 0.0, %v4253
        %v4255 = vpop.f32.mrf.mxu0
        %v4256 = vpop.f32.mrf.mxu0
        %v4257 = vadd.f32 0.0, %v4256
        %v4258 = vpop.f32.mrf.mxu0
        %4259 = vmatprep.mubr.bf16.mxu0 0
        %4260 = vmatmul.mubr.bf16.gmra.mxu0 %v576
        %v4261 = vpop.f32.mrf.mxu0
        %v4262 = vadd.f32 0.0, %v4261
        %v4263 = vpop.f32.mrf.mxu0
        %v4264 = vpop.f32.mrf.mxu0
        %v4265 = vadd.f32 0.0, %v4264
        %v4266 = vpop.f32.mrf.mxu0
        %4267 = vmatprep.mubr.bf16.mxu0 0
        %4268 = vmatmul.mubr.bf16.gmra.mxu0 %v577
        %v4269 = vpop.f32.mrf.mxu0
        %v4270 = vadd.f32 0.0, %v4269
        %v4271 = vpop.f32.mrf.mxu0
        %v4272 = vpop.f32.mrf.mxu0
        %v4273 = vadd.f32 0.0, %v4272
        %v4274 = vpop.f32.mrf.mxu0
        %4275 = vmatprep.mubr.bf16.mxu0 0
        %4276 = vmatmul.mubr.bf16.gmra.mxu0 %v578
        %v4277 = vpop.f32.mrf.mxu0
        %v4278 = vadd.f32 0.0, %v4277
        %v4279 = vpop.f32.mrf.mxu0
        %v4280 = vpop.f32.mrf.mxu0
        %v4281 = vadd.f32 0.0, %v4280
        %v4282 = vpop.f32.mrf.mxu0
        %4283 = vmatprep.mubr.bf16.mxu0 0
        %4284 = vmatmul.mubr.bf16.gmra.mxu0 %v579
        %v4285 = vpop.f32.mrf.mxu0
        %v4286 = vadd.f32 0.0, %v4285
        %v4287 = vpop.f32.mrf.mxu0
        %v4288 = vpop.f32.mrf.mxu0
        %v4289 = vadd.f32 0.0, %v4288
        %v4290 = vpop.f32.mrf.mxu0
        %4291 = vmatprep.mubr.bf16.mxu0 0
        %4292 = vmatmul.mubr.bf16.gmra.mxu0 %v580
        %v4293 = vpop.f32.mrf.mxu0
        %v4294 = vadd.f32 0.0, %v4293
        %v4295 = vpop.f32.mrf.mxu0
        %v4296 = vpop.f32.mrf.mxu0
        %v4297 = vadd.f32 0.0, %v4296
        %v4298 = vpop.f32.mrf.mxu0
        %4299 = vdwg.mxu0
        %v4316 = vunpack.c.l.b16 %v3269
        %v4317 = vunpack.c.l.b16 %v3270
        %v4318 = vunpack.c.l.b16 %v3271
        %v4319 = vunpack.c.l.b16 %v3272
        %v4320 = vunpack.c.l.b16 %v3273
        %v4321 = vunpack.c.l.b16 %v3274
        %v4322 = vunpack.c.l.b16 %v3275
        %v4323 = vunpack.c.l.b16 %v3276
        %v4324 = vunpack.c.l.b16 %v3277
        %v4325 = vunpack.c.l.b16 %v3278
        %v4326 = vunpack.c.l.b16 %v3279
        %v4327 = vunpack.c.l.b16 %v3280
        %v4328 = vunpack.c.l.b16 %v3281
        %v4329 = vunpack.c.l.b16 %v3282
        %v4330 = vunpack.c.l.b16 %v3283
        %v4331 = vunpack.c.l.b16 %v3284
        %v4332 = vpack.c.b16 %v4317, %v4316
        %v4333 = vpack.c.b16 %v4319, %v4318
        %v4334 = vpack.c.b16 %v4321, %v4320
        %v4335 = vpack.c.b16 %v4323, %v4322
        %v4336 = vpack.c.b16 %v4325, %v4324
        %v4337 = vpack.c.b16 %v4327, %v4326
        %v4338 = vpack.c.b16 %v4329, %v4328
        %v4339 = vpack.c.b16 %v4331, %v4330
        %4348 = vmatprep.subr.bf16.mxu0 0
        %4349 = vmatpush1.bf16.msra.mxu0 %v4339
        %4350 = vmatprep.subr.bf16.mxu0 0
        %4351 = vmatpush1.bf16.msra.mxu0 %v4338
        %4352 = vmatprep.subr.bf16.mxu0 0
        %4353 = vmatpush1.bf16.msra.mxu0 %v4337
        %4354 = vmatprep.subr.bf16.mxu0 0
        %4355 = vmatpush1.bf16.msra.mxu0 %v4336
        %4356 = vmatprep.subr.bf16.mxu0 0
        %4357 = vmatpush1.bf16.msra.mxu0 %v4335
        %4358 = vmatprep.subr.bf16.mxu0 0
        %4359 = vmatpush1.bf16.msra.mxu0 %v4334
        %4360 = vmatprep.subr.bf16.mxu0 0
        %4361 = vmatpush1.bf16.msra.mxu0 %v4333
        %4362 = vmatprep.subr.bf16.mxu0 0
        %4363 = vmatpush1.bf16.msra.mxu0 %v4332
        %4364 = vmatprep.subr.bf16.mxu0 0
        %4365 = vmatpush2.bf16.msra.mxu0 0
        %4366 = vmatprep.subr.bf16.mxu0 0
        %4367 = vmatpush2.bf16.msra.mxu0 0
        %4368 = vmatprep.subr.bf16.mxu0 0
        %4369 = vmatpush2.bf16.msra.mxu0 0
        %4370 = vmatprep.subr.bf16.mxu0 0
        %4371 = vmatpush2.bf16.msra.mxu0 0
        %4372 = vmatprep.subr.bf16.mxu0 0
        %4373 = vmatpush2.bf16.msra.mxu0 0
        %4374 = vmatprep.subr.bf16.mxu0 0
        %4375 = vmatpush2.bf16.msra.mxu0 0
        %4376 = vmatprep.subr.bf16.mxu0 0
        %4377 = vmatpush2.bf16.msra.mxu0 0
        %4378 = vmatprep.subr.bf16.mxu0 0
        %4379 = vmatpush2.bf16.msra.mxu0 0
        %4380 = vmatprep.mubr.bf16.mxu0 0
        %4381 = vmatmul.mubr.bf16.gmra.mxu0 %v573
        %v4382 = vpop.f32.mrf.mxu0
        %v4383 = vadd.f32 0.0, %v4382
        %v4384 = vpop.f32.mrf.mxu0
        %v4385 = vpop.f32.mrf.mxu0
        %v4386 = vadd.f32 0.0, %v4385
        %v4387 = vpop.f32.mrf.mxu0
        %4388 = vmatprep.mubr.bf16.mxu0 0
        %4389 = vmatmul.mubr.bf16.gmra.mxu0 %v574
        %v4390 = vpop.f32.mrf.mxu0
        %v4391 = vadd.f32 0.0, %v4390
        %v4392 = vpop.f32.mrf.mxu0
        %v4393 = vpop.f32.mrf.mxu0
        %v4394 = vadd.f32 0.0, %v4393
        %v4395 = vpop.f32.mrf.mxu0
        %4396 = vmatprep.mubr.bf16.mxu0 0
        %4397 = vmatmul.mubr.bf16.gmra.mxu0 %v575
        %v4398 = vpop.f32.mrf.mxu0
        %v4399 = vadd.f32 0.0, %v4398
        %v4400 = vpop.f32.mrf.mxu0
        %v4401 = vpop.f32.mrf.mxu0
        %v4402 = vadd.f32 0.0, %v4401
        %v4403 = vpop.f32.mrf.mxu0
        %4404 = vmatprep.mubr.bf16.mxu0 0
        %4405 = vmatmul.mubr.bf16.gmra.mxu0 %v576
        %v4406 = vpop.f32.mrf.mxu0
        %v4407 = vadd.f32 0.0, %v4406
        %v4408 = vpop.f32.mrf.mxu0
        %v4409 = vpop.f32.mrf.mxu0
        %v4410 = vadd.f32 0.0, %v4409
        %v4411 = vpop.f32.mrf.mxu0
        %4412 = vmatprep.mubr.bf16.mxu0 0
        %4413 = vmatmul.mubr.bf16.gmra.mxu0 %v577
        %v4414 = vpop.f32.mrf.mxu0
        %v4415 = vadd.f32 0.0, %v4414
        %v4416 = vpop.f32.mrf.mxu0
        %v4417 = vpop.f32.mrf.mxu0
        %v4418 = vadd.f32 0.0, %v4417
        %v4419 = vpop.f32.mrf.mxu0
        %4420 = vmatprep.mubr.bf16.mxu0 0
        %4421 = vmatmul.mubr.bf16.gmra.mxu0 %v578
        %v4422 = vpop.f32.mrf.mxu0
        %v4423 = vadd.f32 0.0, %v4422
        %v4424 = vpop.f32.mrf.mxu0
        %v4425 = vpop.f32.mrf.mxu0
        %v4426 = vadd.f32 0.0, %v4425
        %v4427 = vpop.f32.mrf.mxu0
        %4428 = vmatprep.mubr.bf16.mxu0 0
        %4429 = vmatmul.mubr.bf16.gmra.mxu0 %v579
        %v4430 = vpop.f32.mrf.mxu0
        %v4431 = vadd.f32 0.0, %v4430
        %v4432 = vpop.f32.mrf.mxu0
        %v4433 = vpop.f32.mrf.mxu0
        %v4434 = vadd.f32 0.0, %v4433
        %v4435 = vpop.f32.mrf.mxu0
        %4436 = vmatprep.mubr.bf16.mxu0 0
        %4437 = vmatmul.mubr.bf16.gmra.mxu0 %v580
        %v4438 = vpop.f32.mrf.mxu0
        %v4439 = vadd.f32 0.0, %v4438
        %v4440 = vpop.f32.mrf.mxu0
        %v4441 = vpop.f32.mrf.mxu0
        %v4442 = vadd.f32 0.0, %v4441
        %v4443 = vpop.f32.mrf.mxu0
        %4444 = vdwg.mxu0
        %v4445 = vpack.c.bf16 %v795, %v792
        %v4446 = vpack.c.bf16 %v803, %v800
        %v4447 = vpack.c.bf16 %v811, %v808
        %v4448 = vpack.c.bf16 %v819, %v816
        %v4449 = vpack.c.bf16 %v827, %v824
        %v4450 = vpack.c.bf16 %v835, %v832
        %v4451 = vpack.c.bf16 %v843, %v840
        %v4452 = vpack.c.bf16 %v851, %v848
        %v4453 = vpack.c.bf16 %v940, %v937
        %v4454 = vpack.c.bf16 %v948, %v945
        %v4455 = vpack.c.bf16 %v956, %v953
        %v4456 = vpack.c.bf16 %v964, %v961
        %v4457 = vpack.c.bf16 %v972, %v969
        %v4458 = vpack.c.bf16 %v980, %v977
        %v4459 = vpack.c.bf16 %v988, %v985
        %v4460 = vpack.c.bf16 %v996, %v993
        %v4461 = vpack.c.bf16 %v1085, %v1082
        %v4462 = vpack.c.bf16 %v1093, %v1090
        %v4463 = vpack.c.bf16 %v1101, %v1098
        %v4464 = vpack.c.bf16 %v1109, %v1106
        %v4465 = vpack.c.bf16 %v1117, %v1114
        %v4466 = vpack.c.bf16 %v1125, %v1122
        %v4467 = vpack.c.bf16 %v1133, %v1130
        %v4468 = vpack.c.bf16 %v1141, %v1138
        %v4469 = vpack.c.bf16 %v1230, %v1227
        %v4470 = vpack.c.bf16 %v1238, %v1235
        %v4471 = vpack.c.bf16 %v1246, %v1243
        %v4472 = vpack.c.bf16 %v1254, %v1251
        %v4473 = vpack.c.bf16 %v1262, %v1259
        %v4474 = vpack.c.bf16 %v1270, %v1267
        %v4475 = vpack.c.bf16 %v1278, %v1275
        %v4476 = vpack.c.bf16 %v1286, %v1283
        %v4477 = vpack.c.bf16 %v1375, %v1372
        %v4478 = vpack.c.bf16 %v1383, %v1380
        %v4479 = vpack.c.bf16 %v1391, %v1388
        %v4480 = vpack.c.bf16 %v1399, %v1396
        %v4481 = vpack.c.bf16 %v1407, %v1404
        %v4482 = vpack.c.bf16 %v1415, %v1412
        %v4483 = vpack.c.bf16 %v1423, %v1420
        %v4484 = vpack.c.bf16 %v1431, %v1428
        %v4485 = vpack.c.bf16 %v1520, %v1517
        %v4486 = vpack.c.bf16 %v1528, %v1525
        %v4487 = vpack.c.bf16 %v1536, %v1533
        %v4488 = vpack.c.bf16 %v1544, %v1541
        %v4489 = vpack.c.bf16 %v1552, %v1549
        %v4490 = vpack.c.bf16 %v1560, %v1557
        %v4491 = vpack.c.bf16 %v1568, %v1565
        %v4492 = vpack.c.bf16 %v1576, %v1573
        %v4493 = vpack.c.bf16 %v1665, %v1662
        %v4494 = vpack.c.bf16 %v1673, %v1670
        %v4495 = vpack.c.bf16 %v1681, %v1678
        %v4496 = vpack.c.bf16 %v1689, %v1686
        %v4497 = vpack.c.bf16 %v1697, %v1694
        %v4498 = vpack.c.bf16 %v1705, %v1702
        %v4499 = vpack.c.bf16 %v1713, %v1710
        %v4500 = vpack.c.bf16 %v1721, %v1718
        %v4501 = vpack.c.bf16 %v1810, %v1807
        %v4502 = vpack.c.bf16 %v1818, %v1815
        %v4503 = vpack.c.bf16 %v1826, %v1823
        %v4504 = vpack.c.bf16 %v1834, %v1831
        %v4505 = vpack.c.bf16 %v1842, %v1839
        %v4506 = vpack.c.bf16 %v1850, %v1847
        %v4507 = vpack.c.bf16 %v1858, %v1855
        %v4508 = vpack.c.bf16 %v1866, %v1863
        %v4509 = vpack.c.bf16 %v2083, %v2080
        %v4510 = vpack.c.bf16 %v2091, %v2088
        %v4511 = vpack.c.bf16 %v2099, %v2096
        %v4512 = vpack.c.bf16 %v2107, %v2104
        %v4513 = vpack.c.bf16 %v2115, %v2112
        %v4514 = vpack.c.bf16 %v2123, %v2120
        %v4515 = vpack.c.bf16 %v2131, %v2128
        %v4516 = vpack.c.bf16 %v2139, %v2136
        %v4517 = vpack.c.bf16 %v2228, %v2225
        %v4518 = vpack.c.bf16 %v2236, %v2233
        %v4519 = vpack.c.bf16 %v2244, %v2241
        %v4520 = vpack.c.bf16 %v2252, %v2249
        %v4521 = vpack.c.bf16 %v2260, %v2257
        %v4522 = vpack.c.bf16 %v2268, %v2265
        %v4523 = vpack.c.bf16 %v2276, %v2273
        %v4524 = vpack.c.bf16 %v2284, %v2281
        %v4525 = vpack.c.bf16 %v2373, %v2370
        %v4526 = vpack.c.bf16 %v2381, %v2378
        %v4527 = vpack.c.bf16 %v2389, %v2386
        %v4528 = vpack.c.bf16 %v2397, %v2394
        %v4529 = vpack.c.bf16 %v2405, %v2402
        %v4530 = vpack.c.bf16 %v2413, %v2410
        %v4531 = vpack.c.bf16 %v2421, %v2418
        %v4532 = vpack.c.bf16 %v2429, %v2426
        %v4533 = vpack.c.bf16 %v2518, %v2515
        %v4534 = vpack.c.bf16 %v2526, %v2523
        %v4535 = vpack.c.bf16 %v2534, %v2531
        %v4536 = vpack.c.bf16 %v2542, %v2539
        %v4537 = vpack.c.bf16 %v2550, %v2547
        %v4538 = vpack.c.bf16 %v2558, %v2555
        %v4539 = vpack.c.bf16 %v2566, %v2563
        %v4540 = vpack.c.bf16 %v2574, %v2571
        %v4541 = vpack.c.bf16 %v2663, %v2660
        %v4542 = vpack.c.bf16 %v2671, %v2668
        %v4543 = vpack.c.bf16 %v2679, %v2676
        %v4544 = vpack.c.bf16 %v2687, %v2684
        %v4545 = vpack.c.bf16 %v2695, %v2692
        %v4546 = vpack.c.bf16 %v2703, %v2700
        %v4547 = vpack.c.bf16 %v2711, %v2708
        %v4548 = vpack.c.bf16 %v2719, %v2716
        %v4549 = vpack.c.bf16 %v2808, %v2805
        %v4550 = vpack.c.bf16 %v2816, %v2813
        %v4551 = vpack.c.bf16 %v2824, %v2821
        %v4552 = vpack.c.bf16 %v2832, %v2829
        %v4553 = vpack.c.bf16 %v2840, %v2837
        %v4554 = vpack.c.bf16 %v2848, %v2845
        %v4555 = vpack.c.bf16 %v2856, %v2853
        %v4556 = vpack.c.bf16 %v2864, %v2861
        %v4557 = vpack.c.bf16 %v2953, %v2950
        %v4558 = vpack.c.bf16 %v2961, %v2958
        %v4559 = vpack.c.bf16 %v2969, %v2966
        %v4560 = vpack.c.bf16 %v2977, %v2974
        %v4561 = vpack.c.bf16 %v2985, %v2982
        %v4562 = vpack.c.bf16 %v2993, %v2990
        %v4563 = vpack.c.bf16 %v3001, %v2998
        %v4564 = vpack.c.bf16 %v3009, %v3006
        %v4565 = vpack.c.bf16 %v3098, %v3095
        %v4566 = vpack.c.bf16 %v3106, %v3103
        %v4567 = vpack.c.bf16 %v3114, %v3111
        %v4568 = vpack.c.bf16 %v3122, %v3119
        %v4569 = vpack.c.bf16 %v3130, %v3127
        %v4570 = vpack.c.bf16 %v3138, %v3135
        %v4571 = vpack.c.bf16 %v3146, %v3143
        %v4572 = vpack.c.bf16 %v3154, %v3151
        %vm4573 = vcmask 130048
        %v4575 = vsel %vm4573, %v4445, 0
        %v4578 = vsel %vm4573, %v4446, 0
        %v4581 = vsel %vm4573, %v4447, 0
        %v4584 = vsel %vm4573, %v4448, 0
        %v4587 = vsel %vm4573, %v4449, 0
        %v4590 = vsel %vm4573, %v4450, 0
        %v4593 = vsel %vm4573, %v4451, 0
        %v4596 = vsel %vm4573, %v4452, 0
        %v4599 = vsel %vm4573, %v4509, 0
        %v4602 = vsel %vm4573, %v4510, 0
        %v4605 = vsel %vm4573, %v4511, 0
        %v4608 = vsel %vm4573, %v4512, 0
        %v4611 = vsel %vm4573, %v4513, 0
        %v4614 = vsel %vm4573, %v4514, 0
        %v4617 = vsel %vm4573, %v4515, 0
        %v4620 = vsel %vm4573, %v4516, 0
        %4622 = vmatprep.subr.bf16.mxu0 0
        %4623 = vmatpush1.bf16.xpose.msra.mxu0 %v4620
        %4624 = vmatprep.subr.bf16.mxu0 0
        %4625 = vmatpush1.bf16.xpose.msra.mxu0 %v4617
        %4626 = vmatprep.subr.bf16.mxu0 0
        %4627 = vmatpush1.bf16.xpose.msra.mxu0 %v4614
        %4628 = vmatprep.subr.bf16.mxu0 0
        %4629 = vmatpush1.bf16.xpose.msra.mxu0 %v4611
        %4630 = vmatprep.subr.bf16.mxu0 0
        %4631 = vmatpush1.bf16.xpose.msra.mxu0 %v4608
        %4632 = vmatprep.subr.bf16.mxu0 0
        %4633 = vmatpush1.bf16.xpose.msra.mxu0 %v4605
        %4634 = vmatprep.subr.bf16.mxu0 0
        %4635 = vmatpush1.bf16.xpose.msra.mxu0 %v4602
        %4636 = vmatprep.subr.bf16.mxu0 0
        %4637 = vmatpush1.bf16.xpose.msra.mxu0 %v4599
        %4638 = vmatprep.subr.bf16.mxu0 0
        %4639 = vmatpush2.bf16.xpose.msra.mxu0 0
        %4640 = vmatprep.subr.bf16.mxu0 0
        %4641 = vmatpush2.bf16.xpose.msra.mxu0 0
        %4642 = vmatprep.subr.bf16.mxu0 0
        %4643 = vmatpush2.bf16.xpose.msra.mxu0 0
        %4644 = vmatprep.subr.bf16.mxu0 0
        %4645 = vmatpush2.bf16.xpose.msra.mxu0 0
        %4646 = vmatprep.subr.bf16.mxu0 0
        %4647 = vmatpush2.bf16.xpose.msra.mxu0 0
        %4648 = vmatprep.subr.bf16.mxu0 0
        %4649 = vmatpush2.bf16.xpose.msra.mxu0 0
        %4650 = vmatprep.subr.bf16.mxu0 0
        %4651 = vmatpush2.bf16.xpose.msra.mxu0 0
        %4652 = vmatprep.subr.bf16.mxu0 0
        %4653 = vmatpush2.bf16.xpose.msra.mxu0 0
        %4654 = vmatprep.mubr.bf16.mxu0 0
        %4655 = vmatmul.mubr.bf16.gmra.mxu0 %v4575
        %v4656 = vpop.f32.mrf.mxu0
        %v4657 = vadd.f32 0.0, %v4656
        %v4658 = vpop.f32.mrf.mxu0
        %v4659 = vpop.f32.mrf.mxu0
        %v4660 = vadd.f32 0.0, %v4659
        %v4661 = vpop.f32.mrf.mxu0
        %4662 = vmatprep.mubr.bf16.mxu0 0
        %4663 = vmatmul.mubr.bf16.gmra.mxu0 %v4578
        %v4664 = vpop.f32.mrf.mxu0
        %v4665 = vadd.f32 0.0, %v4664
        %v4666 = vpop.f32.mrf.mxu0
        %v4667 = vpop.f32.mrf.mxu0
        %v4668 = vadd.f32 0.0, %v4667
        %v4669 = vpop.f32.mrf.mxu0
        %4670 = vmatprep.mubr.bf16.mxu0 0
        %4671 = vmatmul.mubr.bf16.gmra.mxu0 %v4581
        %v4672 = vpop.f32.mrf.mxu0
        %v4673 = vadd.f32 0.0, %v4672
        %v4674 = vpop.f32.mrf.mxu0
        %v4675 = vpop.f32.mrf.mxu0
        %v4676 = vadd.f32 0.0, %v4675
        %v4677 = vpop.f32.mrf.mxu0
        %4678 = vmatprep.mubr.bf16.mxu0 0
        %4679 = vmatmul.mubr.bf16.gmra.mxu0 %v4584
        %v4680 = vpop.f32.mrf.mxu0
        %v4681 = vadd.f32 0.0, %v4680
        %v4682 = vpop.f32.mrf.mxu0
        %v4683 = vpop.f32.mrf.mxu0
        %v4684 = vadd.f32 0.0, %v4683
        %v4685 = vpop.f32.mrf.mxu0
        %4686 = vmatprep.mubr.bf16.mxu0 0
        %4687 = vmatmul.mubr.bf16.gmra.mxu0 %v4587
        %v4688 = vpop.f32.mrf.mxu0
        %v4689 = vadd.f32 0.0, %v4688
        %v4690 = vpop.f32.mrf.mxu0
        %v4691 = vpop.f32.mrf.mxu0
        %v4692 = vadd.f32 0.0, %v4691
        %v4693 = vpop.f32.mrf.mxu0
        %4694 = vmatprep.mubr.bf16.mxu0 0
        %4695 = vmatmul.mubr.bf16.gmra.mxu0 %v4590
        %v4696 = vpop.f32.mrf.mxu0
        %v4697 = vadd.f32 0.0, %v4696
        %v4698 = vpop.f32.mrf.mxu0
        %v4699 = vpop.f32.mrf.mxu0
        %v4700 = vadd.f32 0.0, %v4699
        %v4701 = vpop.f32.mrf.mxu0
        %4702 = vmatprep.mubr.bf16.mxu0 0
        %4703 = vmatmul.mubr.bf16.gmra.mxu0 %v4593
        %v4704 = vpop.f32.mrf.mxu0
        %v4705 = vadd.f32 0.0, %v4704
        %v4706 = vpop.f32.mrf.mxu0
        %v4707 = vpop.f32.mrf.mxu0
        %v4708 = vadd.f32 0.0, %v4707
        %v4709 = vpop.f32.mrf.mxu0
        %4710 = vmatprep.mubr.bf16.mxu0 0
        %4711 = vmatmul.mubr.bf16.gmra.mxu0 %v4596
        %v4712 = vpop.f32.mrf.mxu0
        %v4713 = vadd.f32 0.0, %v4712
        %v4714 = vpop.f32.mrf.mxu0
        %v4715 = vpop.f32.mrf.mxu0
        %v4716 = vadd.f32 0.0, %v4715
        %v4717 = vpop.f32.mrf.mxu0
        %4718 = vdwg.mxu0
        %v4720 = vsel %vm4573, %v4453, 0
        %v4723 = vsel %vm4573, %v4454, 0
        %v4726 = vsel %vm4573, %v4455, 0
        %v4729 = vsel %vm4573, %v4456, 0
        %v4732 = vsel %vm4573, %v4457, 0
        %v4735 = vsel %vm4573, %v4458, 0
        %v4738 = vsel %vm4573, %v4459, 0
        %v4741 = vsel %vm4573, %v4460, 0
        %v4744 = vsel %vm4573, %v4517, 0
        %v4747 = vsel %vm4573, %v4518, 0
        %v4750 = vsel %vm4573, %v4519, 0
        %v4753 = vsel %vm4573, %v4520, 0
        %v4756 = vsel %vm4573, %v4521, 0
        %v4759 = vsel %vm4573, %v4522, 0
        %v4762 = vsel %vm4573, %v4523, 0
        %v4765 = vsel %vm4573, %v4524, 0
        %4767 = vmatprep.subr.bf16.mxu0 0
        %4768 = vmatpush1.bf16.xpose.msra.mxu0 %v4765
        %4769 = vmatprep.subr.bf16.mxu0 0
        %4770 = vmatpush1.bf16.xpose.msra.mxu0 %v4762
        %4771 = vmatprep.subr.bf16.mxu0 0
        %4772 = vmatpush1.bf16.xpose.msra.mxu0 %v4759
        %4773 = vmatprep.subr.bf16.mxu0 0
        %4774 = vmatpush1.bf16.xpose.msra.mxu0 %v4756
        %4775 = vmatprep.subr.bf16.mxu0 0
        %4776 = vmatpush1.bf16.xpose.msra.mxu0 %v4753
        %4777 = vmatprep.subr.bf16.mxu0 0
        %4778 = vmatpush1.bf16.xpose.msra.mxu0 %v4750
        %4779 = vmatprep.subr.bf16.mxu0 0
        %4780 = vmatpush1.bf16.xpose.msra.mxu0 %v4747
        %4781 = vmatprep.subr.bf16.mxu0 0
        %4782 = vmatpush1.bf16.xpose.msra.mxu0 %v4744
        %4783 = vmatprep.subr.bf16.mxu0 0
        %4784 = vmatpush2.bf16.xpose.msra.mxu0 0
        %4785 = vmatprep.subr.bf16.mxu0 0
        %4786 = vmatpush2.bf16.xpose.msra.mxu0 0
        %4787 = vmatprep.subr.bf16.mxu0 0
        %4788 = vmatpush2.bf16.xpose.msra.mxu0 0
        %4789 = vmatprep.subr.bf16.mxu0 0
        %4790 = vmatpush2.bf16.xpose.msra.mxu0 0
        %4791 = vmatprep.subr.bf16.mxu0 0
        %4792 = vmatpush2.bf16.xpose.msra.mxu0 0
        %4793 = vmatprep.subr.bf16.mxu0 0
        %4794 = vmatpush2.bf16.xpose.msra.mxu0 0
        %4795 = vmatprep.subr.bf16.mxu0 0
        %4796 = vmatpush2.bf16.xpose.msra.mxu0 0
        %4797 = vmatprep.subr.bf16.mxu0 0
        %4798 = vmatpush2.bf16.xpose.msra.mxu0 0
        %4799 = vmatprep.mubr.bf16.mxu0 0
        %4800 = vmatmul.mubr.bf16.gmra.mxu0 %v4720
        %v4801 = vpop.f32.mrf.mxu0
        %v4802 = vadd.f32 0.0, %v4801
        %v4803 = vpop.f32.mrf.mxu0
        %v4804 = vpop.f32.mrf.mxu0
        %v4805 = vadd.f32 0.0, %v4804
        %v4806 = vpop.f32.mrf.mxu0
        %4807 = vmatprep.mubr.bf16.mxu0 0
        %4808 = vmatmul.mubr.bf16.gmra.mxu0 %v4723
        %v4809 = vpop.f32.mrf.mxu0
        %v4810 = vadd.f32 0.0, %v4809
        %v4811 = vpop.f32.mrf.mxu0
        %v4812 = vpop.f32.mrf.mxu0
        %v4813 = vadd.f32 0.0, %v4812
        %v4814 = vpop.f32.mrf.mxu0
        %4815 = vmatprep.mubr.bf16.mxu0 0
        %4816 = vmatmul.mubr.bf16.gmra.mxu0 %v4726
        %v4817 = vpop.f32.mrf.mxu0
        %v4818 = vadd.f32 0.0, %v4817
        %v4819 = vpop.f32.mrf.mxu0
        %v4820 = vpop.f32.mrf.mxu0
        %v4821 = vadd.f32 0.0, %v4820
        %v4822 = vpop.f32.mrf.mxu0
        %4823 = vmatprep.mubr.bf16.mxu0 0
        %4824 = vmatmul.mubr.bf16.gmra.mxu0 %v4729
        %v4825 = vpop.f32.mrf.mxu0
        %v4826 = vadd.f32 0.0, %v4825
        %v4827 = vpop.f32.mrf.mxu0
        %v4828 = vpop.f32.mrf.mxu0
        %v4829 = vadd.f32 0.0, %v4828
        %v4830 = vpop.f32.mrf.mxu0
        %4831 = vmatprep.mubr.bf16.mxu0 0
        %4832 = vmatmul.mubr.bf16.gmra.mxu0 %v4732
        %v4833 = vpop.f32.mrf.mxu0
        %v4834 = vadd.f32 0.0, %v4833
        %v4835 = vpop.f32.mrf.mxu0
        %v4836 = vpop.f32.mrf.mxu0
        %v4837 = vadd.f32 0.0, %v4836
        %v4838 = vpop.f32.mrf.mxu0
        %4839 = vmatprep.mubr.bf16.mxu0 0
        %4840 = vmatmul.mubr.bf16.gmra.mxu0 %v4735
        %v4841 = vpop.f32.mrf.mxu0
        %v4842 = vadd.f32 0.0, %v4841
        %v4843 = vpop.f32.mrf.mxu0
        %v4844 = vpop.f32.mrf.mxu0
        %v4845 = vadd.f32 0.0, %v4844
        %v4846 = vpop.f32.mrf.mxu0
        %4847 = vmatprep.mubr.bf16.mxu0 0
        %4848 = vmatmul.mubr.bf16.gmra.mxu0 %v4738
        %v4849 = vpop.f32.mrf.mxu0
        %v4850 = vadd.f32 0.0, %v4849
        %v4851 = vpop.f32.mrf.mxu0
        %v4852 = vpop.f32.mrf.mxu0
        %v4853 = vadd.f32 0.0, %v4852
        %v4854 = vpop.f32.mrf.mxu0
        %4855 = vmatprep.mubr.bf16.mxu0 0
        %4856 = vmatmul.mubr.bf16.gmra.mxu0 %v4741
        %v4857 = vpop.f32.mrf.mxu0
        %v4858 = vadd.f32 0.0, %v4857
        %v4859 = vpop.f32.mrf.mxu0
        %v4860 = vpop.f32.mrf.mxu0
        %v4861 = vadd.f32 0.0, %v4860
        %v4862 = vpop.f32.mrf.mxu0
        %4863 = vdwg.mxu0
        %v4865 = vsel %vm4573, %v4461, 0
        %v4868 = vsel %vm4573, %v4462, 0
        %v4871 = vsel %vm4573, %v4463, 0
        %v4874 = vsel %vm4573, %v4464, 0
        %v4877 = vsel %vm4573, %v4465, 0
        %v4880 = vsel %vm4573, %v4466, 0
        %v4883 = vsel %vm4573, %v4467, 0
        %v4886 = vsel %vm4573, %v4468, 0
        %v4889 = vsel %vm4573, %v4525, 0
        %v4892 = vsel %vm4573, %v4526, 0
        %v4895 = vsel %vm4573, %v4527, 0
        %v4898 = vsel %vm4573, %v4528, 0
        %v4901 = vsel %vm4573, %v4529, 0
        %v4904 = vsel %vm4573, %v4530, 0
        %v4907 = vsel %vm4573, %v4531, 0
        %v4910 = vsel %vm4573, %v4532, 0
        %4912 = vmatprep.subr.bf16.mxu0 0
        %4913 = vmatpush1.bf16.xpose.msra.mxu0 %v4910
        %4914 = vmatprep.subr.bf16.mxu0 0
        %4915 = vmatpush1.bf16.xpose.msra.mxu0 %v4907
        %4916 = vmatprep.subr.bf16.mxu0 0
        %4917 = vmatpush1.bf16.xpose.msra.mxu0 %v4904
        %4918 = vmatprep.subr.bf16.mxu0 0
        %4919 = vmatpush1.bf16.xpose.msra.mxu0 %v4901
        %4920 = vmatprep.subr.bf16.mxu0 0
        %4921 = vmatpush1.bf16.xpose.msra.mxu0 %v4898
        %4922 = vmatprep.subr.bf16.mxu0 0
        %4923 = vmatpush1.bf16.xpose.msra.mxu0 %v4895
        %4924 = vmatprep.subr.bf16.mxu0 0
        %4925 = vmatpush1.bf16.xpose.msra.mxu0 %v4892
        %4926 = vmatprep.subr.bf16.mxu0 0
        %4927 = vmatpush1.bf16.xpose.msra.mxu0 %v4889
        %4928 = vmatprep.subr.bf16.mxu0 0
        %4929 = vmatpush2.bf16.xpose.msra.mxu0 0
        %4930 = vmatprep.subr.bf16.mxu0 0
        %4931 = vmatpush2.bf16.xpose.msra.mxu0 0
        %4932 = vmatprep.subr.bf16.mxu0 0
        %4933 = vmatpush2.bf16.xpose.msra.mxu0 0
        %4934 = vmatprep.subr.bf16.mxu0 0
        %4935 = vmatpush2.bf16.xpose.msra.mxu0 0
        %4936 = vmatprep.subr.bf16.mxu0 0
        %4937 = vmatpush2.bf16.xpose.msra.mxu0 0
        %4938 = vmatprep.subr.bf16.mxu0 0
        %4939 = vmatpush2.bf16.xpose.msra.mxu0 0
        %4940 = vmatprep.subr.bf16.mxu0 0
        %4941 = vmatpush2.bf16.xpose.msra.mxu0 0
        %4942 = vmatprep.subr.bf16.mxu0 0
        %4943 = vmatpush2.bf16.xpose.msra.mxu0 0
        %4944 = vmatprep.mubr.bf16.mxu0 0
        %4945 = vmatmul.mubr.bf16.gmra.mxu0 %v4865
        %v4946 = vpop.f32.mrf.mxu0
        %v4947 = vadd.f32 0.0, %v4946
        %v4948 = vpop.f32.mrf.mxu0
        %v4949 = vpop.f32.mrf.mxu0
        %v4950 = vadd.f32 0.0, %v4949
        %v4951 = vpop.f32.mrf.mxu0
        %4952 = vmatprep.mubr.bf16.mxu0 0
        %4953 = vmatmul.mubr.bf16.gmra.mxu0 %v4868
        %v4954 = vpop.f32.mrf.mxu0
        %v4955 = vadd.f32 0.0, %v4954
        %v4956 = vpop.f32.mrf.mxu0
        %v4957 = vpop.f32.mrf.mxu0
        %v4958 = vadd.f32 0.0, %v4957
        %v4959 = vpop.f32.mrf.mxu0
        %4960 = vmatprep.mubr.bf16.mxu0 0
        %4961 = vmatmul.mubr.bf16.gmra.mxu0 %v4871
        %v4962 = vpop.f32.mrf.mxu0
        %v4963 = vadd.f32 0.0, %v4962
        %v4964 = vpop.f32.mrf.mxu0
        %v4965 = vpop.f32.mrf.mxu0
        %v4966 = vadd.f32 0.0, %v4965
        %v4967 = vpop.f32.mrf.mxu0
        %4968 = vmatprep.mubr.bf16.mxu0 0
        %4969 = vmatmul.mubr.bf16.gmra.mxu0 %v4874
        %v4970 = vpop.f32.mrf.mxu0
        %v4971 = vadd.f32 0.0, %v4970
        %v4972 = vpop.f32.mrf.mxu0
        %v4973 = vpop.f32.mrf.mxu0
        %v4974 = vadd.f32 0.0, %v4973
        %v4975 = vpop.f32.mrf.mxu0
        %4976 = vmatprep.mubr.bf16.mxu0 0
        %4977 = vmatmul.mubr.bf16.gmra.mxu0 %v4877
        %v4978 = vpop.f32.mrf.mxu0
        %v4979 = vadd.f32 0.0, %v4978
        %v4980 = vpop.f32.mrf.mxu0
        %v4981 = vpop.f32.mrf.mxu0
        %v4982 = vadd.f32 0.0, %v4981
        %v4983 = vpop.f32.mrf.mxu0
        %4984 = vmatprep.mubr.bf16.mxu0 0
        %4985 = vmatmul.mubr.bf16.gmra.mxu0 %v4880
        %v4986 = vpop.f32.mrf.mxu0
        %v4987 = vadd.f32 0.0, %v4986
        %v4988 = vpop.f32.mrf.mxu0
        %v4989 = vpop.f32.mrf.mxu0
        %v4990 = vadd.f32 0.0, %v4989
        %v4991 = vpop.f32.mrf.mxu0
        %4992 = vmatprep.mubr.bf16.mxu0 0
        %4993 = vmatmul.mubr.bf16.gmra.mxu0 %v4883
        %v4994 = vpop.f32.mrf.mxu0
        %v4995 = vadd.f32 0.0, %v4994
        %v4996 = vpop.f32.mrf.mxu0
        %v4997 = vpop.f32.mrf.mxu0
        %v4998 = vadd.f32 0.0, %v4997
        %v4999 = vpop.f32.mrf.mxu0
        %5000 = vmatprep.mubr.bf16.mxu0 0
        %5001 = vmatmul.mubr.bf16.gmra.mxu0 %v4886
        %v5002 = vpop.f32.mrf.mxu0
        %v5003 = vadd.f32 0.0, %v5002
        %v5004 = vpop.f32.mrf.mxu0
        %v5005 = vpop.f32.mrf.mxu0
        %v5006 = vadd.f32 0.0, %v5005
        %v5007 = vpop.f32.mrf.mxu0
        %5008 = vdwg.mxu0
        %v5010 = vsel %vm4573, %v4469, 0
        %v5013 = vsel %vm4573, %v4470, 0
        %v5016 = vsel %vm4573, %v4471, 0
        %v5019 = vsel %vm4573, %v4472, 0
        %v5022 = vsel %vm4573, %v4473, 0
        %v5025 = vsel %vm4573, %v4474, 0
        %v5028 = vsel %vm4573, %v4475, 0
        %v5031 = vsel %vm4573, %v4476, 0
        %v5034 = vsel %vm4573, %v4533, 0
        %v5037 = vsel %vm4573, %v4534, 0
        %v5040 = vsel %vm4573, %v4535, 0
        %v5043 = vsel %vm4573, %v4536, 0
        %v5046 = vsel %vm4573, %v4537, 0
        %v5049 = vsel %vm4573, %v4538, 0
        %v5052 = vsel %vm4573, %v4539, 0
        %v5055 = vsel %vm4573, %v4540, 0
        %5057 = vmatprep.subr.bf16.mxu0 0
        %5058 = vmatpush1.bf16.xpose.msra.mxu0 %v5055
        %5059 = vmatprep.subr.bf16.mxu0 0
        %5060 = vmatpush1.bf16.xpose.msra.mxu0 %v5052
        %5061 = vmatprep.subr.bf16.mxu0 0
        %5062 = vmatpush1.bf16.xpose.msra.mxu0 %v5049
        %5063 = vmatprep.subr.bf16.mxu0 0
        %5064 = vmatpush1.bf16.xpose.msra.mxu0 %v5046
        %5065 = vmatprep.subr.bf16.mxu0 0
        %5066 = vmatpush1.bf16.xpose.msra.mxu0 %v5043
        %5067 = vmatprep.subr.bf16.mxu0 0
        %5068 = vmatpush1.bf16.xpose.msra.mxu0 %v5040
        %5069 = vmatprep.subr.bf16.mxu0 0
        %5070 = vmatpush1.bf16.xpose.msra.mxu0 %v5037
        %5071 = vmatprep.subr.bf16.mxu0 0
        %5072 = vmatpush1.bf16.xpose.msra.mxu0 %v5034
        %5073 = vmatprep.subr.bf16.mxu0 0
        %5074 = vmatpush2.bf16.xpose.msra.mxu0 0
        %5075 = vmatprep.subr.bf16.mxu0 0
        %5076 = vmatpush2.bf16.xpose.msra.mxu0 0
        %5077 = vmatprep.subr.bf16.mxu0 0
        %5078 = vmatpush2.bf16.xpose.msra.mxu0 0
        %5079 = vmatprep.subr.bf16.mxu0 0
        %5080 = vmatpush2.bf16.xpose.msra.mxu0 0
        %5081 = vmatprep.subr.bf16.mxu0 0
        %5082 = vmatpush2.bf16.xpose.msra.mxu0 0
        %5083 = vmatprep.subr.bf16.mxu0 0
        %5084 = vmatpush2.bf16.xpose.msra.mxu0 0
        %5085 = vmatprep.subr.bf16.mxu0 0
        %5086 = vmatpush2.bf16.xpose.msra.mxu0 0
        %5087 = vmatprep.subr.bf16.mxu0 0
        %5088 = vmatpush2.bf16.xpose.msra.mxu0 0
        %5089 = vmatprep.mubr.bf16.mxu0 0
        %5090 = vmatmul.mubr.bf16.gmra.mxu0 %v5010
        %v5091 = vpop.f32.mrf.mxu0
        %v5092 = vadd.f32 0.0, %v5091
        %v5093 = vpop.f32.mrf.mxu0
        %v5094 = vpop.f32.mrf.mxu0
        %v5095 = vadd.f32 0.0, %v5094
        %v5096 = vpop.f32.mrf.mxu0
        %5097 = vmatprep.mubr.bf16.mxu0 0
        %5098 = vmatmul.mubr.bf16.gmra.mxu0 %v5013
        %v5099 = vpop.f32.mrf.mxu0
        %v5100 = vadd.f32 0.0, %v5099
        %v5101 = vpop.f32.mrf.mxu0
        %v5102 = vpop.f32.mrf.mxu0
        %v5103 = vadd.f32 0.0, %v5102
        %v5104 = vpop.f32.mrf.mxu0
        %5105 = vmatprep.mubr.bf16.mxu0 0
        %5106 = vmatmul.mubr.bf16.gmra.mxu0 %v5016
        %v5107 = vpop.f32.mrf.mxu0
        %v5108 = vadd.f32 0.0, %v5107
        %v5109 = vpop.f32.mrf.mxu0
        %v5110 = vpop.f32.mrf.mxu0
        %v5111 = vadd.f32 0.0, %v5110
        %v5112 = vpop.f32.mrf.mxu0
        %5113 = vmatprep.mubr.bf16.mxu0 0
        %5114 = vmatmul.mubr.bf16.gmra.mxu0 %v5019
        %v5115 = vpop.f32.mrf.mxu0
        %v5116 = vadd.f32 0.0, %v5115
        %v5117 = vpop.f32.mrf.mxu0
        %v5118 = vpop.f32.mrf.mxu0
        %v5119 = vadd.f32 0.0, %v5118
        %v5120 = vpop.f32.mrf.mxu0
        %5121 = vmatprep.mubr.bf16.mxu0 0
        %5122 = vmatmul.mubr.bf16.gmra.mxu0 %v5022
        %v5123 = vpop.f32.mrf.mxu0
        %v5124 = vadd.f32 0.0, %v5123
        %v5125 = vpop.f32.mrf.mxu0
        %v5126 = vpop.f32.mrf.mxu0
        %v5127 = vadd.f32 0.0, %v5126
        %v5128 = vpop.f32.mrf.mxu0
        %5129 = vmatprep.mubr.bf16.mxu0 0
        %5130 = vmatmul.mubr.bf16.gmra.mxu0 %v5025
        %v5131 = vpop.f32.mrf.mxu0
        %v5132 = vadd.f32 0.0, %v5131
        %v5133 = vpop.f32.mrf.mxu0
        %v5134 = vpop.f32.mrf.mxu0
        %v5135 = vadd.f32 0.0, %v5134
        %v5136 = vpop.f32.mrf.mxu0
        %5137 = vmatprep.mubr.bf16.mxu0 0
        %5138 = vmatmul.mubr.bf16.gmra.mxu0 %v5028
        %v5139 = vpop.f32.mrf.mxu0
        %v5140 = vadd.f32 0.0, %v5139
        %v5141 = vpop.f32.mrf.mxu0
        %v5142 = vpop.f32.mrf.mxu0
        %v5143 = vadd.f32 0.0, %v5142
        %v5144 = vpop.f32.mrf.mxu0
        %5145 = vmatprep.mubr.bf16.mxu0 0
        %5146 = vmatmul.mubr.bf16.gmra.mxu0 %v5031
        %v5147 = vpop.f32.mrf.mxu0
        %v5148 = vadd.f32 0.0, %v5147
        %v5149 = vpop.f32.mrf.mxu0
        %v5150 = vpop.f32.mrf.mxu0
        %v5151 = vadd.f32 0.0, %v5150
        %v5152 = vpop.f32.mrf.mxu0
        %5153 = vdwg.mxu0
        %v5155 = vsel %vm4573, %v4477, 0
        %v5158 = vsel %vm4573, %v4478, 0
        %v5161 = vsel %vm4573, %v4479, 0
        %v5164 = vsel %vm4573, %v4480, 0
        %v5167 = vsel %vm4573, %v4481, 0
        %v5170 = vsel %vm4573, %v4482, 0
        %v5173 = vsel %vm4573, %v4483, 0
        %v5176 = vsel %vm4573, %v4484, 0
        %v5179 = vsel %vm4573, %v4541, 0
        %v5182 = vsel %vm4573, %v4542, 0
        %v5185 = vsel %vm4573, %v4543, 0
        %v5188 = vsel %vm4573, %v4544, 0
        %v5191 = vsel %vm4573, %v4545, 0
        %v5194 = vsel %vm4573, %v4546, 0
        %v5197 = vsel %vm4573, %v4547, 0
        %v5200 = vsel %vm4573, %v4548, 0
        %5202 = vmatprep.subr.bf16.mxu0 0
        %5203 = vmatpush1.bf16.xpose.msra.mxu0 %v5200
        %5204 = vmatprep.subr.bf16.mxu0 0
        %5205 = vmatpush1.bf16.xpose.msra.mxu0 %v5197
        %5206 = vmatprep.subr.bf16.mxu0 0
        %5207 = vmatpush1.bf16.xpose.msra.mxu0 %v5194
        %5208 = vmatprep.subr.bf16.mxu0 0
        %5209 = vmatpush1.bf16.xpose.msra.mxu0 %v5191
        %5210 = vmatprep.subr.bf16.mxu0 0
        %5211 = vmatpush1.bf16.xpose.msra.mxu0 %v5188
        %5212 = vmatprep.subr.bf16.mxu0 0
        %5213 = vmatpush1.bf16.xpose.msra.mxu0 %v5185
        %5214 = vmatprep.subr.bf16.mxu0 0
        %5215 = vmatpush1.bf16.xpose.msra.mxu0 %v5182
        %5216 = vmatprep.subr.bf16.mxu0 0
        %5217 = vmatpush1.bf16.xpose.msra.mxu0 %v5179
        %5218 = vmatprep.subr.bf16.mxu0 0
        %5219 = vmatpush2.bf16.xpose.msra.mxu0 0
        %5220 = vmatprep.subr.bf16.mxu0 0
        %5221 = vmatpush2.bf16.xpose.msra.mxu0 0
        %5222 = vmatprep.subr.bf16.mxu0 0
        %5223 = vmatpush2.bf16.xpose.msra.mxu0 0
        %5224 = vmatprep.subr.bf16.mxu0 0
        %5225 = vmatpush2.bf16.xpose.msra.mxu0 0
        %5226 = vmatprep.subr.bf16.mxu0 0
        %5227 = vmatpush2.bf16.xpose.msra.mxu0 0
        %5228 = vmatprep.subr.bf16.mxu0 0
        %5229 = vmatpush2.bf16.xpose.msra.mxu0 0
        %5230 = vmatprep.subr.bf16.mxu0 0
        %5231 = vmatpush2.bf16.xpose.msra.mxu0 0
        %5232 = vmatprep.subr.bf16.mxu0 0
        %5233 = vmatpush2.bf16.xpose.msra.mxu0 0
        %5234 = vmatprep.mubr.bf16.mxu0 0
        %5235 = vmatmul.mubr.bf16.gmra.mxu0 %v5155
        %v5236 = vpop.f32.mrf.mxu0
        %v5237 = vadd.f32 0.0, %v5236
        %v5238 = vpop.f32.mrf.mxu0
        %v5239 = vpop.f32.mrf.mxu0
        %v5240 = vadd.f32 0.0, %v5239
        %v5241 = vpop.f32.mrf.mxu0
        %5242 = vmatprep.mubr.bf16.mxu0 0
        %5243 = vmatmul.mubr.bf16.gmra.mxu0 %v5158
        %v5244 = vpop.f32.mrf.mxu0
        %v5245 = vadd.f32 0.0, %v5244
        %v5246 = vpop.f32.mrf.mxu0
        %v5247 = vpop.f32.mrf.mxu0
        %v5248 = vadd.f32 0.0, %v5247
        %v5249 = vpop.f32.mrf.mxu0
        %5250 = vmatprep.mubr.bf16.mxu0 0
        %5251 = vmatmul.mubr.bf16.gmra.mxu0 %v5161
        %v5252 = vpop.f32.mrf.mxu0
        %v5253 = vadd.f32 0.0, %v5252
        %v5254 = vpop.f32.mrf.mxu0
        %v5255 = vpop.f32.mrf.mxu0
        %v5256 = vadd.f32 0.0, %v5255
        %v5257 = vpop.f32.mrf.mxu0
        %5258 = vmatprep.mubr.bf16.mxu0 0
        %5259 = vmatmul.mubr.bf16.gmra.mxu0 %v5164
        %v5260 = vpop.f32.mrf.mxu0
        %v5261 = vadd.f32 0.0, %v5260
        %v5262 = vpop.f32.mrf.mxu0
        %v5263 = vpop.f32.mrf.mxu0
        %v5264 = vadd.f32 0.0, %v5263
        %v5265 = vpop.f32.mrf.mxu0
        %5266 = vmatprep.mubr.bf16.mxu0 0
        %5267 = vmatmul.mubr.bf16.gmra.mxu0 %v5167
        %v5268 = vpop.f32.mrf.mxu0
        %v5269 = vadd.f32 0.0, %v5268
        %v5270 = vpop.f32.mrf.mxu0
        %v5271 = vpop.f32.mrf.mxu0
        %v5272 = vadd.f32 0.0, %v5271
        %v5273 = vpop.f32.mrf.mxu0
        %5274 = vmatprep.mubr.bf16.mxu0 0
        %5275 = vmatmul.mubr.bf16.gmra.mxu0 %v5170
        %v5276 = vpop.f32.mrf.mxu0
        %v5277 = vadd.f32 0.0, %v5276
        %v5278 = vpop.f32.mrf.mxu0
        %v5279 = vpop.f32.mrf.mxu0
        %v5280 = vadd.f32 0.0, %v5279
        %v5281 = vpop.f32.mrf.mxu0
        %5282 = vmatprep.mubr.bf16.mxu0 0
        %5283 = vmatmul.mubr.bf16.gmra.mxu0 %v5173
        %v5284 = vpop.f32.mrf.mxu0
        %v5285 = vadd.f32 0.0, %v5284
        %v5286 = vpop.f32.mrf.mxu0
        %v5287 = vpop.f32.mrf.mxu0
        %v5288 = vadd.f32 0.0, %v5287
        %v5289 = vpop.f32.mrf.mxu0
        %5290 = vmatprep.mubr.bf16.mxu0 0
        %5291 = vmatmul.mubr.bf16.gmra.mxu0 %v5176
        %v5292 = vpop.f32.mrf.mxu0
        %v5293 = vadd.f32 0.0, %v5292
        %v5294 = vpop.f32.mrf.mxu0
        %v5295 = vpop.f32.mrf.mxu0
        %v5296 = vadd.f32 0.0, %v5295
        %v5297 = vpop.f32.mrf.mxu0
        %5298 = vdwg.mxu0
        %v5300 = vsel %vm4573, %v4485, 0
        %v5303 = vsel %vm4573, %v4486, 0
        %v5306 = vsel %vm4573, %v4487, 0
        %v5309 = vsel %vm4573, %v4488, 0
        %v5312 = vsel %vm4573, %v4489, 0
        %v5315 = vsel %vm4573, %v4490, 0
        %v5318 = vsel %vm4573, %v4491, 0
        %v5321 = vsel %vm4573, %v4492, 0
        %v5324 = vsel %vm4573, %v4549, 0
        %v5327 = vsel %vm4573, %v4550, 0
        %v5330 = vsel %vm4573, %v4551, 0
        %v5333 = vsel %vm4573, %v4552, 0
        %v5336 = vsel %vm4573, %v4553, 0
        %v5339 = vsel %vm4573, %v4554, 0
        %v5342 = vsel %vm4573, %v4555, 0
        %v5345 = vsel %vm4573, %v4556, 0
        %5347 = vmatprep.subr.bf16.mxu0 0
        %5348 = vmatpush1.bf16.xpose.msra.mxu0 %v5345
        %5349 = vmatprep.subr.bf16.mxu0 0
        %5350 = vmatpush1.bf16.xpose.msra.mxu0 %v5342
        %5351 = vmatprep.subr.bf16.mxu0 0
        %5352 = vmatpush1.bf16.xpose.msra.mxu0 %v5339
        %5353 = vmatprep.subr.bf16.mxu0 0
        %5354 = vmatpush1.bf16.xpose.msra.mxu0 %v5336
        %5355 = vmatprep.subr.bf16.mxu0 0
        %5356 = vmatpush1.bf16.xpose.msra.mxu0 %v5333
        %5357 = vmatprep.subr.bf16.mxu0 0
        %5358 = vmatpush1.bf16.xpose.msra.mxu0 %v5330
        %5359 = vmatprep.subr.bf16.mxu0 0
        %5360 = vmatpush1.bf16.xpose.msra.mxu0 %v5327
        %5361 = vmatprep.subr.bf16.mxu0 0
        %5362 = vmatpush1.bf16.xpose.msra.mxu0 %v5324
        %5363 = vmatprep.subr.bf16.mxu0 0
        %5364 = vmatpush2.bf16.xpose.msra.mxu0 0
        %5365 = vmatprep.subr.bf16.mxu0 0
        %5366 = vmatpush2.bf16.xpose.msra.mxu0 0
        %5367 = vmatprep.subr.bf16.mxu0 0
        %5368 = vmatpush2.bf16.xpose.msra.mxu0 0
        %5369 = vmatprep.subr.bf16.mxu0 0
        %5370 = vmatpush2.bf16.xpose.msra.mxu0 0
        %5371 = vmatprep.subr.bf16.mxu0 0
        %5372 = vmatpush2.bf16.xpose.msra.mxu0 0
        %5373 = vmatprep.subr.bf16.mxu0 0
        %5374 = vmatpush2.bf16.xpose.msra.mxu0 0
        %5375 = vmatprep.subr.bf16.mxu0 0
        %5376 = vmatpush2.bf16.xpose.msra.mxu0 0
        %5377 = vmatprep.subr.bf16.mxu0 0
        %5378 = vmatpush2.bf16.xpose.msra.mxu0 0
        %5379 = vmatprep.mubr.bf16.mxu0 0
        %5380 = vmatmul.mubr.bf16.gmra.mxu0 %v5300
        %v5381 = vpop.f32.mrf.mxu0
        %v5382 = vadd.f32 0.0, %v5381
        %v5383 = vpop.f32.mrf.mxu0
        %v5384 = vpop.f32.mrf.mxu0
        %v5385 = vadd.f32 0.0, %v5384
        %v5386 = vpop.f32.mrf.mxu0
        %5387 = vmatprep.mubr.bf16.mxu0 0
        %5388 = vmatmul.mubr.bf16.gmra.mxu0 %v5303
        %v5389 = vpop.f32.mrf.mxu0
        %v5390 = vadd.f32 0.0, %v5389
        %v5391 = vpop.f32.mrf.mxu0
        %v5392 = vpop.f32.mrf.mxu0
        %v5393 = vadd.f32 0.0, %v5392
        %v5394 = vpop.f32.mrf.mxu0
        %5395 = vmatprep.mubr.bf16.mxu0 0
        %5396 = vmatmul.mubr.bf16.gmra.mxu0 %v5306
        %v5397 = vpop.f32.mrf.mxu0
        %v5398 = vadd.f32 0.0, %v5397
        %v5399 = vpop.f32.mrf.mxu0
        %v5400 = vpop.f32.mrf.mxu0
        %v5401 = vadd.f32 0.0, %v5400
        %v5402 = vpop.f32.mrf.mxu0
        %5403 = vmatprep.mubr.bf16.mxu0 0
        %5404 = vmatmul.mubr.bf16.gmra.mxu0 %v5309
        %v5405 = vpop.f32.mrf.mxu0
        %v5406 = vadd.f32 0.0, %v5405
        %v5407 = vpop.f32.mrf.mxu0
        %v5408 = vpop.f32.mrf.mxu0
        %v5409 = vadd.f32 0.0, %v5408
        %v5410 = vpop.f32.mrf.mxu0
        %5411 = vmatprep.mubr.bf16.mxu0 0
        %5412 = vmatmul.mubr.bf16.gmra.mxu0 %v5312
        %v5413 = vpop.f32.mrf.mxu0
        %v5414 = vadd.f32 0.0, %v5413
        %v5415 = vpop.f32.mrf.mxu0
        %v5416 = vpop.f32.mrf.mxu0
        %v5417 = vadd.f32 0.0, %v5416
        %v5418 = vpop.f32.mrf.mxu0
        %5419 = vmatprep.mubr.bf16.mxu0 0
        %5420 = vmatmul.mubr.bf16.gmra.mxu0 %v5315
        %v5421 = vpop.f32.mrf.mxu0
        %v5422 = vadd.f32 0.0, %v5421
        %v5423 = vpop.f32.mrf.mxu0
        %v5424 = vpop.f32.mrf.mxu0
        %v5425 = vadd.f32 0.0, %v5424
        %v5426 = vpop.f32.mrf.mxu0
        %5427 = vmatprep.mubr.bf16.mxu0 0
        %5428 = vmatmul.mubr.bf16.gmra.mxu0 %v5318
        %v5429 = vpop.f32.mrf.mxu0
        %v5430 = vadd.f32 0.0, %v5429
        %v5431 = vpop.f32.mrf.mxu0
        %v5432 = vpop.f32.mrf.mxu0
        %v5433 = vadd.f32 0.0, %v5432
        %v5434 = vpop.f32.mrf.mxu0
        %5435 = vmatprep.mubr.bf16.mxu0 0
        %5436 = vmatmul.mubr.bf16.gmra.mxu0 %v5321
        %v5437 = vpop.f32.mrf.mxu0
        %v5438 = vadd.f32 0.0, %v5437
        %v5439 = vpop.f32.mrf.mxu0
        %v5440 = vpop.f32.mrf.mxu0
        %v5441 = vadd.f32 0.0, %v5440
        %v5442 = vpop.f32.mrf.mxu0
        %5443 = vdwg.mxu0
        %v5445 = vsel %vm4573, %v4493, 0
        %v5448 = vsel %vm4573, %v4494, 0
        %v5451 = vsel %vm4573, %v4495, 0
        %v5454 = vsel %vm4573, %v4496, 0
        %v5457 = vsel %vm4573, %v4497, 0
        %v5460 = vsel %vm4573, %v4498, 0
        %v5463 = vsel %vm4573, %v4499, 0
        %v5466 = vsel %vm4573, %v4500, 0
        %v5469 = vsel %vm4573, %v4557, 0
        %v5472 = vsel %vm4573, %v4558, 0
        %v5475 = vsel %vm4573, %v4559, 0
        %v5478 = vsel %vm4573, %v4560, 0
        %v5481 = vsel %vm4573, %v4561, 0
        %v5484 = vsel %vm4573, %v4562, 0
        %v5487 = vsel %vm4573, %v4563, 0
        %v5490 = vsel %vm4573, %v4564, 0
        %5492 = vmatprep.subr.bf16.mxu0 0
        %5493 = vmatpush1.bf16.xpose.msra.mxu0 %v5490
        %5494 = vmatprep.subr.bf16.mxu0 0
        %5495 = vmatpush1.bf16.xpose.msra.mxu0 %v5487
        %5496 = vmatprep.subr.bf16.mxu0 0
        %5497 = vmatpush1.bf16.xpose.msra.mxu0 %v5484
        %5498 = vmatprep.subr.bf16.mxu0 0
        %5499 = vmatpush1.bf16.xpose.msra.mxu0 %v5481
        %5500 = vmatprep.subr.bf16.mxu0 0
        %5501 = vmatpush1.bf16.xpose.msra.mxu0 %v5478
        %5502 = vmatprep.subr.bf16.mxu0 0
        %5503 = vmatpush1.bf16.xpose.msra.mxu0 %v5475
        %5504 = vmatprep.subr.bf16.mxu0 0
        %5505 = vmatpush1.bf16.xpose.msra.mxu0 %v5472
        %5506 = vmatprep.subr.bf16.mxu0 0
        %5507 = vmatpush1.bf16.xpose.msra.mxu0 %v5469
        %5508 = vmatprep.subr.bf16.mxu0 0
        %5509 = vmatpush2.bf16.xpose.msra.mxu0 0
        %5510 = vmatprep.subr.bf16.mxu0 0
        %5511 = vmatpush2.bf16.xpose.msra.mxu0 0
        %5512 = vmatprep.subr.bf16.mxu0 0
        %5513 = vmatpush2.bf16.xpose.msra.mxu0 0
        %5514 = vmatprep.subr.bf16.mxu0 0
        %5515 = vmatpush2.bf16.xpose.msra.mxu0 0
        %5516 = vmatprep.subr.bf16.mxu0 0
        %5517 = vmatpush2.bf16.xpose.msra.mxu0 0
        %5518 = vmatprep.subr.bf16.mxu0 0
        %5519 = vmatpush2.bf16.xpose.msra.mxu0 0
        %5520 = vmatprep.subr.bf16.mxu0 0
        %5521 = vmatpush2.bf16.xpose.msra.mxu0 0
        %5522 = vmatprep.subr.bf16.mxu0 0
        %5523 = vmatpush2.bf16.xpose.msra.mxu0 0
        %5524 = vmatprep.mubr.bf16.mxu0 0
        %5525 = vmatmul.mubr.bf16.gmra.mxu0 %v5445
        %v5526 = vpop.f32.mrf.mxu0
        %v5527 = vadd.f32 0.0, %v5526
        %v5528 = vpop.f32.mrf.mxu0
        %v5529 = vpop.f32.mrf.mxu0
        %v5530 = vadd.f32 0.0, %v5529
        %v5531 = vpop.f32.mrf.mxu0
        %5532 = vmatprep.mubr.bf16.mxu0 0
        %5533 = vmatmul.mubr.bf16.gmra.mxu0 %v5448
        %v5534 = vpop.f32.mrf.mxu0
        %v5535 = vadd.f32 0.0, %v5534
        %v5536 = vpop.f32.mrf.mxu0
        %v5537 = vpop.f32.mrf.mxu0
        %v5538 = vadd.f32 0.0, %v5537
        %v5539 = vpop.f32.mrf.mxu0
        %5540 = vmatprep.mubr.bf16.mxu0 0
        %5541 = vmatmul.mubr.bf16.gmra.mxu0 %v5451
        %v5542 = vpop.f32.mrf.mxu0
        %v5543 = vadd.f32 0.0, %v5542
        %v5544 = vpop.f32.mrf.mxu0
        %v5545 = vpop.f32.mrf.mxu0
        %v5546 = vadd.f32 0.0, %v5545
        %v5547 = vpop.f32.mrf.mxu0
        %5548 = vmatprep.mubr.bf16.mxu0 0
        %5549 = vmatmul.mubr.bf16.gmra.mxu0 %v5454
        %v5550 = vpop.f32.mrf.mxu0
        %v5551 = vadd.f32 0.0, %v5550
        %v5552 = vpop.f32.mrf.mxu0
        %v5553 = vpop.f32.mrf.mxu0
        %v5554 = vadd.f32 0.0, %v5553
        %v5555 = vpop.f32.mrf.mxu0
        %5556 = vmatprep.mubr.bf16.mxu0 0
        %5557 = vmatmul.mubr.bf16.gmra.mxu0 %v5457
        %v5558 = vpop.f32.mrf.mxu0
        %v5559 = vadd.f32 0.0, %v5558
        %v5560 = vpop.f32.mrf.mxu0
        %v5561 = vpop.f32.mrf.mxu0
        %v5562 = vadd.f32 0.0, %v5561
        %v5563 = vpop.f32.mrf.mxu0
        %5564 = vmatprep.mubr.bf16.mxu0 0
        %5565 = vmatmul.mubr.bf16.gmra.mxu0 %v5460
        %v5566 = vpop.f32.mrf.mxu0
        %v5567 = vadd.f32 0.0, %v5566
        %v5568 = vpop.f32.mrf.mxu0
        %v5569 = vpop.f32.mrf.mxu0
        %v5570 = vadd.f32 0.0, %v5569
        %v5571 = vpop.f32.mrf.mxu0
        %5572 = vmatprep.mubr.bf16.mxu0 0
        %5573 = vmatmul.mubr.bf16.gmra.mxu0 %v5463
        %v5574 = vpop.f32.mrf.mxu0
        %v5575 = vadd.f32 0.0, %v5574
        %v5576 = vpop.f32.mrf.mxu0
        %v5577 = vpop.f32.mrf.mxu0
        %v5578 = vadd.f32 0.0, %v5577
        %v5579 = vpop.f32.mrf.mxu0
        %5580 = vmatprep.mubr.bf16.mxu0 0
        %5581 = vmatmul.mubr.bf16.gmra.mxu0 %v5466
        %v5582 = vpop.f32.mrf.mxu0
        %v5583 = vadd.f32 0.0, %v5582
        %v5584 = vpop.f32.mrf.mxu0
        %v5585 = vpop.f32.mrf.mxu0
        %v5586 = vadd.f32 0.0, %v5585
        %v5587 = vpop.f32.mrf.mxu0
        %5588 = vdwg.mxu0
        %v5590 = vsel %vm4573, %v4501, 0
        %v5593 = vsel %vm4573, %v4502, 0
        %v5596 = vsel %vm4573, %v4503, 0
        %v5599 = vsel %vm4573, %v4504, 0
        %v5602 = vsel %vm4573, %v4505, 0
        %v5605 = vsel %vm4573, %v4506, 0
        %v5608 = vsel %vm4573, %v4507, 0
        %v5611 = vsel %vm4573, %v4508, 0
        %v5614 = vsel %vm4573, %v4565, 0
        %v5617 = vsel %vm4573, %v4566, 0
        %v5620 = vsel %vm4573, %v4567, 0
        %v5623 = vsel %vm4573, %v4568, 0
        %v5626 = vsel %vm4573, %v4569, 0
        %v5629 = vsel %vm4573, %v4570, 0
        %v5632 = vsel %vm4573, %v4571, 0
        %v5635 = vsel %vm4573, %v4572, 0
        %5637 = vmatprep.subr.bf16.mxu0 0
        %5638 = vmatpush1.bf16.xpose.msra.mxu0 %v5635
        %5639 = vmatprep.subr.bf16.mxu0 0
        %5640 = vmatpush1.bf16.xpose.msra.mxu0 %v5632
        %5641 = vmatprep.subr.bf16.mxu0 0
        %5642 = vmatpush1.bf16.xpose.msra.mxu0 %v5629
        %5643 = vmatprep.subr.bf16.mxu0 0
        %5644 = vmatpush1.bf16.xpose.msra.mxu0 %v5626
        %5645 = vmatprep.subr.bf16.mxu0 0
        %5646 = vmatpush1.bf16.xpose.msra.mxu0 %v5623
        %5647 = vmatprep.subr.bf16.mxu0 0
        %5648 = vmatpush1.bf16.xpose.msra.mxu0 %v5620
        %5649 = vmatprep.subr.bf16.mxu0 0
        %5650 = vmatpush1.bf16.xpose.msra.mxu0 %v5617
        %5651 = vmatprep.subr.bf16.mxu0 0
        %5652 = vmatpush1.bf16.xpose.msra.mxu0 %v5614
        %5653 = vmatprep.subr.bf16.mxu0 0
        %5654 = vmatpush2.bf16.xpose.msra.mxu0 0
        %5655 = vmatprep.subr.bf16.mxu0 0
        %5656 = vmatpush2.bf16.xpose.msra.mxu0 0
        %5657 = vmatprep.subr.bf16.mxu0 0
        %5658 = vmatpush2.bf16.xpose.msra.mxu0 0
        %5659 = vmatprep.subr.bf16.mxu0 0
        %5660 = vmatpush2.bf16.xpose.msra.mxu0 0
        %5661 = vmatprep.subr.bf16.mxu0 0
        %5662 = vmatpush2.bf16.xpose.msra.mxu0 0
        %5663 = vmatprep.subr.bf16.mxu0 0
        %5664 = vmatpush2.bf16.xpose.msra.mxu0 0
        %5665 = vmatprep.subr.bf16.mxu0 0
        %5666 = vmatpush2.bf16.xpose.msra.mxu0 0
        %5667 = vmatprep.subr.bf16.mxu0 0
        %5668 = vmatpush2.bf16.xpose.msra.mxu0 0
        %5669 = vmatprep.mubr.bf16.mxu0 0
        %5670 = vmatmul.mubr.bf16.gmra.mxu0 %v5590
        %v5671 = vpop.f32.mrf.mxu0
        %v5672 = vadd.f32 0.0, %v5671
        %v5673 = vpop.f32.mrf.mxu0
        %v5674 = vpop.f32.mrf.mxu0
        %v5675 = vadd.f32 0.0, %v5674
        %v5676 = vpop.f32.mrf.mxu0
        %5677 = vmatprep.mubr.bf16.mxu0 0
        %5678 = vmatmul.mubr.bf16.gmra.mxu0 %v5593
        %v5679 = vpop.f32.mrf.mxu0
        %v5680 = vadd.f32 0.0, %v5679
        %v5681 = vpop.f32.mrf.mxu0
        %v5682 = vpop.f32.mrf.mxu0
        %v5683 = vadd.f32 0.0, %v5682
        %v5684 = vpop.f32.mrf.mxu0
        %5685 = vmatprep.mubr.bf16.mxu0 0
        %5686 = vmatmul.mubr.bf16.gmra.mxu0 %v5596
        %v5687 = vpop.f32.mrf.mxu0
        %v5688 = vadd.f32 0.0, %v5687
        %v5689 = vpop.f32.mrf.mxu0
        %v5690 = vpop.f32.mrf.mxu0
        %v5691 = vadd.f32 0.0, %v5690
        %v5692 = vpop.f32.mrf.mxu0
        %5693 = vmatprep.mubr.bf16.mxu0 0
        %5694 = vmatmul.mubr.bf16.gmra.mxu0 %v5599
        %v5695 = vpop.f32.mrf.mxu0
        %v5696 = vadd.f32 0.0, %v5695
        %v5697 = vpop.f32.mrf.mxu0
        %v5698 = vpop.f32.mrf.mxu0
        %v5699 = vadd.f32 0.0, %v5698
        %v5700 = vpop.f32.mrf.mxu0
        %5701 = vmatprep.mubr.bf16.mxu0 0
        %5702 = vmatmul.mubr.bf16.gmra.mxu0 %v5602
        %v5703 = vpop.f32.mrf.mxu0
        %v5704 = vadd.f32 0.0, %v5703
        %v5705 = vpop.f32.mrf.mxu0
        %v5706 = vpop.f32.mrf.mxu0
        %v5707 = vadd.f32 0.0, %v5706
        %v5708 = vpop.f32.mrf.mxu0
        %5709 = vmatprep.mubr.bf16.mxu0 0
        %5710 = vmatmul.mubr.bf16.gmra.mxu0 %v5605
        %v5711 = vpop.f32.mrf.mxu0
        %v5712 = vadd.f32 0.0, %v5711
        %v5713 = vpop.f32.mrf.mxu0
        %v5714 = vpop.f32.mrf.mxu0
        %v5715 = vadd.f32 0.0, %v5714
        %v5716 = vpop.f32.mrf.mxu0
        %5717 = vmatprep.mubr.bf16.mxu0 0
        %5718 = vmatmul.mubr.bf16.gmra.mxu0 %v5608
        %v5719 = vpop.f32.mrf.mxu0
        %v5720 = vadd.f32 0.0, %v5719
        %v5721 = vpop.f32.mrf.mxu0
        %v5722 = vpop.f32.mrf.mxu0
        %v5723 = vadd.f32 0.0, %v5722
        %v5724 = vpop.f32.mrf.mxu0
        %5725 = vmatprep.mubr.bf16.mxu0 0
        %5726 = vmatmul.mubr.bf16.gmra.mxu0 %v5611
        %v5727 = vpop.f32.mrf.mxu0
        %v5728 = vadd.f32 0.0, %v5727
        %v5729 = vpop.f32.mrf.mxu0
        %v5730 = vpop.f32.mrf.mxu0
        %v5731 = vadd.f32 0.0, %v5730
        %v5732 = vpop.f32.mrf.mxu0
        %5733 = vdwg.mxu0
        %5734 = vmax.xlane.f32.xlu0 %v4657
        %v5735 = vpop.xlane.xlu0 %5734
        %5736 = vmax.xlane.f32.xlu0 %v4660
        %v5737 = vpop.xlane.xlu0 %5736
        %5738 = vmax.xlane.f32.xlu0 %v4665
        %v5739 = vpop.xlane.xlu0 %5738
        %5740 = vmax.xlane.f32.xlu0 %v4668
        %v5741 = vpop.xlane.xlu0 %5740
        %5742 = vmax.xlane.f32.xlu0 %v4673
        %v5743 = vpop.xlane.xlu0 %5742
        %5744 = vmax.xlane.f32.xlu0 %v4676
        %v5745 = vpop.xlane.xlu0 %5744
        %5746 = vmax.xlane.f32.xlu0 %v4681
        %v5747 = vpop.xlane.xlu0 %5746
        %5748 = vmax.xlane.f32.xlu0 %v4684
        %v5749 = vpop.xlane.xlu0 %5748
        %5750 = vmax.xlane.f32.xlu0 %v4689
        %v5751 = vpop.xlane.xlu0 %5750
        %5752 = vmax.xlane.f32.xlu0 %v4692
        %v5753 = vpop.xlane.xlu0 %5752
        %5754 = vmax.xlane.f32.xlu0 %v4697
        %v5755 = vpop.xlane.xlu0 %5754
        %5756 = vmax.xlane.f32.xlu0 %v4700
        %v5757 = vpop.xlane.xlu0 %5756
        %5758 = vmax.xlane.f32.xlu0 %v4705
        %v5759 = vpop.xlane.xlu0 %5758
        %5760 = vmax.xlane.f32.xlu0 %v4708
        %v5761 = vpop.xlane.xlu0 %5760
        %5762 = vmax.xlane.f32.xlu0 %v4713
        %v5763 = vpop.xlane.xlu0 %5762
        %5764 = vmax.xlane.f32.xlu0 %v4716
        %v5765 = vpop.xlane.xlu0 %5764
        %5766 = vmax.xlane.f32.xlu0 %v4802
        %v5767 = vpop.xlane.xlu0 %5766
        %5768 = vmax.xlane.f32.xlu0 %v4805
        %v5769 = vpop.xlane.xlu0 %5768
        %5770 = vmax.xlane.f32.xlu0 %v4810
        %v5771 = vpop.xlane.xlu0 %5770
        %5772 = vmax.xlane.f32.xlu0 %v4813
        %v5773 = vpop.xlane.xlu0 %5772
        %5774 = vmax.xlane.f32.xlu0 %v4818
        %v5775 = vpop.xlane.xlu0 %5774
        %5776 = vmax.xlane.f32.xlu0 %v4821
        %v5777 = vpop.xlane.xlu0 %5776
        %5778 = vmax.xlane.f32.xlu0 %v4826
        %v5779 = vpop.xlane.xlu0 %5778
        %5780 = vmax.xlane.f32.xlu0 %v4829
        %v5781 = vpop.xlane.xlu0 %5780
        %5782 = vmax.xlane.f32.xlu0 %v4834
        %v5783 = vpop.xlane.xlu0 %5782
        %5784 = vmax.xlane.f32.xlu0 %v4837
        %v5785 = vpop.xlane.xlu0 %5784
        %5786 = vmax.xlane.f32.xlu0 %v4842
        %v5787 = vpop.xlane.xlu0 %5786
        %5788 = vmax.xlane.f32.xlu0 %v4845
        %v5789 = vpop.xlane.xlu0 %5788
        %5790 = vmax.xlane.f32.xlu0 %v4850
        %v5791 = vpop.xlane.xlu0 %5790
        %5792 = vmax.xlane.f32.xlu0 %v4853
        %v5793 = vpop.xlane.xlu0 %5792
        %5794 = vmax.xlane.f32.xlu0 %v4858
        %v5795 = vpop.xlane.xlu0 %5794
        %5796 = vmax.xlane.f32.xlu0 %v4861
        %v5797 = vpop.xlane.xlu0 %5796
        %5798 = vmax.xlane.f32.xlu0 %v4947
        %v5799 = vpop.xlane.xlu0 %5798
        %5800 = vmax.xlane.f32.xlu0 %v4950
        %v5801 = vpop.xlane.xlu0 %5800
        %5802 = vmax.xlane.f32.xlu0 %v4955
        %v5803 = vpop.xlane.xlu0 %5802
        %5804 = vmax.xlane.f32.xlu0 %v4958
        %v5805 = vpop.xlane.xlu0 %5804
        %5806 = vmax.xlane.f32.xlu0 %v4963
        %v5807 = vpop.xlane.xlu0 %5806
        %5808 = vmax.xlane.f32.xlu0 %v4966
        %v5809 = vpop.xlane.xlu0 %5808
        %5810 = vmax.xlane.f32.xlu0 %v4971
        %v5811 = vpop.xlane.xlu0 %5810
        %5812 = vmax.xlane.f32.xlu0 %v4974
        %v5813 = vpop.xlane.xlu0 %5812
        %5814 = vmax.xlane.f32.xlu0 %v4979
        %v5815 = vpop.xlane.xlu0 %5814
        %5816 = vmax.xlane.f32.xlu0 %v4982
        %v5817 = vpop.xlane.xlu0 %5816
        %5818 = vmax.xlane.f32.xlu0 %v4987
        %v5819 = vpop.xlane.xlu0 %5818
        %5820 = vmax.xlane.f32.xlu0 %v4990
        %v5821 = vpop.xlane.xlu0 %5820
        %5822 = vmax.xlane.f32.xlu0 %v4995
        %v5823 = vpop.xlane.xlu0 %5822
        %5824 = vmax.xlane.f32.xlu0 %v4998
        %v5825 = vpop.xlane.xlu0 %5824
        %5826 = vmax.xlane.f32.xlu0 %v5003
        %v5827 = vpop.xlane.xlu0 %5826
        %5828 = vmax.xlane.f32.xlu0 %v5006
        %v5829 = vpop.xlane.xlu0 %5828
        %5830 = vmax.xlane.f32.xlu0 %v5092
        %v5831 = vpop.xlane.xlu0 %5830
        %5832 = vmax.xlane.f32.xlu0 %v5095
        %v5833 = vpop.xlane.xlu0 %5832
        %5834 = vmax.xlane.f32.xlu0 %v5100
        %v5835 = vpop.xlane.xlu0 %5834
        %5836 = vmax.xlane.f32.xlu0 %v5103
        %v5837 = vpop.xlane.xlu0 %5836
        %5838 = vmax.xlane.f32.xlu0 %v5108
        %v5839 = vpop.xlane.xlu0 %5838
        %5840 = vmax.xlane.f32.xlu0 %v5111
        %v5841 = vpop.xlane.xlu0 %5840
        %5842 = vmax.xlane.f32.xlu0 %v5116
        %v5843 = vpop.xlane.xlu0 %5842
        %5844 = vmax.xlane.f32.xlu0 %v5119
        %v5845 = vpop.xlane.xlu0 %5844
        %5846 = vmax.xlane.f32.xlu0 %v5124
        %v5847 = vpop.xlane.xlu0 %5846
        %5848 = vmax.xlane.f32.xlu0 %v5127
        %v5849 = vpop.xlane.xlu0 %5848
        %5850 = vmax.xlane.f32.xlu0 %v5132
        %v5851 = vpop.xlane.xlu0 %5850
        %5852 = vmax.xlane.f32.xlu0 %v5135
        %v5853 = vpop.xlane.xlu0 %5852
        %5854 = vmax.xlane.f32.xlu0 %v5140
        %v5855 = vpop.xlane.xlu0 %5854
        %5856 = vmax.xlane.f32.xlu0 %v5143
        %v5857 = vpop.xlane.xlu0 %5856
        %5858 = vmax.xlane.f32.xlu0 %v5148
        %v5859 = vpop.xlane.xlu0 %5858
        %5860 = vmax.xlane.f32.xlu0 %v5151
        %v5861 = vpop.xlane.xlu0 %5860
        %5862 = vmax.xlane.f32.xlu0 %v5237
        %v5863 = vpop.xlane.xlu0 %5862
        %5864 = vmax.xlane.f32.xlu0 %v5240
        %v5865 = vpop.xlane.xlu0 %5864
        %5866 = vmax.xlane.f32.xlu0 %v5245
        %v5867 = vpop.xlane.xlu0 %5866
        %5868 = vmax.xlane.f32.xlu0 %v5248
        %v5869 = vpop.xlane.xlu0 %5868
        %5870 = vmax.xlane.f32.xlu0 %v5253
        %v5871 = vpop.xlane.xlu0 %5870
        %5872 = vmax.xlane.f32.xlu0 %v5256
        %v5873 = vpop.xlane.xlu0 %5872
        %5874 = vmax.xlane.f32.xlu0 %v5261
        %v5875 = vpop.xlane.xlu0 %5874
        %5876 = vmax.xlane.f32.xlu0 %v5264
        %v5877 = vpop.xlane.xlu0 %5876
        %5878 = vmax.xlane.f32.xlu0 %v5269
        %v5879 = vpop.xlane.xlu0 %5878
        %5880 = vmax.xlane.f32.xlu0 %v5272
        %v5881 = vpop.xlane.xlu0 %5880
        %5882 = vmax.xlane.f32.xlu0 %v5277
        %v5883 = vpop.xlane.xlu0 %5882
        %5884 = vmax.xlane.f32.xlu0 %v5280
        %v5885 = vpop.xlane.xlu0 %5884
        %5886 = vmax.xlane.f32.xlu0 %v5285
        %v5887 = vpop.xlane.xlu0 %5886
        %5888 = vmax.xlane.f32.xlu0 %v5288
        %v5889 = vpop.xlane.xlu0 %5888
        %5890 = vmax.xlane.f32.xlu0 %v5293
        %v5891 = vpop.xlane.xlu0 %5890
        %5892 = vmax.xlane.f32.xlu0 %v5296
        %v5893 = vpop.xlane.xlu0 %5892
        %5894 = vmax.xlane.f32.xlu0 %v5382
        %v5895 = vpop.xlane.xlu0 %5894
        %5896 = vmax.xlane.f32.xlu0 %v5385
        %v5897 = vpop.xlane.xlu0 %5896
        %5898 = vmax.xlane.f32.xlu0 %v5390
        %v5899 = vpop.xlane.xlu0 %5898
        %5900 = vmax.xlane.f32.xlu0 %v5393
        %v5901 = vpop.xlane.xlu0 %5900
        %5902 = vmax.xlane.f32.xlu0 %v5398
        %v5903 = vpop.xlane.xlu0 %5902
        %5904 = vmax.xlane.f32.xlu0 %v5401
        %v5905 = vpop.xlane.xlu0 %5904
        %5906 = vmax.xlane.f32.xlu0 %v5406
        %v5907 = vpop.xlane.xlu0 %5906
        %5908 = vmax.xlane.f32.xlu0 %v5409
        %v5909 = vpop.xlane.xlu0 %5908
        %5910 = vmax.xlane.f32.xlu0 %v5414
        %v5911 = vpop.xlane.xlu0 %5910
        %5912 = vmax.xlane.f32.xlu0 %v5417
        %v5913 = vpop.xlane.xlu0 %5912
        %5914 = vmax.xlane.f32.xlu0 %v5422
        %v5915 = vpop.xlane.xlu0 %5914
        %5916 = vmax.xlane.f32.xlu0 %v5425
        %v5917 = vpop.xlane.xlu0 %5916
        %5918 = vmax.xlane.f32.xlu0 %v5430
        %v5919 = vpop.xlane.xlu0 %5918
        %5920 = vmax.xlane.f32.xlu0 %v5433
        %v5921 = vpop.xlane.xlu0 %5920
        %5922 = vmax.xlane.f32.xlu0 %v5438
        %v5923 = vpop.xlane.xlu0 %5922
        %5924 = vmax.xlane.f32.xlu0 %v5441
        %v5925 = vpop.xlane.xlu0 %5924
        %5926 = vmax.xlane.f32.xlu0 %v5527
        %v5927 = vpop.xlane.xlu0 %5926
        %5928 = vmax.xlane.f32.xlu0 %v5530
        %v5929 = vpop.xlane.xlu0 %5928
        %5930 = vmax.xlane.f32.xlu0 %v5535
        %v5931 = vpop.xlane.xlu0 %5930
        %5932 = vmax.xlane.f32.xlu0 %v5538
        %v5933 = vpop.xlane.xlu0 %5932
        %5934 = vmax.xlane.f32.xlu0 %v5543
        %v5935 = vpop.xlane.xlu0 %5934
        %5936 = vmax.xlane.f32.xlu0 %v5546
        %v5937 = vpop.xlane.xlu0 %5936
        %5938 = vmax.xlane.f32.xlu0 %v5551
        %v5939 = vpop.xlane.xlu0 %5938
        %5940 = vmax.xlane.f32.xlu0 %v5554
        %v5941 = vpop.xlane.xlu0 %5940
        %5942 = vmax.xlane.f32.xlu0 %v5559
        %v5943 = vpop.xlane.xlu0 %5942
        %5944 = vmax.xlane.f32.xlu0 %v5562
        %v5945 = vpop.xlane.xlu0 %5944
        %5946 = vmax.xlane.f32.xlu0 %v5567
        %v5947 = vpop.xlane.xlu0 %5946
        %5948 = vmax.xlane.f32.xlu0 %v5570
        %v5949 = vpop.xlane.xlu0 %5948
        %5950 = vmax.xlane.f32.xlu0 %v5575
        %v5951 = vpop.xlane.xlu0 %5950
        %5952 = vmax.xlane.f32.xlu0 %v5578
        %v5953 = vpop.xlane.xlu0 %5952
        %5954 = vmax.xlane.f32.xlu0 %v5583
        %v5955 = vpop.xlane.xlu0 %5954
        %5956 = vmax.xlane.f32.xlu0 %v5586
        %v5957 = vpop.xlane.xlu0 %5956
        %5958 = vmax.xlane.f32.xlu0 %v5672
        %v5959 = vpop.xlane.xlu0 %5958
        %5960 = vmax.xlane.f32.xlu0 %v5675
        %v5961 = vpop.xlane.xlu0 %5960
        %5962 = vmax.xlane.f32.xlu0 %v5680
        %v5963 = vpop.xlane.xlu0 %5962
        %5964 = vmax.xlane.f32.xlu0 %v5683
        %v5965 = vpop.xlane.xlu0 %5964
        %5966 = vmax.xlane.f32.xlu0 %v5688
        %v5967 = vpop.xlane.xlu0 %5966
        %5968 = vmax.xlane.f32.xlu0 %v5691
        %v5969 = vpop.xlane.xlu0 %5968
        %5970 = vmax.xlane.f32.xlu0 %v5696
        %v5971 = vpop.xlane.xlu0 %5970
        %5972 = vmax.xlane.f32.xlu0 %v5699
        %v5973 = vpop.xlane.xlu0 %5972
        %5974 = vmax.xlane.f32.xlu0 %v5704
        %v5975 = vpop.xlane.xlu0 %5974
        %5976 = vmax.xlane.f32.xlu0 %v5707
        %v5977 = vpop.xlane.xlu0 %5976
        %5978 = vmax.xlane.f32.xlu0 %v5712
        %v5979 = vpop.xlane.xlu0 %5978
        %5980 = vmax.xlane.f32.xlu0 %v5715
        %v5981 = vpop.xlane.xlu0 %5980
        %5982 = vmax.xlane.f32.xlu0 %v5720
        %v5983 = vpop.xlane.xlu0 %5982
        %5984 = vmax.xlane.f32.xlu0 %v5723
        %v5985 = vpop.xlane.xlu0 %5984
        %5986 = vmax.xlane.f32.xlu0 %v5728
        %v5987 = vpop.xlane.xlu0 %5986
        %5988 = vmax.xlane.f32.xlu0 %v5731
        %v5989 = vpop.xlane.xlu0 %5988
        %v5990 = vsub.f32 %v4657, %v5735
        %v5991 = vsub.f32 %v4660, %v5737
        %v5992 = vsub.f32 %v4665, %v5739
        %v5993 = vsub.f32 %v4668, %v5741
        %v5994 = vsub.f32 %v4673, %v5743
        %v5995 = vsub.f32 %v4676, %v5745
        %v5996 = vsub.f32 %v4681, %v5747
        %v5997 = vsub.f32 %v4684, %v5749
        %v5998 = vsub.f32 %v4689, %v5751
        %v5999 = vsub.f32 %v4692, %v5753
        %v6000 = vsub.f32 %v4697, %v5755
        %v6001 = vsub.f32 %v4700, %v5757
        %v6002 = vsub.f32 %v4705, %v5759
        %v6003 = vsub.f32 %v4708, %v5761
        %v6004 = vsub.f32 %v4713, %v5763
        %v6005 = vsub.f32 %v4716, %v5765
        %v6006 = vsub.f32 %v4802, %v5767
        %v6007 = vsub.f32 %v4805, %v5769
        %v6008 = vsub.f32 %v4810, %v5771
        %v6009 = vsub.f32 %v4813, %v5773
        %v6010 = vsub.f32 %v4818, %v5775
        %v6011 = vsub.f32 %v4821, %v5777
        %v6012 = vsub.f32 %v4826, %v5779
        %v6013 = vsub.f32 %v4829, %v5781
        %v6014 = vsub.f32 %v4834, %v5783
        %v6015 = vsub.f32 %v4837, %v5785
        %v6016 = vsub.f32 %v4842, %v5787
        %v6017 = vsub.f32 %v4845, %v5789
        %v6018 = vsub.f32 %v4850, %v5791
        %v6019 = vsub.f32 %v4853, %v5793
        %v6020 = vsub.f32 %v4858, %v5795
        %v6021 = vsub.f32 %v4861, %v5797
        %v6022 = vsub.f32 %v4947, %v5799
        %v6023 = vsub.f32 %v4950, %v5801
        %v6024 = vsub.f32 %v4955, %v5803
        %v6025 = vsub.f32 %v4958, %v5805
        %v6026 = vsub.f32 %v4963, %v5807
        %v6027 = vsub.f32 %v4966, %v5809
        %v6028 = vsub.f32 %v4971, %v5811
        %v6029 = vsub.f32 %v4974, %v5813
        %v6030 = vsub.f32 %v4979, %v5815
        %v6031 = vsub.f32 %v4982, %v5817
        %v6032 = vsub.f32 %v4987, %v5819
        %v6033 = vsub.f32 %v4990, %v5821
        %v6034 = vsub.f32 %v4995, %v5823
        %v6035 = vsub.f32 %v4998, %v5825
        %v6036 = vsub.f32 %v5003, %v5827
        %v6037 = vsub.f32 %v5006, %v5829
        %v6038 = vsub.f32 %v5092, %v5831
        %v6039 = vsub.f32 %v5095, %v5833
        %v6040 = vsub.f32 %v5100, %v5835
        %v6041 = vsub.f32 %v5103, %v5837
        %v6042 = vsub.f32 %v5108, %v5839
        %v6043 = vsub.f32 %v5111, %v5841
        %v6044 = vsub.f32 %v5116, %v5843
        %v6045 = vsub.f32 %v5119, %v5845
        %v6046 = vsub.f32 %v5124, %v5847
        %v6047 = vsub.f32 %v5127, %v5849
        %v6048 = vsub.f32 %v5132, %v5851
        %v6049 = vsub.f32 %v5135, %v5853
        %v6050 = vsub.f32 %v5140, %v5855
        %v6051 = vsub.f32 %v5143, %v5857
        %v6052 = vsub.f32 %v5148, %v5859
        %v6053 = vsub.f32 %v5151, %v5861
        %v6054 = vsub.f32 %v5237, %v5863
        %v6055 = vsub.f32 %v5240, %v5865
        %v6056 = vsub.f32 %v5245, %v5867
        %v6057 = vsub.f32 %v5248, %v5869
        %v6058 = vsub.f32 %v5253, %v5871
        %v6059 = vsub.f32 %v5256, %v5873
        %v6060 = vsub.f32 %v5261, %v5875
        %v6061 = vsub.f32 %v5264, %v5877
        %v6062 = vsub.f32 %v5269, %v5879
        %v6063 = vsub.f32 %v5272, %v5881
        %v6064 = vsub.f32 %v5277, %v5883
        %v6065 = vsub.f32 %v5280, %v5885
        %v6066 = vsub.f32 %v5285, %v5887
        %v6067 = vsub.f32 %v5288, %v5889
        %v6068 = vsub.f32 %v5293, %v5891
        %v6069 = vsub.f32 %v5296, %v5893
        %v6070 = vsub.f32 %v5382, %v5895
        %v6071 = vsub.f32 %v5385, %v5897
        %v6072 = vsub.f32 %v5390, %v5899
        %v6073 = vsub.f32 %v5393, %v5901
        %v6074 = vsub.f32 %v5398, %v5903
        %v6075 = vsub.f32 %v5401, %v5905
        %v6076 = vsub.f32 %v5406, %v5907
        %v6077 = vsub.f32 %v5409, %v5909
        %v6078 = vsub.f32 %v5414, %v5911
        %v6079 = vsub.f32 %v5417, %v5913
        %v6080 = vsub.f32 %v5422, %v5915
        %v6081 = vsub.f32 %v5425, %v5917
        %v6082 = vsub.f32 %v5430, %v5919
        %v6083 = vsub.f32 %v5433, %v5921
        %v6084 = vsub.f32 %v5438, %v5923
        %v6085 = vsub.f32 %v5441, %v5925
        %v6086 = vsub.f32 %v5527, %v5927
        %v6087 = vsub.f32 %v5530, %v5929
        %v6088 = vsub.f32 %v5535, %v5931
        %v6089 = vsub.f32 %v5538, %v5933
        %v6090 = vsub.f32 %v5543, %v5935
        %v6091 = vsub.f32 %v5546, %v5937
        %v6092 = vsub.f32 %v5551, %v5939
        %v6093 = vsub.f32 %v5554, %v5941
        %v6094 = vsub.f32 %v5559, %v5943
        %v6095 = vsub.f32 %v5562, %v5945
        %v6096 = vsub.f32 %v5567, %v5947
        %v6097 = vsub.f32 %v5570, %v5949
        %v6098 = vsub.f32 %v5575, %v5951
        %v6099 = vsub.f32 %v5578, %v5953
        %v6100 = vsub.f32 %v5583, %v5955
        %v6101 = vsub.f32 %v5586, %v5957
        %v6102 = vsub.f32 %v5672, %v5959
        %v6103 = vsub.f32 %v5675, %v5961
        %v6104 = vsub.f32 %v5680, %v5963
        %v6105 = vsub.f32 %v5683, %v5965
        %v6106 = vsub.f32 %v5688, %v5967
        %v6107 = vsub.f32 %v5691, %v5969
        %v6108 = vsub.f32 %v5696, %v5971
        %v6109 = vsub.f32 %v5699, %v5973
        %v6110 = vsub.f32 %v5704, %v5975
        %v6111 = vsub.f32 %v5707, %v5977
        %v6112 = vsub.f32 %v5712, %v5979
        %v6113 = vsub.f32 %v5715, %v5981
        %v6114 = vsub.f32 %v5720, %v5983
        %v6115 = vsub.f32 %v5723, %v5985
        %v6116 = vsub.f32 %v5728, %v5987
        %v6117 = vsub.f32 %v5731, %v5989
        %v6118 = vmul.f32 %v5990, 1.442695
        %v6119 = vpow.pop %v6118
        %v6120 = vmul.f32 %v5991, 1.442695
        %v6121 = vpow.pop %v6120
        %v6122 = vmul.f32 %v5992, 1.442695
        %v6123 = vpow.pop %v6122
        %v6124 = vmul.f32 %v5993, 1.442695
        %v6125 = vpow.pop %v6124
        %v6126 = vmul.f32 %v5994, 1.442695
        %v6127 = vpow.pop %v6126
        %v6128 = vmul.f32 %v5995, 1.442695
        %v6129 = vpow.pop %v6128
        %v6130 = vmul.f32 %v5996, 1.442695
        %v6131 = vpow.pop %v6130
        %v6132 = vmul.f32 %v5997, 1.442695
        %v6133 = vpow.pop %v6132
        %v6134 = vmul.f32 %v5998, 1.442695
        %v6135 = vpow.pop %v6134
        %v6136 = vmul.f32 %v5999, 1.442695
        %v6137 = vpow.pop %v6136
        %v6138 = vmul.f32 %v6000, 1.442695
        %v6139 = vpow.pop %v6138
        %v6140 = vmul.f32 %v6001, 1.442695
        %v6141 = vpow.pop %v6140
        %v6142 = vmul.f32 %v6002, 1.442695
        %v6143 = vpow.pop %v6142
        %v6144 = vmul.f32 %v6003, 1.442695
        %v6145 = vpow.pop %v6144
        %v6146 = vmul.f32 %v6004, 1.442695
        %v6147 = vpow.pop %v6146
        %v6148 = vmul.f32 %v6005, 1.442695
        %v6149 = vpow.pop %v6148
        %v6150 = vmul.f32 %v6006, 1.442695
        %v6151 = vpow.pop %v6150
        %v6152 = vmul.f32 %v6007, 1.442695
        %v6153 = vpow.pop %v6152
        %v6154 = vmul.f32 %v6008, 1.442695
        %v6155 = vpow.pop %v6154
        %v6156 = vmul.f32 %v6009, 1.442695
        %v6157 = vpow.pop %v6156
        %v6158 = vmul.f32 %v6010, 1.442695
        %v6159 = vpow.pop %v6158
        %v6160 = vmul.f32 %v6011, 1.442695
        %v6161 = vpow.pop %v6160
        %v6162 = vmul.f32 %v6012, 1.442695
        %v6163 = vpow.pop %v6162
        %v6164 = vmul.f32 %v6013, 1.442695
        %v6165 = vpow.pop %v6164
        %v6166 = vmul.f32 %v6014, 1.442695
        %v6167 = vpow.pop %v6166
        %v6168 = vmul.f32 %v6015, 1.442695
        %v6169 = vpow.pop %v6168
        %v6170 = vmul.f32 %v6016, 1.442695
        %v6171 = vpow.pop %v6170
        %v6172 = vmul.f32 %v6017, 1.442695
        %v6173 = vpow.pop %v6172
        %v6174 = vmul.f32 %v6018, 1.442695
        %v6175 = vpow.pop %v6174
        %v6176 = vmul.f32 %v6019, 1.442695
        %v6177 = vpow.pop %v6176
        %v6178 = vmul.f32 %v6020, 1.442695
        %v6179 = vpow.pop %v6178
        %v6180 = vmul.f32 %v6021, 1.442695
        %v6181 = vpow.pop %v6180
        %v6182 = vmul.f32 %v6022, 1.442695
        %v6183 = vpow.pop %v6182
        %v6184 = vmul.f32 %v6023, 1.442695
        %v6185 = vpow.pop %v6184
        %v6186 = vmul.f32 %v6024, 1.442695
        %v6187 = vpow.pop %v6186
        %v6188 = vmul.f32 %v6025, 1.442695
        %v6189 = vpow.pop %v6188
        %v6190 = vmul.f32 %v6026, 1.442695
        %v6191 = vpow.pop %v6190
        %v6192 = vmul.f32 %v6027, 1.442695
        %v6193 = vpow.pop %v6192
        %v6194 = vmul.f32 %v6028, 1.442695
        %v6195 = vpow.pop %v6194
        %v6196 = vmul.f32 %v6029, 1.442695
        %v6197 = vpow.pop %v6196
        %v6198 = vmul.f32 %v6030, 1.442695
        %v6199 = vpow.pop %v6198
        %v6200 = vmul.f32 %v6031, 1.442695
        %v6201 = vpow.pop %v6200
        %v6202 = vmul.f32 %v6032, 1.442695
        %v6203 = vpow.pop %v6202
        %v6204 = vmul.f32 %v6033, 1.442695
        %v6205 = vpow.pop %v6204
        %v6206 = vmul.f32 %v6034, 1.442695
        %v6207 = vpow.pop %v6206
        %v6208 = vmul.f32 %v6035, 1.442695
        %v6209 = vpow.pop %v6208
        %v6210 = vmul.f32 %v6036, 1.442695
        %v6211 = vpow.pop %v6210
        %v6212 = vmul.f32 %v6037, 1.442695
        %v6213 = vpow.pop %v6212
        %v6214 = vmul.f32 %v6038, 1.442695
        %v6215 = vpow.pop %v6214
        %v6216 = vmul.f32 %v6039, 1.442695
        %v6217 = vpow.pop %v6216
        %v6218 = vmul.f32 %v6040, 1.442695
        %v6219 = vpow.pop %v6218
        %v6220 = vmul.f32 %v6041, 1.442695
        %v6221 = vpow.pop %v6220
        %v6222 = vmul.f32 %v6042, 1.442695
        %v6223 = vpow.pop %v6222
        %v6224 = vmul.f32 %v6043, 1.442695
        %v6225 = vpow.pop %v6224
        %v6226 = vmul.f32 %v6044, 1.442695
        %v6227 = vpow.pop %v6226
        %v6228 = vmul.f32 %v6045, 1.442695
        %v6229 = vpow.pop %v6228
        %v6230 = vmul.f32 %v6046, 1.442695
        %v6231 = vpow.pop %v6230
        %v6232 = vmul.f32 %v6047, 1.442695
        %v6233 = vpow.pop %v6232
        %v6234 = vmul.f32 %v6048, 1.442695
        %v6235 = vpow.pop %v6234
        %v6236 = vmul.f32 %v6049, 1.442695
        %v6237 = vpow.pop %v6236
        %v6238 = vmul.f32 %v6050, 1.442695
        %v6239 = vpow.pop %v6238
        %v6240 = vmul.f32 %v6051, 1.442695
        %v6241 = vpow.pop %v6240
        %v6242 = vmul.f32 %v6052, 1.442695
        %v6243 = vpow.pop %v6242
        %v6244 = vmul.f32 %v6053, 1.442695
        %v6245 = vpow.pop %v6244
        %v6246 = vmul.f32 %v6054, 1.442695
        %v6247 = vpow.pop %v6246
        %v6248 = vmul.f32 %v6055, 1.442695
        %v6249 = vpow.pop %v6248
        %v6250 = vmul.f32 %v6056, 1.442695
        %v6251 = vpow.pop %v6250
        %v6252 = vmul.f32 %v6057, 1.442695
        %v6253 = vpow.pop %v6252
        %v6254 = vmul.f32 %v6058, 1.442695
        %v6255 = vpow.pop %v6254
        %v6256 = vmul.f32 %v6059, 1.442695
        %v6257 = vpow.pop %v6256
        %v6258 = vmul.f32 %v6060, 1.442695
        %v6259 = vpow.pop %v6258
        %v6260 = vmul.f32 %v6061, 1.442695
        %v6261 = vpow.pop %v6260
        %v6262 = vmul.f32 %v6062, 1.442695
        %v6263 = vpow.pop %v6262
        %v6264 = vmul.f32 %v6063, 1.442695
        %v6265 = vpow.pop %v6264
        %v6266 = vmul.f32 %v6064, 1.442695
        %v6267 = vpow.pop %v6266
        %v6268 = vmul.f32 %v6065, 1.442695
        %v6269 = vpow.pop %v6268
        %v6270 = vmul.f32 %v6066, 1.442695
        %v6271 = vpow.pop %v6270
        %v6272 = vmul.f32 %v6067, 1.442695
        %v6273 = vpow.pop %v6272
        %v6274 = vmul.f32 %v6068, 1.442695
        %v6275 = vpow.pop %v6274
        %v6276 = vmul.f32 %v6069, 1.442695
        %v6277 = vpow.pop %v6276
        %v6278 = vmul.f32 %v6070, 1.442695
        %v6279 = vpow.pop %v6278
        %v6280 = vmul.f32 %v6071, 1.442695
        %v6281 = vpow.pop %v6280
        %v6282 = vmul.f32 %v6072, 1.442695
        %v6283 = vpow.pop %v6282
        %v6284 = vmul.f32 %v6073, 1.442695
        %v6285 = vpow.pop %v6284
        %v6286 = vmul.f32 %v6074, 1.442695
        %v6287 = vpow.pop %v6286
        %v6288 = vmul.f32 %v6075, 1.442695
        %v6289 = vpow.pop %v6288
        %v6290 = vmul.f32 %v6076, 1.442695
        %v6291 = vpow.pop %v6290
        %v6292 = vmul.f32 %v6077, 1.442695
        %v6293 = vpow.pop %v6292
        %v6294 = vmul.f32 %v6078, 1.442695
        %v6295 = vpow.pop %v6294
        %v6296 = vmul.f32 %v6079, 1.442695
        %v6297 = vpow.pop %v6296
        %v6298 = vmul.f32 %v6080, 1.442695
        %v6299 = vpow.pop %v6298
        %v6300 = vmul.f32 %v6081, 1.442695
        %v6301 = vpow.pop %v6300
        %v6302 = vmul.f32 %v6082, 1.442695
        %v6303 = vpow.pop %v6302
        %v6304 = vmul.f32 %v6083, 1.442695
        %v6305 = vpow.pop %v6304
        %v6306 = vmul.f32 %v6084, 1.442695
        %v6307 = vpow.pop %v6306
        %v6308 = vmul.f32 %v6085, 1.442695
        %v6309 = vpow.pop %v6308
        %v6310 = vmul.f32 %v6086, 1.442695
        %v6311 = vpow.pop %v6310
        %v6312 = vmul.f32 %v6087, 1.442695
        %v6313 = vpow.pop %v6312
        %v6314 = vmul.f32 %v6088, 1.442695
        %v6315 = vpow.pop %v6314
        %v6316 = vmul.f32 %v6089, 1.442695
        %v6317 = vpow.pop %v6316
        %v6318 = vmul.f32 %v6090, 1.442695
        %v6319 = vpow.pop %v6318
        %v6320 = vmul.f32 %v6091, 1.442695
        %v6321 = vpow.pop %v6320
        %v6322 = vmul.f32 %v6092, 1.442695
        %v6323 = vpow.pop %v6322
        %v6324 = vmul.f32 %v6093, 1.442695
        %v6325 = vpow.pop %v6324
        %v6326 = vmul.f32 %v6094, 1.442695
        %v6327 = vpow.pop %v6326
        %v6328 = vmul.f32 %v6095, 1.442695
        %v6329 = vpow.pop %v6328
        %v6330 = vmul.f32 %v6096, 1.442695
        %v6331 = vpow.pop %v6330
        %v6332 = vmul.f32 %v6097, 1.442695
        %v6333 = vpow.pop %v6332
        %v6334 = vmul.f32 %v6098, 1.442695
        %v6335 = vpow.pop %v6334
        %v6336 = vmul.f32 %v6099, 1.442695
        %v6337 = vpow.pop %v6336
        %v6338 = vmul.f32 %v6100, 1.442695
        %v6339 = vpow.pop %v6338
        %v6340 = vmul.f32 %v6101, 1.442695
        %v6341 = vpow.pop %v6340
        %v6342 = vmul.f32 %v6102, 1.442695
        %v6343 = vpow.pop %v6342
        %v6344 = vmul.f32 %v6103, 1.442695
        %v6345 = vpow.pop %v6344
        %v6346 = vmul.f32 %v6104, 1.442695
        %v6347 = vpow.pop %v6346
        %v6348 = vmul.f32 %v6105, 1.442695
        %v6349 = vpow.pop %v6348
        %v6350 = vmul.f32 %v6106, 1.442695
        %v6351 = vpow.pop %v6350
        %v6352 = vmul.f32 %v6107, 1.442695
        %v6353 = vpow.pop %v6352
        %v6354 = vmul.f32 %v6108, 1.442695
        %v6355 = vpow.pop %v6354
        %v6356 = vmul.f32 %v6109, 1.442695
        %v6357 = vpow.pop %v6356
        %v6358 = vmul.f32 %v6110, 1.442695
        %v6359 = vpow.pop %v6358
        %v6360 = vmul.f32 %v6111, 1.442695
        %v6361 = vpow.pop %v6360
        %v6362 = vmul.f32 %v6112, 1.442695
        %v6363 = vpow.pop %v6362
        %v6364 = vmul.f32 %v6113, 1.442695
        %v6365 = vpow.pop %v6364
        %v6366 = vmul.f32 %v6114, 1.442695
        %v6367 = vpow.pop %v6366
        %v6368 = vmul.f32 %v6115, 1.442695
        %v6369 = vpow.pop %v6368
        %v6370 = vmul.f32 %v6116, 1.442695
        %v6371 = vpow.pop %v6370
        %v6372 = vmul.f32 %v6117, 1.442695
        %v6373 = vpow.pop %v6372
        %6374 = vadd.xlane.f32.xlu0 %v6119
        %v6375 = vpop.xlane.xlu0 %6374
        %6376 = vadd.xlane.f32.xlu0 %v6121
        %v6377 = vpop.xlane.xlu0 %6376
        %6378 = vadd.xlane.f32.xlu0 %v6123
        %v6379 = vpop.xlane.xlu0 %6378
        %6380 = vadd.xlane.f32.xlu0 %v6125
        %v6381 = vpop.xlane.xlu0 %6380
        %6382 = vadd.xlane.f32.xlu0 %v6127
        %v6383 = vpop.xlane.xlu0 %6382
        %6384 = vadd.xlane.f32.xlu0 %v6129
        %v6385 = vpop.xlane.xlu0 %6384
        %6386 = vadd.xlane.f32.xlu0 %v6131
        %v6387 = vpop.xlane.xlu0 %6386
        %6388 = vadd.xlane.f32.xlu0 %v6133
        %v6389 = vpop.xlane.xlu0 %6388
        %6390 = vadd.xlane.f32.xlu0 %v6135
        %v6391 = vpop.xlane.xlu0 %6390
        %6392 = vadd.xlane.f32.xlu0 %v6137
        %v6393 = vpop.xlane.xlu0 %6392
        %6394 = vadd.xlane.f32.xlu0 %v6139
        %v6395 = vpop.xlane.xlu0 %6394
        %6396 = vadd.xlane.f32.xlu0 %v6141
        %v6397 = vpop.xlane.xlu0 %6396
        %6398 = vadd.xlane.f32.xlu0 %v6143
        %v6399 = vpop.xlane.xlu0 %6398
        %6400 = vadd.xlane.f32.xlu0 %v6145
        %v6401 = vpop.xlane.xlu0 %6400
        %6402 = vadd.xlane.f32.xlu0 %v6147
        %v6403 = vpop.xlane.xlu0 %6402
        %6404 = vadd.xlane.f32.xlu0 %v6149
        %v6405 = vpop.xlane.xlu0 %6404
        %6406 = vadd.xlane.f32.xlu0 %v6151
        %v6407 = vpop.xlane.xlu0 %6406
        %6408 = vadd.xlane.f32.xlu0 %v6153
        %v6409 = vpop.xlane.xlu0 %6408
        %6410 = vadd.xlane.f32.xlu0 %v6155
        %v6411 = vpop.xlane.xlu0 %6410
        %6412 = vadd.xlane.f32.xlu0 %v6157
        %v6413 = vpop.xlane.xlu0 %6412
        %6414 = vadd.xlane.f32.xlu0 %v6159
        %v6415 = vpop.xlane.xlu0 %6414
        %6416 = vadd.xlane.f32.xlu0 %v6161
        %v6417 = vpop.xlane.xlu0 %6416
        %6418 = vadd.xlane.f32.xlu0 %v6163
        %v6419 = vpop.xlane.xlu0 %6418
        %6420 = vadd.xlane.f32.xlu0 %v6165
        %v6421 = vpop.xlane.xlu0 %6420
        %6422 = vadd.xlane.f32.xlu0 %v6167
        %v6423 = vpop.xlane.xlu0 %6422
        %6424 = vadd.xlane.f32.xlu0 %v6169
        %v6425 = vpop.xlane.xlu0 %6424
        %6426 = vadd.xlane.f32.xlu0 %v6171
        %v6427 = vpop.xlane.xlu0 %6426
        %6428 = vadd.xlane.f32.xlu0 %v6173
        %v6429 = vpop.xlane.xlu0 %6428
        %6430 = vadd.xlane.f32.xlu0 %v6175
        %v6431 = vpop.xlane.xlu0 %6430
        %6432 = vadd.xlane.f32.xlu0 %v6177
        %v6433 = vpop.xlane.xlu0 %6432
        %6434 = vadd.xlane.f32.xlu0 %v6179
        %v6435 = vpop.xlane.xlu0 %6434
        %6436 = vadd.xlane.f32.xlu0 %v6181
        %v6437 = vpop.xlane.xlu0 %6436
        %6438 = vadd.xlane.f32.xlu0 %v6183
        %v6439 = vpop.xlane.xlu0 %6438
        %6440 = vadd.xlane.f32.xlu0 %v6185
        %v6441 = vpop.xlane.xlu0 %6440
        %6442 = vadd.xlane.f32.xlu0 %v6187
        %v6443 = vpop.xlane.xlu0 %6442
        %6444 = vadd.xlane.f32.xlu0 %v6189
        %v6445 = vpop.xlane.xlu0 %6444
        %6446 = vadd.xlane.f32.xlu0 %v6191
        %v6447 = vpop.xlane.xlu0 %6446
        %6448 = vadd.xlane.f32.xlu0 %v6193
        %v6449 = vpop.xlane.xlu0 %6448
        %6450 = vadd.xlane.f32.xlu0 %v6195
        %v6451 = vpop.xlane.xlu0 %6450
        %6452 = vadd.xlane.f32.xlu0 %v6197
        %v6453 = vpop.xlane.xlu0 %6452
        %6454 = vadd.xlane.f32.xlu0 %v6199
        %v6455 = vpop.xlane.xlu0 %6454
        %6456 = vadd.xlane.f32.xlu0 %v6201
        %v6457 = vpop.xlane.xlu0 %6456
        %6458 = vadd.xlane.f32.xlu0 %v6203
        %v6459 = vpop.xlane.xlu0 %6458
        %6460 = vadd.xlane.f32.xlu0 %v6205
        %v6461 = vpop.xlane.xlu0 %6460
        %6462 = vadd.xlane.f32.xlu0 %v6207
        %v6463 = vpop.xlane.xlu0 %6462
        %6464 = vadd.xlane.f32.xlu0 %v6209
        %v6465 = vpop.xlane.xlu0 %6464
        %6466 = vadd.xlane.f32.xlu0 %v6211
        %v6467 = vpop.xlane.xlu0 %6466
        %6468 = vadd.xlane.f32.xlu0 %v6213
        %v6469 = vpop.xlane.xlu0 %6468
        %6470 = vadd.xlane.f32.xlu0 %v6215
        %v6471 = vpop.xlane.xlu0 %6470
        %6472 = vadd.xlane.f32.xlu0 %v6217
        %v6473 = vpop.xlane.xlu0 %6472
        %6474 = vadd.xlane.f32.xlu0 %v6219
        %v6475 = vpop.xlane.xlu0 %6474
        %6476 = vadd.xlane.f32.xlu0 %v6221
        %v6477 = vpop.xlane.xlu0 %6476
        %6478 = vadd.xlane.f32.xlu0 %v6223
        %v6479 = vpop.xlane.xlu0 %6478
        %6480 = vadd.xlane.f32.xlu0 %v6225
        %v6481 = vpop.xlane.xlu0 %6480
        %6482 = vadd.xlane.f32.xlu0 %v6227
        %v6483 = vpop.xlane.xlu0 %6482
        %6484 = vadd.xlane.f32.xlu0 %v6229
        %v6485 = vpop.xlane.xlu0 %6484
        %6486 = vadd.xlane.f32.xlu0 %v6231
        %v6487 = vpop.xlane.xlu0 %6486
        %6488 = vadd.xlane.f32.xlu0 %v6233
        %v6489 = vpop.xlane.xlu0 %6488
        %6490 = vadd.xlane.f32.xlu0 %v6235
        %v6491 = vpop.xlane.xlu0 %6490
        %6492 = vadd.xlane.f32.xlu0 %v6237
        %v6493 = vpop.xlane.xlu0 %6492
        %6494 = vadd.xlane.f32.xlu0 %v6239
        %v6495 = vpop.xlane.xlu0 %6494
        %6496 = vadd.xlane.f32.xlu0 %v6241
        %v6497 = vpop.xlane.xlu0 %6496
        %6498 = vadd.xlane.f32.xlu0 %v6243
        %v6499 = vpop.xlane.xlu0 %6498
        %6500 = vadd.xlane.f32.xlu0 %v6245
        %v6501 = vpop.xlane.xlu0 %6500
        %6502 = vadd.xlane.f32.xlu0 %v6247
        %v6503 = vpop.xlane.xlu0 %6502
        %6504 = vadd.xlane.f32.xlu0 %v6249
        %v6505 = vpop.xlane.xlu0 %6504
        %6506 = vadd.xlane.f32.xlu0 %v6251
        %v6507 = vpop.xlane.xlu0 %6506
        %6508 = vadd.xlane.f32.xlu0 %v6253
        %v6509 = vpop.xlane.xlu0 %6508
        %6510 = vadd.xlane.f32.xlu0 %v6255
        %v6511 = vpop.xlane.xlu0 %6510
        %6512 = vadd.xlane.f32.xlu0 %v6257
        %v6513 = vpop.xlane.xlu0 %6512
        %6514 = vadd.xlane.f32.xlu0 %v6259
        %v6515 = vpop.xlane.xlu0 %6514
        %6516 = vadd.xlane.f32.xlu0 %v6261
        %v6517 = vpop.xlane.xlu0 %6516
        %6518 = vadd.xlane.f32.xlu0 %v6263
        %v6519 = vpop.xlane.xlu0 %6518
        %6520 = vadd.xlane.f32.xlu0 %v6265
        %v6521 = vpop.xlane.xlu0 %6520
        %6522 = vadd.xlane.f32.xlu0 %v6267
        %v6523 = vpop.xlane.xlu0 %6522
        %6524 = vadd.xlane.f32.xlu0 %v6269
        %v6525 = vpop.xlane.xlu0 %6524
        %6526 = vadd.xlane.f32.xlu0 %v6271
        %v6527 = vpop.xlane.xlu0 %6526
        %6528 = vadd.xlane.f32.xlu0 %v6273
        %v6529 = vpop.xlane.xlu0 %6528
        %6530 = vadd.xlane.f32.xlu0 %v6275
        %v6531 = vpop.xlane.xlu0 %6530
        %6532 = vadd.xlane.f32.xlu0 %v6277
        %v6533 = vpop.xlane.xlu0 %6532
        %6534 = vadd.xlane.f32.xlu0 %v6279
        %v6535 = vpop.xlane.xlu0 %6534
        %6536 = vadd.xlane.f32.xlu0 %v6281
        %v6537 = vpop.xlane.xlu0 %6536
        %6538 = vadd.xlane.f32.xlu0 %v6283
        %v6539 = vpop.xlane.xlu0 %6538
        %6540 = vadd.xlane.f32.xlu0 %v6285
        %v6541 = vpop.xlane.xlu0 %6540
        %6542 = vadd.xlane.f32.xlu0 %v6287
        %v6543 = vpop.xlane.xlu0 %6542
        %6544 = vadd.xlane.f32.xlu0 %v6289
        %v6545 = vpop.xlane.xlu0 %6544
        %6546 = vadd.xlane.f32.xlu0 %v6291
        %v6547 = vpop.xlane.xlu0 %6546
        %6548 = vadd.xlane.f32.xlu0 %v6293
        %v6549 = vpop.xlane.xlu0 %6548
        %6550 = vadd.xlane.f32.xlu0 %v6295
        %v6551 = vpop.xlane.xlu0 %6550
        %6552 = vadd.xlane.f32.xlu0 %v6297
        %v6553 = vpop.xlane.xlu0 %6552
        %6554 = vadd.xlane.f32.xlu0 %v6299
        %v6555 = vpop.xlane.xlu0 %6554
        %6556 = vadd.xlane.f32.xlu0 %v6301
        %v6557 = vpop.xlane.xlu0 %6556
        %6558 = vadd.xlane.f32.xlu0 %v6303
        %v6559 = vpop.xlane.xlu0 %6558
        %6560 = vadd.xlane.f32.xlu0 %v6305
        %v6561 = vpop.xlane.xlu0 %6560
        %6562 = vadd.xlane.f32.xlu0 %v6307
        %v6563 = vpop.xlane.xlu0 %6562
        %6564 = vadd.xlane.f32.xlu0 %v6309
        %v6565 = vpop.xlane.xlu0 %6564
        %6566 = vadd.xlane.f32.xlu0 %v6311
        %v6567 = vpop.xlane.xlu0 %6566
        %6568 = vadd.xlane.f32.xlu0 %v6313
        %v6569 = vpop.xlane.xlu0 %6568
        %6570 = vadd.xlane.f32.xlu0 %v6315
        %v6571 = vpop.xlane.xlu0 %6570
        %6572 = vadd.xlane.f32.xlu0 %v6317
        %v6573 = vpop.xlane.xlu0 %6572
        %6574 = vadd.xlane.f32.xlu0 %v6319
        %v6575 = vpop.xlane.xlu0 %6574
        %6576 = vadd.xlane.f32.xlu0 %v6321
        %v6577 = vpop.xlane.xlu0 %6576
        %6578 = vadd.xlane.f32.xlu0 %v6323
        %v6579 = vpop.xlane.xlu0 %6578
        %6580 = vadd.xlane.f32.xlu0 %v6325
        %v6581 = vpop.xlane.xlu0 %6580
        %6582 = vadd.xlane.f32.xlu0 %v6327
        %v6583 = vpop.xlane.xlu0 %6582
        %6584 = vadd.xlane.f32.xlu0 %v6329
        %v6585 = vpop.xlane.xlu0 %6584
        %6586 = vadd.xlane.f32.xlu0 %v6331
        %v6587 = vpop.xlane.xlu0 %6586
        %6588 = vadd.xlane.f32.xlu0 %v6333
        %v6589 = vpop.xlane.xlu0 %6588
        %6590 = vadd.xlane.f32.xlu0 %v6335
        %v6591 = vpop.xlane.xlu0 %6590
        %6592 = vadd.xlane.f32.xlu0 %v6337
        %v6593 = vpop.xlane.xlu0 %6592
        %6594 = vadd.xlane.f32.xlu0 %v6339
        %v6595 = vpop.xlane.xlu0 %6594
        %6596 = vadd.xlane.f32.xlu0 %v6341
        %v6597 = vpop.xlane.xlu0 %6596
        %6598 = vadd.xlane.f32.xlu0 %v6343
        %v6599 = vpop.xlane.xlu0 %6598
        %6600 = vadd.xlane.f32.xlu0 %v6345
        %v6601 = vpop.xlane.xlu0 %6600
        %6602 = vadd.xlane.f32.xlu0 %v6347
        %v6603 = vpop.xlane.xlu0 %6602
        %6604 = vadd.xlane.f32.xlu0 %v6349
        %v6605 = vpop.xlane.xlu0 %6604
        %6606 = vadd.xlane.f32.xlu0 %v6351
        %v6607 = vpop.xlane.xlu0 %6606
        %6608 = vadd.xlane.f32.xlu0 %v6353
        %v6609 = vpop.xlane.xlu0 %6608
        %6610 = vadd.xlane.f32.xlu0 %v6355
        %v6611 = vpop.xlane.xlu0 %6610
        %6612 = vadd.xlane.f32.xlu0 %v6357
        %v6613 = vpop.xlane.xlu0 %6612
        %6614 = vadd.xlane.f32.xlu0 %v6359
        %v6615 = vpop.xlane.xlu0 %6614
        %6616 = vadd.xlane.f32.xlu0 %v6361
        %v6617 = vpop.xlane.xlu0 %6616
        %6618 = vadd.xlane.f32.xlu0 %v6363
        %v6619 = vpop.xlane.xlu0 %6618
        %6620 = vadd.xlane.f32.xlu0 %v6365
        %v6621 = vpop.xlane.xlu0 %6620
        %6622 = vadd.xlane.f32.xlu0 %v6367
        %v6623 = vpop.xlane.xlu0 %6622
        %6624 = vadd.xlane.f32.xlu0 %v6369
        %v6625 = vpop.xlane.xlu0 %6624
        %6626 = vadd.xlane.f32.xlu0 %v6371
        %v6627 = vpop.xlane.xlu0 %6626
        %6628 = vadd.xlane.f32.xlu0 %v6373
        %v6629 = vpop.xlane.xlu0 %6628
        %v6630 = vrcp.pop %v6375
        %v6631 = vrcp.pop %v6377
        %v6632 = vrcp.pop %v6379
        %v6633 = vrcp.pop %v6381
        %v6634 = vrcp.pop %v6383
        %v6635 = vrcp.pop %v6385
        %v6636 = vrcp.pop %v6387
        %v6637 = vrcp.pop %v6389
        %v6638 = vrcp.pop %v6391
        %v6639 = vrcp.pop %v6393
        %v6640 = vrcp.pop %v6395
        %v6641 = vrcp.pop %v6397
        %v6642 = vrcp.pop %v6399
        %v6643 = vrcp.pop %v6401
        %v6644 = vrcp.pop %v6403
        %v6645 = vrcp.pop %v6405
        %v6646 = vrcp.pop %v6407
        %v6647 = vrcp.pop %v6409
        %v6648 = vrcp.pop %v6411
        %v6649 = vrcp.pop %v6413
        %v6650 = vrcp.pop %v6415
        %v6651 = vrcp.pop %v6417
        %v6652 = vrcp.pop %v6419
        %v6653 = vrcp.pop %v6421
        %v6654 = vrcp.pop %v6423
        %v6655 = vrcp.pop %v6425
        %v6656 = vrcp.pop %v6427
        %v6657 = vrcp.pop %v6429
        %v6658 = vrcp.pop %v6431
        %v6659 = vrcp.pop %v6433
        %v6660 = vrcp.pop %v6435
        %v6661 = vrcp.pop %v6437
        %v6662 = vrcp.pop %v6439
        %v6663 = vrcp.pop %v6441
        %v6664 = vrcp.pop %v6443
        %v6665 = vrcp.pop %v6445
        %v6666 = vrcp.pop %v6447
        %v6667 = vrcp.pop %v6449
        %v6668 = vrcp.pop %v6451
        %v6669 = vrcp.pop %v6453
        %v6670 = vrcp.pop %v6455
        %v6671 = vrcp.pop %v6457
        %v6672 = vrcp.pop %v6459
        %v6673 = vrcp.pop %v6461
        %v6674 = vrcp.pop %v6463
        %v6675 = vrcp.pop %v6465
        %v6676 = vrcp.pop %v6467
        %v6677 = vrcp.pop %v6469
        %v6678 = vrcp.pop %v6471
        %v6679 = vrcp.pop %v6473
        %v6680 = vrcp.pop %v6475
        %v6681 = vrcp.pop %v6477
        %v6682 = vrcp.pop %v6479
        %v6683 = vrcp.pop %v6481
        %v6684 = vrcp.pop %v6483
        %v6685 = vrcp.pop %v6485
        %v6686 = vrcp.pop %v6487
        %v6687 = vrcp.pop %v6489
        %v6688 = vrcp.pop %v6491
        %v6689 = vrcp.pop %v6493
        %v6690 = vrcp.pop %v6495
        %v6691 = vrcp.pop %v6497
        %v6692 = vrcp.pop %v6499
        %v6693 = vrcp.pop %v6501
        %v6694 = vrcp.pop %v6503
        %v6695 = vrcp.pop %v6505
        %v6696 = vrcp.pop %v6507
        %v6697 = vrcp.pop %v6509
        %v6698 = vrcp.pop %v6511
        %v6699 = vrcp.pop %v6513
        %v6700 = vrcp.pop %v6515
        %v6701 = vrcp.pop %v6517
        %v6702 = vrcp.pop %v6519
        %v6703 = vrcp.pop %v6521
        %v6704 = vrcp.pop %v6523
        %v6705 = vrcp.pop %v6525
        %v6706 = vrcp.pop %v6527
        %v6707 = vrcp.pop %v6529
        %v6708 = vrcp.pop %v6531
        %v6709 = vrcp.pop %v6533
        %v6710 = vrcp.pop %v6535
        %v6711 = vrcp.pop %v6537
        %v6712 = vrcp.pop %v6539
        %v6713 = vrcp.pop %v6541
        %v6714 = vrcp.pop %v6543
        %v6715 = vrcp.pop %v6545
        %v6716 = vrcp.pop %v6547
        %v6717 = vrcp.pop %v6549
        %v6718 = vrcp.pop %v6551
        %v6719 = vrcp.pop %v6553
        %v6720 = vrcp.pop %v6555
        %v6721 = vrcp.pop %v6557
        %v6722 = vrcp.pop %v6559
        %v6723 = vrcp.pop %v6561
        %v6724 = vrcp.pop %v6563
        %v6725 = vrcp.pop %v6565
        %v6726 = vrcp.pop %v6567
        %v6727 = vrcp.pop %v6569
        %v6728 = vrcp.pop %v6571
        %v6729 = vrcp.pop %v6573
        %v6730 = vrcp.pop %v6575
        %v6731 = vrcp.pop %v6577
        %v6732 = vrcp.pop %v6579
        %v6733 = vrcp.pop %v6581
        %v6734 = vrcp.pop %v6583
        %v6735 = vrcp.pop %v6585
        %v6736 = vrcp.pop %v6587
        %v6737 = vrcp.pop %v6589
        %v6738 = vrcp.pop %v6591
        %v6739 = vrcp.pop %v6593
        %v6740 = vrcp.pop %v6595
        %v6741 = vrcp.pop %v6597
        %v6742 = vrcp.pop %v6599
        %v6743 = vrcp.pop %v6601
        %v6744 = vrcp.pop %v6603
        %v6745 = vrcp.pop %v6605
        %v6746 = vrcp.pop %v6607
        %v6747 = vrcp.pop %v6609
        %v6748 = vrcp.pop %v6611
        %v6749 = vrcp.pop %v6613
        %v6750 = vrcp.pop %v6615
        %v6751 = vrcp.pop %v6617
        %v6752 = vrcp.pop %v6619
        %v6753 = vrcp.pop %v6621
        %v6754 = vrcp.pop %v6623
        %v6755 = vrcp.pop %v6625
        %v6756 = vrcp.pop %v6627
        %v6757 = vrcp.pop %v6629
        %v6758 = vmul.f32 %v6119, %v6630
        %v6759 = vmul.f32 %v6121, %v6631
        %v6760 = vmul.f32 %v6123, %v6632
        %v6761 = vmul.f32 %v6125, %v6633
        %v6762 = vmul.f32 %v6127, %v6634
        %v6763 = vmul.f32 %v6129, %v6635
        %v6764 = vmul.f32 %v6131, %v6636
        %v6765 = vmul.f32 %v6133, %v6637
        %v6766 = vmul.f32 %v6135, %v6638
        %v6767 = vmul.f32 %v6137, %v6639
        %v6768 = vmul.f32 %v6139, %v6640
        %v6769 = vmul.f32 %v6141, %v6641
        %v6770 = vmul.f32 %v6143, %v6642
        %v6771 = vmul.f32 %v6145, %v6643
        %v6772 = vmul.f32 %v6147, %v6644
        %v6773 = vmul.f32 %v6149, %v6645
        %v6774 = vmul.f32 %v6151, %v6646
        %v6775 = vmul.f32 %v6153, %v6647
        %v6776 = vmul.f32 %v6155, %v6648
        %v6777 = vmul.f32 %v6157, %v6649
        %v6778 = vmul.f32 %v6159, %v6650
        %v6779 = vmul.f32 %v6161, %v6651
        %v6780 = vmul.f32 %v6163, %v6652
        %v6781 = vmul.f32 %v6165, %v6653
        %v6782 = vmul.f32 %v6167, %v6654
        %v6783 = vmul.f32 %v6169, %v6655
        %v6784 = vmul.f32 %v6171, %v6656
        %v6785 = vmul.f32 %v6173, %v6657
        %v6786 = vmul.f32 %v6175, %v6658
        %v6787 = vmul.f32 %v6177, %v6659
        %v6788 = vmul.f32 %v6179, %v6660
        %v6789 = vmul.f32 %v6181, %v6661
        %v6790 = vmul.f32 %v6183, %v6662
        %v6791 = vmul.f32 %v6185, %v6663
        %v6792 = vmul.f32 %v6187, %v6664
        %v6793 = vmul.f32 %v6189, %v6665
        %v6794 = vmul.f32 %v6191, %v6666
        %v6795 = vmul.f32 %v6193, %v6667
        %v6796 = vmul.f32 %v6195, %v6668
        %v6797 = vmul.f32 %v6197, %v6669
        %v6798 = vmul.f32 %v6199, %v6670
        %v6799 = vmul.f32 %v6201, %v6671
        %v6800 = vmul.f32 %v6203, %v6672
        %v6801 = vmul.f32 %v6205, %v6673
        %v6802 = vmul.f32 %v6207, %v6674
        %v6803 = vmul.f32 %v6209, %v6675
        %v6804 = vmul.f32 %v6211, %v6676
        %v6805 = vmul.f32 %v6213, %v6677
        %v6806 = vmul.f32 %v6215, %v6678
        %v6807 = vmul.f32 %v6217, %v6679
        %v6808 = vmul.f32 %v6219, %v6680
        %v6809 = vmul.f32 %v6221, %v6681
        %v6810 = vmul.f32 %v6223, %v6682
        %v6811 = vmul.f32 %v6225, %v6683
        %v6812 = vmul.f32 %v6227, %v6684
        %v6813 = vmul.f32 %v6229, %v6685
        %v6814 = vmul.f32 %v6231, %v6686
        %v6815 = vmul.f32 %v6233, %v6687
        %v6816 = vmul.f32 %v6235, %v6688
        %v6817 = vmul.f32 %v6237, %v6689
        %v6818 = vmul.f32 %v6239, %v6690
        %v6819 = vmul.f32 %v6241, %v6691
        %v6820 = vmul.f32 %v6243, %v6692
        %v6821 = vmul.f32 %v6245, %v6693
        %v6822 = vmul.f32 %v6247, %v6694
        %v6823 = vmul.f32 %v6249, %v6695
        %v6824 = vmul.f32 %v6251, %v6696
        %v6825 = vmul.f32 %v6253, %v6697
        %v6826 = vmul.f32 %v6255, %v6698
        %v6827 = vmul.f32 %v6257, %v6699
        %v6828 = vmul.f32 %v6259, %v6700
        %v6829 = vmul.f32 %v6261, %v6701
        %v6830 = vmul.f32 %v6263, %v6702
        %v6831 = vmul.f32 %v6265, %v6703
        %v6832 = vmul.f32 %v6267, %v6704
        %v6833 = vmul.f32 %v6269, %v6705
        %v6834 = vmul.f32 %v6271, %v6706
        %v6835 = vmul.f32 %v6273, %v6707
        %v6836 = vmul.f32 %v6275, %v6708
        %v6837 = vmul.f32 %v6277, %v6709
        %v6838 = vmul.f32 %v6279, %v6710
        %v6839 = vmul.f32 %v6281, %v6711
        %v6840 = vmul.f32 %v6283, %v6712
        %v6841 = vmul.f32 %v6285, %v6713
        %v6842 = vmul.f32 %v6287, %v6714
        %v6843 = vmul.f32 %v6289, %v6715
        %v6844 = vmul.f32 %v6291, %v6716
        %v6845 = vmul.f32 %v6293, %v6717
        %v6846 = vmul.f32 %v6295, %v6718
        %v6847 = vmul.f32 %v6297, %v6719
        %v6848 = vmul.f32 %v6299, %v6720
        %v6849 = vmul.f32 %v6301, %v6721
        %v6850 = vmul.f32 %v6303, %v6722
        %v6851 = vmul.f32 %v6305, %v6723
        %v6852 = vmul.f32 %v6307, %v6724
        %v6853 = vmul.f32 %v6309, %v6725
        %v6854 = vmul.f32 %v6311, %v6726
        %v6855 = vmul.f32 %v6313, %v6727
        %v6856 = vmul.f32 %v6315, %v6728
        %v6857 = vmul.f32 %v6317, %v6729
        %v6858 = vmul.f32 %v6319, %v6730
        %v6859 = vmul.f32 %v6321, %v6731
        %v6860 = vmul.f32 %v6323, %v6732
        %v6861 = vmul.f32 %v6325, %v6733
        %v6862 = vmul.f32 %v6327, %v6734
        %v6863 = vmul.f32 %v6329, %v6735
        %v6864 = vmul.f32 %v6331, %v6736
        %v6865 = vmul.f32 %v6333, %v6737
        %v6866 = vmul.f32 %v6335, %v6738
        %v6867 = vmul.f32 %v6337, %v6739
        %v6868 = vmul.f32 %v6339, %v6740
        %v6869 = vmul.f32 %v6341, %v6741
        %v6870 = vmul.f32 %v6343, %v6742
        %v6871 = vmul.f32 %v6345, %v6743
        %v6872 = vmul.f32 %v6347, %v6744
        %v6873 = vmul.f32 %v6349, %v6745
        %v6874 = vmul.f32 %v6351, %v6746
        %v6875 = vmul.f32 %v6353, %v6747
        %v6876 = vmul.f32 %v6355, %v6748
        %v6877 = vmul.f32 %v6357, %v6749
        %v6878 = vmul.f32 %v6359, %v6750
        %v6879 = vmul.f32 %v6361, %v6751
        %v6880 = vmul.f32 %v6363, %v6752
        %v6881 = vmul.f32 %v6365, %v6753
        %v6882 = vmul.f32 %v6367, %v6754
        %v6883 = vmul.f32 %v6369, %v6755
        %v6884 = vmul.f32 %v6371, %v6756
        %v6885 = vmul.f32 %v6373, %v6757
        %v6886 = vpack.c.bf16 %v6759, %v6758
        %v6887 = vpack.c.bf16 %v6761, %v6760
        %v6888 = vpack.c.bf16 %v6763, %v6762
        %v6889 = vpack.c.bf16 %v6765, %v6764
        %v6890 = vpack.c.bf16 %v6767, %v6766
        %v6891 = vpack.c.bf16 %v6769, %v6768
        %v6892 = vpack.c.bf16 %v6771, %v6770
        %v6893 = vpack.c.bf16 %v6773, %v6772
        %v6894 = vpack.c.bf16 %v6775, %v6774
        %v6895 = vpack.c.bf16 %v6777, %v6776
        %v6896 = vpack.c.bf16 %v6779, %v6778
        %v6897 = vpack.c.bf16 %v6781, %v6780
        %v6898 = vpack.c.bf16 %v6783, %v6782
        %v6899 = vpack.c.bf16 %v6785, %v6784
        %v6900 = vpack.c.bf16 %v6787, %v6786
        %v6901 = vpack.c.bf16 %v6789, %v6788
        %v6902 = vpack.c.bf16 %v6791, %v6790
        %v6903 = vpack.c.bf16 %v6793, %v6792
        %v6904 = vpack.c.bf16 %v6795, %v6794
        %v6905 = vpack.c.bf16 %v6797, %v6796
        %v6906 = vpack.c.bf16 %v6799, %v6798
        %v6907 = vpack.c.bf16 %v6801, %v6800
        %v6908 = vpack.c.bf16 %v6803, %v6802
        %v6909 = vpack.c.bf16 %v6805, %v6804
        %v6910 = vpack.c.bf16 %v6807, %v6806
        %v6911 = vpack.c.bf16 %v6809, %v6808
        %v6912 = vpack.c.bf16 %v6811, %v6810
        %v6913 = vpack.c.bf16 %v6813, %v6812
        %v6914 = vpack.c.bf16 %v6815, %v6814
        %v6915 = vpack.c.bf16 %v6817, %v6816
        %v6916 = vpack.c.bf16 %v6819, %v6818
        %v6917 = vpack.c.bf16 %v6821, %v6820
        %v6918 = vpack.c.bf16 %v6823, %v6822
        %v6919 = vpack.c.bf16 %v6825, %v6824
        %v6920 = vpack.c.bf16 %v6827, %v6826
        %v6921 = vpack.c.bf16 %v6829, %v6828
        %v6922 = vpack.c.bf16 %v6831, %v6830
        %v6923 = vpack.c.bf16 %v6833, %v6832
        %v6924 = vpack.c.bf16 %v6835, %v6834
        %v6925 = vpack.c.bf16 %v6837, %v6836
        %v6926 = vpack.c.bf16 %v6839, %v6838
        %v6927 = vpack.c.bf16 %v6841, %v6840
        %v6928 = vpack.c.bf16 %v6843, %v6842
        %v6929 = vpack.c.bf16 %v6845, %v6844
        %v6930 = vpack.c.bf16 %v6847, %v6846
        %v6931 = vpack.c.bf16 %v6849, %v6848
        %v6932 = vpack.c.bf16 %v6851, %v6850
        %v6933 = vpack.c.bf16 %v6853, %v6852
        %v6934 = vpack.c.bf16 %v6855, %v6854
        %v6935 = vpack.c.bf16 %v6857, %v6856
        %v6936 = vpack.c.bf16 %v6859, %v6858
        %v6937 = vpack.c.bf16 %v6861, %v6860
        %v6938 = vpack.c.bf16 %v6863, %v6862
        %v6939 = vpack.c.bf16 %v6865, %v6864
        %v6940 = vpack.c.bf16 %v6867, %v6866
        %v6941 = vpack.c.bf16 %v6869, %v6868
        %v6942 = vpack.c.bf16 %v6871, %v6870
        %v6943 = vpack.c.bf16 %v6873, %v6872
        %v6944 = vpack.c.bf16 %v6875, %v6874
        %v6945 = vpack.c.bf16 %v6877, %v6876
        %v6946 = vpack.c.bf16 %v6879, %v6878
        %v6947 = vpack.c.bf16 %v6881, %v6880
        %v6948 = vpack.c.bf16 %v6883, %v6882
        %v6949 = vpack.c.bf16 %v6885, %v6884
        %v6950 = vpack.c.bf16 %v3371, %v3368
        %v6951 = vpack.c.bf16 %v3379, %v3376
        %v6952 = vpack.c.bf16 %v3387, %v3384
        %v6953 = vpack.c.bf16 %v3395, %v3392
        %v6954 = vpack.c.bf16 %v3403, %v3400
        %v6955 = vpack.c.bf16 %v3411, %v3408
        %v6956 = vpack.c.bf16 %v3419, %v3416
        %v6957 = vpack.c.bf16 %v3427, %v3424
        %v6958 = vpack.c.bf16 %v3516, %v3513
        %v6959 = vpack.c.bf16 %v3524, %v3521
        %v6960 = vpack.c.bf16 %v3532, %v3529
        %v6961 = vpack.c.bf16 %v3540, %v3537
        %v6962 = vpack.c.bf16 %v3548, %v3545
        %v6963 = vpack.c.bf16 %v3556, %v3553
        %v6964 = vpack.c.bf16 %v3564, %v3561
        %v6965 = vpack.c.bf16 %v3572, %v3569
        %v6966 = vpack.c.bf16 %v3661, %v3658
        %v6967 = vpack.c.bf16 %v3669, %v3666
        %v6968 = vpack.c.bf16 %v3677, %v3674
        %v6969 = vpack.c.bf16 %v3685, %v3682
        %v6970 = vpack.c.bf16 %v3693, %v3690
        %v6971 = vpack.c.bf16 %v3701, %v3698
        %v6972 = vpack.c.bf16 %v3709, %v3706
        %v6973 = vpack.c.bf16 %v3717, %v3714
        %v6974 = vpack.c.bf16 %v3806, %v3803
        %v6975 = vpack.c.bf16 %v3814, %v3811
        %v6976 = vpack.c.bf16 %v3822, %v3819
        %v6977 = vpack.c.bf16 %v3830, %v3827
        %v6978 = vpack.c.bf16 %v3838, %v3835
        %v6979 = vpack.c.bf16 %v3846, %v3843
        %v6980 = vpack.c.bf16 %v3854, %v3851
        %v6981 = vpack.c.bf16 %v3862, %v3859
        %v6982 = vpack.c.bf16 %v3951, %v3948
        %v6983 = vpack.c.bf16 %v3959, %v3956
        %v6984 = vpack.c.bf16 %v3967, %v3964
        %v6985 = vpack.c.bf16 %v3975, %v3972
        %v6986 = vpack.c.bf16 %v3983, %v3980
        %v6987 = vpack.c.bf16 %v3991, %v3988
        %v6988 = vpack.c.bf16 %v3999, %v3996
        %v6989 = vpack.c.bf16 %v4007, %v4004
        %v6990 = vpack.c.bf16 %v4096, %v4093
        %v6991 = vpack.c.bf16 %v4104, %v4101
        %v6992 = vpack.c.bf16 %v4112, %v4109
        %v6993 = vpack.c.bf16 %v4120, %v4117
        %v6994 = vpack.c.bf16 %v4128, %v4125
        %v6995 = vpack.c.bf16 %v4136, %v4133
        %v6996 = vpack.c.bf16 %v4144, %v4141
        %v6997 = vpack.c.bf16 %v4152, %v4149
        %v6998 = vpack.c.bf16 %v4241, %v4238
        %v6999 = vpack.c.bf16 %v4249, %v4246
        %v7000 = vpack.c.bf16 %v4257, %v4254
        %v7001 = vpack.c.bf16 %v4265, %v4262
        %v7002 = vpack.c.bf16 %v4273, %v4270
        %v7003 = vpack.c.bf16 %v4281, %v4278
        %v7004 = vpack.c.bf16 %v4289, %v4286
        %v7005 = vpack.c.bf16 %v4297, %v4294
        %v7006 = vpack.c.bf16 %v4386, %v4383
        %v7007 = vpack.c.bf16 %v4394, %v4391
        %v7008 = vpack.c.bf16 %v4402, %v4399
        %v7009 = vpack.c.bf16 %v4410, %v4407
        %v7010 = vpack.c.bf16 %v4418, %v4415
        %v7011 = vpack.c.bf16 %v4426, %v4423
        %v7012 = vpack.c.bf16 %v4434, %v4431
        %v7013 = vpack.c.bf16 %v4442, %v4439
        %7014 = vmatprep.subr.bf16.mxu0 0
        %7015 = vmatpush1.bf16.msra.mxu0 %v6957
        %7016 = vmatprep.subr.bf16.mxu0 0
        %7017 = vmatpush1.bf16.msra.mxu0 %v6956
        %7018 = vmatprep.subr.bf16.mxu0 0
        %7019 = vmatpush1.bf16.msra.mxu0 %v6955
        %7020 = vmatprep.subr.bf16.mxu0 0
        %7021 = vmatpush1.bf16.msra.mxu0 %v6954
        %7022 = vmatprep.subr.bf16.mxu0 0
        %7023 = vmatpush1.bf16.msra.mxu0 %v6953
        %7024 = vmatprep.subr.bf16.mxu0 0
        %7025 = vmatpush1.bf16.msra.mxu0 %v6952
        %7026 = vmatprep.subr.bf16.mxu0 0
        %7027 = vmatpush1.bf16.msra.mxu0 %v6951
        %7028 = vmatprep.subr.bf16.mxu0 0
        %7029 = vmatpush1.bf16.msra.mxu0 %v6950
        %7030 = vmatprep.subr.bf16.mxu0 0
        %7031 = vmatpush2.bf16.msra.mxu0 0
        %7032 = vmatprep.subr.bf16.mxu0 0
        %7033 = vmatpush2.bf16.msra.mxu0 0
        %7034 = vmatprep.subr.bf16.mxu0 0
        %7035 = vmatpush2.bf16.msra.mxu0 0
        %7036 = vmatprep.subr.bf16.mxu0 0
        %7037 = vmatpush2.bf16.msra.mxu0 0
        %7038 = vmatprep.subr.bf16.mxu0 0
        %7039 = vmatpush2.bf16.msra.mxu0 0
        %7040 = vmatprep.subr.bf16.mxu0 0
        %7041 = vmatpush2.bf16.msra.mxu0 0
        %7042 = vmatprep.subr.bf16.mxu0 0
        %7043 = vmatpush2.bf16.msra.mxu0 0
        %7044 = vmatprep.subr.bf16.mxu0 0
        %7045 = vmatpush2.bf16.msra.mxu0 0
        %7046 = vmatprep.mubr.bf16.mxu0 0
        %7047 = vmatmul.mubr.bf16.gmra.mxu0 %v6886
        %v7048 = vpop.f32.mrf.mxu0
        %v7049 = vadd.f32 0.0, %v7048
        %v7050 = vpop.f32.mrf.mxu0
        %v7051 = vpop.f32.mrf.mxu0
        %v7052 = vadd.f32 0.0, %v7051
        %v7053 = vpop.f32.mrf.mxu0
        %7054 = vmatprep.mubr.bf16.mxu0 0
        %7055 = vmatmul.mubr.bf16.gmra.mxu0 %v6887
        %v7056 = vpop.f32.mrf.mxu0
        %v7057 = vadd.f32 0.0, %v7056
        %v7058 = vpop.f32.mrf.mxu0
        %v7059 = vpop.f32.mrf.mxu0
        %v7060 = vadd.f32 0.0, %v7059
        %v7061 = vpop.f32.mrf.mxu0
        %7062 = vmatprep.mubr.bf16.mxu0 0
        %7063 = vmatmul.mubr.bf16.gmra.mxu0 %v6888
        %v7064 = vpop.f32.mrf.mxu0
        %v7065 = vadd.f32 0.0, %v7064
        %v7066 = vpop.f32.mrf.mxu0
        %v7067 = vpop.f32.mrf.mxu0
        %v7068 = vadd.f32 0.0, %v7067
        %v7069 = vpop.f32.mrf.mxu0
        %7070 = vmatprep.mubr.bf16.mxu0 0
        %7071 = vmatmul.mubr.bf16.gmra.mxu0 %v6889
        %v7072 = vpop.f32.mrf.mxu0
        %v7073 = vadd.f32 0.0, %v7072
        %v7074 = vpop.f32.mrf.mxu0
        %v7075 = vpop.f32.mrf.mxu0
        %v7076 = vadd.f32 0.0, %v7075
        %v7077 = vpop.f32.mrf.mxu0
        %7078 = vmatprep.mubr.bf16.mxu0 0
        %7079 = vmatmul.mubr.bf16.gmra.mxu0 %v6890
        %v7080 = vpop.f32.mrf.mxu0
        %v7081 = vadd.f32 0.0, %v7080
        %v7082 = vpop.f32.mrf.mxu0
        %v7083 = vpop.f32.mrf.mxu0
        %v7084 = vadd.f32 0.0, %v7083
        %v7085 = vpop.f32.mrf.mxu0
        %7086 = vmatprep.mubr.bf16.mxu0 0
        %7087 = vmatmul.mubr.bf16.gmra.mxu0 %v6891
        %v7088 = vpop.f32.mrf.mxu0
        %v7089 = vadd.f32 0.0, %v7088
        %v7090 = vpop.f32.mrf.mxu0
        %v7091 = vpop.f32.mrf.mxu0
        %v7092 = vadd.f32 0.0, %v7091
        %v7093 = vpop.f32.mrf.mxu0
        %7094 = vmatprep.mubr.bf16.mxu0 0
        %7095 = vmatmul.mubr.bf16.gmra.mxu0 %v6892
        %v7096 = vpop.f32.mrf.mxu0
        %v7097 = vadd.f32 0.0, %v7096
        %v7098 = vpop.f32.mrf.mxu0
        %v7099 = vpop.f32.mrf.mxu0
        %v7100 = vadd.f32 0.0, %v7099
        %v7101 = vpop.f32.mrf.mxu0
        %7102 = vmatprep.mubr.bf16.mxu0 0
        %7103 = vmatmul.mubr.bf16.gmra.mxu0 %v6893
        %v7104 = vpop.f32.mrf.mxu0
        %v7105 = vadd.f32 0.0, %v7104
        %v7106 = vpop.f32.mrf.mxu0
        %v7107 = vpop.f32.mrf.mxu0
        %v7108 = vadd.f32 0.0, %v7107
        %v7109 = vpop.f32.mrf.mxu0
        %7110 = vdwg.mxu0
        %7111 = vmatprep.subr.bf16.mxu0 0
        %7112 = vmatpush1.bf16.msra.mxu0 %v6965
        %7113 = vmatprep.subr.bf16.mxu0 0
        %7114 = vmatpush1.bf16.msra.mxu0 %v6964
        %7115 = vmatprep.subr.bf16.mxu0 0
        %7116 = vmatpush1.bf16.msra.mxu0 %v6963
        %7117 = vmatprep.subr.bf16.mxu0 0
        %7118 = vmatpush1.bf16.msra.mxu0 %v6962
        %7119 = vmatprep.subr.bf16.mxu0 0
        %7120 = vmatpush1.bf16.msra.mxu0 %v6961
        %7121 = vmatprep.subr.bf16.mxu0 0
        %7122 = vmatpush1.bf16.msra.mxu0 %v6960
        %7123 = vmatprep.subr.bf16.mxu0 0
        %7124 = vmatpush1.bf16.msra.mxu0 %v6959
        %7125 = vmatprep.subr.bf16.mxu0 0
        %7126 = vmatpush1.bf16.msra.mxu0 %v6958
        %7127 = vmatprep.subr.bf16.mxu0 0
        %7128 = vmatpush2.bf16.msra.mxu0 0
        %7129 = vmatprep.subr.bf16.mxu0 0
        %7130 = vmatpush2.bf16.msra.mxu0 0
        %7131 = vmatprep.subr.bf16.mxu0 0
        %7132 = vmatpush2.bf16.msra.mxu0 0
        %7133 = vmatprep.subr.bf16.mxu0 0
        %7134 = vmatpush2.bf16.msra.mxu0 0
        %7135 = vmatprep.subr.bf16.mxu0 0
        %7136 = vmatpush2.bf16.msra.mxu0 0
        %7137 = vmatprep.subr.bf16.mxu0 0
        %7138 = vmatpush2.bf16.msra.mxu0 0
        %7139 = vmatprep.subr.bf16.mxu0 0
        %7140 = vmatpush2.bf16.msra.mxu0 0
        %7141 = vmatprep.subr.bf16.mxu0 0
        %7142 = vmatpush2.bf16.msra.mxu0 0
        %7143 = vmatprep.mubr.bf16.mxu0 0
        %7144 = vmatmul.mubr.bf16.gmra.mxu0 %v6894
        %v7145 = vpop.f32.mrf.mxu0
        %v7146 = vadd.f32 0.0, %v7145
        %v7147 = vpop.f32.mrf.mxu0
        %v7148 = vpop.f32.mrf.mxu0
        %v7149 = vadd.f32 0.0, %v7148
        %v7150 = vpop.f32.mrf.mxu0
        %7151 = vmatprep.mubr.bf16.mxu0 0
        %7152 = vmatmul.mubr.bf16.gmra.mxu0 %v6895
        %v7153 = vpop.f32.mrf.mxu0
        %v7154 = vadd.f32 0.0, %v7153
        %v7155 = vpop.f32.mrf.mxu0
        %v7156 = vpop.f32.mrf.mxu0
        %v7157 = vadd.f32 0.0, %v7156
        %v7158 = vpop.f32.mrf.mxu0
        %7159 = vmatprep.mubr.bf16.mxu0 0
        %7160 = vmatmul.mubr.bf16.gmra.mxu0 %v6896
        %v7161 = vpop.f32.mrf.mxu0
        %v7162 = vadd.f32 0.0, %v7161
        %v7163 = vpop.f32.mrf.mxu0
        %v7164 = vpop.f32.mrf.mxu0
        %v7165 = vadd.f32 0.0, %v7164
        %v7166 = vpop.f32.mrf.mxu0
        %7167 = vmatprep.mubr.bf16.mxu0 0
        %7168 = vmatmul.mubr.bf16.gmra.mxu0 %v6897
        %v7169 = vpop.f32.mrf.mxu0
        %v7170 = vadd.f32 0.0, %v7169
        %v7171 = vpop.f32.mrf.mxu0
        %v7172 = vpop.f32.mrf.mxu0
        %v7173 = vadd.f32 0.0, %v7172
        %v7174 = vpop.f32.mrf.mxu0
        %7175 = vmatprep.mubr.bf16.mxu0 0
        %7176 = vmatmul.mubr.bf16.gmra.mxu0 %v6898
        %v7177 = vpop.f32.mrf.mxu0
        %v7178 = vadd.f32 0.0, %v7177
        %v7179 = vpop.f32.mrf.mxu0
        %v7180 = vpop.f32.mrf.mxu0
        %v7181 = vadd.f32 0.0, %v7180
        %v7182 = vpop.f32.mrf.mxu0
        %7183 = vmatprep.mubr.bf16.mxu0 0
        %7184 = vmatmul.mubr.bf16.gmra.mxu0 %v6899
        %v7185 = vpop.f32.mrf.mxu0
        %v7186 = vadd.f32 0.0, %v7185
        %v7187 = vpop.f32.mrf.mxu0
        %v7188 = vpop.f32.mrf.mxu0
        %v7189 = vadd.f32 0.0, %v7188
        %v7190 = vpop.f32.mrf.mxu0
        %7191 = vmatprep.mubr.bf16.mxu0 0
        %7192 = vmatmul.mubr.bf16.gmra.mxu0 %v6900
        %v7193 = vpop.f32.mrf.mxu0
        %v7194 = vadd.f32 0.0, %v7193
        %v7195 = vpop.f32.mrf.mxu0
        %v7196 = vpop.f32.mrf.mxu0
        %v7197 = vadd.f32 0.0, %v7196
        %v7198 = vpop.f32.mrf.mxu0
        %7199 = vmatprep.mubr.bf16.mxu0 0
        %7200 = vmatmul.mubr.bf16.gmra.mxu0 %v6901
        %v7201 = vpop.f32.mrf.mxu0
        %v7202 = vadd.f32 0.0, %v7201
        %v7203 = vpop.f32.mrf.mxu0
        %v7204 = vpop.f32.mrf.mxu0
        %v7205 = vadd.f32 0.0, %v7204
        %v7206 = vpop.f32.mrf.mxu0
        %7207 = vdwg.mxu0
        %7208 = vmatprep.subr.bf16.mxu0 0
        %7209 = vmatpush1.bf16.msra.mxu0 %v6973
        %7210 = vmatprep.subr.bf16.mxu0 0
        %7211 = vmatpush1.bf16.msra.mxu0 %v6972
        %7212 = vmatprep.subr.bf16.mxu0 0
        %7213 = vmatpush1.bf16.msra.mxu0 %v6971
        %7214 = vmatprep.subr.bf16.mxu0 0
        %7215 = vmatpush1.bf16.msra.mxu0 %v6970
        %7216 = vmatprep.subr.bf16.mxu0 0
        %7217 = vmatpush1.bf16.msra.mxu0 %v6969
        %7218 = vmatprep.subr.bf16.mxu0 0
        %7219 = vmatpush1.bf16.msra.mxu0 %v6968
        %7220 = vmatprep.subr.bf16.mxu0 0
        %7221 = vmatpush1.bf16.msra.mxu0 %v6967
        %7222 = vmatprep.subr.bf16.mxu0 0
        %7223 = vmatpush1.bf16.msra.mxu0 %v6966
        %7224 = vmatprep.subr.bf16.mxu0 0
        %7225 = vmatpush2.bf16.msra.mxu0 0
        %7226 = vmatprep.subr.bf16.mxu0 0
        %7227 = vmatpush2.bf16.msra.mxu0 0
        %7228 = vmatprep.subr.bf16.mxu0 0
        %7229 = vmatpush2.bf16.msra.mxu0 0
        %7230 = vmatprep.subr.bf16.mxu0 0
        %7231 = vmatpush2.bf16.msra.mxu0 0
        %7232 = vmatprep.subr.bf16.mxu0 0
        %7233 = vmatpush2.bf16.msra.mxu0 0
        %7234 = vmatprep.subr.bf16.mxu0 0
        %7235 = vmatpush2.bf16.msra.mxu0 0
        %7236 = vmatprep.subr.bf16.mxu0 0
        %7237 = vmatpush2.bf16.msra.mxu0 0
        %7238 = vmatprep.subr.bf16.mxu0 0
        %7239 = vmatpush2.bf16.msra.mxu0 0
        %7240 = vmatprep.mubr.bf16.mxu0 0
        %7241 = vmatmul.mubr.bf16.gmra.mxu0 %v6902
        %v7242 = vpop.f32.mrf.mxu0
        %v7243 = vadd.f32 0.0, %v7242
        %v7244 = vpop.f32.mrf.mxu0
        %v7245 = vpop.f32.mrf.mxu0
        %v7246 = vadd.f32 0.0, %v7245
        %v7247 = vpop.f32.mrf.mxu0
        %7248 = vmatprep.mubr.bf16.mxu0 0
        %7249 = vmatmul.mubr.bf16.gmra.mxu0 %v6903
        %v7250 = vpop.f32.mrf.mxu0
        %v7251 = vadd.f32 0.0, %v7250
        %v7252 = vpop.f32.mrf.mxu0
        %v7253 = vpop.f32.mrf.mxu0
        %v7254 = vadd.f32 0.0, %v7253
        %v7255 = vpop.f32.mrf.mxu0
        %7256 = vmatprep.mubr.bf16.mxu0 0
        %7257 = vmatmul.mubr.bf16.gmra.mxu0 %v6904
        %v7258 = vpop.f32.mrf.mxu0
        %v7259 = vadd.f32 0.0, %v7258
        %v7260 = vpop.f32.mrf.mxu0
        %v7261 = vpop.f32.mrf.mxu0
        %v7262 = vadd.f32 0.0, %v7261
        %v7263 = vpop.f32.mrf.mxu0
        %7264 = vmatprep.mubr.bf16.mxu0 0
        %7265 = vmatmul.mubr.bf16.gmra.mxu0 %v6905
        %v7266 = vpop.f32.mrf.mxu0
        %v7267 = vadd.f32 0.0, %v7266
        %v7268 = vpop.f32.mrf.mxu0
        %v7269 = vpop.f32.mrf.mxu0
        %v7270 = vadd.f32 0.0, %v7269
        %v7271 = vpop.f32.mrf.mxu0
        %7272 = vmatprep.mubr.bf16.mxu0 0
        %7273 = vmatmul.mubr.bf16.gmra.mxu0 %v6906
        %v7274 = vpop.f32.mrf.mxu0
        %v7275 = vadd.f32 0.0, %v7274
        %v7276 = vpop.f32.mrf.mxu0
        %v7277 = vpop.f32.mrf.mxu0
        %v7278 = vadd.f32 0.0, %v7277
        %v7279 = vpop.f32.mrf.mxu0
        %7280 = vmatprep.mubr.bf16.mxu0 0
        %7281 = vmatmul.mubr.bf16.gmra.mxu0 %v6907
        %v7282 = vpop.f32.mrf.mxu0
        %v7283 = vadd.f32 0.0, %v7282
        %v7284 = vpop.f32.mrf.mxu0
        %v7285 = vpop.f32.mrf.mxu0
        %v7286 = vadd.f32 0.0, %v7285
        %v7287 = vpop.f32.mrf.mxu0
        %7288 = vmatprep.mubr.bf16.mxu0 0
        %7289 = vmatmul.mubr.bf16.gmra.mxu0 %v6908
        %v7290 = vpop.f32.mrf.mxu0
        %v7291 = vadd.f32 0.0, %v7290
        %v7292 = vpop.f32.mrf.mxu0
        %v7293 = vpop.f32.mrf.mxu0
        %v7294 = vadd.f32 0.0, %v7293
        %v7295 = vpop.f32.mrf.mxu0
        %7296 = vmatprep.mubr.bf16.mxu0 0
        %7297 = vmatmul.mubr.bf16.gmra.mxu0 %v6909
        %v7298 = vpop.f32.mrf.mxu0
        %v7299 = vadd.f32 0.0, %v7298
        %v7300 = vpop.f32.mrf.mxu0
        %v7301 = vpop.f32.mrf.mxu0
        %v7302 = vadd.f32 0.0, %v7301
        %v7303 = vpop.f32.mrf.mxu0
        %7304 = vdwg.mxu0
        %7305 = vmatprep.subr.bf16.mxu0 0
        %7306 = vmatpush1.bf16.msra.mxu0 %v6981
        %7307 = vmatprep.subr.bf16.mxu0 0
        %7308 = vmatpush1.bf16.msra.mxu0 %v6980
        %7309 = vmatprep.subr.bf16.mxu0 0
        %7310 = vmatpush1.bf16.msra.mxu0 %v6979
        %7311 = vmatprep.subr.bf16.mxu0 0
        %7312 = vmatpush1.bf16.msra.mxu0 %v6978
        %7313 = vmatprep.subr.bf16.mxu0 0
        %7314 = vmatpush1.bf16.msra.mxu0 %v6977
        %7315 = vmatprep.subr.bf16.mxu0 0
        %7316 = vmatpush1.bf16.msra.mxu0 %v6976
        %7317 = vmatprep.subr.bf16.mxu0 0
        %7318 = vmatpush1.bf16.msra.mxu0 %v6975
        %7319 = vmatprep.subr.bf16.mxu0 0
        %7320 = vmatpush1.bf16.msra.mxu0 %v6974
        %7321 = vmatprep.subr.bf16.mxu0 0
        %7322 = vmatpush2.bf16.msra.mxu0 0
        %7323 = vmatprep.subr.bf16.mxu0 0
        %7324 = vmatpush2.bf16.msra.mxu0 0
        %7325 = vmatprep.subr.bf16.mxu0 0
        %7326 = vmatpush2.bf16.msra.mxu0 0
        %7327 = vmatprep.subr.bf16.mxu0 0
        %7328 = vmatpush2.bf16.msra.mxu0 0
        %7329 = vmatprep.subr.bf16.mxu0 0
        %7330 = vmatpush2.bf16.msra.mxu0 0
        %7331 = vmatprep.subr.bf16.mxu0 0
        %7332 = vmatpush2.bf16.msra.mxu0 0
        %7333 = vmatprep.subr.bf16.mxu0 0
        %7334 = vmatpush2.bf16.msra.mxu0 0
        %7335 = vmatprep.subr.bf16.mxu0 0
        %7336 = vmatpush2.bf16.msra.mxu0 0
        %7337 = vmatprep.mubr.bf16.mxu0 0
        %7338 = vmatmul.mubr.bf16.gmra.mxu0 %v6910
        %v7339 = vpop.f32.mrf.mxu0
        %v7340 = vadd.f32 0.0, %v7339
        %v7341 = vpop.f32.mrf.mxu0
        %v7342 = vpop.f32.mrf.mxu0
        %v7343 = vadd.f32 0.0, %v7342
        %v7344 = vpop.f32.mrf.mxu0
        %7345 = vmatprep.mubr.bf16.mxu0 0
        %7346 = vmatmul.mubr.bf16.gmra.mxu0 %v6911
        %v7347 = vpop.f32.mrf.mxu0
        %v7348 = vadd.f32 0.0, %v7347
        %v7349 = vpop.f32.mrf.mxu0
        %v7350 = vpop.f32.mrf.mxu0
        %v7351 = vadd.f32 0.0, %v7350
        %v7352 = vpop.f32.mrf.mxu0
        %7353 = vmatprep.mubr.bf16.mxu0 0
        %7354 = vmatmul.mubr.bf16.gmra.mxu0 %v6912
        %v7355 = vpop.f32.mrf.mxu0
        %v7356 = vadd.f32 0.0, %v7355
        %v7357 = vpop.f32.mrf.mxu0
        %v7358 = vpop.f32.mrf.mxu0
        %v7359 = vadd.f32 0.0, %v7358
        %v7360 = vpop.f32.mrf.mxu0
        %7361 = vmatprep.mubr.bf16.mxu0 0
        %7362 = vmatmul.mubr.bf16.gmra.mxu0 %v6913
        %v7363 = vpop.f32.mrf.mxu0
        %v7364 = vadd.f32 0.0, %v7363
        %v7365 = vpop.f32.mrf.mxu0
        %v7366 = vpop.f32.mrf.mxu0
        %v7367 = vadd.f32 0.0, %v7366
        %v7368 = vpop.f32.mrf.mxu0
        %7369 = vmatprep.mubr.bf16.mxu0 0
        %7370 = vmatmul.mubr.bf16.gmra.mxu0 %v6914
        %v7371 = vpop.f32.mrf.mxu0
        %v7372 = vadd.f32 0.0, %v7371
        %v7373 = vpop.f32.mrf.mxu0
        %v7374 = vpop.f32.mrf.mxu0
        %v7375 = vadd.f32 0.0, %v7374
        %v7376 = vpop.f32.mrf.mxu0
        %7377 = vmatprep.mubr.bf16.mxu0 0
        %7378 = vmatmul.mubr.bf16.gmra.mxu0 %v6915
        %v7379 = vpop.f32.mrf.mxu0
        %v7380 = vadd.f32 0.0, %v7379
        %v7381 = vpop.f32.mrf.mxu0
        %v7382 = vpop.f32.mrf.mxu0
        %v7383 = vadd.f32 0.0, %v7382
        %v7384 = vpop.f32.mrf.mxu0
        %7385 = vmatprep.mubr.bf16.mxu0 0
        %7386 = vmatmul.mubr.bf16.gmra.mxu0 %v6916
        %v7387 = vpop.f32.mrf.mxu0
        %v7388 = vadd.f32 0.0, %v7387
        %v7389 = vpop.f32.mrf.mxu0
        %v7390 = vpop.f32.mrf.mxu0
        %v7391 = vadd.f32 0.0, %v7390
        %v7392 = vpop.f32.mrf.mxu0
        %7393 = vmatprep.mubr.bf16.mxu0 0
        %7394 = vmatmul.mubr.bf16.gmra.mxu0 %v6917
        %v7395 = vpop.f32.mrf.mxu0
        %v7396 = vadd.f32 0.0, %v7395
        %v7397 = vpop.f32.mrf.mxu0
        %v7398 = vpop.f32.mrf.mxu0
        %v7399 = vadd.f32 0.0, %v7398
        %v7400 = vpop.f32.mrf.mxu0
        %7401 = vdwg.mxu0
        %7402 = vmatprep.subr.bf16.mxu0 0
        %7403 = vmatpush1.bf16.msra.mxu0 %v6989
        %7404 = vmatprep.subr.bf16.mxu0 0
        %7405 = vmatpush1.bf16.msra.mxu0 %v6988
        %7406 = vmatprep.subr.bf16.mxu0 0
        %7407 = vmatpush1.bf16.msra.mxu0 %v6987
        %7408 = vmatprep.subr.bf16.mxu0 0
        %7409 = vmatpush1.bf16.msra.mxu0 %v6986
        %7410 = vmatprep.subr.bf16.mxu0 0
        %7411 = vmatpush1.bf16.msra.mxu0 %v6985
        %7412 = vmatprep.subr.bf16.mxu0 0
        %7413 = vmatpush1.bf16.msra.mxu0 %v6984
        %7414 = vmatprep.subr.bf16.mxu0 0
        %7415 = vmatpush1.bf16.msra.mxu0 %v6983
        %7416 = vmatprep.subr.bf16.mxu0 0
        %7417 = vmatpush1.bf16.msra.mxu0 %v6982
        %7418 = vmatprep.subr.bf16.mxu0 0
        %7419 = vmatpush2.bf16.msra.mxu0 0
        %7420 = vmatprep.subr.bf16.mxu0 0
        %7421 = vmatpush2.bf16.msra.mxu0 0
        %7422 = vmatprep.subr.bf16.mxu0 0
        %7423 = vmatpush2.bf16.msra.mxu0 0
        %7424 = vmatprep.subr.bf16.mxu0 0
        %7425 = vmatpush2.bf16.msra.mxu0 0
        %7426 = vmatprep.subr.bf16.mxu0 0
        %7427 = vmatpush2.bf16.msra.mxu0 0
        %7428 = vmatprep.subr.bf16.mxu0 0
        %7429 = vmatpush2.bf16.msra.mxu0 0
        %7430 = vmatprep.subr.bf16.mxu0 0
        %7431 = vmatpush2.bf16.msra.mxu0 0
        %7432 = vmatprep.subr.bf16.mxu0 0
        %7433 = vmatpush2.bf16.msra.mxu0 0
        %7434 = vmatprep.mubr.bf16.mxu0 0
        %7435 = vmatmul.mubr.bf16.gmra.mxu0 %v6918
        %v7436 = vpop.f32.mrf.mxu0
        %v7437 = vadd.f32 0.0, %v7436
        %v7438 = vpop.f32.mrf.mxu0
        %v7439 = vpop.f32.mrf.mxu0
        %v7440 = vadd.f32 0.0, %v7439
        %v7441 = vpop.f32.mrf.mxu0
        %7442 = vmatprep.mubr.bf16.mxu0 0
        %7443 = vmatmul.mubr.bf16.gmra.mxu0 %v6919
        %v7444 = vpop.f32.mrf.mxu0
        %v7445 = vadd.f32 0.0, %v7444
        %v7446 = vpop.f32.mrf.mxu0
        %v7447 = vpop.f32.mrf.mxu0
        %v7448 = vadd.f32 0.0, %v7447
        %v7449 = vpop.f32.mrf.mxu0
        %7450 = vmatprep.mubr.bf16.mxu0 0
        %7451 = vmatmul.mubr.bf16.gmra.mxu0 %v6920
        %v7452 = vpop.f32.mrf.mxu0
        %v7453 = vadd.f32 0.0, %v7452
        %v7454 = vpop.f32.mrf.mxu0
        %v7455 = vpop.f32.mrf.mxu0
        %v7456 = vadd.f32 0.0, %v7455
        %v7457 = vpop.f32.mrf.mxu0
        %7458 = vmatprep.mubr.bf16.mxu0 0
        %7459 = vmatmul.mubr.bf16.gmra.mxu0 %v6921
        %v7460 = vpop.f32.mrf.mxu0
        %v7461 = vadd.f32 0.0, %v7460
        %v7462 = vpop.f32.mrf.mxu0
        %v7463 = vpop.f32.mrf.mxu0
        %v7464 = vadd.f32 0.0, %v7463
        %v7465 = vpop.f32.mrf.mxu0
        %7466 = vmatprep.mubr.bf16.mxu0 0
        %7467 = vmatmul.mubr.bf16.gmra.mxu0 %v6922
        %v7468 = vpop.f32.mrf.mxu0
        %v7469 = vadd.f32 0.0, %v7468
        %v7470 = vpop.f32.mrf.mxu0
        %v7471 = vpop.f32.mrf.mxu0
        %v7472 = vadd.f32 0.0, %v7471
        %v7473 = vpop.f32.mrf.mxu0
        %7474 = vmatprep.mubr.bf16.mxu0 0
        %7475 = vmatmul.mubr.bf16.gmra.mxu0 %v6923
        %v7476 = vpop.f32.mrf.mxu0
        %v7477 = vadd.f32 0.0, %v7476
        %v7478 = vpop.f32.mrf.mxu0
        %v7479 = vpop.f32.mrf.mxu0
        %v7480 = vadd.f32 0.0, %v7479
        %v7481 = vpop.f32.mrf.mxu0
        %7482 = vmatprep.mubr.bf16.mxu0 0
        %7483 = vmatmul.mubr.bf16.gmra.mxu0 %v6924
        %v7484 = vpop.f32.mrf.mxu0
        %v7485 = vadd.f32 0.0, %v7484
        %v7486 = vpop.f32.mrf.mxu0
        %v7487 = vpop.f32.mrf.mxu0
        %v7488 = vadd.f32 0.0, %v7487
        %v7489 = vpop.f32.mrf.mxu0
        %7490 = vmatprep.mubr.bf16.mxu0 0
        %7491 = vmatmul.mubr.bf16.gmra.mxu0 %v6925
        %v7492 = vpop.f32.mrf.mxu0
        %v7493 = vadd.f32 0.0, %v7492
        %v7494 = vpop.f32.mrf.mxu0
        %v7495 = vpop.f32.mrf.mxu0
        %v7496 = vadd.f32 0.0, %v7495
        %v7497 = vpop.f32.mrf.mxu0
        %7498 = vdwg.mxu0
        %7499 = vmatprep.subr.bf16.mxu0 0
        %7500 = vmatpush1.bf16.msra.mxu0 %v6997
        %7501 = vmatprep.subr.bf16.mxu0 0
        %7502 = vmatpush1.bf16.msra.mxu0 %v6996
        %7503 = vmatprep.subr.bf16.mxu0 0
        %7504 = vmatpush1.bf16.msra.mxu0 %v6995
        %7505 = vmatprep.subr.bf16.mxu0 0
        %7506 = vmatpush1.bf16.msra.mxu0 %v6994
        %7507 = vmatprep.subr.bf16.mxu0 0
        %7508 = vmatpush1.bf16.msra.mxu0 %v6993
        %7509 = vmatprep.subr.bf16.mxu0 0
        %7510 = vmatpush1.bf16.msra.mxu0 %v6992
        %7511 = vmatprep.subr.bf16.mxu0 0
        %7512 = vmatpush1.bf16.msra.mxu0 %v6991
        %7513 = vmatprep.subr.bf16.mxu0 0
        %7514 = vmatpush1.bf16.msra.mxu0 %v6990
        %7515 = vmatprep.subr.bf16.mxu0 0
        %7516 = vmatpush2.bf16.msra.mxu0 0
        %7517 = vmatprep.subr.bf16.mxu0 0
        %7518 = vmatpush2.bf16.msra.mxu0 0
        %7519 = vmatprep.subr.bf16.mxu0 0
        %7520 = vmatpush2.bf16.msra.mxu0 0
        %7521 = vmatprep.subr.bf16.mxu0 0
        %7522 = vmatpush2.bf16.msra.mxu0 0
        %7523 = vmatprep.subr.bf16.mxu0 0
        %7524 = vmatpush2.bf16.msra.mxu0 0
        %7525 = vmatprep.subr.bf16.mxu0 0
        %7526 = vmatpush2.bf16.msra.mxu0 0
        %7527 = vmatprep.subr.bf16.mxu0 0
        %7528 = vmatpush2.bf16.msra.mxu0 0
        %7529 = vmatprep.subr.bf16.mxu0 0
        %7530 = vmatpush2.bf16.msra.mxu0 0
        %7531 = vmatprep.mubr.bf16.mxu0 0
        %7532 = vmatmul.mubr.bf16.gmra.mxu0 %v6926
        %v7533 = vpop.f32.mrf.mxu0
        %v7534 = vadd.f32 0.0, %v7533
        %v7535 = vpop.f32.mrf.mxu0
        %v7536 = vpop.f32.mrf.mxu0
        %v7537 = vadd.f32 0.0, %v7536
        %v7538 = vpop.f32.mrf.mxu0
        %7539 = vmatprep.mubr.bf16.mxu0 0
        %7540 = vmatmul.mubr.bf16.gmra.mxu0 %v6927
        %v7541 = vpop.f32.mrf.mxu0
        %v7542 = vadd.f32 0.0, %v7541
        %v7543 = vpop.f32.mrf.mxu0
        %v7544 = vpop.f32.mrf.mxu0
        %v7545 = vadd.f32 0.0, %v7544
        %v7546 = vpop.f32.mrf.mxu0
        %7547 = vmatprep.mubr.bf16.mxu0 0
        %7548 = vmatmul.mubr.bf16.gmra.mxu0 %v6928
        %v7549 = vpop.f32.mrf.mxu0
        %v7550 = vadd.f32 0.0, %v7549
        %v7551 = vpop.f32.mrf.mxu0
        %v7552 = vpop.f32.mrf.mxu0
        %v7553 = vadd.f32 0.0, %v7552
        %v7554 = vpop.f32.mrf.mxu0
        %7555 = vmatprep.mubr.bf16.mxu0 0
        %7556 = vmatmul.mubr.bf16.gmra.mxu0 %v6929
        %v7557 = vpop.f32.mrf.mxu0
        %v7558 = vadd.f32 0.0, %v7557
        %v7559 = vpop.f32.mrf.mxu0
        %v7560 = vpop.f32.mrf.mxu0
        %v7561 = vadd.f32 0.0, %v7560
        %v7562 = vpop.f32.mrf.mxu0
        %7563 = vmatprep.mubr.bf16.mxu0 0
        %7564 = vmatmul.mubr.bf16.gmra.mxu0 %v6930
        %v7565 = vpop.f32.mrf.mxu0
        %v7566 = vadd.f32 0.0, %v7565
        %v7567 = vpop.f32.mrf.mxu0
        %v7568 = vpop.f32.mrf.mxu0
        %v7569 = vadd.f32 0.0, %v7568
        %v7570 = vpop.f32.mrf.mxu0
        %7571 = vmatprep.mubr.bf16.mxu0 0
        %7572 = vmatmul.mubr.bf16.gmra.mxu0 %v6931
        %v7573 = vpop.f32.mrf.mxu0
        %v7574 = vadd.f32 0.0, %v7573
        %v7575 = vpop.f32.mrf.mxu0
        %v7576 = vpop.f32.mrf.mxu0
        %v7577 = vadd.f32 0.0, %v7576
        %v7578 = vpop.f32.mrf.mxu0
        %7579 = vmatprep.mubr.bf16.mxu0 0
        %7580 = vmatmul.mubr.bf16.gmra.mxu0 %v6932
        %v7581 = vpop.f32.mrf.mxu0
        %v7582 = vadd.f32 0.0, %v7581
        %v7583 = vpop.f32.mrf.mxu0
        %v7584 = vpop.f32.mrf.mxu0
        %v7585 = vadd.f32 0.0, %v7584
        %v7586 = vpop.f32.mrf.mxu0
        %7587 = vmatprep.mubr.bf16.mxu0 0
        %7588 = vmatmul.mubr.bf16.gmra.mxu0 %v6933
        %v7589 = vpop.f32.mrf.mxu0
        %v7590 = vadd.f32 0.0, %v7589
        %v7591 = vpop.f32.mrf.mxu0
        %v7592 = vpop.f32.mrf.mxu0
        %v7593 = vadd.f32 0.0, %v7592
        %v7594 = vpop.f32.mrf.mxu0
        %7595 = vdwg.mxu0
        %7596 = vmatprep.subr.bf16.mxu0 0
        %7597 = vmatpush1.bf16.msra.mxu0 %v7005
        %7598 = vmatprep.subr.bf16.mxu0 0
        %7599 = vmatpush1.bf16.msra.mxu0 %v7004
        %7600 = vmatprep.subr.bf16.mxu0 0
        %7601 = vmatpush1.bf16.msra.mxu0 %v7003
        %7602 = vmatprep.subr.bf16.mxu0 0
        %7603 = vmatpush1.bf16.msra.mxu0 %v7002
        %7604 = vmatprep.subr.bf16.mxu0 0
        %7605 = vmatpush1.bf16.msra.mxu0 %v7001
        %7606 = vmatprep.subr.bf16.mxu0 0
        %7607 = vmatpush1.bf16.msra.mxu0 %v7000
        %7608 = vmatprep.subr.bf16.mxu0 0
        %7609 = vmatpush1.bf16.msra.mxu0 %v6999
        %7610 = vmatprep.subr.bf16.mxu0 0
        %7611 = vmatpush1.bf16.msra.mxu0 %v6998
        %7612 = vmatprep.subr.bf16.mxu0 0
        %7613 = vmatpush2.bf16.msra.mxu0 0
        %7614 = vmatprep.subr.bf16.mxu0 0
        %7615 = vmatpush2.bf16.msra.mxu0 0
        %7616 = vmatprep.subr.bf16.mxu0 0
        %7617 = vmatpush2.bf16.msra.mxu0 0
        %7618 = vmatprep.subr.bf16.mxu0 0
        %7619 = vmatpush2.bf16.msra.mxu0 0
        %7620 = vmatprep.subr.bf16.mxu0 0
        %7621 = vmatpush2.bf16.msra.mxu0 0
        %7622 = vmatprep.subr.bf16.mxu0 0
        %7623 = vmatpush2.bf16.msra.mxu0 0
        %7624 = vmatprep.subr.bf16.mxu0 0
        %7625 = vmatpush2.bf16.msra.mxu0 0
        %7626 = vmatprep.subr.bf16.mxu0 0
        %7627 = vmatpush2.bf16.msra.mxu0 0
        %7628 = vmatprep.mubr.bf16.mxu0 0
        %7629 = vmatmul.mubr.bf16.gmra.mxu0 %v6934
        %v7630 = vpop.f32.mrf.mxu0
        %v7631 = vadd.f32 0.0, %v7630
        %v7632 = vpop.f32.mrf.mxu0
        %v7633 = vpop.f32.mrf.mxu0
        %v7634 = vadd.f32 0.0, %v7633
        %v7635 = vpop.f32.mrf.mxu0
        %7636 = vmatprep.mubr.bf16.mxu0 0
        %7637 = vmatmul.mubr.bf16.gmra.mxu0 %v6935
        %v7638 = vpop.f32.mrf.mxu0
        %v7639 = vadd.f32 0.0, %v7638
        %v7640 = vpop.f32.mrf.mxu0
        %v7641 = vpop.f32.mrf.mxu0
        %v7642 = vadd.f32 0.0, %v7641
        %v7643 = vpop.f32.mrf.mxu0
        %7644 = vmatprep.mubr.bf16.mxu0 0
        %7645 = vmatmul.mubr.bf16.gmra.mxu0 %v6936
        %v7646 = vpop.f32.mrf.mxu0
        %v7647 = vadd.f32 0.0, %v7646
        %v7648 = vpop.f32.mrf.mxu0
        %v7649 = vpop.f32.mrf.mxu0
        %v7650 = vadd.f32 0.0, %v7649
        %v7651 = vpop.f32.mrf.mxu0
        %7652 = vmatprep.mubr.bf16.mxu0 0
        %7653 = vmatmul.mubr.bf16.gmra.mxu0 %v6937
        %v7654 = vpop.f32.mrf.mxu0
        %v7655 = vadd.f32 0.0, %v7654
        %v7656 = vpop.f32.mrf.mxu0
        %v7657 = vpop.f32.mrf.mxu0
        %v7658 = vadd.f32 0.0, %v7657
        %v7659 = vpop.f32.mrf.mxu0
        %7660 = vmatprep.mubr.bf16.mxu0 0
        %7661 = vmatmul.mubr.bf16.gmra.mxu0 %v6938
        %v7662 = vpop.f32.mrf.mxu0
        %v7663 = vadd.f32 0.0, %v7662
        %v7664 = vpop.f32.mrf.mxu0
        %v7665 = vpop.f32.mrf.mxu0
        %v7666 = vadd.f32 0.0, %v7665
        %v7667 = vpop.f32.mrf.mxu0
        %7668 = vmatprep.mubr.bf16.mxu0 0
        %7669 = vmatmul.mubr.bf16.gmra.mxu0 %v6939
        %v7670 = vpop.f32.mrf.mxu0
        %v7671 = vadd.f32 0.0, %v7670
        %v7672 = vpop.f32.mrf.mxu0
        %v7673 = vpop.f32.mrf.mxu0
        %v7674 = vadd.f32 0.0, %v7673
        %v7675 = vpop.f32.mrf.mxu0
        %7676 = vmatprep.mubr.bf16.mxu0 0
        %7677 = vmatmul.mubr.bf16.gmra.mxu0 %v6940
        %v7678 = vpop.f32.mrf.mxu0
        %v7679 = vadd.f32 0.0, %v7678
        %v7680 = vpop.f32.mrf.mxu0
        %v7681 = vpop.f32.mrf.mxu0
        %v7682 = vadd.f32 0.0, %v7681
        %v7683 = vpop.f32.mrf.mxu0
        %7684 = vmatprep.mubr.bf16.mxu0 0
        %7685 = vmatmul.mubr.bf16.gmra.mxu0 %v6941
        %v7686 = vpop.f32.mrf.mxu0
        %v7687 = vadd.f32 0.0, %v7686
        %v7688 = vpop.f32.mrf.mxu0
        %v7689 = vpop.f32.mrf.mxu0
        %v7690 = vadd.f32 0.0, %v7689
        %v7691 = vpop.f32.mrf.mxu0
        %7692 = vdwg.mxu0
        %7693 = vmatprep.subr.bf16.mxu0 0
        %7694 = vmatpush1.bf16.msra.mxu0 %v7013
        %7695 = vmatprep.subr.bf16.mxu0 0
        %7696 = vmatpush1.bf16.msra.mxu0 %v7012
        %7697 = vmatprep.subr.bf16.mxu0 0
        %7698 = vmatpush1.bf16.msra.mxu0 %v7011
        %7699 = vmatprep.subr.bf16.mxu0 0
        %7700 = vmatpush1.bf16.msra.mxu0 %v7010
        %7701 = vmatprep.subr.bf16.mxu0 0
        %7702 = vmatpush1.bf16.msra.mxu0 %v7009
        %7703 = vmatprep.subr.bf16.mxu0 0
        %7704 = vmatpush1.bf16.msra.mxu0 %v7008
        %7705 = vmatprep.subr.bf16.mxu0 0
        %7706 = vmatpush1.bf16.msra.mxu0 %v7007
        %7707 = vmatprep.subr.bf16.mxu0 0
        %7708 = vmatpush1.bf16.msra.mxu0 %v7006
        %7709 = vmatprep.subr.bf16.mxu0 0
        %7710 = vmatpush2.bf16.msra.mxu0 0
        %7711 = vmatprep.subr.bf16.mxu0 0
        %7712 = vmatpush2.bf16.msra.mxu0 0
        %7713 = vmatprep.subr.bf16.mxu0 0
        %7714 = vmatpush2.bf16.msra.mxu0 0
        %7715 = vmatprep.subr.bf16.mxu0 0
        %7716 = vmatpush2.bf16.msra.mxu0 0
        %7717 = vmatprep.subr.bf16.mxu0 0
        %7718 = vmatpush2.bf16.msra.mxu0 0
        %7719 = vmatprep.subr.bf16.mxu0 0
        %7720 = vmatpush2.bf16.msra.mxu0 0
        %7721 = vmatprep.subr.bf16.mxu0 0
        %7722 = vmatpush2.bf16.msra.mxu0 0
        %7723 = vmatprep.subr.bf16.mxu0 0
        %7724 = vmatpush2.bf16.msra.mxu0 0
        %7725 = vmatprep.mubr.bf16.mxu0 0
        %7726 = vmatmul.mubr.bf16.gmra.mxu0 %v6942
        %v7727 = vpop.f32.mrf.mxu0
        %v7728 = vadd.f32 0.0, %v7727
        %v7729 = vpop.f32.mrf.mxu0
        %v7730 = vpop.f32.mrf.mxu0
        %v7731 = vadd.f32 0.0, %v7730
        %v7732 = vpop.f32.mrf.mxu0
        %7733 = vmatprep.mubr.bf16.mxu0 0
        %7734 = vmatmul.mubr.bf16.gmra.mxu0 %v6943
        %v7735 = vpop.f32.mrf.mxu0
        %v7736 = vadd.f32 0.0, %v7735
        %v7737 = vpop.f32.mrf.mxu0
        %v7738 = vpop.f32.mrf.mxu0
        %v7739 = vadd.f32 0.0, %v7738
        %v7740 = vpop.f32.mrf.mxu0
        %7741 = vmatprep.mubr.bf16.mxu0 0
        %7742 = vmatmul.mubr.bf16.gmra.mxu0 %v6944
        %v7743 = vpop.f32.mrf.mxu0
        %v7744 = vadd.f32 0.0, %v7743
        %v7745 = vpop.f32.mrf.mxu0
        %v7746 = vpop.f32.mrf.mxu0
        %v7747 = vadd.f32 0.0, %v7746
        %v7748 = vpop.f32.mrf.mxu0
        %7749 = vmatprep.mubr.bf16.mxu0 0
        %7750 = vmatmul.mubr.bf16.gmra.mxu0 %v6945
        %v7751 = vpop.f32.mrf.mxu0
        %v7752 = vadd.f32 0.0, %v7751
        %v7753 = vpop.f32.mrf.mxu0
        %v7754 = vpop.f32.mrf.mxu0
        %v7755 = vadd.f32 0.0, %v7754
        %v7756 = vpop.f32.mrf.mxu0
        %7757 = vmatprep.mubr.bf16.mxu0 0
        %7758 = vmatmul.mubr.bf16.gmra.mxu0 %v6946
        %v7759 = vpop.f32.mrf.mxu0
        %v7760 = vadd.f32 0.0, %v7759
        %v7761 = vpop.f32.mrf.mxu0
        %v7762 = vpop.f32.mrf.mxu0
        %v7763 = vadd.f32 0.0, %v7762
        %v7764 = vpop.f32.mrf.mxu0
        %7765 = vmatprep.mubr.bf16.mxu0 0
        %7766 = vmatmul.mubr.bf16.gmra.mxu0 %v6947
        %v7767 = vpop.f32.mrf.mxu0
        %v7768 = vadd.f32 0.0, %v7767
        %v7769 = vpop.f32.mrf.mxu0
        %v7770 = vpop.f32.mrf.mxu0
        %v7771 = vadd.f32 0.0, %v7770
        %v7772 = vpop.f32.mrf.mxu0
        %7773 = vmatprep.mubr.bf16.mxu0 0
        %7774 = vmatmul.mubr.bf16.gmra.mxu0 %v6948
        %v7775 = vpop.f32.mrf.mxu0
        %v7776 = vadd.f32 0.0, %v7775
        %v7777 = vpop.f32.mrf.mxu0
        %v7778 = vpop.f32.mrf.mxu0
        %v7779 = vadd.f32 0.0, %v7778
        %v7780 = vpop.f32.mrf.mxu0
        %7781 = vmatprep.mubr.bf16.mxu0 0
        %7782 = vmatmul.mubr.bf16.gmra.mxu0 %v6949
        %v7783 = vpop.f32.mrf.mxu0
        %v7784 = vadd.f32 0.0, %v7783
        %v7785 = vpop.f32.mrf.mxu0
        %v7786 = vpop.f32.mrf.mxu0
        %v7787 = vadd.f32 0.0, %v7786
        %v7788 = vpop.f32.mrf.mxu0
        %7789 = vdwg.mxu0
        %v7790 = vpack.c.bf16 %v7052, %v7049
        %v7791 = vpack.c.bf16 %v7060, %v7057
        %v7792 = vpack.c.bf16 %v7068, %v7065
        %v7793 = vpack.c.bf16 %v7076, %v7073
        %v7794 = vpack.c.bf16 %v7084, %v7081
        %v7795 = vpack.c.bf16 %v7092, %v7089
        %v7796 = vpack.c.bf16 %v7100, %v7097
        %v7797 = vpack.c.bf16 %v7108, %v7105
        %v7798 = vpack.c.bf16 %v7149, %v7146
        %v7799 = vpack.c.bf16 %v7157, %v7154
        %v7800 = vpack.c.bf16 %v7165, %v7162
        %v7801 = vpack.c.bf16 %v7173, %v7170
        %v7802 = vpack.c.bf16 %v7181, %v7178
        %v7803 = vpack.c.bf16 %v7189, %v7186
        %v7804 = vpack.c.bf16 %v7197, %v7194
        %v7805 = vpack.c.bf16 %v7205, %v7202
        %v7806 = vpack.c.bf16 %v7246, %v7243
        %v7807 = vpack.c.bf16 %v7254, %v7251
        %v7808 = vpack.c.bf16 %v7262, %v7259
        %v7809 = vpack.c.bf16 %v7270, %v7267
        %v7810 = vpack.c.bf16 %v7278, %v7275
        %v7811 = vpack.c.bf16 %v7286, %v7283
        %v7812 = vpack.c.bf16 %v7294, %v7291
        %v7813 = vpack.c.bf16 %v7302, %v7299
        %v7814 = vpack.c.bf16 %v7343, %v7340
        %v7815 = vpack.c.bf16 %v7351, %v7348
        %v7816 = vpack.c.bf16 %v7359, %v7356
        %v7817 = vpack.c.bf16 %v7367, %v7364
        %v7818 = vpack.c.bf16 %v7375, %v7372
        %v7819 = vpack.c.bf16 %v7383, %v7380
        %v7820 = vpack.c.bf16 %v7391, %v7388
        %v7821 = vpack.c.bf16 %v7399, %v7396
        %v7822 = vpack.c.bf16 %v7440, %v7437
        %v7823 = vpack.c.bf16 %v7448, %v7445
        %v7824 = vpack.c.bf16 %v7456, %v7453
        %v7825 = vpack.c.bf16 %v7464, %v7461
        %v7826 = vpack.c.bf16 %v7472, %v7469
        %v7827 = vpack.c.bf16 %v7480, %v7477
        %v7828 = vpack.c.bf16 %v7488, %v7485
        %v7829 = vpack.c.bf16 %v7496, %v7493
        %v7830 = vpack.c.bf16 %v7537, %v7534
        %v7831 = vpack.c.bf16 %v7545, %v7542
        %v7832 = vpack.c.bf16 %v7553, %v7550
        %v7833 = vpack.c.bf16 %v7561, %v7558
        %v7834 = vpack.c.bf16 %v7569, %v7566
        %v7835 = vpack.c.bf16 %v7577, %v7574
        %v7836 = vpack.c.bf16 %v7585, %v7582
        %v7837 = vpack.c.bf16 %v7593, %v7590
        %v7838 = vpack.c.bf16 %v7634, %v7631
        %v7839 = vpack.c.bf16 %v7642, %v7639
        %v7840 = vpack.c.bf16 %v7650, %v7647
        %v7841 = vpack.c.bf16 %v7658, %v7655
        %v7842 = vpack.c.bf16 %v7666, %v7663
        %v7843 = vpack.c.bf16 %v7674, %v7671
        %v7844 = vpack.c.bf16 %v7682, %v7679
        %v7845 = vpack.c.bf16 %v7690, %v7687
        %v7846 = vpack.c.bf16 %v7731, %v7728
        %v7847 = vpack.c.bf16 %v7739, %v7736
        %v7848 = vpack.c.bf16 %v7747, %v7744
        %v7849 = vpack.c.bf16 %v7755, %v7752
        %v7850 = vpack.c.bf16 %v7763, %v7760
        %v7851 = vpack.c.bf16 %v7771, %v7768
        %v7852 = vpack.c.bf16 %v7779, %v7776
        %v7853 = vpack.c.bf16 %v7787, %v7784
        %v7854 = vld [vmem:[%s6] sm:$0xf]
        %v7855 = vld [vmem:[%s6 + $0x4] sm:$0xf]
        %v7856 = vld [vmem:[%s6 + $0x8] sm:$0xf]
        %v7857 = vld [vmem:[%s6 + $0xc] sm:$0xf]
        %v7858 = vld [vmem:[%s6 + $0x10] sm:$0xf]
        %v7859 = vld [vmem:[%s6 + $0x14] sm:$0xf]
        %v7860 = vld [vmem:[%s6 + $0x18] sm:$0xf]
        %v7861 = vld [vmem:[%s6 + $0x1c] sm:$0xf]
        %v7862 = vld [vmem:[%s6 + $0x20] sm:$0xf]
        %v7863 = vld [vmem:[%s6 + $0x24] sm:$0xf]
        %v7864 = vld [vmem:[%s6 + $0x28] sm:$0xf]
        %v7865 = vld [vmem:[%s6 + $0x2c] sm:$0xf]
        %v7866 = vld [vmem:[%s6 + $0x30] sm:$0xf]
        %v7867 = vld [vmem:[%s6 + $0x34] sm:$0xf]
        %v7868 = vld [vmem:[%s6 + $0x38] sm:$0xf]
        %v7869 = vld [vmem:[%s6 + $0x3c] sm:$0xf]
        %v7872 = vunpack.c.l.b16 %v7854
        %v7873 = vunpack.c.l.b16 %v7855
        %v7874 = vpack.c.b16 %v7873, %v7872
        %v7877 = vsel %vm4573, %v7790, 0
        %v7880 = vsel %vm4573, %v7791, 0
        %v7883 = vsel %vm4573, %v7792, 0
        %v7886 = vsel %vm4573, %v7793, 0
        %v7889 = vsel %vm4573, %v7794, 0
        %v7892 = vsel %vm4573, %v7795, 0
        %v7895 = vsel %vm4573, %v7796, 0
        %v7898 = vsel %vm4573, %v7797, 0
        %7900 = vmatprep.subr.bf16.mxu0 0
        %7901 = vmatpush1.bf16.msra.mxu0 0
        %7902 = vmatprep.subr.bf16.mxu0 0
        %7903 = vmatpush1.bf16.msra.mxu0 0
        %7904 = vmatprep.subr.bf16.mxu0 0
        %7905 = vmatpush1.bf16.msra.mxu0 0
        %7906 = vmatprep.subr.bf16.mxu0 0
        %7907 = vmatpush1.bf16.msra.mxu0 0
        %7908 = vmatprep.subr.bf16.mxu0 0
        %7909 = vmatpush1.bf16.msra.mxu0 0
        %7910 = vmatprep.subr.bf16.mxu0 0
        %7911 = vmatpush1.bf16.msra.mxu0 0
        %7912 = vmatprep.subr.bf16.mxu0 0
        %7913 = vmatpush1.bf16.msra.mxu0 0
        %7914 = vmatprep.subr.bf16.mxu0 0
        %7915 = vmatpush1.bf16.msra.mxu0 %v7874
        %7916 = vmatprep.subr.bf16.mxu0 0
        %7917 = vmatpush2.bf16.msra.mxu0 0
        %7918 = vmatprep.subr.bf16.mxu0 0
        %7919 = vmatpush2.bf16.msra.mxu0 0
        %7920 = vmatprep.subr.bf16.mxu0 0
        %7921 = vmatpush2.bf16.msra.mxu0 0
        %7922 = vmatprep.subr.bf16.mxu0 0
        %7923 = vmatpush2.bf16.msra.mxu0 0
        %7924 = vmatprep.subr.bf16.mxu0 0
        %7925 = vmatpush2.bf16.msra.mxu0 0
        %7926 = vmatprep.subr.bf16.mxu0 0
        %7927 = vmatpush2.bf16.msra.mxu0 0
        %7928 = vmatprep.subr.bf16.mxu0 0
        %7929 = vmatpush2.bf16.msra.mxu0 0
        %7930 = vmatprep.subr.bf16.mxu0 0
        %7931 = vmatpush2.bf16.msra.mxu0 0
        %7932 = vmatprep.mubr.bf16.mxu0 0
        %7933 = vmatmul.mubr.bf16.gmra.mxu0 %v7877
        %v7934 = vpop.f32.mrf.mxu0
        %v7935 = vadd.f32 0.0, %v7934
        %v7936 = vpop.f32.mrf.mxu0
        %v7937 = vpop.f32.mrf.mxu0
        %v7938 = vadd.f32 0.0, %v7937
        %v7939 = vpop.f32.mrf.mxu0
        %7940 = vmatprep.mubr.bf16.mxu0 0
        %7941 = vmatmul.mubr.bf16.gmra.mxu0 %v7880
        %v7942 = vpop.f32.mrf.mxu0
        %v7943 = vadd.f32 0.0, %v7942
        %v7944 = vpop.f32.mrf.mxu0
        %v7945 = vpop.f32.mrf.mxu0
        %v7946 = vadd.f32 0.0, %v7945
        %v7947 = vpop.f32.mrf.mxu0
        %7948 = vmatprep.mubr.bf16.mxu0 0
        %7949 = vmatmul.mubr.bf16.gmra.mxu0 %v7883
        %v7950 = vpop.f32.mrf.mxu0
        %v7951 = vadd.f32 0.0, %v7950
        %v7952 = vpop.f32.mrf.mxu0
        %v7953 = vpop.f32.mrf.mxu0
        %v7954 = vadd.f32 0.0, %v7953
        %v7955 = vpop.f32.mrf.mxu0
        %7956 = vmatprep.mubr.bf16.mxu0 0
        %7957 = vmatmul.mubr.bf16.gmra.mxu0 %v7886
        %v7958 = vpop.f32.mrf.mxu0
        %v7959 = vadd.f32 0.0, %v7958
        %v7960 = vpop.f32.mrf.mxu0
        %v7961 = vpop.f32.mrf.mxu0
        %v7962 = vadd.f32 0.0, %v7961
        %v7963 = vpop.f32.mrf.mxu0
        %7964 = vmatprep.mubr.bf16.mxu0 0
        %7965 = vmatmul.mubr.bf16.gmra.mxu0 %v7889
        %v7966 = vpop.f32.mrf.mxu0
        %v7967 = vadd.f32 0.0, %v7966
        %v7968 = vpop.f32.mrf.mxu0
        %v7969 = vpop.f32.mrf.mxu0
        %v7970 = vadd.f32 0.0, %v7969
        %v7971 = vpop.f32.mrf.mxu0
        %7972 = vmatprep.mubr.bf16.mxu0 0
        %7973 = vmatmul.mubr.bf16.gmra.mxu0 %v7892
        %v7974 = vpop.f32.mrf.mxu0
        %v7975 = vadd.f32 0.0, %v7974
        %v7976 = vpop.f32.mrf.mxu0
        %v7977 = vpop.f32.mrf.mxu0
        %v7978 = vadd.f32 0.0, %v7977
        %v7979 = vpop.f32.mrf.mxu0
        %7980 = vmatprep.mubr.bf16.mxu0 0
        %7981 = vmatmul.mubr.bf16.gmra.mxu0 %v7895
        %v7982 = vpop.f32.mrf.mxu0
        %v7983 = vadd.f32 0.0, %v7982
        %v7984 = vpop.f32.mrf.mxu0
        %v7985 = vpop.f32.mrf.mxu0
        %v7986 = vadd.f32 0.0, %v7985
        %v7987 = vpop.f32.mrf.mxu0
        %7988 = vmatprep.mubr.bf16.mxu0 0
        %7989 = vmatmul.mubr.bf16.gmra.mxu0 %v7898
        %v7990 = vpop.f32.mrf.mxu0
        %v7991 = vadd.f32 0.0, %v7990
        %v7992 = vpop.f32.mrf.mxu0
        %v7993 = vpop.f32.mrf.mxu0
        %v7994 = vadd.f32 0.0, %v7993
        %v7995 = vpop.f32.mrf.mxu0
        %7996 = vdwg.mxu0
        %v7999 = vunpack.c.l.b16 %v7856
        %v8000 = vunpack.c.l.b16 %v7857
        %v8001 = vpack.c.b16 %v8000, %v7999
        %v8004 = vsel %vm4573, %v7798, 0
        %v8007 = vsel %vm4573, %v7799, 0
        %v8010 = vsel %vm4573, %v7800, 0
        %v8013 = vsel %vm4573, %v7801, 0
        %v8016 = vsel %vm4573, %v7802, 0
        %v8019 = vsel %vm4573, %v7803, 0
        %v8022 = vsel %vm4573, %v7804, 0
        %v8025 = vsel %vm4573, %v7805, 0
        %8027 = vmatprep.subr.bf16.mxu0 0
        %8028 = vmatpush1.bf16.msra.mxu0 0
        %8029 = vmatprep.subr.bf16.mxu0 0
        %8030 = vmatpush1.bf16.msra.mxu0 0
        %8031 = vmatprep.subr.bf16.mxu0 0
        %8032 = vmatpush1.bf16.msra.mxu0 0
        %8033 = vmatprep.subr.bf16.mxu0 0
        %8034 = vmatpush1.bf16.msra.mxu0 0
        %8035 = vmatprep.subr.bf16.mxu0 0
        %8036 = vmatpush1.bf16.msra.mxu0 0
        %8037 = vmatprep.subr.bf16.mxu0 0
        %8038 = vmatpush1.bf16.msra.mxu0 0
        %8039 = vmatprep.subr.bf16.mxu0 0
        %8040 = vmatpush1.bf16.msra.mxu0 0
        %8041 = vmatprep.subr.bf16.mxu0 0
        %8042 = vmatpush1.bf16.msra.mxu0 %v8001
        %8043 = vmatprep.subr.bf16.mxu0 0
        %8044 = vmatpush2.bf16.msra.mxu0 0
        %8045 = vmatprep.subr.bf16.mxu0 0
        %8046 = vmatpush2.bf16.msra.mxu0 0
        %8047 = vmatprep.subr.bf16.mxu0 0
        %8048 = vmatpush2.bf16.msra.mxu0 0
        %8049 = vmatprep.subr.bf16.mxu0 0
        %8050 = vmatpush2.bf16.msra.mxu0 0
        %8051 = vmatprep.subr.bf16.mxu0 0
        %8052 = vmatpush2.bf16.msra.mxu0 0
        %8053 = vmatprep.subr.bf16.mxu0 0
        %8054 = vmatpush2.bf16.msra.mxu0 0
        %8055 = vmatprep.subr.bf16.mxu0 0
        %8056 = vmatpush2.bf16.msra.mxu0 0
        %8057 = vmatprep.subr.bf16.mxu0 0
        %8058 = vmatpush2.bf16.msra.mxu0 0
        %8059 = vmatprep.mubr.bf16.mxu0 0
        %8060 = vmatmul.mubr.bf16.gmra.mxu0 %v8004
        %v8061 = vpop.f32.mrf.mxu0
        %v8062 = vadd.f32 0.0, %v8061
        %v8063 = vpop.f32.mrf.mxu0
        %v8064 = vpop.f32.mrf.mxu0
        %v8065 = vadd.f32 0.0, %v8064
        %v8066 = vpop.f32.mrf.mxu0
        %8067 = vmatprep.mubr.bf16.mxu0 0
        %8068 = vmatmul.mubr.bf16.gmra.mxu0 %v8007
        %v8069 = vpop.f32.mrf.mxu0
        %v8070 = vadd.f32 0.0, %v8069
        %v8071 = vpop.f32.mrf.mxu0
        %v8072 = vpop.f32.mrf.mxu0
        %v8073 = vadd.f32 0.0, %v8072
        %v8074 = vpop.f32.mrf.mxu0
        %8075 = vmatprep.mubr.bf16.mxu0 0
        %8076 = vmatmul.mubr.bf16.gmra.mxu0 %v8010
        %v8077 = vpop.f32.mrf.mxu0
        %v8078 = vadd.f32 0.0, %v8077
        %v8079 = vpop.f32.mrf.mxu0
        %v8080 = vpop.f32.mrf.mxu0
        %v8081 = vadd.f32 0.0, %v8080
        %v8082 = vpop.f32.mrf.mxu0
        %8083 = vmatprep.mubr.bf16.mxu0 0
        %8084 = vmatmul.mubr.bf16.gmra.mxu0 %v8013
        %v8085 = vpop.f32.mrf.mxu0
        %v8086 = vadd.f32 0.0, %v8085
        %v8087 = vpop.f32.mrf.mxu0
        %v8088 = vpop.f32.mrf.mxu0
        %v8089 = vadd.f32 0.0, %v8088
        %v8090 = vpop.f32.mrf.mxu0
        %8091 = vmatprep.mubr.bf16.mxu0 0
        %8092 = vmatmul.mubr.bf16.gmra.mxu0 %v8016
        %v8093 = vpop.f32.mrf.mxu0
        %v8094 = vadd.f32 0.0, %v8093
        %v8095 = vpop.f32.mrf.mxu0
        %v8096 = vpop.f32.mrf.mxu0
        %v8097 = vadd.f32 0.0, %v8096
        %v8098 = vpop.f32.mrf.mxu0
        %8099 = vmatprep.mubr.bf16.mxu0 0
        %8100 = vmatmul.mubr.bf16.gmra.mxu0 %v8019
        %v8101 = vpop.f32.mrf.mxu0
        %v8102 = vadd.f32 0.0, %v8101
        %v8103 = vpop.f32.mrf.mxu0
        %v8104 = vpop.f32.mrf.mxu0
        %v8105 = vadd.f32 0.0, %v8104
        %v8106 = vpop.f32.mrf.mxu0
        %8107 = vmatprep.mubr.bf16.mxu0 0
        %8108 = vmatmul.mubr.bf16.gmra.mxu0 %v8022
        %v8109 = vpop.f32.mrf.mxu0
        %v8110 = vadd.f32 0.0, %v8109
        %v8111 = vpop.f32.mrf.mxu0
        %v8112 = vpop.f32.mrf.mxu0
        %v8113 = vadd.f32 0.0, %v8112
        %v8114 = vpop.f32.mrf.mxu0
        %8115 = vmatprep.mubr.bf16.mxu0 0
        %8116 = vmatmul.mubr.bf16.gmra.mxu0 %v8025
        %v8117 = vpop.f32.mrf.mxu0
        %v8118 = vadd.f32 0.0, %v8117
        %v8119 = vpop.f32.mrf.mxu0
        %v8120 = vpop.f32.mrf.mxu0
        %v8121 = vadd.f32 0.0, %v8120
        %v8122 = vpop.f32.mrf.mxu0
        %8123 = vdwg.mxu0
        %v8126 = vunpack.c.l.b16 %v7858
        %v8127 = vunpack.c.l.b16 %v7859
        %v8128 = vpack.c.b16 %v8127, %v8126
        %v8131 = vsel %vm4573, %v7806, 0
        %v8134 = vsel %vm4573, %v7807, 0
        %v8137 = vsel %vm4573, %v7808, 0
        %v8140 = vsel %vm4573, %v7809, 0
        %v8143 = vsel %vm4573, %v7810, 0
        %v8146 = vsel %vm4573, %v7811, 0
        %v8149 = vsel %vm4573, %v7812, 0
        %v8152 = vsel %vm4573, %v7813, 0
        %8154 = vmatprep.subr.bf16.mxu0 0
        %8155 = vmatpush1.bf16.msra.mxu0 0
        %8156 = vmatprep.subr.bf16.mxu0 0
        %8157 = vmatpush1.bf16.msra.mxu0 0
        %8158 = vmatprep.subr.bf16.mxu0 0
        %8159 = vmatpush1.bf16.msra.mxu0 0
        %8160 = vmatprep.subr.bf16.mxu0 0
        %8161 = vmatpush1.bf16.msra.mxu0 0
        %8162 = vmatprep.subr.bf16.mxu0 0
        %8163 = vmatpush1.bf16.msra.mxu0 0
        %8164 = vmatprep.subr.bf16.mxu0 0
        %8165 = vmatpush1.bf16.msra.mxu0 0
        %8166 = vmatprep.subr.bf16.mxu0 0
        %8167 = vmatpush1.bf16.msra.mxu0 0
        %8168 = vmatprep.subr.bf16.mxu0 0
        %8169 = vmatpush1.bf16.msra.mxu0 %v8128
        %8170 = vmatprep.subr.bf16.mxu0 0
        %8171 = vmatpush2.bf16.msra.mxu0 0
        %8172 = vmatprep.subr.bf16.mxu0 0
        %8173 = vmatpush2.bf16.msra.mxu0 0
        %8174 = vmatprep.subr.bf16.mxu0 0
        %8175 = vmatpush2.bf16.msra.mxu0 0
        %8176 = vmatprep.subr.bf16.mxu0 0
        %8177 = vmatpush2.bf16.msra.mxu0 0
        %8178 = vmatprep.subr.bf16.mxu0 0
        %8179 = vmatpush2.bf16.msra.mxu0 0
        %8180 = vmatprep.subr.bf16.mxu0 0
        %8181 = vmatpush2.bf16.msra.mxu0 0
        %8182 = vmatprep.subr.bf16.mxu0 0
        %8183 = vmatpush2.bf16.msra.mxu0 0
        %8184 = vmatprep.subr.bf16.mxu0 0
        %8185 = vmatpush2.bf16.msra.mxu0 0
        %8186 = vmatprep.mubr.bf16.mxu0 0
        %8187 = vmatmul.mubr.bf16.gmra.mxu0 %v8131
        %v8188 = vpop.f32.mrf.mxu0
        %v8189 = vadd.f32 0.0, %v8188
        %v8190 = vpop.f32.mrf.mxu0
        %v8191 = vpop.f32.mrf.mxu0
        %v8192 = vadd.f32 0.0, %v8191
        %v8193 = vpop.f32.mrf.mxu0
        %8194 = vmatprep.mubr.bf16.mxu0 0
        %8195 = vmatmul.mubr.bf16.gmra.mxu0 %v8134
        %v8196 = vpop.f32.mrf.mxu0
        %v8197 = vadd.f32 0.0, %v8196
        %v8198 = vpop.f32.mrf.mxu0
        %v8199 = vpop.f32.mrf.mxu0
        %v8200 = vadd.f32 0.0, %v8199
        %v8201 = vpop.f32.mrf.mxu0
        %8202 = vmatprep.mubr.bf16.mxu0 0
        %8203 = vmatmul.mubr.bf16.gmra.mxu0 %v8137
        %v8204 = vpop.f32.mrf.mxu0
        %v8205 = vadd.f32 0.0, %v8204
        %v8206 = vpop.f32.mrf.mxu0
        %v8207 = vpop.f32.mrf.mxu0
        %v8208 = vadd.f32 0.0, %v8207
        %v8209 = vpop.f32.mrf.mxu0
        %8210 = vmatprep.mubr.bf16.mxu0 0
        %8211 = vmatmul.mubr.bf16.gmra.mxu0 %v8140
        %v8212 = vpop.f32.mrf.mxu0
        %v8213 = vadd.f32 0.0, %v8212
        %v8214 = vpop.f32.mrf.mxu0
        %v8215 = vpop.f32.mrf.mxu0
        %v8216 = vadd.f32 0.0, %v8215
        %v8217 = vpop.f32.mrf.mxu0
        %8218 = vmatprep.mubr.bf16.mxu0 0
        %8219 = vmatmul.mubr.bf16.gmra.mxu0 %v8143
        %v8220 = vpop.f32.mrf.mxu0
        %v8221 = vadd.f32 0.0, %v8220
        %v8222 = vpop.f32.mrf.mxu0
        %v8223 = vpop.f32.mrf.mxu0
        %v8224 = vadd.f32 0.0, %v8223
        %v8225 = vpop.f32.mrf.mxu0
        %8226 = vmatprep.mubr.bf16.mxu0 0
        %8227 = vmatmul.mubr.bf16.gmra.mxu0 %v8146
        %v8228 = vpop.f32.mrf.mxu0
        %v8229 = vadd.f32 0.0, %v8228
        %v8230 = vpop.f32.mrf.mxu0
        %v8231 = vpop.f32.mrf.mxu0
        %v8232 = vadd.f32 0.0, %v8231
        %v8233 = vpop.f32.mrf.mxu0
        %8234 = vmatprep.mubr.bf16.mxu0 0
        %8235 = vmatmul.mubr.bf16.gmra.mxu0 %v8149
        %v8236 = vpop.f32.mrf.mxu0
        %v8237 = vadd.f32 0.0, %v8236
        %v8238 = vpop.f32.mrf.mxu0
        %v8239 = vpop.f32.mrf.mxu0
        %v8240 = vadd.f32 0.0, %v8239
        %v8241 = vpop.f32.mrf.mxu0
        %8242 = vmatprep.mubr.bf16.mxu0 0
        %8243 = vmatmul.mubr.bf16.gmra.mxu0 %v8152
        %v8244 = vpop.f32.mrf.mxu0
        %v8245 = vadd.f32 0.0, %v8244
        %v8246 = vpop.f32.mrf.mxu0
        %v8247 = vpop.f32.mrf.mxu0
        %v8248 = vadd.f32 0.0, %v8247
        %v8249 = vpop.f32.mrf.mxu0
        %8250 = vdwg.mxu0
        %v8253 = vunpack.c.l.b16 %v7860
        %v8254 = vunpack.c.l.b16 %v7861
        %v8255 = vpack.c.b16 %v8254, %v8253
        %v8258 = vsel %vm4573, %v7814, 0
        %v8261 = vsel %vm4573, %v7815, 0
        %v8264 = vsel %vm4573, %v7816, 0
        %v8267 = vsel %vm4573, %v7817, 0
        %v8270 = vsel %vm4573, %v7818, 0
        %v8273 = vsel %vm4573, %v7819, 0
        %v8276 = vsel %vm4573, %v7820, 0
        %v8279 = vsel %vm4573, %v7821, 0
        %8281 = vmatprep.subr.bf16.mxu0 0
        %8282 = vmatpush1.bf16.msra.mxu0 0
        %8283 = vmatprep.subr.bf16.mxu0 0
        %8284 = vmatpush1.bf16.msra.mxu0 0
        %8285 = vmatprep.subr.bf16.mxu0 0
        %8286 = vmatpush1.bf16.msra.mxu0 0
        %8287 = vmatprep.subr.bf16.mxu0 0
        %8288 = vmatpush1.bf16.msra.mxu0 0
        %8289 = vmatprep.subr.bf16.mxu0 0
        %8290 = vmatpush1.bf16.msra.mxu0 0
        %8291 = vmatprep.subr.bf16.mxu0 0
        %8292 = vmatpush1.bf16.msra.mxu0 0
        %8293 = vmatprep.subr.bf16.mxu0 0
        %8294 = vmatpush1.bf16.msra.mxu0 0
        %8295 = vmatprep.subr.bf16.mxu0 0
        %8296 = vmatpush1.bf16.msra.mxu0 %v8255
        %8297 = vmatprep.subr.bf16.mxu0 0
        %8298 = vmatpush2.bf16.msra.mxu0 0
        %8299 = vmatprep.subr.bf16.mxu0 0
        %8300 = vmatpush2.bf16.msra.mxu0 0
        %8301 = vmatprep.subr.bf16.mxu0 0
        %8302 = vmatpush2.bf16.msra.mxu0 0
        %8303 = vmatprep.subr.bf16.mxu0 0
        %8304 = vmatpush2.bf16.msra.mxu0 0
        %8305 = vmatprep.subr.bf16.mxu0 0
        %8306 = vmatpush2.bf16.msra.mxu0 0
        %8307 = vmatprep.subr.bf16.mxu0 0
        %8308 = vmatpush2.bf16.msra.mxu0 0
        %8309 = vmatprep.subr.bf16.mxu0 0
        %8310 = vmatpush2.bf16.msra.mxu0 0
        %8311 = vmatprep.subr.bf16.mxu0 0
        %8312 = vmatpush2.bf16.msra.mxu0 0
        %8313 = vmatprep.mubr.bf16.mxu0 0
        %8314 = vmatmul.mubr.bf16.gmra.mxu0 %v8258
        %v8315 = vpop.f32.mrf.mxu0
        %v8316 = vadd.f32 0.0, %v8315
        %v8317 = vpop.f32.mrf.mxu0
        %v8318 = vpop.f32.mrf.mxu0
        %v8319 = vadd.f32 0.0, %v8318
        %v8320 = vpop.f32.mrf.mxu0
        %8321 = vmatprep.mubr.bf16.mxu0 0
        %8322 = vmatmul.mubr.bf16.gmra.mxu0 %v8261
        %v8323 = vpop.f32.mrf.mxu0
        %v8324 = vadd.f32 0.0, %v8323
        %v8325 = vpop.f32.mrf.mxu0
        %v8326 = vpop.f32.mrf.mxu0
        %v8327 = vadd.f32 0.0, %v8326
        %v8328 = vpop.f32.mrf.mxu0
        %8329 = vmatprep.mubr.bf16.mxu0 0
        %8330 = vmatmul.mubr.bf16.gmra.mxu0 %v8264
        %v8331 = vpop.f32.mrf.mxu0
        %v8332 = vadd.f32 0.0, %v8331
        %v8333 = vpop.f32.mrf.mxu0
        %v8334 = vpop.f32.mrf.mxu0
        %v8335 = vadd.f32 0.0, %v8334
        %v8336 = vpop.f32.mrf.mxu0
        %8337 = vmatprep.mubr.bf16.mxu0 0
        %8338 = vmatmul.mubr.bf16.gmra.mxu0 %v8267
        %v8339 = vpop.f32.mrf.mxu0
        %v8340 = vadd.f32 0.0, %v8339
        %v8341 = vpop.f32.mrf.mxu0
        %v8342 = vpop.f32.mrf.mxu0
        %v8343 = vadd.f32 0.0, %v8342
        %v8344 = vpop.f32.mrf.mxu0
        %8345 = vmatprep.mubr.bf16.mxu0 0
        %8346 = vmatmul.mubr.bf16.gmra.mxu0 %v8270
        %v8347 = vpop.f32.mrf.mxu0
        %v8348 = vadd.f32 0.0, %v8347
        %v8349 = vpop.f32.mrf.mxu0
        %v8350 = vpop.f32.mrf.mxu0
        %v8351 = vadd.f32 0.0, %v8350
        %v8352 = vpop.f32.mrf.mxu0
        %8353 = vmatprep.mubr.bf16.mxu0 0
        %8354 = vmatmul.mubr.bf16.gmra.mxu0 %v8273
        %v8355 = vpop.f32.mrf.mxu0
        %v8356 = vadd.f32 0.0, %v8355
        %v8357 = vpop.f32.mrf.mxu0
        %v8358 = vpop.f32.mrf.mxu0
        %v8359 = vadd.f32 0.0, %v8358
        %v8360 = vpop.f32.mrf.mxu0
        %8361 = vmatprep.mubr.bf16.mxu0 0
        %8362 = vmatmul.mubr.bf16.gmra.mxu0 %v8276
        %v8363 = vpop.f32.mrf.mxu0
        %v8364 = vadd.f32 0.0, %v8363
        %v8365 = vpop.f32.mrf.mxu0
        %v8366 = vpop.f32.mrf.mxu0
        %v8367 = vadd.f32 0.0, %v8366
        %v8368 = vpop.f32.mrf.mxu0
        %8369 = vmatprep.mubr.bf16.mxu0 0
        %8370 = vmatmul.mubr.bf16.gmra.mxu0 %v8279
        %v8371 = vpop.f32.mrf.mxu0
        %v8372 = vadd.f32 0.0, %v8371
        %v8373 = vpop.f32.mrf.mxu0
        %v8374 = vpop.f32.mrf.mxu0
        %v8375 = vadd.f32 0.0, %v8374
        %v8376 = vpop.f32.mrf.mxu0
        %8377 = vdwg.mxu0
        %v8380 = vunpack.c.l.b16 %v7862
        %v8381 = vunpack.c.l.b16 %v7863
        %v8382 = vpack.c.b16 %v8381, %v8380
        %v8385 = vsel %vm4573, %v7822, 0
        %v8388 = vsel %vm4573, %v7823, 0
        %v8391 = vsel %vm4573, %v7824, 0
        %v8394 = vsel %vm4573, %v7825, 0
        %v8397 = vsel %vm4573, %v7826, 0
        %v8400 = vsel %vm4573, %v7827, 0
        %v8403 = vsel %vm4573, %v7828, 0
        %v8406 = vsel %vm4573, %v7829, 0
        %8408 = vmatprep.subr.bf16.mxu0 0
        %8409 = vmatpush1.bf16.msra.mxu0 0
        %8410 = vmatprep.subr.bf16.mxu0 0
        %8411 = vmatpush1.bf16.msra.mxu0 0
        %8412 = vmatprep.subr.bf16.mxu0 0
        %8413 = vmatpush1.bf16.msra.mxu0 0
        %8414 = vmatprep.subr.bf16.mxu0 0
        %8415 = vmatpush1.bf16.msra.mxu0 0
        %8416 = vmatprep.subr.bf16.mxu0 0
        %8417 = vmatpush1.bf16.msra.mxu0 0
        %8418 = vmatprep.subr.bf16.mxu0 0
        %8419 = vmatpush1.bf16.msra.mxu0 0
        %8420 = vmatprep.subr.bf16.mxu0 0
        %8421 = vmatpush1.bf16.msra.mxu0 0
        %8422 = vmatprep.subr.bf16.mxu0 0
        %8423 = vmatpush1.bf16.msra.mxu0 %v8382
        %8424 = vmatprep.subr.bf16.mxu0 0
        %8425 = vmatpush2.bf16.msra.mxu0 0
        %8426 = vmatprep.subr.bf16.mxu0 0
        %8427 = vmatpush2.bf16.msra.mxu0 0
        %8428 = vmatprep.subr.bf16.mxu0 0
        %8429 = vmatpush2.bf16.msra.mxu0 0
        %8430 = vmatprep.subr.bf16.mxu0 0
        %8431 = vmatpush2.bf16.msra.mxu0 0
        %8432 = vmatprep.subr.bf16.mxu0 0
        %8433 = vmatpush2.bf16.msra.mxu0 0
        %8434 = vmatprep.subr.bf16.mxu0 0
        %8435 = vmatpush2.bf16.msra.mxu0 0
        %8436 = vmatprep.subr.bf16.mxu0 0
        %8437 = vmatpush2.bf16.msra.mxu0 0
        %8438 = vmatprep.subr.bf16.mxu0 0
        %8439 = vmatpush2.bf16.msra.mxu0 0
        %8440 = vmatprep.mubr.bf16.mxu0 0
        %8441 = vmatmul.mubr.bf16.gmra.mxu0 %v8385
        %v8442 = vpop.f32.mrf.mxu0
        %v8443 = vadd.f32 0.0, %v8442
        %v8444 = vpop.f32.mrf.mxu0
        %v8445 = vpop.f32.mrf.mxu0
        %v8446 = vadd.f32 0.0, %v8445
        %v8447 = vpop.f32.mrf.mxu0
        %8448 = vmatprep.mubr.bf16.mxu0 0
        %8449 = vmatmul.mubr.bf16.gmra.mxu0 %v8388
        %v8450 = vpop.f32.mrf.mxu0
        %v8451 = vadd.f32 0.0, %v8450
        %v8452 = vpop.f32.mrf.mxu0
        %v8453 = vpop.f32.mrf.mxu0
        %v8454 = vadd.f32 0.0, %v8453
        %v8455 = vpop.f32.mrf.mxu0
        %8456 = vmatprep.mubr.bf16.mxu0 0
        %8457 = vmatmul.mubr.bf16.gmra.mxu0 %v8391
        %v8458 = vpop.f32.mrf.mxu0
        %v8459 = vadd.f32 0.0, %v8458
        %v8460 = vpop.f32.mrf.mxu0
        %v8461 = vpop.f32.mrf.mxu0
        %v8462 = vadd.f32 0.0, %v8461
        %v8463 = vpop.f32.mrf.mxu0
        %8464 = vmatprep.mubr.bf16.mxu0 0
        %8465 = vmatmul.mubr.bf16.gmra.mxu0 %v8394
        %v8466 = vpop.f32.mrf.mxu0
        %v8467 = vadd.f32 0.0, %v8466
        %v8468 = vpop.f32.mrf.mxu0
        %v8469 = vpop.f32.mrf.mxu0
        %v8470 = vadd.f32 0.0, %v8469
        %v8471 = vpop.f32.mrf.mxu0
        %8472 = vmatprep.mubr.bf16.mxu0 0
        %8473 = vmatmul.mubr.bf16.gmra.mxu0 %v8397
        %v8474 = vpop.f32.mrf.mxu0
        %v8475 = vadd.f32 0.0, %v8474
        %v8476 = vpop.f32.mrf.mxu0
        %v8477 = vpop.f32.mrf.mxu0
        %v8478 = vadd.f32 0.0, %v8477
        %v8479 = vpop.f32.mrf.mxu0
        %8480 = vmatprep.mubr.bf16.mxu0 0
        %8481 = vmatmul.mubr.bf16.gmra.mxu0 %v8400
        %v8482 = vpop.f32.mrf.mxu0
        %v8483 = vadd.f32 0.0, %v8482
        %v8484 = vpop.f32.mrf.mxu0
        %v8485 = vpop.f32.mrf.mxu0
        %v8486 = vadd.f32 0.0, %v8485
        %v8487 = vpop.f32.mrf.mxu0
        %8488 = vmatprep.mubr.bf16.mxu0 0
        %8489 = vmatmul.mubr.bf16.gmra.mxu0 %v8403
        %v8490 = vpop.f32.mrf.mxu0
        %v8491 = vadd.f32 0.0, %v8490
        %v8492 = vpop.f32.mrf.mxu0
        %v8493 = vpop.f32.mrf.mxu0
        %v8494 = vadd.f32 0.0, %v8493
        %v8495 = vpop.f32.mrf.mxu0
        %8496 = vmatprep.mubr.bf16.mxu0 0
        %8497 = vmatmul.mubr.bf16.gmra.mxu0 %v8406
        %v8498 = vpop.f32.mrf.mxu0
        %v8499 = vadd.f32 0.0, %v8498
        %v8500 = vpop.f32.mrf.mxu0
        %v8501 = vpop.f32.mrf.mxu0
        %v8502 = vadd.f32 0.0, %v8501
        %v8503 = vpop.f32.mrf.mxu0
        %8504 = vdwg.mxu0
        %v8507 = vunpack.c.l.b16 %v7864
        %v8508 = vunpack.c.l.b16 %v7865
        %v8509 = vpack.c.b16 %v8508, %v8507
        %v8512 = vsel %vm4573, %v7830, 0
        %v8515 = vsel %vm4573, %v7831, 0
        %v8518 = vsel %vm4573, %v7832, 0
        %v8521 = vsel %vm4573, %v7833, 0
        %v8524 = vsel %vm4573, %v7834, 0
        %v8527 = vsel %vm4573, %v7835, 0
        %v8530 = vsel %vm4573, %v7836, 0
        %v8533 = vsel %vm4573, %v7837, 0
        %8535 = vmatprep.subr.bf16.mxu0 0
        %8536 = vmatpush1.bf16.msra.mxu0 0
        %8537 = vmatprep.subr.bf16.mxu0 0
        %8538 = vmatpush1.bf16.msra.mxu0 0
        %8539 = vmatprep.subr.bf16.mxu0 0
        %8540 = vmatpush1.bf16.msra.mxu0 0
        %8541 = vmatprep.subr.bf16.mxu0 0
        %8542 = vmatpush1.bf16.msra.mxu0 0
        %8543 = vmatprep.subr.bf16.mxu0 0
        %8544 = vmatpush1.bf16.msra.mxu0 0
        %8545 = vmatprep.subr.bf16.mxu0 0
        %8546 = vmatpush1.bf16.msra.mxu0 0
        %8547 = vmatprep.subr.bf16.mxu0 0
        %8548 = vmatpush1.bf16.msra.mxu0 0
        %8549 = vmatprep.subr.bf16.mxu0 0
        %8550 = vmatpush1.bf16.msra.mxu0 %v8509
        %8551 = vmatprep.subr.bf16.mxu0 0
        %8552 = vmatpush2.bf16.msra.mxu0 0
        %8553 = vmatprep.subr.bf16.mxu0 0
        %8554 = vmatpush2.bf16.msra.mxu0 0
        %8555 = vmatprep.subr.bf16.mxu0 0
        %8556 = vmatpush2.bf16.msra.mxu0 0
        %8557 = vmatprep.subr.bf16.mxu0 0
        %8558 = vmatpush2.bf16.msra.mxu0 0
        %8559 = vmatprep.subr.bf16.mxu0 0
        %8560 = vmatpush2.bf16.msra.mxu0 0
        %8561 = vmatprep.subr.bf16.mxu0 0
        %8562 = vmatpush2.bf16.msra.mxu0 0
        %8563 = vmatprep.subr.bf16.mxu0 0
        %8564 = vmatpush2.bf16.msra.mxu0 0
        %8565 = vmatprep.subr.bf16.mxu0 0
        %8566 = vmatpush2.bf16.msra.mxu0 0
        %8567 = vmatprep.mubr.bf16.mxu0 0
        %8568 = vmatmul.mubr.bf16.gmra.mxu0 %v8512
        %v8569 = vpop.f32.mrf.mxu0
        %v8570 = vadd.f32 0.0, %v8569
        %v8571 = vpop.f32.mrf.mxu0
        %v8572 = vpop.f32.mrf.mxu0
        %v8573 = vadd.f32 0.0, %v8572
        %v8574 = vpop.f32.mrf.mxu0
        %8575 = vmatprep.mubr.bf16.mxu0 0
        %8576 = vmatmul.mubr.bf16.gmra.mxu0 %v8515
        %v8577 = vpop.f32.mrf.mxu0
        %v8578 = vadd.f32 0.0, %v8577
        %v8579 = vpop.f32.mrf.mxu0
        %v8580 = vpop.f32.mrf.mxu0
        %v8581 = vadd.f32 0.0, %v8580
        %v8582 = vpop.f32.mrf.mxu0
        %8583 = vmatprep.mubr.bf16.mxu0 0
        %8584 = vmatmul.mubr.bf16.gmra.mxu0 %v8518
        %v8585 = vpop.f32.mrf.mxu0
        %v8586 = vadd.f32 0.0, %v8585
        %v8587 = vpop.f32.mrf.mxu0
        %v8588 = vpop.f32.mrf.mxu0
        %v8589 = vadd.f32 0.0, %v8588
        %v8590 = vpop.f32.mrf.mxu0
        %8591 = vmatprep.mubr.bf16.mxu0 0
        %8592 = vmatmul.mubr.bf16.gmra.mxu0 %v8521
        %v8593 = vpop.f32.mrf.mxu0
        %v8594 = vadd.f32 0.0, %v8593
        %v8595 = vpop.f32.mrf.mxu0
        %v8596 = vpop.f32.mrf.mxu0
        %v8597 = vadd.f32 0.0, %v8596
        %v8598 = vpop.f32.mrf.mxu0
        %8599 = vmatprep.mubr.bf16.mxu0 0
        %8600 = vmatmul.mubr.bf16.gmra.mxu0 %v8524
        %v8601 = vpop.f32.mrf.mxu0
        %v8602 = vadd.f32 0.0, %v8601
        %v8603 = vpop.f32.mrf.mxu0
        %v8604 = vpop.f32.mrf.mxu0
        %v8605 = vadd.f32 0.0, %v8604
        %v8606 = vpop.f32.mrf.mxu0
        %8607 = vmatprep.mubr.bf16.mxu0 0
        %8608 = vmatmul.mubr.bf16.gmra.mxu0 %v8527
        %v8609 = vpop.f32.mrf.mxu0
        %v8610 = vadd.f32 0.0, %v8609
        %v8611 = vpop.f32.mrf.mxu0
        %v8612 = vpop.f32.mrf.mxu0
        %v8613 = vadd.f32 0.0, %v8612
        %v8614 = vpop.f32.mrf.mxu0
        %8615 = vmatprep.mubr.bf16.mxu0 0
        %8616 = vmatmul.mubr.bf16.gmra.mxu0 %v8530
        %v8617 = vpop.f32.mrf.mxu0
        %v8618 = vadd.f32 0.0, %v8617
        %v8619 = vpop.f32.mrf.mxu0
        %v8620 = vpop.f32.mrf.mxu0
        %v8621 = vadd.f32 0.0, %v8620
        %v8622 = vpop.f32.mrf.mxu0
        %8623 = vmatprep.mubr.bf16.mxu0 0
        %8624 = vmatmul.mubr.bf16.gmra.mxu0 %v8533
        %v8625 = vpop.f32.mrf.mxu0
        %v8626 = vadd.f32 0.0, %v8625
        %v8627 = vpop.f32.mrf.mxu0
        %v8628 = vpop.f32.mrf.mxu0
        %v8629 = vadd.f32 0.0, %v8628
        %v8630 = vpop.f32.mrf.mxu0
        %8631 = vdwg.mxu0
        %v8634 = vunpack.c.l.b16 %v7866
        %v8635 = vunpack.c.l.b16 %v7867
        %v8636 = vpack.c.b16 %v8635, %v8634
        %v8639 = vsel %vm4573, %v7838, 0
        %v8642 = vsel %vm4573, %v7839, 0
        %v8645 = vsel %vm4573, %v7840, 0
        %v8648 = vsel %vm4573, %v7841, 0
        %v8651 = vsel %vm4573, %v7842, 0
        %v8654 = vsel %vm4573, %v7843, 0
        %v8657 = vsel %vm4573, %v7844, 0
        %v8660 = vsel %vm4573, %v7845, 0
        %8662 = vmatprep.subr.bf16.mxu0 0
        %8663 = vmatpush1.bf16.msra.mxu0 0
        %8664 = vmatprep.subr.bf16.mxu0 0
        %8665 = vmatpush1.bf16.msra.mxu0 0
        %8666 = vmatprep.subr.bf16.mxu0 0
        %8667 = vmatpush1.bf16.msra.mxu0 0
        %8668 = vmatprep.subr.bf16.mxu0 0
        %8669 = vmatpush1.bf16.msra.mxu0 0
        %8670 = vmatprep.subr.bf16.mxu0 0
        %8671 = vmatpush1.bf16.msra.mxu0 0
        %8672 = vmatprep.subr.bf16.mxu0 0
        %8673 = vmatpush1.bf16.msra.mxu0 0
        %8674 = vmatprep.subr.bf16.mxu0 0
        %8675 = vmatpush1.bf16.msra.mxu0 0
        %8676 = vmatprep.subr.bf16.mxu0 0
        %8677 = vmatpush1.bf16.msra.mxu0 %v8636
        %8678 = vmatprep.subr.bf16.mxu0 0
        %8679 = vmatpush2.bf16.msra.mxu0 0
        %8680 = vmatprep.subr.bf16.mxu0 0
        %8681 = vmatpush2.bf16.msra.mxu0 0
        %8682 = vmatprep.subr.bf16.mxu0 0
        %8683 = vmatpush2.bf16.msra.mxu0 0
        %8684 = vmatprep.subr.bf16.mxu0 0
        %8685 = vmatpush2.bf16.msra.mxu0 0
        %8686 = vmatprep.subr.bf16.mxu0 0
        %8687 = vmatpush2.bf16.msra.mxu0 0
        %8688 = vmatprep.subr.bf16.mxu0 0
        %8689 = vmatpush2.bf16.msra.mxu0 0
        %8690 = vmatprep.subr.bf16.mxu0 0
        %8691 = vmatpush2.bf16.msra.mxu0 0
        %8692 = vmatprep.subr.bf16.mxu0 0
        %8693 = vmatpush2.bf16.msra.mxu0 0
        %8694 = vmatprep.mubr.bf16.mxu0 0
        %8695 = vmatmul.mubr.bf16.gmra.mxu0 %v8639
        %v8696 = vpop.f32.mrf.mxu0
        %v8697 = vadd.f32 0.0, %v8696
        %v8698 = vpop.f32.mrf.mxu0
        %v8699 = vpop.f32.mrf.mxu0
        %v8700 = vadd.f32 0.0, %v8699
        %v8701 = vpop.f32.mrf.mxu0
        %8702 = vmatprep.mubr.bf16.mxu0 0
        %8703 = vmatmul.mubr.bf16.gmra.mxu0 %v8642
        %v8704 = vpop.f32.mrf.mxu0
        %v8705 = vadd.f32 0.0, %v8704
        %v8706 = vpop.f32.mrf.mxu0
        %v8707 = vpop.f32.mrf.mxu0
        %v8708 = vadd.f32 0.0, %v8707
        %v8709 = vpop.f32.mrf.mxu0
        %8710 = vmatprep.mubr.bf16.mxu0 0
        %8711 = vmatmul.mubr.bf16.gmra.mxu0 %v8645
        %v8712 = vpop.f32.mrf.mxu0
        %v8713 = vadd.f32 0.0, %v8712
        %v8714 = vpop.f32.mrf.mxu0
        %v8715 = vpop.f32.mrf.mxu0
        %v8716 = vadd.f32 0.0, %v8715
        %v8717 = vpop.f32.mrf.mxu0
        %8718 = vmatprep.mubr.bf16.mxu0 0
        %8719 = vmatmul.mubr.bf16.gmra.mxu0 %v8648
        %v8720 = vpop.f32.mrf.mxu0
        %v8721 = vadd.f32 0.0, %v8720
        %v8722 = vpop.f32.mrf.mxu0
        %v8723 = vpop.f32.mrf.mxu0
        %v8724 = vadd.f32 0.0, %v8723
        %v8725 = vpop.f32.mrf.mxu0
        %8726 = vmatprep.mubr.bf16.mxu0 0
        %8727 = vmatmul.mubr.bf16.gmra.mxu0 %v8651
        %v8728 = vpop.f32.mrf.mxu0
        %v8729 = vadd.f32 0.0, %v8728
        %v8730 = vpop.f32.mrf.mxu0
        %v8731 = vpop.f32.mrf.mxu0
        %v8732 = vadd.f32 0.0, %v8731
        %v8733 = vpop.f32.mrf.mxu0
        %8734 = vmatprep.mubr.bf16.mxu0 0
        %8735 = vmatmul.mubr.bf16.gmra.mxu0 %v8654
        %v8736 = vpop.f32.mrf.mxu0
        %v8737 = vadd.f32 0.0, %v8736
        %v8738 = vpop.f32.mrf.mxu0
        %v8739 = vpop.f32.mrf.mxu0
        %v8740 = vadd.f32 0.0, %v8739
        %v8741 = vpop.f32.mrf.mxu0
        %8742 = vmatprep.mubr.bf16.mxu0 0
        %8743 = vmatmul.mubr.bf16.gmra.mxu0 %v8657
        %v8744 = vpop.f32.mrf.mxu0
        %v8745 = vadd.f32 0.0, %v8744
        %v8746 = vpop.f32.mrf.mxu0
        %v8747 = vpop.f32.mrf.mxu0
        %v8748 = vadd.f32 0.0, %v8747
        %v8749 = vpop.f32.mrf.mxu0
        %8750 = vmatprep.mubr.bf16.mxu0 0
        %8751 = vmatmul.mubr.bf16.gmra.mxu0 %v8660
        %v8752 = vpop.f32.mrf.mxu0
        %v8753 = vadd.f32 0.0, %v8752
        %v8754 = vpop.f32.mrf.mxu0
        %v8755 = vpop.f32.mrf.mxu0
        %v8756 = vadd.f32 0.0, %v8755
        %v8757 = vpop.f32.mrf.mxu0
        %8758 = vdwg.mxu0
        %v8761 = vunpack.c.l.b16 %v7868
        %v8762 = vunpack.c.l.b16 %v7869
        %v8763 = vpack.c.b16 %v8762, %v8761
        %v8766 = vsel %vm4573, %v7846, 0
        %v8769 = vsel %vm4573, %v7847, 0
        %v8772 = vsel %vm4573, %v7848, 0
        %v8775 = vsel %vm4573, %v7849, 0
        %v8778 = vsel %vm4573, %v7850, 0
        %v8781 = vsel %vm4573, %v7851, 0
        %v8784 = vsel %vm4573, %v7852, 0
        %v8787 = vsel %vm4573, %v7853, 0
        %8789 = vmatprep.subr.bf16.mxu0 0
        %8790 = vmatpush1.bf16.msra.mxu0 0
        %8791 = vmatprep.subr.bf16.mxu0 0
        %8792 = vmatpush1.bf16.msra.mxu0 0
        %8793 = vmatprep.subr.bf16.mxu0 0
        %8794 = vmatpush1.bf16.msra.mxu0 0
        %8795 = vmatprep.subr.bf16.mxu0 0
        %8796 = vmatpush1.bf16.msra.mxu0 0
        %8797 = vmatprep.subr.bf16.mxu0 0
        %8798 = vmatpush1.bf16.msra.mxu0 0
        %8799 = vmatprep.subr.bf16.mxu0 0
        %8800 = vmatpush1.bf16.msra.mxu0 0
        %8801 = vmatprep.subr.bf16.mxu0 0
        %8802 = vmatpush1.bf16.msra.mxu0 0
        %8803 = vmatprep.subr.bf16.mxu0 0
        %8804 = vmatpush1.bf16.msra.mxu0 %v8763
        %8805 = vmatprep.subr.bf16.mxu0 0
        %8806 = vmatpush2.bf16.msra.mxu0 0
        %8807 = vmatprep.subr.bf16.mxu0 0
        %8808 = vmatpush2.bf16.msra.mxu0 0
        %8809 = vmatprep.subr.bf16.mxu0 0
        %8810 = vmatpush2.bf16.msra.mxu0 0
        %8811 = vmatprep.subr.bf16.mxu0 0
        %8812 = vmatpush2.bf16.msra.mxu0 0
        %8813 = vmatprep.subr.bf16.mxu0 0
        %8814 = vmatpush2.bf16.msra.mxu0 0
        %8815 = vmatprep.subr.bf16.mxu0 0
        %8816 = vmatpush2.bf16.msra.mxu0 0
        %8817 = vmatprep.subr.bf16.mxu0 0
        %8818 = vmatpush2.bf16.msra.mxu0 0
        %8819 = vmatprep.subr.bf16.mxu0 0
        %8820 = vmatpush2.bf16.msra.mxu0 0
        %8821 = vmatprep.mubr.bf16.mxu0 0
        %8822 = vmatmul.mubr.bf16.gmra.mxu0 %v8766
        %v8823 = vpop.f32.mrf.mxu0
        %v8824 = vadd.f32 0.0, %v8823
        %v8825 = vpop.f32.mrf.mxu0
        %v8826 = vpop.f32.mrf.mxu0
        %v8827 = vadd.f32 0.0, %v8826
        %v8828 = vpop.f32.mrf.mxu0
        %8829 = vmatprep.mubr.bf16.mxu0 0
        %8830 = vmatmul.mubr.bf16.gmra.mxu0 %v8769
        %v8831 = vpop.f32.mrf.mxu0
        %v8832 = vadd.f32 0.0, %v8831
        %v8833 = vpop.f32.mrf.mxu0
        %v8834 = vpop.f32.mrf.mxu0
        %v8835 = vadd.f32 0.0, %v8834
        %v8836 = vpop.f32.mrf.mxu0
        %8837 = vmatprep.mubr.bf16.mxu0 0
        %8838 = vmatmul.mubr.bf16.gmra.mxu0 %v8772
        %v8839 = vpop.f32.mrf.mxu0
        %v8840 = vadd.f32 0.0, %v8839
        %v8841 = vpop.f32.mrf.mxu0
        %v8842 = vpop.f32.mrf.mxu0
        %v8843 = vadd.f32 0.0, %v8842
        %v8844 = vpop.f32.mrf.mxu0
        %8845 = vmatprep.mubr.bf16.mxu0 0
        %8846 = vmatmul.mubr.bf16.gmra.mxu0 %v8775
        %v8847 = vpop.f32.mrf.mxu0
        %v8848 = vadd.f32 0.0, %v8847
        %v8849 = vpop.f32.mrf.mxu0
        %v8850 = vpop.f32.mrf.mxu0
        %v8851 = vadd.f32 0.0, %v8850
        %v8852 = vpop.f32.mrf.mxu0
        %8853 = vmatprep.mubr.bf16.mxu0 0
        %8854 = vmatmul.mubr.bf16.gmra.mxu0 %v8778
        %v8855 = vpop.f32.mrf.mxu0
        %v8856 = vadd.f32 0.0, %v8855
        %v8857 = vpop.f32.mrf.mxu0
        %v8858 = vpop.f32.mrf.mxu0
        %v8859 = vadd.f32 0.0, %v8858
        %v8860 = vpop.f32.mrf.mxu0
        %8861 = vmatprep.mubr.bf16.mxu0 0
        %8862 = vmatmul.mubr.bf16.gmra.mxu0 %v8781
        %v8863 = vpop.f32.mrf.mxu0
        %v8864 = vadd.f32 0.0, %v8863
        %v8865 = vpop.f32.mrf.mxu0
        %v8866 = vpop.f32.mrf.mxu0
        %v8867 = vadd.f32 0.0, %v8866
        %v8868 = vpop.f32.mrf.mxu0
        %8869 = vmatprep.mubr.bf16.mxu0 0
        %8870 = vmatmul.mubr.bf16.gmra.mxu0 %v8784
        %v8871 = vpop.f32.mrf.mxu0
        %v8872 = vadd.f32 0.0, %v8871
        %v8873 = vpop.f32.mrf.mxu0
        %v8874 = vpop.f32.mrf.mxu0
        %v8875 = vadd.f32 0.0, %v8874
        %v8876 = vpop.f32.mrf.mxu0
        %8877 = vmatprep.mubr.bf16.mxu0 0
        %8878 = vmatmul.mubr.bf16.gmra.mxu0 %v8787
        %v8879 = vpop.f32.mrf.mxu0
        %v8880 = vadd.f32 0.0, %v8879
        %v8881 = vpop.f32.mrf.mxu0
        %v8882 = vpop.f32.mrf.mxu0
        %v8883 = vadd.f32 0.0, %v8882
        %v8884 = vpop.f32.mrf.mxu0
        %8885 = vdwg.mxu0
        %v8886 = vadd.f32 %v7935, %v8062
        %v8887 = vadd.f32 %v8886, %v8189
        %v8888 = vadd.f32 %v8887, %v8316
        %v8889 = vadd.f32 %v8888, %v8443
        %v8890 = vadd.f32 %v8889, %v8570
        %v8891 = vadd.f32 %v8890, %v8697
        %v8892 = vadd.f32 %v8891, %v8824
        %v8893 = vadd.f32 %v7938, %v8065
        %v8894 = vadd.f32 %v8893, %v8192
        %v8895 = vadd.f32 %v8894, %v8319
        %v8896 = vadd.f32 %v8895, %v8446
        %v8897 = vadd.f32 %v8896, %v8573
        %v8898 = vadd.f32 %v8897, %v8700
        %v8899 = vadd.f32 %v8898, %v8827
        %v8900 = vadd.f32 %v7943, %v8070
        %v8901 = vadd.f32 %v8900, %v8197
        %v8902 = vadd.f32 %v8901, %v8324
        %v8903 = vadd.f32 %v8902, %v8451
        %v8904 = vadd.f32 %v8903, %v8578
        %v8905 = vadd.f32 %v8904, %v8705
        %v8906 = vadd.f32 %v8905, %v8832
        %v8907 = vadd.f32 %v7946, %v8073
        %v8908 = vadd.f32 %v8907, %v8200
        %v8909 = vadd.f32 %v8908, %v8327
        %v8910 = vadd.f32 %v8909, %v8454
        %v8911 = vadd.f32 %v8910, %v8581
        %v8912 = vadd.f32 %v8911, %v8708
        %v8913 = vadd.f32 %v8912, %v8835
        %v8914 = vadd.f32 %v7951, %v8078
        %v8915 = vadd.f32 %v8914, %v8205
        %v8916 = vadd.f32 %v8915, %v8332
        %v8917 = vadd.f32 %v8916, %v8459
        %v8918 = vadd.f32 %v8917, %v8586
        %v8919 = vadd.f32 %v8918, %v8713
        %v8920 = vadd.f32 %v8919, %v8840
        %v8921 = vadd.f32 %v7954, %v8081
        %v8922 = vadd.f32 %v8921, %v8208
        %v8923 = vadd.f32 %v8922, %v8335
        %v8924 = vadd.f32 %v8923, %v8462
        %v8925 = vadd.f32 %v8924, %v8589
        %v8926 = vadd.f32 %v8925, %v8716
        %v8927 = vadd.f32 %v8926, %v8843
        %v8928 = vadd.f32 %v7959, %v8086
        %v8929 = vadd.f32 %v8928, %v8213
        %v8930 = vadd.f32 %v8929, %v8340
        %v8931 = vadd.f32 %v8930, %v8467
        %v8932 = vadd.f32 %v8931, %v8594
        %v8933 = vadd.f32 %v8932, %v8721
        %v8934 = vadd.f32 %v8933, %v8848
        %v8935 = vadd.f32 %v7962, %v8089
        %v8936 = vadd.f32 %v8935, %v8216
        %v8937 = vadd.f32 %v8936, %v8343
        %v8938 = vadd.f32 %v8937, %v8470
        %v8939 = vadd.f32 %v8938, %v8597
        %v8940 = vadd.f32 %v8939, %v8724
        %v8941 = vadd.f32 %v8940, %v8851
        %v8942 = vadd.f32 %v7967, %v8094
        %v8943 = vadd.f32 %v8942, %v8221
        %v8944 = vadd.f32 %v8943, %v8348
        %v8945 = vadd.f32 %v8944, %v8475
        %v8946 = vadd.f32 %v8945, %v8602
        %v8947 = vadd.f32 %v8946, %v8729
        %v8948 = vadd.f32 %v8947, %v8856
        %v8949 = vadd.f32 %v7970, %v8097
        %v8950 = vadd.f32 %v8949, %v8224
        %v8951 = vadd.f32 %v8950, %v8351
        %v8952 = vadd.f32 %v8951, %v8478
        %v8953 = vadd.f32 %v8952, %v8605
        %v8954 = vadd.f32 %v8953, %v8732
        %v8955 = vadd.f32 %v8954, %v8859
        %v8956 = vadd.f32 %v7975, %v8102
        %v8957 = vadd.f32 %v8956, %v8229
        %v8958 = vadd.f32 %v8957, %v8356
        %v8959 = vadd.f32 %v8958, %v8483
        %v8960 = vadd.f32 %v8959, %v8610
        %v8961 = vadd.f32 %v8960, %v8737
        %v8962 = vadd.f32 %v8961, %v8864
        %v8963 = vadd.f32 %v7978, %v8105
        %v8964 = vadd.f32 %v8963, %v8232
        %v8965 = vadd.f32 %v8964, %v8359
        %v8966 = vadd.f32 %v8965, %v8486
        %v8967 = vadd.f32 %v8966, %v8613
        %v8968 = vadd.f32 %v8967, %v8740
        %v8969 = vadd.f32 %v8968, %v8867
        %v8970 = vadd.f32 %v7983, %v8110
        %v8971 = vadd.f32 %v8970, %v8237
        %v8972 = vadd.f32 %v8971, %v8364
        %v8973 = vadd.f32 %v8972, %v8491
        %v8974 = vadd.f32 %v8973, %v8618
        %v8975 = vadd.f32 %v8974, %v8745
        %v8976 = vadd.f32 %v8975, %v8872
        %v8977 = vadd.f32 %v7986, %v8113
        %v8978 = vadd.f32 %v8977, %v8240
        %v8979 = vadd.f32 %v8978, %v8367
        %v8980 = vadd.f32 %v8979, %v8494
        %v8981 = vadd.f32 %v8980, %v8621
        %v8982 = vadd.f32 %v8981, %v8748
        %v8983 = vadd.f32 %v8982, %v8875
        %v8984 = vadd.f32 %v7991, %v8118
        %v8985 = vadd.f32 %v8984, %v8245
        %v8986 = vadd.f32 %v8985, %v8372
        %v8987 = vadd.f32 %v8986, %v8499
        %v8988 = vadd.f32 %v8987, %v8626
        %v8989 = vadd.f32 %v8988, %v8753
        %v8990 = vadd.f32 %v8989, %v8880
        %v8991 = vadd.f32 %v7994, %v8121
        %v8992 = vadd.f32 %v8991, %v8248
        %v8993 = vadd.f32 %v8992, %v8375
        %v8994 = vadd.f32 %v8993, %v8502
        %v8995 = vadd.f32 %v8994, %v8629
        %v8996 = vadd.f32 %v8995, %v8756
        %v8997 = vadd.f32 %v8996, %v8883
        %v8998 = vlaneseq
        %v8999 = vshrl.u32 %v8998, 7
        %v9000 = vsub.s32 0, %v8999
        %v9001 = vrot.slane %v354, %v9000
        %v9002 = vadd.f32 %v8892, %v9001
        %v9003 = vadd.f32 %v8899, %v9001
        %v9004 = vadd.f32 %v8906, %v9001
        %v9005 = vadd.f32 %v8913, %v9001
        %v9006 = vadd.f32 %v8920, %v9001
        %v9007 = vadd.f32 %v8927, %v9001
        %v9008 = vadd.f32 %v8934, %v9001
        %v9009 = vadd.f32 %v8941, %v9001
        %v9010 = vadd.f32 %v8948, %v9001
        %v9011 = vadd.f32 %v8955, %v9001
        %v9012 = vadd.f32 %v8962, %v9001
        %v9013 = vadd.f32 %v8969, %v9001
        %v9014 = vadd.f32 %v8976, %v9001
        %v9015 = vadd.f32 %v8983, %v9001
        %v9016 = vadd.f32 %v8990, %v9001
        %v9017 = vadd.f32 %v8997, %v9001
        %v9018 = vlaneseq
        %v9019 = vshrl.u32 %v9018, 7
        %v9020 = vsub.s32 0, %v9019
        %v9021 = vrot.slane %v352, %v9020
        %v9022 = vmul.f32 %v9021, %v9002
        %v9023 = vmul.f32 %v9021, %v9003
        %v9024 = vmul.f32 %v9021, %v9004
        %v9025 = vmul.f32 %v9021, %v9005
        %v9026 = vmul.f32 %v9021, %v9006
        %v9027 = vmul.f32 %v9021, %v9007
        %v9028 = vmul.f32 %v9021, %v9008
        %v9029 = vmul.f32 %v9021, %v9009
        %v9030 = vmul.f32 %v9021, %v9010
        %v9031 = vmul.f32 %v9021, %v9011
        %v9032 = vmul.f32 %v9021, %v9012
        %v9033 = vmul.f32 %v9021, %v9013
        %v9034 = vmul.f32 %v9021, %v9014
        %v9035 = vmul.f32 %v9021, %v9015
        %v9036 = vmul.f32 %v9021, %v9016
        %v9037 = vmul.f32 %v9021, %v9017
        %v9038 = vadd.f32 %v332, %v9022
        %v9039 = vadd.f32 %v333, %v9023
        %v9040 = vadd.f32 %v334, %v9024
        %v9041 = vadd.f32 %v335, %v9025
        %v9042 = vadd.f32 %v336, %v9026
        %v9043 = vadd.f32 %v337, %v9027
        %v9044 = vadd.f32 %v338, %v9028
        %v9045 = vadd.f32 %v339, %v9029
        %v9046 = vadd.f32 %v340, %v9030
        %v9047 = vadd.f32 %v341, %v9031
        %v9048 = vadd.f32 %v342, %v9032
        %v9049 = vadd.f32 %v343, %v9033
        %v9050 = vadd.f32 %v344, %v9034
        %v9051 = vadd.f32 %v345, %v9035
        %v9052 = vadd.f32 %v346, %v9036
        %v9053 = vadd.f32 %v347, %v9037
        %9054 = vadd.xlane.f32.xlu0 %v9038
        %v9055 = vpop.xlane.xlu0 %9054
        %9056 = vadd.xlane.f32.xlu0 %v9039
        %v9057 = vpop.xlane.xlu0 %9056
        %9058 = vadd.xlane.f32.xlu0 %v9040
        %v9059 = vpop.xlane.xlu0 %9058
        %9060 = vadd.xlane.f32.xlu0 %v9041
        %v9061 = vpop.xlane.xlu0 %9060
        %9062 = vadd.xlane.f32.xlu0 %v9042
        %v9063 = vpop.xlane.xlu0 %9062
        %9064 = vadd.xlane.f32.xlu0 %v9043
        %v9065 = vpop.xlane.xlu0 %9064
        %9066 = vadd.xlane.f32.xlu0 %v9044
        %v9067 = vpop.xlane.xlu0 %9066
        %9068 = vadd.xlane.f32.xlu0 %v9045
        %v9069 = vpop.xlane.xlu0 %9068
        %9070 = vadd.xlane.f32.xlu0 %v9046
        %v9071 = vpop.xlane.xlu0 %9070
        %9072 = vadd.xlane.f32.xlu0 %v9047
        %v9073 = vpop.xlane.xlu0 %9072
        %9074 = vadd.xlane.f32.xlu0 %v9048
        %v9075 = vpop.xlane.xlu0 %9074
        %9076 = vadd.xlane.f32.xlu0 %v9049
        %v9077 = vpop.xlane.xlu0 %9076
        %9078 = vadd.xlane.f32.xlu0 %v9050
        %v9079 = vpop.xlane.xlu0 %9078
        %9080 = vadd.xlane.f32.xlu0 %v9051
        %v9081 = vpop.xlane.xlu0 %9080
        %9082 = vadd.xlane.f32.xlu0 %v9052
        %v9083 = vpop.xlane.xlu0 %9082
        %9084 = vadd.xlane.f32.xlu0 %v9053
        %v9085 = vpop.xlane.xlu0 %9084
        %v9086 = vmul.f32 %v9055, %v388
        %v9087 = vmul.f32 %v9057, %v388
        %v9088 = vmul.f32 %v9059, %v388
        %v9089 = vmul.f32 %v9061, %v388
        %v9090 = vmul.f32 %v9063, %v388
        %v9091 = vmul.f32 %v9065, %v388
        %v9092 = vmul.f32 %v9067, %v388
        %v9093 = vmul.f32 %v9069, %v388
        %v9094 = vmul.f32 %v9071, %v388
        %v9095 = vmul.f32 %v9073, %v388
        %v9096 = vmul.f32 %v9075, %v388
        %v9097 = vmul.f32 %v9077, %v388
        %v9098 = vmul.f32 %v9079, %v388
        %v9099 = vmul.f32 %v9081, %v388
        %v9100 = vmul.f32 %v9083, %v388
        %v9101 = vmul.f32 %v9085, %v388
        %v9102 = vsub.f32 %v9038, %v9086
        %v9103 = vsub.f32 %v9039, %v9087
        %v9104 = vsub.f32 %v9040, %v9088
        %v9105 = vsub.f32 %v9041, %v9089
        %v9106 = vsub.f32 %v9042, %v9090
        %v9107 = vsub.f32 %v9043, %v9091
        %v9108 = vsub.f32 %v9044, %v9092
        %v9109 = vsub.f32 %v9045, %v9093
        %v9110 = vsub.f32 %v9046, %v9094
        %v9111 = vsub.f32 %v9047, %v9095
        %v9112 = vsub.f32 %v9048, %v9096
        %v9113 = vsub.f32 %v9049, %v9097
        %v9114 = vsub.f32 %v9050, %v9098
        %v9115 = vsub.f32 %v9051, %v9099
        %v9116 = vsub.f32 %v9052, %v9100
        %v9117 = vsub.f32 %v9053, %v9101
        %v9118 = vmul.f32 %v9102, %v9102
        %v9119 = vmul.f32 %v9103, %v9103
        %v9120 = vmul.f32 %v9104, %v9104
        %v9121 = vmul.f32 %v9105, %v9105
        %v9122 = vmul.f32 %v9106, %v9106
        %v9123 = vmul.f32 %v9107, %v9107
        %v9124 = vmul.f32 %v9108, %v9108
        %v9125 = vmul.f32 %v9109, %v9109
        %v9126 = vmul.f32 %v9110, %v9110
        %v9127 = vmul.f32 %v9111, %v9111
        %v9128 = vmul.f32 %v9112, %v9112
        %v9129 = vmul.f32 %v9113, %v9113
        %v9130 = vmul.f32 %v9114, %v9114
        %v9131 = vmul.f32 %v9115, %v9115
        %v9132 = vmul.f32 %v9116, %v9116
        %v9133 = vmul.f32 %v9117, %v9117
        %9134 = vadd.xlane.f32.xlu0 %v9118
        %v9135 = vpop.xlane.xlu0 %9134
        %9136 = vadd.xlane.f32.xlu0 %v9119
        %v9137 = vpop.xlane.xlu0 %9136
        %9138 = vadd.xlane.f32.xlu0 %v9120
        %v9139 = vpop.xlane.xlu0 %9138
        %9140 = vadd.xlane.f32.xlu0 %v9121
        %v9141 = vpop.xlane.xlu0 %9140
        %9142 = vadd.xlane.f32.xlu0 %v9122
        %v9143 = vpop.xlane.xlu0 %9142
        %9144 = vadd.xlane.f32.xlu0 %v9123
        %v9145 = vpop.xlane.xlu0 %9144
        %9146 = vadd.xlane.f32.xlu0 %v9124
        %v9147 = vpop.xlane.xlu0 %9146
        %9148 = vadd.xlane.f32.xlu0 %v9125
        %v9149 = vpop.xlane.xlu0 %9148
        %9150 = vadd.xlane.f32.xlu0 %v9126
        %v9151 = vpop.xlane.xlu0 %9150
        %9152 = vadd.xlane.f32.xlu0 %v9127
        %v9153 = vpop.xlane.xlu0 %9152
        %9154 = vadd.xlane.f32.xlu0 %v9128
        %v9155 = vpop.xlane.xlu0 %9154
        %9156 = vadd.xlane.f32.xlu0 %v9129
        %v9157 = vpop.xlane.xlu0 %9156
        %9158 = vadd.xlane.f32.xlu0 %v9130
        %v9159 = vpop.xlane.xlu0 %9158
        %9160 = vadd.xlane.f32.xlu0 %v9131
        %v9161 = vpop.xlane.xlu0 %9160
        %9162 = vadd.xlane.f32.xlu0 %v9132
        %v9163 = vpop.xlane.xlu0 %9162
        %9164 = vadd.xlane.f32.xlu0 %v9133
        %v9165 = vpop.xlane.xlu0 %9164
        %v9166 = vmul.f32 %v9135, %v388
        %v9167 = vmul.f32 %v9137, %v388
        %v9168 = vmul.f32 %v9139, %v388
        %v9169 = vmul.f32 %v9141, %v388
        %v9170 = vmul.f32 %v9143, %v388
        %v9171 = vmul.f32 %v9145, %v388
        %v9172 = vmul.f32 %v9147, %v388
        %v9173 = vmul.f32 %v9149, %v388
        %v9174 = vmul.f32 %v9151, %v388
        %v9175 = vmul.f32 %v9153, %v388
        %v9176 = vmul.f32 %v9155, %v388
        %v9177 = vmul.f32 %v9157, %v388
        %v9178 = vmul.f32 %v9159, %v388
        %v9179 = vmul.f32 %v9161, %v388
        %v9180 = vmul.f32 %v9163, %v388
        %v9181 = vmul.f32 %v9165, %v388
        %v9182 = vadd.f32 %v9166, 1e-05
        %v9183 = vadd.f32 %v9167, 1e-05
        %v9184 = vadd.f32 %v9168, 1e-05
        %v9185 = vadd.f32 %v9169, 1e-05
        %v9186 = vadd.f32 %v9170, 1e-05
        %v9187 = vadd.f32 %v9171, 1e-05
        %v9188 = vadd.f32 %v9172, 1e-05
        %v9189 = vadd.f32 %v9173, 1e-05
        %v9190 = vadd.f32 %v9174, 1e-05
        %v9191 = vadd.f32 %v9175, 1e-05
        %v9192 = vadd.f32 %v9176, 1e-05
        %v9193 = vadd.f32 %v9177, 1e-05
        %v9194 = vadd.f32 %v9178, 1e-05
        %v9195 = vadd.f32 %v9179, 1e-05
        %v9196 = vadd.f32 %v9180, 1e-05
        %v9197 = vadd.f32 %v9181, 1e-05
        %v9198 = vrsqrt.pop %v9182
        %v9199 = vrsqrt.pop %v9183
        %v9200 = vrsqrt.pop %v9184
        %v9201 = vrsqrt.pop %v9185
        %v9202 = vrsqrt.pop %v9186
        %v9203 = vrsqrt.pop %v9187
        %v9204 = vrsqrt.pop %v9188
        %v9205 = vrsqrt.pop %v9189
        %v9206 = vrsqrt.pop %v9190
        %v9207 = vrsqrt.pop %v9191
        %v9208 = vrsqrt.pop %v9192
        %v9209 = vrsqrt.pop %v9193
        %v9210 = vrsqrt.pop %v9194
        %v9211 = vrsqrt.pop %v9195
        %v9212 = vrsqrt.pop %v9196
        %v9213 = vrsqrt.pop %v9197
        %v9214 = vmul.f32 %v9102, %v9198
        %v9215 = vmul.f32 %v9103, %v9199
        %v9216 = vmul.f32 %v9104, %v9200
        %v9217 = vmul.f32 %v9105, %v9201
        %v9218 = vmul.f32 %v9106, %v9202
        %v9219 = vmul.f32 %v9107, %v9203
        %v9220 = vmul.f32 %v9108, %v9204
        %v9221 = vmul.f32 %v9109, %v9205
        %v9222 = vmul.f32 %v9110, %v9206
        %v9223 = vmul.f32 %v9111, %v9207
        %v9224 = vmul.f32 %v9112, %v9208
        %v9225 = vmul.f32 %v9113, %v9209
        %v9226 = vmul.f32 %v9114, %v9210
        %v9227 = vmul.f32 %v9115, %v9211
        %v9228 = vmul.f32 %v9116, %v9212
        %v9229 = vmul.f32 %v9117, %v9213
        %v9230 = vlaneseq
        %v9231 = vshrl.u32 %v9230, 7
        %v9232 = vsub.s32 0, %v9231
        %v9233 = vrot.slane %v350, %v9232
        %v9234 = vmul.f32 %v9214, %v9233
        %v9235 = vmul.f32 %v9215, %v9233
        %v9236 = vmul.f32 %v9216, %v9233
        %v9237 = vmul.f32 %v9217, %v9233
        %v9238 = vmul.f32 %v9218, %v9233
        %v9239 = vmul.f32 %v9219, %v9233
        %v9240 = vmul.f32 %v9220, %v9233
        %v9241 = vmul.f32 %v9221, %v9233
        %v9242 = vmul.f32 %v9222, %v9233
        %v9243 = vmul.f32 %v9223, %v9233
        %v9244 = vmul.f32 %v9224, %v9233
        %v9245 = vmul.f32 %v9225, %v9233
        %v9246 = vmul.f32 %v9226, %v9233
        %v9247 = vmul.f32 %v9227, %v9233
        %v9248 = vmul.f32 %v9228, %v9233
        %v9249 = vmul.f32 %v9229, %v9233
        %v9250 = vlaneseq
        %v9251 = vshrl.u32 %v9250, 7
        %v9252 = vsub.s32 0, %v9251
        %v9253 = vrot.slane %v351, %v9252
        %v9254 = vadd.f32 %v9234, %v9253
        %v9255 = vadd.f32 %v9235, %v9253
        %v9256 = vadd.f32 %v9236, %v9253
        %v9257 = vadd.f32 %v9237, %v9253
        %v9258 = vadd.f32 %v9238, %v9253
        %v9259 = vadd.f32 %v9239, %v9253
        %v9260 = vadd.f32 %v9240, %v9253
        %v9261 = vadd.f32 %v9241, %v9253
        %v9262 = vadd.f32 %v9242, %v9253
        %v9263 = vadd.f32 %v9243, %v9253
        %v9264 = vadd.f32 %v9244, %v9253
        %v9265 = vadd.f32 %v9245, %v9253
        %v9266 = vadd.f32 %v9246, %v9253
        %v9267 = vadd.f32 %v9247, %v9253
        %v9268 = vadd.f32 %v9248, %v9253
        %v9269 = vadd.f32 %v9249, %v9253
        %v9270 = vpack.c.bf16 %v9255, %v9254
        %v9271 = vpack.c.bf16 %v9257, %v9256
        %v9272 = vpack.c.bf16 %v9259, %v9258
        %v9273 = vpack.c.bf16 %v9261, %v9260
        %v9274 = vpack.c.bf16 %v9263, %v9262
        %v9275 = vpack.c.bf16 %v9265, %v9264
        %v9276 = vpack.c.bf16 %v9267, %v9266
        %v9277 = vpack.c.bf16 %v9269, %v9268
        %v9278 = vld [vmem:[%s7] sm:$0xff]
        %v9279 = vld [vmem:[%s7 + $0x8] sm:$0xff]
        %v9280 = vld [vmem:[%s7 + $0x10] sm:$0xff]
        %v9281 = vld [vmem:[%s7 + $0x18] sm:$0xff]
        %v9282 = vld [vmem:[%s7 + $0x20] sm:$0xff]
        %v9283 = vld [vmem:[%s7 + $0x28] sm:$0xff]
        %v9284 = vld [vmem:[%s7 + $0x30] sm:$0xff]
        %v9285 = vld [vmem:[%s7 + $0x38] sm:$0xff]
        %v9286 = vld [vmem:[%s7 + $0x40] sm:$0xff]
        %v9287 = vld [vmem:[%s7 + $0x48] sm:$0xff]
        %v9288 = vld [vmem:[%s7 + $0x50] sm:$0xff]
        %v9289 = vld [vmem:[%s7 + $0x58] sm:$0xff]
        %v9290 = vld [vmem:[%s7 + $0x60] sm:$0xff]
        %v9291 = vld [vmem:[%s7 + $0x68] sm:$0xff]
        %v9292 = vld [vmem:[%s7 + $0x70] sm:$0xff]
        %v9293 = vld [vmem:[%s7 + $0x78] sm:$0xff]
        %v9294 = vld [vmem:[%s7 + $0x80] sm:$0xff]
        %v9295 = vld [vmem:[%s7 + $0x88] sm:$0xff]
        %v9296 = vld [vmem:[%s7 + $0x90] sm:$0xff]
        %v9297 = vld [vmem:[%s7 + $0x98] sm:$0xff]
        %v9298 = vld [vmem:[%s7 + $0xa0] sm:$0xff]
        %v9299 = vld [vmem:[%s7 + $0xa8] sm:$0xff]
        %v9300 = vld [vmem:[%s7 + $0xb0] sm:$0xff]
        %v9301 = vld [vmem:[%s7 + $0xb8] sm:$0xff]
        %v9302 = vld [vmem:[%s7 + $0xc0] sm:$0xff]
        %v9303 = vld [vmem:[%s7 + $0xc8] sm:$0xff]
        %v9304 = vld [vmem:[%s7 + $0xd0] sm:$0xff]
        %v9305 = vld [vmem:[%s7 + $0xd8] sm:$0xff]
        %v9306 = vld [vmem:[%s7 + $0xe0] sm:$0xff]
        %v9307 = vld [vmem:[%s7 + $0xe8] sm:$0xff]
        %v9308 = vld [vmem:[%s7 + $0xf0] sm:$0xff]
        %v9309 = vld [vmem:[%s7 + $0xf8] sm:$0xff]
        %v9310 = vld [vmem:[%s2] sm:$0xf]
        %v9312 = vlaneseq
        %v9313 = vshrl.u32 %v9312, 7
        %v9314 = vsub.s32 0, %v9313
        %v9315 = vrot.slane %v9310, %v9314
        %v9316 = vlaneseq
        %v9317 = vshrl.u32 %v9316, 7
        %v9318 = vsub.s32 1, %v9317
        %v9319 = vrot.slane %v9310, %v9318
        %v9320 = vlaneseq
        %v9321 = vshrl.u32 %v9320, 7
        %v9322 = vsub.s32 2, %v9321
        %v9323 = vrot.slane %v9310, %v9322
        %v9324 = vlaneseq
        %v9325 = vshrl.u32 %v9324, 7
        %v9326 = vsub.s32 3, %v9325
        %v9327 = vrot.slane %v9310, %v9326
        %v9364 = vunpack.c.l.b16 %v9278
        %v9365 = vunpack.c.h.b16 %v9278
        %v9366 = vunpack.c.l.b16 %v9279
        %v9367 = vunpack.c.h.b16 %v9279
        %v9368 = vunpack.c.l.b16 %v9280
        %v9369 = vunpack.c.h.b16 %v9280
        %v9370 = vunpack.c.l.b16 %v9281
        %v9371 = vunpack.c.h.b16 %v9281
        %v9372 = vunpack.c.l.b16 %v9282
        %v9373 = vunpack.c.h.b16 %v9282
        %v9374 = vunpack.c.l.b16 %v9283
        %v9375 = vunpack.c.h.b16 %v9283
        %v9376 = vunpack.c.l.b16 %v9284
        %v9377 = vunpack.c.h.b16 %v9284
        %v9378 = vunpack.c.l.b16 %v9285
        %v9379 = vunpack.c.h.b16 %v9285
        %v9380 = vunpack.c.l.b16 %v9286
        %v9381 = vunpack.c.h.b16 %v9286
        %v9382 = vunpack.c.l.b16 %v9287
        %v9383 = vunpack.c.h.b16 %v9287
        %v9384 = vunpack.c.l.b16 %v9288
        %v9385 = vunpack.c.h.b16 %v9288
        %v9386 = vunpack.c.l.b16 %v9289
        %v9387 = vunpack.c.h.b16 %v9289
        %v9388 = vunpack.c.l.b16 %v9290
        %v9389 = vunpack.c.h.b16 %v9290
        %v9390 = vunpack.c.l.b16 %v9291
        %v9391 = vunpack.c.h.b16 %v9291
        %v9392 = vunpack.c.l.b16 %v9292
        %v9393 = vunpack.c.h.b16 %v9292
        %v9394 = vunpack.c.l.b16 %v9293
        %v9395 = vunpack.c.h.b16 %v9293
        %v9396 = vunpack.c.l.b16 %v9294
        %v9397 = vunpack.c.h.b16 %v9294
        %v9398 = vunpack.c.l.b16 %v9295
        %v9399 = vunpack.c.h.b16 %v9295
        %v9400 = vunpack.c.l.b16 %v9296
        %v9401 = vunpack.c.h.b16 %v9296
        %v9402 = vunpack.c.l.b16 %v9297
        %v9403 = vunpack.c.h.b16 %v9297
        %v9404 = vunpack.c.l.b16 %v9298
        %v9405 = vunpack.c.h.b16 %v9298
        %v9406 = vunpack.c.l.b16 %v9299
        %v9407 = vunpack.c.h.b16 %v9299
        %v9408 = vunpack.c.l.b16 %v9300
        %v9409 = vunpack.c.h.b16 %v9300
        %v9410 = vunpack.c.l.b16 %v9301
        %v9411 = vunpack.c.h.b16 %v9301
        %v9412 = vunpack.c.l.b16 %v9302
        %v9413 = vunpack.c.h.b16 %v9302
        %v9414 = vunpack.c.l.b16 %v9303
        %v9415 = vunpack.c.h.b16 %v9303
        %v9416 = vunpack.c.l.b16 %v9304
        %v9417 = vunpack.c.h.b16 %v9304
        %v9418 = vunpack.c.l.b16 %v9305
        %v9419 = vunpack.c.h.b16 %v9305
        %v9420 = vunpack.c.l.b16 %v9306
        %v9421 = vunpack.c.h.b16 %v9306
        %v9422 = vunpack.c.l.b16 %v9307
        %v9423 = vunpack.c.h.b16 %v9307
        %v9424 = vunpack.c.l.b16 %v9308
        %v9425 = vunpack.c.h.b16 %v9308
        %v9426 = vunpack.c.l.b16 %v9309
        %v9427 = vunpack.c.h.b16 %v9309
        %v9428 = vpack.c.b16 %v9368, %v9364
        %v9429 = vpack.c.b16 %v9369, %v9365
        %v9430 = vpack.c.b16 %v9370, %v9366
        %v9431 = vpack.c.b16 %v9371, %v9367
        %v9432 = vpack.c.b16 %v9376, %v9372
        %v9433 = vpack.c.b16 %v9377, %v9373
        %v9434 = vpack.c.b16 %v9378, %v9374
        %v9435 = vpack.c.b16 %v9379, %v9375
        %v9436 = vpack.c.b16 %v9384, %v9380
        %v9437 = vpack.c.b16 %v9385, %v9381
        %v9438 = vpack.c.b16 %v9386, %v9382
        %v9439 = vpack.c.b16 %v9387, %v9383
        %v9440 = vpack.c.b16 %v9392, %v9388
        %v9441 = vpack.c.b16 %v9393, %v9389
        %v9442 = vpack.c.b16 %v9394, %v9390
        %v9443 = vpack.c.b16 %v9395, %v9391
        %v9444 = vpack.c.b16 %v9400, %v9396
        %v9445 = vpack.c.b16 %v9401, %v9397
        %v9446 = vpack.c.b16 %v9402, %v9398
        %v9447 = vpack.c.b16 %v9403, %v9399
        %v9448 = vpack.c.b16 %v9408, %v9404
        %v9449 = vpack.c.b16 %v9409, %v9405
        %v9450 = vpack.c.b16 %v9410, %v9406
        %v9451 = vpack.c.b16 %v9411, %v9407
        %v9452 = vpack.c.b16 %v9416, %v9412
        %v9453 = vpack.c.b16 %v9417, %v9413
        %v9454 = vpack.c.b16 %v9418, %v9414
        %v9455 = vpack.c.b16 %v9419, %v9415
        %v9456 = vpack.c.b16 %v9424, %v9420
        %v9457 = vpack.c.b16 %v9425, %v9421
        %v9458 = vpack.c.b16 %v9426, %v9422
        %v9459 = vpack.c.b16 %v9427, %v9423
        %9492 = vmatprep.subr.bf16.mxu0 %v9457
        %9493 = vmatpush1.bf16.msra.mxu0 %v9456
        %9494 = vmatprep.subr.bf16.mxu0 %v9453
        %9495 = vmatpush1.bf16.msra.mxu0 %v9452
        %9496 = vmatprep.subr.bf16.mxu0 %v9449
        %9497 = vmatpush1.bf16.msra.mxu0 %v9448
        %9498 = vmatprep.subr.bf16.mxu0 %v9445
        %9499 = vmatpush1.bf16.msra.mxu0 %v9444
        %9500 = vmatprep.subr.bf16.mxu0 %v9441
        %9501 = vmatpush1.bf16.msra.mxu0 %v9440
        %9502 = vmatprep.subr.bf16.mxu0 %v9437
        %9503 = vmatpush1.bf16.msra.mxu0 %v9436
        %9504 = vmatprep.subr.bf16.mxu0 %v9433
        %9505 = vmatpush1.bf16.msra.mxu0 %v9432
        %9506 = vmatprep.subr.bf16.mxu0 %v9429
        %9507 = vmatpush1.bf16.msra.mxu0 %v9428
        %9508 = vmatprep.subr.bf16.mxu0 0
        %9509 = vmatpush2.bf16.msra.mxu0 0
        %9510 = vmatprep.subr.bf16.mxu0 0
        %9511 = vmatpush2.bf16.msra.mxu0 0
        %9512 = vmatprep.subr.bf16.mxu0 0
        %9513 = vmatpush2.bf16.msra.mxu0 0
        %9514 = vmatprep.subr.bf16.mxu0 0
        %9515 = vmatpush2.bf16.msra.mxu0 0
        %9516 = vmatprep.subr.bf16.mxu0 0
        %9517 = vmatpush2.bf16.msra.mxu0 0
        %9518 = vmatprep.subr.bf16.mxu0 0
        %9519 = vmatpush2.bf16.msra.mxu0 0
        %9520 = vmatprep.subr.bf16.mxu0 0
        %9521 = vmatpush2.bf16.msra.mxu0 0
        %9522 = vmatprep.subr.bf16.mxu0 0
        %9523 = vmatpush2.bf16.msra.mxu0 0
        %9524 = vmatprep.mubr.bf16.mxu0 0
        %9525 = vmatmul.mubr.bf16.gmra.mxu0 %v9270
        %v9526 = vpop.f32.mrf.mxu0
        %v9527 = vadd.f32 %v9315, %v9526
        %v9528 = vpop.f32.mrf.mxu0
        %v9529 = vadd.f32 %v9319, %v9528
        %v9530 = vpop.f32.mrf.mxu0
        %v9531 = vadd.f32 %v9315, %v9530
        %v9532 = vpop.f32.mrf.mxu0
        %v9533 = vadd.f32 %v9319, %v9532
        %9534 = vmatprep.mubr.bf16.mxu0 0
        %9535 = vmatmul.mubr.bf16.gmra.mxu0 %v9271
        %v9536 = vpop.f32.mrf.mxu0
        %v9537 = vadd.f32 %v9315, %v9536
        %v9538 = vpop.f32.mrf.mxu0
        %v9539 = vadd.f32 %v9319, %v9538
        %v9540 = vpop.f32.mrf.mxu0
        %v9541 = vadd.f32 %v9315, %v9540
        %v9542 = vpop.f32.mrf.mxu0
        %v9543 = vadd.f32 %v9319, %v9542
        %9544 = vmatprep.mubr.bf16.mxu0 0
        %9545 = vmatmul.mubr.bf16.gmra.mxu0 %v9272
        %v9546 = vpop.f32.mrf.mxu0
        %v9547 = vadd.f32 %v9315, %v9546
        %v9548 = vpop.f32.mrf.mxu0
        %v9549 = vadd.f32 %v9319, %v9548
        %v9550 = vpop.f32.mrf.mxu0
        %v9551 = vadd.f32 %v9315, %v9550
        %v9552 = vpop.f32.mrf.mxu0
        %v9553 = vadd.f32 %v9319, %v9552
        %9554 = vmatprep.mubr.bf16.mxu0 0
        %9555 = vmatmul.mubr.bf16.gmra.mxu0 %v9273
        %v9556 = vpop.f32.mrf.mxu0
        %v9557 = vadd.f32 %v9315, %v9556
        %v9558 = vpop.f32.mrf.mxu0
        %v9559 = vadd.f32 %v9319, %v9558
        %v9560 = vpop.f32.mrf.mxu0
        %v9561 = vadd.f32 %v9315, %v9560
        %v9562 = vpop.f32.mrf.mxu0
        %v9563 = vadd.f32 %v9319, %v9562
        %9564 = vmatprep.mubr.bf16.mxu0 0
        %9565 = vmatmul.mubr.bf16.gmra.mxu0 %v9274
        %v9566 = vpop.f32.mrf.mxu0
        %v9567 = vadd.f32 %v9315, %v9566
        %v9568 = vpop.f32.mrf.mxu0
        %v9569 = vadd.f32 %v9319, %v9568
        %v9570 = vpop.f32.mrf.mxu0
        %v9571 = vadd.f32 %v9315, %v9570
        %v9572 = vpop.f32.mrf.mxu0
        %v9573 = vadd.f32 %v9319, %v9572
        %9574 = vmatprep.mubr.bf16.mxu0 0
        %9575 = vmatmul.mubr.bf16.gmra.mxu0 %v9275
        %v9576 = vpop.f32.mrf.mxu0
        %v9577 = vadd.f32 %v9315, %v9576
        %v9578 = vpop.f32.mrf.mxu0
        %v9579 = vadd.f32 %v9319, %v9578
        %v9580 = vpop.f32.mrf.mxu0
        %v9581 = vadd.f32 %v9315, %v9580
        %v9582 = vpop.f32.mrf.mxu0
        %v9583 = vadd.f32 %v9319, %v9582
        %9584 = vmatprep.mubr.bf16.mxu0 0
        %9585 = vmatmul.mubr.bf16.gmra.mxu0 %v9276
        %v9586 = vpop.f32.mrf.mxu0
        %v9587 = vadd.f32 %v9315, %v9586
        %v9588 = vpop.f32.mrf.mxu0
        %v9589 = vadd.f32 %v9319, %v9588
        %v9590 = vpop.f32.mrf.mxu0
        %v9591 = vadd.f32 %v9315, %v9590
        %v9592 = vpop.f32.mrf.mxu0
        %v9593 = vadd.f32 %v9319, %v9592
        %9594 = vmatprep.mubr.bf16.mxu0 0
        %9595 = vmatmul.mubr.bf16.gmra.mxu0 %v9277
        %v9596 = vpop.f32.mrf.mxu0
        %v9597 = vadd.f32 %v9315, %v9596
        %v9598 = vpop.f32.mrf.mxu0
        %v9599 = vadd.f32 %v9319, %v9598
        %v9600 = vpop.f32.mrf.mxu0
        %v9601 = vadd.f32 %v9315, %v9600
        %v9602 = vpop.f32.mrf.mxu0
        %v9603 = vadd.f32 %v9319, %v9602
        %9604 = vdwg.mxu0
        %9605 = vmatprep.subr.bf16.mxu0 %v9459
        %9606 = vmatpush1.bf16.msra.mxu0 %v9458
        %9607 = vmatprep.subr.bf16.mxu0 %v9455
        %9608 = vmatpush1.bf16.msra.mxu0 %v9454
        %9609 = vmatprep.subr.bf16.mxu0 %v9451
        %9610 = vmatpush1.bf16.msra.mxu0 %v9450
        %9611 = vmatprep.subr.bf16.mxu0 %v9447
        %9612 = vmatpush1.bf16.msra.mxu0 %v9446
        %9613 = vmatprep.subr.bf16.mxu0 %v9443
        %9614 = vmatpush1.bf16.msra.mxu0 %v9442
        %9615 = vmatprep.subr.bf16.mxu0 %v9439
        %9616 = vmatpush1.bf16.msra.mxu0 %v9438
        %9617 = vmatprep.subr.bf16.mxu0 %v9435
        %9618 = vmatpush1.bf16.msra.mxu0 %v9434
        %9619 = vmatprep.subr.bf16.mxu0 %v9431
        %9620 = vmatpush1.bf16.msra.mxu0 %v9430
        %9621 = vmatprep.subr.bf16.mxu0 0
        %9622 = vmatpush2.bf16.msra.mxu0 0
        %9623 = vmatprep.subr.bf16.mxu0 0
        %9624 = vmatpush2.bf16.msra.mxu0 0
        %9625 = vmatprep.subr.bf16.mxu0 0
        %9626 = vmatpush2.bf16.msra.mxu0 0
        %9627 = vmatprep.subr.bf16.mxu0 0
        %9628 = vmatpush2.bf16.msra.mxu0 0
        %9629 = vmatprep.subr.bf16.mxu0 0
        %9630 = vmatpush2.bf16.msra.mxu0 0
        %9631 = vmatprep.subr.bf16.mxu0 0
        %9632 = vmatpush2.bf16.msra.mxu0 0
        %9633 = vmatprep.subr.bf16.mxu0 0
        %9634 = vmatpush2.bf16.msra.mxu0 0
        %9635 = vmatprep.subr.bf16.mxu0 0
        %9636 = vmatpush2.bf16.msra.mxu0 0
        %9637 = vmatprep.mubr.bf16.mxu0 0
        %9638 = vmatmul.mubr.bf16.gmra.mxu0 %v9270
        %v9639 = vpop.f32.mrf.mxu0
        %v9640 = vadd.f32 %v9323, %v9639
        %v9641 = vpop.f32.mrf.mxu0
        %v9642 = vadd.f32 %v9327, %v9641
        %v9643 = vpop.f32.mrf.mxu0
        %v9644 = vadd.f32 %v9323, %v9643
        %v9645 = vpop.f32.mrf.mxu0
        %v9646 = vadd.f32 %v9327, %v9645
        %9647 = vmatprep.mubr.bf16.mxu0 0
        %9648 = vmatmul.mubr.bf16.gmra.mxu0 %v9271
        %v9649 = vpop.f32.mrf.mxu0
        %v9650 = vadd.f32 %v9323, %v9649
        %v9651 = vpop.f32.mrf.mxu0
        %v9652 = vadd.f32 %v9327, %v9651
        %v9653 = vpop.f32.mrf.mxu0
        %v9654 = vadd.f32 %v9323, %v9653
        %v9655 = vpop.f32.mrf.mxu0
        %v9656 = vadd.f32 %v9327, %v9655
        %9657 = vmatprep.mubr.bf16.mxu0 0
        %9658 = vmatmul.mubr.bf16.gmra.mxu0 %v9272
        %v9659 = vpop.f32.mrf.mxu0
        %v9660 = vadd.f32 %v9323, %v9659
        %v9661 = vpop.f32.mrf.mxu0
        %v9662 = vadd.f32 %v9327, %v9661
        %v9663 = vpop.f32.mrf.mxu0
        %v9664 = vadd.f32 %v9323, %v9663
        %v9665 = vpop.f32.mrf.mxu0
        %v9666 = vadd.f32 %v9327, %v9665
        %9667 = vmatprep.mubr.bf16.mxu0 0
        %9668 = vmatmul.mubr.bf16.gmra.mxu0 %v9273
        %v9669 = vpop.f32.mrf.mxu0
        %v9670 = vadd.f32 %v9323, %v9669
        %v9671 = vpop.f32.mrf.mxu0
        %v9672 = vadd.f32 %v9327, %v9671
        %v9673 = vpop.f32.mrf.mxu0
        %v9674 = vadd.f32 %v9323, %v9673
        %v9675 = vpop.f32.mrf.mxu0
        %v9676 = vadd.f32 %v9327, %v9675
        %9677 = vmatprep.mubr.bf16.mxu0 0
        %9678 = vmatmul.mubr.bf16.gmra.mxu0 %v9274
        %v9679 = vpop.f32.mrf.mxu0
        %v9680 = vadd.f32 %v9323, %v9679
        %v9681 = vpop.f32.mrf.mxu0
        %v9682 = vadd.f32 %v9327, %v9681
        %v9683 = vpop.f32.mrf.mxu0
        %v9684 = vadd.f32 %v9323, %v9683
        %v9685 = vpop.f32.mrf.mxu0
        %v9686 = vadd.f32 %v9327, %v9685
        %9687 = vmatprep.mubr.bf16.mxu0 0
        %9688 = vmatmul.mubr.bf16.gmra.mxu0 %v9275
        %v9689 = vpop.f32.mrf.mxu0
        %v9690 = vadd.f32 %v9323, %v9689
        %v9691 = vpop.f32.mrf.mxu0
        %v9692 = vadd.f32 %v9327, %v9691
        %v9693 = vpop.f32.mrf.mxu0
        %v9694 = vadd.f32 %v9323, %v9693
        %v9695 = vpop.f32.mrf.mxu0
        %v9696 = vadd.f32 %v9327, %v9695
        %9697 = vmatprep.mubr.bf16.mxu0 0
        %9698 = vmatmul.mubr.bf16.gmra.mxu0 %v9276
        %v9699 = vpop.f32.mrf.mxu0
        %v9700 = vadd.f32 %v9323, %v9699
        %v9701 = vpop.f32.mrf.mxu0
        %v9702 = vadd.f32 %v9327, %v9701
        %v9703 = vpop.f32.mrf.mxu0
        %v9704 = vadd.f32 %v9323, %v9703
        %v9705 = vpop.f32.mrf.mxu0
        %v9706 = vadd.f32 %v9327, %v9705
        %9707 = vmatprep.mubr.bf16.mxu0 0
        %9708 = vmatmul.mubr.bf16.gmra.mxu0 %v9277
        %v9709 = vpop.f32.mrf.mxu0
        %v9710 = vadd.f32 %v9323, %v9709
        %v9711 = vpop.f32.mrf.mxu0
        %v9712 = vadd.f32 %v9327, %v9711
        %v9713 = vpop.f32.mrf.mxu0
        %v9714 = vadd.f32 %v9323, %v9713
        %v9715 = vpop.f32.mrf.mxu0
        %v9716 = vadd.f32 %v9327, %v9715
        %9717 = vdwg.mxu0
        %v9718 = vmul.f32 %v9527, 0.5
        %v9719 = vmul.f32 %v9529, 0.5
        %v9720 = vmul.f32 %v9640, 0.5
        %v9721 = vmul.f32 %v9642, 0.5
        %v9722 = vmul.f32 %v9531, 0.5
        %v9723 = vmul.f32 %v9533, 0.5
        %v9724 = vmul.f32 %v9644, 0.5
        %v9725 = vmul.f32 %v9646, 0.5
        %v9726 = vmul.f32 %v9537, 0.5
        %v9727 = vmul.f32 %v9539, 0.5
        %v9728 = vmul.f32 %v9650, 0.5
        %v9729 = vmul.f32 %v9652, 0.5
        %v9730 = vmul.f32 %v9541, 0.5
        %v9731 = vmul.f32 %v9543, 0.5
        %v9732 = vmul.f32 %v9654, 0.5
        %v9733 = vmul.f32 %v9656, 0.5
        %v9734 = vmul.f32 %v9547, 0.5
        %v9735 = vmul.f32 %v9549, 0.5
        %v9736 = vmul.f32 %v9660, 0.5
        %v9737 = vmul.f32 %v9662, 0.5
        %v9738 = vmul.f32 %v9551, 0.5
        %v9739 = vmul.f32 %v9553, 0.5
        %v9740 = vmul.f32 %v9664, 0.5
        %v9741 = vmul.f32 %v9666, 0.5
        %v9742 = vmul.f32 %v9557, 0.5
        %v9743 = vmul.f32 %v9559, 0.5
        %v9744 = vmul.f32 %v9670, 0.5
        %v9745 = vmul.f32 %v9672, 0.5
        %v9746 = vmul.f32 %v9561, 0.5
        %v9747 = vmul.f32 %v9563, 0.5
        %v9748 = vmul.f32 %v9674, 0.5
        %v9749 = vmul.f32 %v9676, 0.5
        %v9750 = vmul.f32 %v9567, 0.5
        %v9751 = vmul.f32 %v9569, 0.5
        %v9752 = vmul.f32 %v9680, 0.5
        %v9753 = vmul.f32 %v9682, 0.5
        %v9754 = vmul.f32 %v9571, 0.5
        %v9755 = vmul.f32 %v9573, 0.5
        %v9756 = vmul.f32 %v9684, 0.5
        %v9757 = vmul.f32 %v9686, 0.5
        %v9758 = vmul.f32 %v9577, 0.5
        %v9759 = vmul.f32 %v9579, 0.5
        %v9760 = vmul.f32 %v9690, 0.5
        %v9761 = vmul.f32 %v9692, 0.5
        %v9762 = vmul.f32 %v9581, 0.5
        %v9763 = vmul.f32 %v9583, 0.5
        %v9764 = vmul.f32 %v9694, 0.5
        %v9765 = vmul.f32 %v9696, 0.5
        %v9766 = vmul.f32 %v9587, 0.5
        %v9767 = vmul.f32 %v9589, 0.5
        %v9768 = vmul.f32 %v9700, 0.5
        %v9769 = vmul.f32 %v9702, 0.5
        %v9770 = vmul.f32 %v9591, 0.5
        %v9771 = vmul.f32 %v9593, 0.5
        %v9772 = vmul.f32 %v9704, 0.5
        %v9773 = vmul.f32 %v9706, 0.5
        %v9774 = vmul.f32 %v9597, 0.5
        %v9775 = vmul.f32 %v9599, 0.5
        %v9776 = vmul.f32 %v9710, 0.5
        %v9777 = vmul.f32 %v9712, 0.5
        %v9778 = vmul.f32 %v9601, 0.5
        %v9779 = vmul.f32 %v9603, 0.5
        %v9780 = vmul.f32 %v9714, 0.5
        %v9781 = vmul.f32 %v9716, 0.5
        %v9782 = vmul.f32 %v9527, 0.044715
        %v9783 = vmul.f32 %v9529, 0.044715
        %v9784 = vmul.f32 %v9640, 0.044715
        %v9785 = vmul.f32 %v9642, 0.044715
        %v9786 = vmul.f32 %v9531, 0.044715
        %v9787 = vmul.f32 %v9533, 0.044715
        %v9788 = vmul.f32 %v9644, 0.044715
        %v9789 = vmul.f32 %v9646, 0.044715
        %v9790 = vmul.f32 %v9537, 0.044715
        %v9791 = vmul.f32 %v9539, 0.044715
        %v9792 = vmul.f32 %v9650, 0.044715
        %v9793 = vmul.f32 %v9652, 0.044715
        %v9794 = vmul.f32 %v9541, 0.044715
        %v9795 = vmul.f32 %v9543, 0.044715
        %v9796 = vmul.f32 %v9654, 0.044715
        %v9797 = vmul.f32 %v9656, 0.044715
        %v9798 = vmul.f32 %v9547, 0.044715
        %v9799 = vmul.f32 %v9549, 0.044715
        %v9800 = vmul.f32 %v9660, 0.044715
        %v9801 = vmul.f32 %v9662, 0.044715
        %v9802 = vmul.f32 %v9551, 0.044715
        %v9803 = vmul.f32 %v9553, 0.044715
        %v9804 = vmul.f32 %v9664, 0.044715
        %v9805 = vmul.f32 %v9666, 0.044715
        %v9806 = vmul.f32 %v9557, 0.044715
        %v9807 = vmul.f32 %v9559, 0.044715
        %v9808 = vmul.f32 %v9670, 0.044715
        %v9809 = vmul.f32 %v9672, 0.044715
        %v9810 = vmul.f32 %v9561, 0.044715
        %v9811 = vmul.f32 %v9563, 0.044715
        %v9812 = vmul.f32 %v9674, 0.044715
        %v9813 = vmul.f32 %v9676, 0.044715
        %v9814 = vmul.f32 %v9567, 0.044715
        %v9815 = vmul.f32 %v9569, 0.044715
        %v9816 = vmul.f32 %v9680, 0.044715
        %v9817 = vmul.f32 %v9682, 0.044715
        %v9818 = vmul.f32 %v9571, 0.044715
        %v9819 = vmul.f32 %v9573, 0.044715
        %v9820 = vmul.f32 %v9684, 0.044715
        %v9821 = vmul.f32 %v9686, 0.044715
        %v9822 = vmul.f32 %v9577, 0.044715
        %v9823 = vmul.f32 %v9579, 0.044715
        %v9824 = vmul.f32 %v9690, 0.044715
        %v9825 = vmul.f32 %v9692, 0.044715
        %v9826 = vmul.f32 %v9581, 0.044715
        %v9827 = vmul.f32 %v9583, 0.044715
        %v9828 = vmul.f32 %v9694, 0.044715
        %v9829 = vmul.f32 %v9696, 0.044715
        %v9830 = vmul.f32 %v9587, 0.044715
        %v9831 = vmul.f32 %v9589, 0.044715
        %v9832 = vmul.f32 %v9700, 0.044715
        %v9833 = vmul.f32 %v9702, 0.044715
        %v9834 = vmul.f32 %v9591, 0.044715
        %v9835 = vmul.f32 %v9593, 0.044715
        %v9836 = vmul.f32 %v9704, 0.044715
        %v9837 = vmul.f32 %v9706, 0.044715
        %v9838 = vmul.f32 %v9597, 0.044715
        %v9839 = vmul.f32 %v9599, 0.044715
        %v9840 = vmul.f32 %v9710, 0.044715
        %v9841 = vmul.f32 %v9712, 0.044715
        %v9842 = vmul.f32 %v9601, 0.044715
        %v9843 = vmul.f32 %v9603, 0.044715
        %v9844 = vmul.f32 %v9714, 0.044715
        %v9845 = vmul.f32 %v9716, 0.044715
        %v9846 = vmul.f32 %v9782, %v9527
        %v9847 = vmul.f32 %v9783, %v9529
        %v9848 = vmul.f32 %v9784, %v9640
        %v9849 = vmul.f32 %v9785, %v9642
        %v9850 = vmul.f32 %v9786, %v9531
        %v9851 = vmul.f32 %v9787, %v9533
        %v9852 = vmul.f32 %v9788, %v9644
        %v9853 = vmul.f32 %v9789, %v9646
        %v9854 = vmul.f32 %v9790, %v9537
        %v9855 = vmul.f32 %v9791, %v9539
        %v9856 = vmul.f32 %v9792, %v9650
        %v9857 = vmul.f32 %v9793, %v9652
        %v9858 = vmul.f32 %v9794, %v9541
        %v9859 = vmul.f32 %v9795, %v9543
        %v9860 = vmul.f32 %v9796, %v9654
        %v9861 = vmul.f32 %v9797, %v9656
        %v9862 = vmul.f32 %v9798, %v9547
        %v9863 = vmul.f32 %v9799, %v9549
        %v9864 = vmul.f32 %v9800, %v9660
        %v9865 = vmul.f32 %v9801, %v9662
        %v9866 = vmul.f32 %v9802, %v9551
        %v9867 = vmul.f32 %v9803, %v9553
        %v9868 = vmul.f32 %v9804, %v9664
        %v9869 = vmul.f32 %v9805, %v9666
        %v9870 = vmul.f32 %v9806, %v9557
        %v9871 = vmul.f32 %v9807, %v9559
        %v9872 = vmul.f32 %v9808, %v9670
        %v9873 = vmul.f32 %v9809, %v9672
        %v9874 = vmul.f32 %v9810, %v9561
        %v9875 = vmul.f32 %v9811, %v9563
        %v9876 = vmul.f32 %v9812, %v9674
        %v9877 = vmul.f32 %v9813, %v9676
        %v9878 = vmul.f32 %v9814, %v9567
        %v9879 = vmul.f32 %v9815, %v9569
        %v9880 = vmul.f32 %v9816, %v9680
        %v9881 = vmul.f32 %v9817, %v9682
        %v9882 = vmul.f32 %v9818, %v9571
        %v9883 = vmul.f32 %v9819, %v9573
        %v9884 = vmul.f32 %v9820, %v9684
        %v9885 = vmul.f32 %v9821, %v9686
        %v9886 = vmul.f32 %v9822, %v9577
        %v9887 = vmul.f32 %v9823, %v9579
        %v9888 = vmul.f32 %v9824, %v9690
        %v9889 = vmul.f32 %v9825, %v9692
        %v9890 = vmul.f32 %v9826, %v9581
        %v9891 = vmul.f32 %v9827, %v9583
        %v9892 = vmul.f32 %v9828, %v9694
        %v9893 = vmul.f32 %v9829, %v9696
        %v9894 = vmul.f32 %v9830, %v9587
        %v9895 = vmul.f32 %v9831, %v9589
        %v9896 = vmul.f32 %v9832, %v9700
        %v9897 = vmul.f32 %v9833, %v9702
        %v9898 = vmul.f32 %v9834, %v9591
        %v9899 = vmul.f32 %v9835, %v9593
        %v9900 = vmul.f32 %v9836, %v9704
        %v9901 = vmul.f32 %v9837, %v9706
        %v9902 = vmul.f32 %v9838, %v9597
        %v9903 = vmul.f32 %v9839, %v9599
        %v9904 = vmul.f32 %v9840, %v9710
        %v9905 = vmul.f32 %v9841, %v9712
        %v9906 = vmul.f32 %v9842, %v9601
        %v9907 = vmul.f32 %v9843, %v9603
        %v9908 = vmul.f32 %v9844, %v9714
        %v9909 = vmul.f32 %v9845, %v9716
        %v9910 = vmul.f32 %v9846, %v9527
        %v9911 = vmul.f32 %v9847, %v9529
        %v9912 = vmul.f32 %v9848, %v9640
        %v9913 = vmul.f32 %v9849, %v9642
        %v9914 = vmul.f32 %v9850, %v9531
        %v9915 = vmul.f32 %v9851, %v9533
        %v9916 = vmul.f32 %v9852, %v9644
        %v9917 = vmul.f32 %v9853, %v9646
        %v9918 = vmul.f32 %v9854, %v9537
        %v9919 = vmul.f32 %v9855, %v9539
        %v9920 = vmul.f32 %v9856, %v9650
        %v9921 = vmul.f32 %v9857, %v9652
        %v9922 = vmul.f32 %v9858, %v9541
        %v9923 = vmul.f32 %v9859, %v9543
        %v9924 = vmul.f32 %v9860, %v9654
        %v9925 = vmul.f32 %v9861, %v9656
        %v9926 = vmul.f32 %v9862, %v9547
        %v9927 = vmul.f32 %v9863, %v9549
        %v9928 = vmul.f32 %v9864, %v9660
        %v9929 = vmul.f32 %v9865, %v9662
        %v9930 = vmul.f32 %v9866, %v9551
        %v9931 = vmul.f32 %v9867, %v9553
        %v9932 = vmul.f32 %v9868, %v9664
        %v9933 = vmul.f32 %v9869, %v9666
        %v9934 = vmul.f32 %v9870, %v9557
        %v9935 = vmul.f32 %v9871, %v9559
        %v9936 = vmul.f32 %v9872, %v9670
        %v9937 = vmul.f32 %v9873, %v9672
        %v9938 = vmul.f32 %v9874, %v9561
        %v9939 = vmul.f32 %v9875, %v9563
        %v9940 = vmul.f32 %v9876, %v9674
        %v9941 = vmul.f32 %v9877, %v9676
        %v9942 = vmul.f32 %v9878, %v9567
        %v9943 = vmul.f32 %v9879, %v9569
        %v9944 = vmul.f32 %v9880, %v9680
        %v9945 = vmul.f32 %v9881, %v9682
        %v9946 = vmul.f32 %v9882, %v9571
        %v9947 = vmul.f32 %v9883, %v9573
        %v9948 = vmul.f32 %v9884, %v9684
        %v9949 = vmul.f32 %v9885, %v9686
        %v9950 = vmul.f32 %v9886, %v9577
        %v9951 = vmul.f32 %v9887, %v9579
        %v9952 = vmul.f32 %v9888, %v9690
        %v9953 = vmul.f32 %v9889, %v9692
        %v9954 = vmul.f32 %v9890, %v9581
        %v9955 = vmul.f32 %v9891, %v9583
        %v9956 = vmul.f32 %v9892, %v9694
        %v9957 = vmul.f32 %v9893, %v9696
        %v9958 = vmul.f32 %v9894, %v9587
        %v9959 = vmul.f32 %v9895, %v9589
        %v9960 = vmul.f32 %v9896, %v9700
        %v9961 = vmul.f32 %v9897, %v9702
        %v9962 = vmul.f32 %v9898, %v9591
        %v9963 = vmul.f32 %v9899, %v9593
        %v9964 = vmul.f32 %v9900, %v9704
        %v9965 = vmul.f32 %v9901, %v9706
        %v9966 = vmul.f32 %v9902, %v9597
        %v9967 = vmul.f32 %v9903, %v9599
        %v9968 = vmul.f32 %v9904, %v9710
        %v9969 = vmul.f32 %v9905, %v9712
        %v9970 = vmul.f32 %v9906, %v9601
        %v9971 = vmul.f32 %v9907, %v9603
        %v9972 = vmul.f32 %v9908, %v9714
        %v9973 = vmul.f32 %v9909, %v9716
        %v9974 = vadd.f32 %v9527, %v9910
        %v9975 = vadd.f32 %v9529, %v9911
        %v9976 = vadd.f32 %v9640, %v9912
        %v9977 = vadd.f32 %v9642, %v9913
        %v9978 = vadd.f32 %v9531, %v9914
        %v9979 = vadd.f32 %v9533, %v9915
        %v9980 = vadd.f32 %v9644, %v9916
        %v9981 = vadd.f32 %v9646, %v9917
        %v9982 = vadd.f32 %v9537, %v9918
        %v9983 = vadd.f32 %v9539, %v9919
        %v9984 = vadd.f32 %v9650, %v9920
        %v9985 = vadd.f32 %v9652, %v9921
        %v9986 = vadd.f32 %v9541, %v9922
        %v9987 = vadd.f32 %v9543, %v9923
        %v9988 = vadd.f32 %v9654, %v9924
        %v9989 = vadd.f32 %v9656, %v9925
        %v9990 = vadd.f32 %v9547, %v9926
        %v9991 = vadd.f32 %v9549, %v9927
        %v9992 = vadd.f32 %v9660, %v9928
        %v9993 = vadd.f32 %v9662, %v9929
        %v9994 = vadd.f32 %v9551, %v9930
        %v9995 = vadd.f32 %v9553, %v9931
        %v9996 = vadd.f32 %v9664, %v9932
        %v9997 = vadd.f32 %v9666, %v9933
        %v9998 = vadd.f32 %v9557, %v9934
        %v9999 = vadd.f32 %v9559, %v9935
        %v10000 = vadd.f32 %v9670, %v9936
        %v10001 = vadd.f32 %v9672, %v9937
        %v10002 = vadd.f32 %v9561, %v9938
        %v10003 = vadd.f32 %v9563, %v9939
        %v10004 = vadd.f32 %v9674, %v9940
        %v10005 = vadd.f32 %v9676, %v9941
        %v10006 = vadd.f32 %v9567, %v9942
        %v10007 = vadd.f32 %v9569, %v9943
        %v10008 = vadd.f32 %v9680, %v9944
        %v10009 = vadd.f32 %v9682, %v9945
        %v10010 = vadd.f32 %v9571, %v9946
        %v10011 = vadd.f32 %v9573, %v9947
        %v10012 = vadd.f32 %v9684, %v9948
        %v10013 = vadd.f32 %v9686, %v9949
        %v10014 = vadd.f32 %v9577, %v9950
        %v10015 = vadd.f32 %v9579, %v9951
        %v10016 = vadd.f32 %v9690, %v9952
        %v10017 = vadd.f32 %v9692, %v9953
        %v10018 = vadd.f32 %v9581, %v9954
        %v10019 = vadd.f32 %v9583, %v9955
        %v10020 = vadd.f32 %v9694, %v9956
        %v10021 = vadd.f32 %v9696, %v9957
        %v10022 = vadd.f32 %v9587, %v9958
        %v10023 = vadd.f32 %v9589, %v9959
        %v10024 = vadd.f32 %v9700, %v9960
        %v10025 = vadd.f32 %v9702, %v9961
        %v10026 = vadd.f32 %v9591, %v9962
        %v10027 = vadd.f32 %v9593, %v9963
        %v10028 = vadd.f32 %v9704, %v9964
        %v10029 = vadd.f32 %v9706, %v9965
        %v10030 = vadd.f32 %v9597, %v9966
        %v10031 = vadd.f32 %v9599, %v9967
        %v10032 = vadd.f32 %v9710, %v9968
        %v10033 = vadd.f32 %v9712, %v9969
        %v10034 = vadd.f32 %v9601, %v9970
        %v10035 = vadd.f32 %v9603, %v9971
        %v10036 = vadd.f32 %v9714, %v9972
        %v10037 = vadd.f32 %v9716, %v9973
        %v10038 = vmul.f32 %v9974, 0.7978846
        %v10039 = vmul.f32 %v9975, 0.7978846
        %v10040 = vmul.f32 %v9976, 0.7978846
        %v10041 = vmul.f32 %v9977, 0.7978846
        %v10042 = vmul.f32 %v9978, 0.7978846
        %v10043 = vmul.f32 %v9979, 0.7978846
        %v10044 = vmul.f32 %v9980, 0.7978846
        %v10045 = vmul.f32 %v9981, 0.7978846
        %v10046 = vmul.f32 %v9982, 0.7978846
        %v10047 = vmul.f32 %v9983, 0.7978846
        %v10048 = vmul.f32 %v9984, 0.7978846
        %v10049 = vmul.f32 %v9985, 0.7978846
        %v10050 = vmul.f32 %v9986, 0.7978846
        %v10051 = vmul.f32 %v9987, 0.7978846
        %v10052 = vmul.f32 %v9988, 0.7978846
        %v10053 = vmul.f32 %v9989, 0.7978846
        %v10054 = vmul.f32 %v9990, 0.7978846
        %v10055 = vmul.f32 %v9991, 0.7978846
        %v10056 = vmul.f32 %v9992, 0.7978846
        %v10057 = vmul.f32 %v9993, 0.7978846
        %v10058 = vmul.f32 %v9994, 0.7978846
        %v10059 = vmul.f32 %v9995, 0.7978846
        %v10060 = vmul.f32 %v9996, 0.7978846
        %v10061 = vmul.f32 %v9997, 0.7978846
        %v10062 = vmul.f32 %v9998, 0.7978846
        %v10063 = vmul.f32 %v9999, 0.7978846
        %v10064 = vmul.f32 %v10000, 0.7978846
        %v10065 = vmul.f32 %v10001, 0.7978846
        %v10066 = vmul.f32 %v10002, 0.7978846
        %v10067 = vmul.f32 %v10003, 0.7978846
        %v10068 = vmul.f32 %v10004, 0.7978846
        %v10069 = vmul.f32 %v10005, 0.7978846
        %v10070 = vmul.f32 %v10006, 0.7978846
        %v10071 = vmul.f32 %v10007, 0.7978846
        %v10072 = vmul.f32 %v10008, 0.7978846
        %v10073 = vmul.f32 %v10009, 0.7978846
        %v10074 = vmul.f32 %v10010, 0.7978846
        %v10075 = vmul.f32 %v10011, 0.7978846
        %v10076 = vmul.f32 %v10012, 0.7978846
        %v10077 = vmul.f32 %v10013, 0.7978846
        %v10078 = vmul.f32 %v10014, 0.7978846
        %v10079 = vmul.f32 %v10015, 0.7978846
        %v10080 = vmul.f32 %v10016, 0.7978846
        %v10081 = vmul.f32 %v10017, 0.7978846
        %v10082 = vmul.f32 %v10018, 0.7978846
        %v10083 = vmul.f32 %v10019, 0.7978846
        %v10084 = vmul.f32 %v10020, 0.7978846
        %v10085 = vmul.f32 %v10021, 0.7978846
        %v10086 = vmul.f32 %v10022, 0.7978846
        %v10087 = vmul.f32 %v10023, 0.7978846
        %v10088 = vmul.f32 %v10024, 0.7978846
        %v10089 = vmul.f32 %v10025, 0.7978846
        %v10090 = vmul.f32 %v10026, 0.7978846
        %v10091 = vmul.f32 %v10027, 0.7978846
        %v10092 = vmul.f32 %v10028, 0.7978846
        %v10093 = vmul.f32 %v10029, 0.7978846
        %v10094 = vmul.f32 %v10030, 0.7978846
        %v10095 = vmul.f32 %v10031, 0.7978846
        %v10096 = vmul.f32 %v10032, 0.7978846
        %v10097 = vmul.f32 %v10033, 0.7978846
        %v10098 = vmul.f32 %v10034, 0.7978846
        %v10099 = vmul.f32 %v10035, 0.7978846
        %v10100 = vmul.f32 %v10036, 0.7978846
        %v10101 = vmul.f32 %v10037, 0.7978846
        %v10102 = vtanh.pop %v10038
        %v10103 = vtanh.pop %v10039
        %v10104 = vtanh.pop %v10040
        %v10105 = vtanh.pop %v10041
        %v10106 = vtanh.pop %v10042
        %v10107 = vtanh.pop %v10043
        %v10108 = vtanh.pop %v10044
        %v10109 = vtanh.pop %v10045
        %v10110 = vtanh.pop %v10046
        %v10111 = vtanh.pop %v10047
        %v10112 = vtanh.pop %v10048
        %v10113 = vtanh.pop %v10049
        %v10114 = vtanh.pop %v10050
        %v10115 = vtanh.pop %v10051
        %v10116 = vtanh.pop %v10052
        %v10117 = vtanh.pop %v10053
        %v10118 = vtanh.pop %v10054
        %v10119 = vtanh.pop %v10055
        %v10120 = vtanh.pop %v10056
        %v10121 = vtanh.pop %v10057
        %v10122 = vtanh.pop %v10058
        %v10123 = vtanh.pop %v10059
        %v10124 = vtanh.pop %v10060
        %v10125 = vtanh.pop %v10061
        %v10126 = vtanh.pop %v10062
        %v10127 = vtanh.pop %v10063
        %v10128 = vtanh.pop %v10064
        %v10129 = vtanh.pop %v10065
        %v10130 = vtanh.pop %v10066
        %v10131 = vtanh.pop %v10067
        %v10132 = vtanh.pop %v10068
        %v10133 = vtanh.pop %v10069
        %v10134 = vtanh.pop %v10070
        %v10135 = vtanh.pop %v10071
        %v10136 = vtanh.pop %v10072
        %v10137 = vtanh.pop %v10073
        %v10138 = vtanh.pop %v10074
        %v10139 = vtanh.pop %v10075
        %v10140 = vtanh.pop %v10076
        %v10141 = vtanh.pop %v10077
        %v10142 = vtanh.pop %v10078
        %v10143 = vtanh.pop %v10079
        %v10144 = vtanh.pop %v10080
        %v10145 = vtanh.pop %v10081
        %v10146 = vtanh.pop %v10082
        %v10147 = vtanh.pop %v10083
        %v10148 = vtanh.pop %v10084
        %v10149 = vtanh.pop %v10085
        %v10150 = vtanh.pop %v10086
        %v10151 = vtanh.pop %v10087
        %v10152 = vtanh.pop %v10088
        %v10153 = vtanh.pop %v10089
        %v10154 = vtanh.pop %v10090
        %v10155 = vtanh.pop %v10091
        %v10156 = vtanh.pop %v10092
        %v10157 = vtanh.pop %v10093
        %v10158 = vtanh.pop %v10094
        %v10159 = vtanh.pop %v10095
        %v10160 = vtanh.pop %v10096
        %v10161 = vtanh.pop %v10097
        %v10162 = vtanh.pop %v10098
        %v10163 = vtanh.pop %v10099
        %v10164 = vtanh.pop %v10100
        %v10165 = vtanh.pop %v10101
        %v10166 = vadd.f32 %v10102, 1.0
        %v10167 = vadd.f32 %v10103, 1.0
        %v10168 = vadd.f32 %v10104, 1.0
        %v10169 = vadd.f32 %v10105, 1.0
        %v10170 = vadd.f32 %v10106, 1.0
        %v10171 = vadd.f32 %v10107, 1.0
        %v10172 = vadd.f32 %v10108, 1.0
        %v10173 = vadd.f32 %v10109, 1.0
        %v10174 = vadd.f32 %v10110, 1.0
        %v10175 = vadd.f32 %v10111, 1.0
        %v10176 = vadd.f32 %v10112, 1.0
        %v10177 = vadd.f32 %v10113, 1.0
        %v10178 = vadd.f32 %v10114, 1.0
        %v10179 = vadd.f32 %v10115, 1.0
        %v10180 = vadd.f32 %v10116, 1.0
        %v10181 = vadd.f32 %v10117, 1.0
        %v10182 = vadd.f32 %v10118, 1.0
        %v10183 = vadd.f32 %v10119, 1.0
        %v10184 = vadd.f32 %v10120, 1.0
        %v10185 = vadd.f32 %v10121, 1.0
        %v10186 = vadd.f32 %v10122, 1.0
        %v10187 = vadd.f32 %v10123, 1.0
        %v10188 = vadd.f32 %v10124, 1.0
        %v10189 = vadd.f32 %v10125, 1.0
        %v10190 = vadd.f32 %v10126, 1.0
        %v10191 = vadd.f32 %v10127, 1.0
        %v10192 = vadd.f32 %v10128, 1.0
        %v10193 = vadd.f32 %v10129, 1.0
        %v10194 = vadd.f32 %v10130, 1.0
        %v10195 = vadd.f32 %v10131, 1.0
        %v10196 = vadd.f32 %v10132, 1.0
        %v10197 = vadd.f32 %v10133, 1.0
        %v10198 = vadd.f32 %v10134, 1.0
        %v10199 = vadd.f32 %v10135, 1.0
        %v10200 = vadd.f32 %v10136, 1.0
        %v10201 = vadd.f32 %v10137, 1.0
        %v10202 = vadd.f32 %v10138, 1.0
        %v10203 = vadd.f32 %v10139, 1.0
        %v10204 = vadd.f32 %v10140, 1.0
        %v10205 = vadd.f32 %v10141, 1.0
        %v10206 = vadd.f32 %v10142, 1.0
        %v10207 = vadd.f32 %v10143, 1.0
        %v10208 = vadd.f32 %v10144, 1.0
        %v10209 = vadd.f32 %v10145, 1.0
        %v10210 = vadd.f32 %v10146, 1.0
        %v10211 = vadd.f32 %v10147, 1.0
        %v10212 = vadd.f32 %v10148, 1.0
        %v10213 = vadd.f32 %v10149, 1.0
        %v10214 = vadd.f32 %v10150, 1.0
        %v10215 = vadd.f32 %v10151, 1.0
        %v10216 = vadd.f32 %v10152, 1.0
        %v10217 = vadd.f32 %v10153, 1.0
        %v10218 = vadd.f32 %v10154, 1.0
        %v10219 = vadd.f32 %v10155, 1.0
        %v10220 = vadd.f32 %v10156, 1.0
        %v10221 = vadd.f32 %v10157, 1.0
        %v10222 = vadd.f32 %v10158, 1.0
        %v10223 = vadd.f32 %v10159, 1.0
        %v10224 = vadd.f32 %v10160, 1.0
        %v10225 = vadd.f32 %v10161, 1.0
        %v10226 = vadd.f32 %v10162, 1.0
        %v10227 = vadd.f32 %v10163, 1.0
        %v10228 = vadd.f32 %v10164, 1.0
        %v10229 = vadd.f32 %v10165, 1.0
        %v10230 = vmul.f32 %v9718, %v10166
        %v10231 = vmul.f32 %v9719, %v10167
        %v10232 = vmul.f32 %v9720, %v10168
        %v10233 = vmul.f32 %v9721, %v10169
        %v10234 = vmul.f32 %v9722, %v10170
        %v10235 = vmul.f32 %v9723, %v10171
        %v10236 = vmul.f32 %v9724, %v10172
        %v10237 = vmul.f32 %v9725, %v10173
        %v10238 = vmul.f32 %v9726, %v10174
        %v10239 = vmul.f32 %v9727, %v10175
        %v10240 = vmul.f32 %v9728, %v10176
        %v10241 = vmul.f32 %v9729, %v10177
        %v10242 = vmul.f32 %v9730, %v10178
        %v10243 = vmul.f32 %v9731, %v10179
        %v10244 = vmul.f32 %v9732, %v10180
        %v10245 = vmul.f32 %v9733, %v10181
        %v10246 = vmul.f32 %v9734, %v10182
        %v10247 = vmul.f32 %v9735, %v10183
        %v10248 = vmul.f32 %v9736, %v10184
        %v10249 = vmul.f32 %v9737, %v10185
        %v10250 = vmul.f32 %v9738, %v10186
        %v10251 = vmul.f32 %v9739, %v10187
        %v10252 = vmul.f32 %v9740, %v10188
        %v10253 = vmul.f32 %v9741, %v10189
        %v10254 = vmul.f32 %v9742, %v10190
        %v10255 = vmul.f32 %v9743, %v10191
        %v10256 = vmul.f32 %v9744, %v10192
        %v10257 = vmul.f32 %v9745, %v10193
        %v10258 = vmul.f32 %v9746, %v10194
        %v10259 = vmul.f32 %v9747, %v10195
        %v10260 = vmul.f32 %v9748, %v10196
        %v10261 = vmul.f32 %v9749, %v10197
        %v10262 = vmul.f32 %v9750, %v10198
        %v10263 = vmul.f32 %v9751, %v10199
        %v10264 = vmul.f32 %v9752, %v10200
        %v10265 = vmul.f32 %v9753, %v10201
        %v10266 = vmul.f32 %v9754, %v10202
        %v10267 = vmul.f32 %v9755, %v10203
        %v10268 = vmul.f32 %v9756, %v10204
        %v10269 = vmul.f32 %v9757, %v10205
        %v10270 = vmul.f32 %v9758, %v10206
        %v10271 = vmul.f32 %v9759, %v10207
        %v10272 = vmul.f32 %v9760, %v10208
        %v10273 = vmul.f32 %v9761, %v10209
        %v10274 = vmul.f32 %v9762, %v10210
        %v10275 = vmul.f32 %v9763, %v10211
        %v10276 = vmul.f32 %v9764, %v10212
        %v10277 = vmul.f32 %v9765, %v10213
        %v10278 = vmul.f32 %v9766, %v10214
        %v10279 = vmul.f32 %v9767, %v10215
        %v10280 = vmul.f32 %v9768, %v10216
        %v10281 = vmul.f32 %v9769, %v10217
        %v10282 = vmul.f32 %v9770, %v10218
        %v10283 = vmul.f32 %v9771, %v10219
        %v10284 = vmul.f32 %v9772, %v10220
        %v10285 = vmul.f32 %v9773, %v10221
        %v10286 = vmul.f32 %v9774, %v10222
        %v10287 = vmul.f32 %v9775, %v10223
        %v10288 = vmul.f32 %v9776, %v10224
        %v10289 = vmul.f32 %v9777, %v10225
        %v10290 = vmul.f32 %v9778, %v10226
        %v10291 = vmul.f32 %v9779, %v10227
        %v10292 = vmul.f32 %v9780, %v10228
        %v10293 = vmul.f32 %v9781, %v10229
        %v10294 = vpack.c.bf16 %v10234, %v10230
        %v10295 = vpack.c.bf16 %v10235, %v10231
        %v10296 = vpack.c.bf16 %v10236, %v10232
        %v10297 = vpack.c.bf16 %v10237, %v10233
        %v10298 = vpack.c.bf16 %v10242, %v10238
        %v10299 = vpack.c.bf16 %v10243, %v10239
        %v10300 = vpack.c.bf16 %v10244, %v10240
        %v10301 = vpack.c.bf16 %v10245, %v10241
        %v10302 = vpack.c.bf16 %v10250, %v10246
        %v10303 = vpack.c.bf16 %v10251, %v10247
        %v10304 = vpack.c.bf16 %v10252, %v10248
        %v10305 = vpack.c.bf16 %v10253, %v10249
        %v10306 = vpack.c.bf16 %v10258, %v10254
        %v10307 = vpack.c.bf16 %v10259, %v10255
        %v10308 = vpack.c.bf16 %v10260, %v10256
        %v10309 = vpack.c.bf16 %v10261, %v10257
        %v10310 = vpack.c.bf16 %v10266, %v10262
        %v10311 = vpack.c.bf16 %v10267, %v10263
        %v10312 = vpack.c.bf16 %v10268, %v10264
        %v10313 = vpack.c.bf16 %v10269, %v10265
        %v10314 = vpack.c.bf16 %v10274, %v10270
        %v10315 = vpack.c.bf16 %v10275, %v10271
        %v10316 = vpack.c.bf16 %v10276, %v10272
        %v10317 = vpack.c.bf16 %v10277, %v10273
        %v10318 = vpack.c.bf16 %v10282, %v10278
        %v10319 = vpack.c.bf16 %v10283, %v10279
        %v10320 = vpack.c.bf16 %v10284, %v10280
        %v10321 = vpack.c.bf16 %v10285, %v10281
        %v10322 = vpack.c.bf16 %v10290, %v10286
        %v10323 = vpack.c.bf16 %v10291, %v10287
        %v10324 = vpack.c.bf16 %v10292, %v10288
        %v10325 = vpack.c.bf16 %v10293, %v10289
        %v10326 = vld [vmem:[%s8] sm:$0xf]
        %v10327 = vld [vmem:[%s8 + $0x4] sm:$0xf]
        %v10328 = vld [vmem:[%s8 + $0x8] sm:$0xf]
        %v10329 = vld [vmem:[%s8 + $0xc] sm:$0xf]
        %v10330 = vld [vmem:[%s8 + $0x10] sm:$0xf]
        %v10331 = vld [vmem:[%s8 + $0x14] sm:$0xf]
        %v10332 = vld [vmem:[%s8 + $0x18] sm:$0xf]
        %v10333 = vld [vmem:[%s8 + $0x1c] sm:$0xf]
        %v10334 = vld [vmem:[%s8 + $0x20] sm:$0xf]
        %v10335 = vld [vmem:[%s8 + $0x24] sm:$0xf]
        %v10336 = vld [vmem:[%s8 + $0x28] sm:$0xf]
        %v10337 = vld [vmem:[%s8 + $0x2c] sm:$0xf]
        %v10338 = vld [vmem:[%s8 + $0x30] sm:$0xf]
        %v10339 = vld [vmem:[%s8 + $0x34] sm:$0xf]
        %v10340 = vld [vmem:[%s8 + $0x38] sm:$0xf]
        %v10341 = vld [vmem:[%s8 + $0x3c] sm:$0xf]
        %v10342 = vld [vmem:[%s8 + $0x40] sm:$0xf]
        %v10343 = vld [vmem:[%s8 + $0x44] sm:$0xf]
        %v10344 = vld [vmem:[%s8 + $0x48] sm:$0xf]
        %v10345 = vld [vmem:[%s8 + $0x4c] sm:$0xf]
        %v10346 = vld [vmem:[%s8 + $0x50] sm:$0xf]
        %v10347 = vld [vmem:[%s8 + $0x54] sm:$0xf]
        %v10348 = vld [vmem:[%s8 + $0x58] sm:$0xf]
        %v10349 = vld [vmem:[%s8 + $0x5c] sm:$0xf]
        %v10350 = vld [vmem:[%s8 + $0x60] sm:$0xf]
        %v10351 = vld [vmem:[%s8 + $0x64] sm:$0xf]
        %v10352 = vld [vmem:[%s8 + $0x68] sm:$0xf]
        %v10353 = vld [vmem:[%s8 + $0x6c] sm:$0xf]
        %v10354 = vld [vmem:[%s8 + $0x70] sm:$0xf]
        %v10355 = vld [vmem:[%s8 + $0x74] sm:$0xf]
        %v10356 = vld [vmem:[%s8 + $0x78] sm:$0xf]
        %v10357 = vld [vmem:[%s8 + $0x7c] sm:$0xf]
        %v10358 = vld [vmem:[%s8 + $0x80] sm:$0xf]
        %v10359 = vld [vmem:[%s8 + $0x84] sm:$0xf]
        %v10360 = vld [vmem:[%s8 + $0x88] sm:$0xf]
        %v10361 = vld [vmem:[%s8 + $0x8c] sm:$0xf]
        %v10362 = vld [vmem:[%s8 + $0x90] sm:$0xf]
        %v10363 = vld [vmem:[%s8 + $0x94] sm:$0xf]
        %v10364 = vld [vmem:[%s8 + $0x98] sm:$0xf]
        %v10365 = vld [vmem:[%s8 + $0x9c] sm:$0xf]
        %v10366 = vld [vmem:[%s8 + $0xa0] sm:$0xf]
        %v10367 = vld [vmem:[%s8 + $0xa4] sm:$0xf]
        %v10368 = vld [vmem:[%s8 + $0xa8] sm:$0xf]
        %v10369 = vld [vmem:[%s8 + $0xac] sm:$0xf]
        %v10370 = vld [vmem:[%s8 + $0xb0] sm:$0xf]
        %v10371 = vld [vmem:[%s8 + $0xb4] sm:$0xf]
        %v10372 = vld [vmem:[%s8 + $0xb8] sm:$0xf]
        %v10373 = vld [vmem:[%s8 + $0xbc] sm:$0xf]
        %v10374 = vld [vmem:[%s8 + $0xc0] sm:$0xf]
        %v10375 = vld [vmem:[%s8 + $0xc4] sm:$0xf]
        %v10376 = vld [vmem:[%s8 + $0xc8] sm:$0xf]
        %v10377 = vld [vmem:[%s8 + $0xcc] sm:$0xf]
        %v10378 = vld [vmem:[%s8 + $0xd0] sm:$0xf]
        %v10379 = vld [vmem:[%s8 + $0xd4] sm:$0xf]
        %v10380 = vld [vmem:[%s8 + $0xd8] sm:$0xf]
        %v10381 = vld [vmem:[%s8 + $0xdc] sm:$0xf]
        %v10382 = vld [vmem:[%s8 + $0xe0] sm:$0xf]
        %v10383 = vld [vmem:[%s8 + $0xe4] sm:$0xf]
        %v10384 = vld [vmem:[%s8 + $0xe8] sm:$0xf]
        %v10385 = vld [vmem:[%s8 + $0xec] sm:$0xf]
        %v10386 = vld [vmem:[%s8 + $0xf0] sm:$0xf]
        %v10387 = vld [vmem:[%s8 + $0xf4] sm:$0xf]
        %v10388 = vld [vmem:[%s8 + $0xf8] sm:$0xf]
        %v10389 = vld [vmem:[%s8 + $0xfc] sm:$0xf]
        %v10390 = vlaneseq
        %v10391 = vshrl.u32 %v10390, 7
        %v10392 = vsub.s32 0, %v10391
        %v10393 = vrot.slane %v355, %v10392
        %v10458 = vunpack.c.l.b16 %v10326
        %v10459 = vunpack.c.l.b16 %v10327
        %v10460 = vunpack.c.l.b16 %v10328
        %v10461 = vunpack.c.l.b16 %v10329
        %v10462 = vunpack.c.l.b16 %v10330
        %v10463 = vunpack.c.l.b16 %v10331
        %v10464 = vunpack.c.l.b16 %v10332
        %v10465 = vunpack.c.l.b16 %v10333
        %v10466 = vunpack.c.l.b16 %v10334
        %v10467 = vunpack.c.l.b16 %v10335
        %v10468 = vunpack.c.l.b16 %v10336
        %v10469 = vunpack.c.l.b16 %v10337
        %v10470 = vunpack.c.l.b16 %v10338
        %v10471 = vunpack.c.l.b16 %v10339
        %v10472 = vunpack.c.l.b16 %v10340
        %v10473 = vunpack.c.l.b16 %v10341
        %v10474 = vunpack.c.l.b16 %v10342
        %v10475 = vunpack.c.l.b16 %v10343
        %v10476 = vunpack.c.l.b16 %v10344
        %v10477 = vunpack.c.l.b16 %v10345
        %v10478 = vunpack.c.l.b16 %v10346
        %v10479 = vunpack.c.l.b16 %v10347
        %v10480 = vunpack.c.l.b16 %v10348
        %v10481 = vunpack.c.l.b16 %v10349
        %v10482 = vunpack.c.l.b16 %v10350
        %v10483 = vunpack.c.l.b16 %v10351
        %v10484 = vunpack.c.l.b16 %v10352
        %v10485 = vunpack.c.l.b16 %v10353
        %v10486 = vunpack.c.l.b16 %v10354
        %v10487 = vunpack.c.l.b16 %v10355
        %v10488 = vunpack.c.l.b16 %v10356
        %v10489 = vunpack.c.l.b16 %v10357
        %v10490 = vunpack.c.l.b16 %v10358
        %v10491 = vunpack.c.l.b16 %v10359
        %v10492 = vunpack.c.l.b16 %v10360
        %v10493 = vunpack.c.l.b16 %v10361
        %v10494 = vunpack.c.l.b16 %v10362
        %v10495 = vunpack.c.l.b16 %v10363
        %v10496 = vunpack.c.l.b16 %v10364
        %v10497 = vunpack.c.l.b16 %v10365
        %v10498 = vunpack.c.l.b16 %v10366
        %v10499 = vunpack.c.l.b16 %v10367
        %v10500 = vunpack.c.l.b16 %v10368
        %v10501 = vunpack.c.l.b16 %v10369
        %v10502 = vunpack.c.l.b16 %v10370
        %v10503 = vunpack.c.l.b16 %v10371
        %v10504 = vunpack.c.l.b16 %v10372
        %v10505 = vunpack.c.l.b16 %v10373
        %v10506 = vunpack.c.l.b16 %v10374
        %v10507 = vunpack.c.l.b16 %v10375
        %v10508 = vunpack.c.l.b16 %v10376
        %v10509 = vunpack.c.l.b16 %v10377
        %v10510 = vunpack.c.l.b16 %v10378
        %v10511 = vunpack.c.l.b16 %v10379
        %v10512 = vunpack.c.l.b16 %v10380
        %v10513 = vunpack.c.l.b16 %v10381
        %v10514 = vunpack.c.l.b16 %v10382
        %v10515 = vunpack.c.l.b16 %v10383
        %v10516 = vunpack.c.l.b16 %v10384
        %v10517 = vunpack.c.l.b16 %v10385
        %v10518 = vunpack.c.l.b16 %v10386
        %v10519 = vunpack.c.l.b16 %v10387
        %v10520 = vunpack.c.l.b16 %v10388
        %v10521 = vunpack.c.l.b16 %v10389
        %v10522 = vpack.c.b16 %v10459, %v10458
        %v10523 = vpack.c.b16 %v10461, %v10460
        %v10524 = vpack.c.b16 %v10463, %v10462
        %v10525 = vpack.c.b16 %v10465, %v10464
        %v10526 = vpack.c.b16 %v10467, %v10466
        %v10527 = vpack.c.b16 %v10469, %v10468
        %v10528 = vpack.c.b16 %v10471, %v10470
        %v10529 = vpack.c.b16 %v10473, %v10472
        %v10530 = vpack.c.b16 %v10475, %v10474
        %v10531 = vpack.c.b16 %v10477, %v10476
        %v10532 = vpack.c.b16 %v10479, %v10478
        %v10533 = vpack.c.b16 %v10481, %v10480
        %v10534 = vpack.c.b16 %v10483, %v10482
        %v10535 = vpack.c.b16 %v10485, %v10484
        %v10536 = vpack.c.b16 %v10487, %v10486
        %v10537 = vpack.c.b16 %v10489, %v10488
        %v10538 = vpack.c.b16 %v10491, %v10490
        %v10539 = vpack.c.b16 %v10493, %v10492
        %v10540 = vpack.c.b16 %v10495, %v10494
        %v10541 = vpack.c.b16 %v10497, %v10496
        %v10542 = vpack.c.b16 %v10499, %v10498
        %v10543 = vpack.c.b16 %v10501, %v10500
        %v10544 = vpack.c.b16 %v10503, %v10502
        %v10545 = vpack.c.b16 %v10505, %v10504
        %v10546 = vpack.c.b16 %v10507, %v10506
        %v10547 = vpack.c.b16 %v10509, %v10508
        %v10548 = vpack.c.b16 %v10511, %v10510
        %v10549 = vpack.c.b16 %v10513, %v10512
        %v10550 = vpack.c.b16 %v10515, %v10514
        %v10551 = vpack.c.b16 %v10517, %v10516
        %v10552 = vpack.c.b16 %v10519, %v10518
        %v10553 = vpack.c.b16 %v10521, %v10520
        %10586 = vmatprep.subr.bf16.mxu0 0
        %10587 = vmatpush1.bf16.msra.mxu0 %v10529
        %10588 = vmatprep.subr.bf16.mxu0 0
        %10589 = vmatpush1.bf16.msra.mxu0 %v10528
        %10590 = vmatprep.subr.bf16.mxu0 0
        %10591 = vmatpush1.bf16.msra.mxu0 %v10527
        %10592 = vmatprep.subr.bf16.mxu0 0
        %10593 = vmatpush1.bf16.msra.mxu0 %v10526
        %10594 = vmatprep.subr.bf16.mxu0 0
        %10595 = vmatpush1.bf16.msra.mxu0 %v10525
        %10596 = vmatprep.subr.bf16.mxu0 0
        %10597 = vmatpush1.bf16.msra.mxu0 %v10524
        %10598 = vmatprep.subr.bf16.mxu0 0
        %10599 = vmatpush1.bf16.msra.mxu0 %v10523
        %10600 = vmatprep.subr.bf16.mxu0 0
        %10601 = vmatpush1.bf16.msra.mxu0 %v10522
        %10602 = vmatprep.subr.bf16.mxu0 0
        %10603 = vmatpush2.bf16.msra.mxu0 %v10537
        %10604 = vmatprep.subr.bf16.mxu0 0
        %10605 = vmatpush2.bf16.msra.mxu0 %v10536
        %10606 = vmatprep.subr.bf16.mxu0 0
        %10607 = vmatpush2.bf16.msra.mxu0 %v10535
        %10608 = vmatprep.subr.bf16.mxu0 0
        %10609 = vmatpush2.bf16.msra.mxu0 %v10534
        %10610 = vmatprep.subr.bf16.mxu0 0
        %10611 = vmatpush2.bf16.msra.mxu0 %v10533
        %10612 = vmatprep.subr.bf16.mxu0 0
        %10613 = vmatpush2.bf16.msra.mxu0 %v10532
        %10614 = vmatprep.subr.bf16.mxu0 0
        %10615 = vmatpush2.bf16.msra.mxu0 %v10531
        %10616 = vmatprep.subr.bf16.mxu0 0
        %10617 = vmatpush2.bf16.msra.mxu0 %v10530
        %10618 = vmatprep.mubr.bf16.mxu0 %v10295
        %10619 = vmatmul.mubr.bf16.gmra.mxu0 %v10294
        %v10620 = vpop.f32.mrf.mxu0
        %v10621 = vadd.f32 %v10393, %v10620
        %v10622 = vpop.f32.mrf.mxu0
        %v10623 = vpop.f32.mrf.mxu0
        %v10624 = vadd.f32 %v10393, %v10623
        %v10625 = vpop.f32.mrf.mxu0
        %10626 = vmatprep.mubr.bf16.mxu0 %v10299
        %10627 = vmatmul.mubr.bf16.gmra.mxu0 %v10298
        %v10628 = vpop.f32.mrf.mxu0
        %v10629 = vadd.f32 %v10393, %v10628
        %v10630 = vpop.f32.mrf.mxu0
        %v10631 = vpop.f32.mrf.mxu0
        %v10632 = vadd.f32 %v10393, %v10631
        %v10633 = vpop.f32.mrf.mxu0
        %10634 = vmatprep.mubr.bf16.mxu0 %v10303
        %10635 = vmatmul.mubr.bf16.gmra.mxu0 %v10302
        %v10636 = vpop.f32.mrf.mxu0
        %v10637 = vadd.f32 %v10393, %v10636
        %v10638 = vpop.f32.mrf.mxu0
        %v10639 = vpop.f32.mrf.mxu0
        %v10640 = vadd.f32 %v10393, %v10639
        %v10641 = vpop.f32.mrf.mxu0
        %10642 = vmatprep.mubr.bf16.mxu0 %v10307
        %10643 = vmatmul.mubr.bf16.gmra.mxu0 %v10306
        %v10644 = vpop.f32.mrf.mxu0
        %v10645 = vadd.f32 %v10393, %v10644
        %v10646 = vpop.f32.mrf.mxu0
        %v10647 = vpop.f32.mrf.mxu0
        %v10648 = vadd.f32 %v10393, %v10647
        %v10649 = vpop.f32.mrf.mxu0
        %10650 = vmatprep.mubr.bf16.mxu0 %v10311
        %10651 = vmatmul.mubr.bf16.gmra.mxu0 %v10310
        %v10652 = vpop.f32.mrf.mxu0
        %v10653 = vadd.f32 %v10393, %v10652
        %v10654 = vpop.f32.mrf.mxu0
        %v10655 = vpop.f32.mrf.mxu0
        %v10656 = vadd.f32 %v10393, %v10655
        %v10657 = vpop.f32.mrf.mxu0
        %10658 = vmatprep.mubr.bf16.mxu0 %v10315
        %10659 = vmatmul.mubr.bf16.gmra.mxu0 %v10314
        %v10660 = vpop.f32.mrf.mxu0
        %v10661 = vadd.f32 %v10393, %v10660
        %v10662 = vpop.f32.mrf.mxu0
        %v10663 = vpop.f32.mrf.mxu0
        %v10664 = vadd.f32 %v10393, %v10663
        %v10665 = vpop.f32.mrf.mxu0
        %10666 = vmatprep.mubr.bf16.mxu0 %v10319
        %10667 = vmatmul.mubr.bf16.gmra.mxu0 %v10318
        %v10668 = vpop.f32.mrf.mxu0
        %v10669 = vadd.f32 %v10393, %v10668
        %v10670 = vpop.f32.mrf.mxu0
        %v10671 = vpop.f32.mrf.mxu0
        %v10672 = vadd.f32 %v10393, %v10671
        %v10673 = vpop.f32.mrf.mxu0
        %10674 = vmatprep.mubr.bf16.mxu0 %v10323
        %10675 = vmatmul.mubr.bf16.gmra.mxu0 %v10322
        %v10676 = vpop.f32.mrf.mxu0
        %v10677 = vadd.f32 %v10393, %v10676
        %v10678 = vpop.f32.mrf.mxu0
        %v10679 = vpop.f32.mrf.mxu0
        %v10680 = vadd.f32 %v10393, %v10679
        %v10681 = vpop.f32.mrf.mxu0
        %10682 = vdwg.mxu0
        %10683 = vmatprep.subr.bf16.mxu0 0
        %10684 = vmatpush1.bf16.msra.mxu0 %v10545
        %10685 = vmatprep.subr.bf16.mxu0 0
        %10686 = vmatpush1.bf16.msra.mxu0 %v10544
        %10687 = vmatprep.subr.bf16.mxu0 0
        %10688 = vmatpush1.bf16.msra.mxu0 %v10543
        %10689 = vmatprep.subr.bf16.mxu0 0
        %10690 = vmatpush1.bf16.msra.mxu0 %v10542
        %10691 = vmatprep.subr.bf16.mxu0 0
        %10692 = vmatpush1.bf16.msra.mxu0 %v10541
        %10693 = vmatprep.subr.bf16.mxu0 0
        %10694 = vmatpush1.bf16.msra.mxu0 %v10540
        %10695 = vmatprep.subr.bf16.mxu0 0
        %10696 = vmatpush1.bf16.msra.mxu0 %v10539
        %10697 = vmatprep.subr.bf16.mxu0 0
        %10698 = vmatpush1.bf16.msra.mxu0 %v10538
        %10699 = vmatprep.subr.bf16.mxu0 0
        %10700 = vmatpush2.bf16.msra.mxu0 %v10553
        %10701 = vmatprep.subr.bf16.mxu0 0
        %10702 = vmatpush2.bf16.msra.mxu0 %v10552
        %10703 = vmatprep.subr.bf16.mxu0 0
        %10704 = vmatpush2.bf16.msra.mxu0 %v10551
        %10705 = vmatprep.subr.bf16.mxu0 0
        %10706 = vmatpush2.bf16.msra.mxu0 %v10550
        %10707 = vmatprep.subr.bf16.mxu0 0
        %10708 = vmatpush2.bf16.msra.mxu0 %v10549
        %10709 = vmatprep.subr.bf16.mxu0 0
        %10710 = vmatpush2.bf16.msra.mxu0 %v10548
        %10711 = vmatprep.subr.bf16.mxu0 0
        %10712 = vmatpush2.bf16.msra.mxu0 %v10547
        %10713 = vmatprep.subr.bf16.mxu0 0
        %10714 = vmatpush2.bf16.msra.mxu0 %v10546
        %10715 = vmatprep.mubr.bf16.mxu0 %v10297
        %10716 = vmatmul.mubr.bf16.gmra.mxu0 %v10296
        %v10717 = vpop.f32.mrf.mxu0
        %v10718 = vadd.f32 %v10621, %v10717
        %v10719 = vpop.f32.mrf.mxu0
        %v10720 = vpop.f32.mrf.mxu0
        %v10721 = vadd.f32 %v10624, %v10720
        %v10722 = vpop.f32.mrf.mxu0
        %10723 = vmatprep.mubr.bf16.mxu0 %v10301
        %10724 = vmatmul.mubr.bf16.gmra.mxu0 %v10300
        %v10725 = vpop.f32.mrf.mxu0
        %v10726 = vadd.f32 %v10629, %v10725
        %v10727 = vpop.f32.mrf.mxu0
        %v10728 = vpop.f32.mrf.mxu0
        %v10729 = vadd.f32 %v10632, %v10728
        %v10730 = vpop.f32.mrf.mxu0
        %10731 = vmatprep.mubr.bf16.mxu0 %v10305
        %10732 = vmatmul.mubr.bf16.gmra.mxu0 %v10304
        %v10733 = vpop.f32.mrf.mxu0
        %v10734 = vadd.f32 %v10637, %v10733
        %v10735 = vpop.f32.mrf.mxu0
        %v10736 = vpop.f32.mrf.mxu0
        %v10737 = vadd.f32 %v10640, %v10736
        %v10738 = vpop.f32.mrf.mxu0
        %10739 = vmatprep.mubr.bf16.mxu0 %v10309
        %10740 = vmatmul.mubr.bf16.gmra.mxu0 %v10308
        %v10741 = vpop.f32.mrf.mxu0
        %v10742 = vadd.f32 %v10645, %v10741
        %v10743 = vpop.f32.mrf.mxu0
        %v10744 = vpop.f32.mrf.mxu0
        %v10745 = vadd.f32 %v10648, %v10744
        %v10746 = vpop.f32.mrf.mxu0
        %10747 = vmatprep.mubr.bf16.mxu0 %v10313
        %10748 = vmatmul.mubr.bf16.gmra.mxu0 %v10312
        %v10749 = vpop.f32.mrf.mxu0
        %v10750 = vadd.f32 %v10653, %v10749
        %v10751 = vpop.f32.mrf.mxu0
        %v10752 = vpop.f32.mrf.mxu0
        %v10753 = vadd.f32 %v10656, %v10752
        %v10754 = vpop.f32.mrf.mxu0
        %10755 = vmatprep.mubr.bf16.mxu0 %v10317
        %10756 = vmatmul.mubr.bf16.gmra.mxu0 %v10316
        %v10757 = vpop.f32.mrf.mxu0
        %v10758 = vadd.f32 %v10661, %v10757
        %v10759 = vpop.f32.mrf.mxu0
        %v10760 = vpop.f32.mrf.mxu0
        %v10761 = vadd.f32 %v10664, %v10760
        %v10762 = vpop.f32.mrf.mxu0
        %10763 = vmatprep.mubr.bf16.mxu0 %v10321
        %10764 = vmatmul.mubr.bf16.gmra.mxu0 %v10320
        %v10765 = vpop.f32.mrf.mxu0
        %v10766 = vadd.f32 %v10669, %v10765
        %v10767 = vpop.f32.mrf.mxu0
        %v10768 = vpop.f32.mrf.mxu0
        %v10769 = vadd.f32 %v10672, %v10768
        %v10770 = vpop.f32.mrf.mxu0
        %10771 = vmatprep.mubr.bf16.mxu0 %v10325
        %10772 = vmatmul.mubr.bf16.gmra.mxu0 %v10324
        %v10773 = vpop.f32.mrf.mxu0
        %v10774 = vadd.f32 %v10677, %v10773
        %v10775 = vpop.f32.mrf.mxu0
        %v10776 = vpop.f32.mrf.mxu0
        %v10777 = vadd.f32 %v10680, %v10776
        %v10778 = vpop.f32.mrf.mxu0
        %10779 = vdwg.mxu0
        %v10780 = vlaneseq
        %v10781 = vshrl.u32 %v10780, 7
        %v10782 = vsub.s32 0, %v10781
        %v10783 = vrot.slane %v353, %v10782
        %v10784 = vmul.f32 %v10783, %v10718
        %v10785 = vmul.f32 %v10783, %v10721
        %v10786 = vmul.f32 %v10783, %v10726
        %v10787 = vmul.f32 %v10783, %v10729
        %v10788 = vmul.f32 %v10783, %v10734
        %v10789 = vmul.f32 %v10783, %v10737
        %v10790 = vmul.f32 %v10783, %v10742
        %v10791 = vmul.f32 %v10783, %v10745
        %v10792 = vmul.f32 %v10783, %v10750
        %v10793 = vmul.f32 %v10783, %v10753
        %v10794 = vmul.f32 %v10783, %v10758
        %v10795 = vmul.f32 %v10783, %v10761
        %v10796 = vmul.f32 %v10783, %v10766
        %v10797 = vmul.f32 %v10783, %v10769
        %v10798 = vmul.f32 %v10783, %v10774
        %v10799 = vmul.f32 %v10783, %v10777
        %v10800 = vadd.f32 %v9038, %v10784
        %v10801 = vadd.f32 %v9039, %v10785
        %v10802 = vadd.f32 %v9040, %v10786
        %v10803 = vadd.f32 %v9041, %v10787
        %v10804 = vadd.f32 %v9042, %v10788
        %v10805 = vadd.f32 %v9043, %v10789
        %v10806 = vadd.f32 %v9044, %v10790
        %v10807 = vadd.f32 %v9045, %v10791
        %v10808 = vadd.f32 %v9046, %v10792
        %v10809 = vadd.f32 %v9047, %v10793
        %v10810 = vadd.f32 %v9048, %v10794
        %v10811 = vadd.f32 %v9049, %v10795
        %v10812 = vadd.f32 %v9050, %v10796
        %v10813 = vadd.f32 %v9051, %v10797
        %v10814 = vadd.f32 %v9052, %v10798
        %v10815 = vadd.f32 %v9053, %v10799
        %10816 = vst [vmem:[%s325] sm:$0xff] %v10800
        %10817 = vst [vmem:[%s325 + $0x8] sm:$0xff] %v10801
        %10818 = vst [vmem:[%s325 + $0x10] sm:$0xff] %v10802
        %10819 = vst [vmem:[%s325 + $0x18] sm:$0xff] %v10803
        %10820 = vst [vmem:[%s325 + $0x20] sm:$0xff] %v10804
        %10821 = vst [vmem:[%s325 + $0x28] sm:$0xff] %v10805
        %10822 = vst [vmem:[%s325 + $0x30] sm:$0xff] %v10806
        %10823 = vst [vmem:[%s325 + $0x38] sm:$0xff] %v10807
        %10824 = vst [vmem:[%s325 + $0x40] sm:$0xff] %v10808
        %10825 = vst [vmem:[%s325 + $0x48] sm:$0xff] %v10809
        %10826 = vst [vmem:[%s325 + $0x50] sm:$0xff] %v10810
        %10827 = vst [vmem:[%s325 + $0x58] sm:$0xff] %v10811
        %10828 = vst [vmem:[%s325 + $0x60] sm:$0xff] %v10812
        %10829 = vst [vmem:[%s325 + $0x68] sm:$0xff] %v10813
        %10830 = vst [vmem:[%s325 + $0x70] sm:$0xff] %v10814
        %10831 = vst [vmem:[%s325 + $0x78] sm:$0xff] %v10815
        %s10832 = sand.u32 %s225, 1
        %s10833 = scalar_lea.sflag [#allocation3], %s10832
        %s10834 = sand.u32 %s225, 1
        %s10835 = smul.addr %s10834, 128
        %s10836 = scalar_lea.vmem [#allocation2], %s10835
        // Predicated region
        $region57: #{tpu_custom_call.1} parent=55 // pred_check
          %p10837 = pneg %p235
        $region58: #{tpu_custom_call.1} parent=55 // pred_check_branch
          %10839 = sbr.rel (%p10837) target = $region60
        $region59: #{tpu_custom_call.1} parent=55 // pred_region
          %s10841 = ssub.s32 2048, 2048
          %10842 = vsyncadd %s10833, %s10841
          %s10843 = smul.addr %s23, 16
          %s10844 = smul.addr %s10843, 128
          %s10845 = scalar_lea.hbm %s9, %s10844
          %s10846 = sshll.u32 %s10836, 4
          %s10847 = int_to_ptr.vmem [resolvable:$true] %s10846
          %10852 = dma.vmem_to_hbm [thread:$0]  %s10847, 2048, %s10845, %s10833, 128, 128, 8
        $region60: #{tpu_custom_call.1} parent=55 // pred_fallthru
          _
      $region56: #{tpu_custom_call.1} parent=5 // pred_fallthru
        _
      %p10853 = scmp.le.s32.totalorder 2, %s18
      // Predicated region
      $region61: #{tpu_custom_call.1} parent=5 // pred_check
        %p10854 = pneg %p10853
      $region62: #{tpu_custom_call.1} parent=5 // pred_check_branch
        %10856 = sbr.rel (%p10854) target = $region64
      $region63: #{tpu_custom_call.1} parent=5 // pred_region
        %s10857 = ssub.s32 %s18, 2
        // Predicated region
        $region65: #{tpu_custom_call.1} parent=63 // pred_check
          %p10858 = pneg %p241
        $region66: #{tpu_custom_call.1} parent=63 // pred_check_branch
          %10860 = sbr.rel (%p10858) target = $region68
        $region67: #{tpu_custom_call.1} parent=63 // pred_region
          %s10861 = sand.u32 %s226, 1
          %s10862 = scalar_lea.sflag [#allocation3], %s10861
          %s10863 = sand.u32 %s226, 1
          %s10864 = smul.addr %s10863, 128
          %s10865 = scalar_lea.vmem [#allocation2], %s10864
          %10866 = dma.done %s10862, 2048
        $region68: #{tpu_custom_call.1} parent=63 // pred_fallthru
          _
      $region64: #{tpu_custom_call.1} parent=5 // pred_fallthru
        _
    $region6: #{tpu_custom_call.1} parent=1 // loop_footer
      %s22 = sadd.s32 1, %s18
    $region7: #{tpu_custom_call.1} parent=1 // loop_footer_branch
      %17 = sbr.rel target = $region3
    $region8: #{tpu_custom_call.1} parent=1 // loop_exit
      _
    %10867 = vsyncpa [#allocation3], 1
    %s10868 = scalar_lea.sflag [#allocation3], 1
    %10869 = vsyncpa %s10868, 1

</llo_original>
